<compile_context>
chip_gen: v7x
topology: tpu7x:2x2x1
jax: 0.10.0
libtpu: 0.0.40
codegen_flags: <defaults>
</compile_context>

<pallas_src>
import jax
import jax.numpy as jnp
from jax import lax
from jax.experimental import pallas as pl
from jax.experimental.pallas import tpu as pltpu


BB = 8          # batch block (sublane-full);   on v7x prefer B >= 2*BB so both TCs get work
HALO = 8        # sublane-aligned conv halo


def _nbytes(x):
    return int(x.size) * x.dtype.itemsize


def _vmem_limit(block_bytes, const_bytes, scratch_bytes):
    # Sized scoped-VMEM request: double-buffered IO blocks + (conservatively
    # double-buffered) constants + scratch + headroom, capped at 48 MiB so the
    # kernel stays launchable on v7x (64 MiB physical VMEM).
    need = 2 * block_bytes + 2 * const_bytes + scratch_bytes
    return int(min(max(need + need // 2 + (2 << 20), 4 << 20), 48 << 20))


# ---------------------------------------------------------------------------
# Kernel 1: fused conv bank
#   nconv x [Conv1d(K, stride 1, 'same') + BatchNorm1d(eval) + ReLU]
#   time-major (T, B, C), BB batch rows per grid step, bf16 intermediates in
#   VMEM, im2col tap fusion for small C_in, sublane-aligned halo.
# ---------------------------------------------------------------------------
def make_conv_bank_kernel(nconv, T, K, flags, layer_slab):
    pad = (K - 1) // 2
    a0 = HALO - pad                     # first tap's source row (k == pad is aligned)

    def kernel(*refs):
        x_ref = refs[0]                                 # (T, BB, C_in0) f32
        o_ref = refs[1 + 3 * nconv]                     # (T, BB, C)     f32
        scratch = refs[2 + 3 * nconv:]
        buf_in, buf_a, buf_b = scratch[0:3]             # bf16 halo'd ping-pong bufs
        slabs = scratch[3:]                             # bf16 im2col slabs

        # Zero the halo rows once per grid step.  Interiors are fully rewritten
        # for every batch row, so halos stay zero; do NOT guard this on
        # program_id -- on v7x megacore each TensorCore has its own scratch.
        for buf in (buf_in, buf_a, buf_b):
            cb = buf.shape[1]
            buf[0:HALO, :] = jnp.zeros((HALO, cb), jnp.bfloat16)
            buf[T + HALO:T + 2 * HALO, :] = jnp.zeros((HALO, cb), jnp.bfloat16)

        for r in range(BB):                             # static per-row loop
            buf_in[HALO:HALO + T, :] = x_ref[:, r, :].astype(jnp.bfloat16)
            src = buf_in
            for l in range(nconv):
                w_ref = refs[1 + 3 * l]                 # (K*C_in, C_out) bf16
                sc_ref = refs[2 + 3 * l]                # (1, C_out) f32  BN scale
                sh_ref = refs[3 + 3 * l]                # (1, C_out) f32  BN shift (+conv bias)
                c_in = src.shape[1]
                c_out = w_ref.shape[1]
                if flags[l]:
                    # im2col: one dot of contraction depth K*C_in (small-C case)
                    slab = slabs[layer_slab[l]]
                    for k in range(K):
                        slab[:, k * c_in:(k + 1) * c_in] = src[a0 + k:a0 + k + T, :]
                    acc = jnp.dot(slab[...], w_ref[...],
                                  preferred_element_type=jnp.float32)
                else:
                    # large C_in: per-tap dots already saturate the MXU depth
                    acc = jnp.zeros((T, c_out), jnp.float32)
                    for k in range(K):
                        acc = acc + jnp.dot(src[a0 + k:a0 + k + T, :],
                                            w_ref[k * c_in:(k + 1) * c_in, :],
                                            preferred_element_type=jnp.float32)
                # folded conv-bias + BatchNorm (eval) + ReLU; dropout(eval) = id
                y = jnp.maximum(acc * sc_ref[...] + sh_ref[...], 0.0)
                if l == nconv - 1:
                    o_ref[:, r, :] = y                  # f32 time-major output
                else:
                    dst = buf_a if (l % 2 == 0) else buf_b
                    dst[HALO:HALO + T, :] = y.astype(jnp.bfloat16)
                    src = dst

    return kernel


def conv_bank(x_tbc, conv_params, K):
    # x_tbc: (T, B_pad, C_in0) f32, time-major, batch already padded to BB.
    # TODO(synk): time-tile with a halo for very long T on v7x (64 MiB VMEM).
    T, B_pad, C_in0 = x_tbc.shape
    nconv = len(conv_params)
    C = conv_params[0][0].shape[1]
    T_h = T + 2 * HALO

    cins = [C_in0] + [C] * (nconv - 1)
    flags = tuple(ci < 128 for ci in cins)              # im2col only for small C_in
    layer_slab, slab_shapes, width_idx = [], [], {}
    for ci, f in zip(cins, flags):
        if not f:
            layer_slab.append(-1)
            continue
        wd = K * ci
        if wd not in width_idx:
            width_idx[wd] = len(slab_shapes)
            slab_shapes.append(pltpu.VMEM((T, wd), jnp.bfloat16))
        layer_slab.append(width_idx[wd])
    layer_slab = tuple(layer_slab)

    def wspec(shape):
        n = len(shape)
        return pl.BlockSpec(shape, lambda b, _n=n: (0,) * _n)

    in_specs = [pl.BlockSpec((T, BB, C_in0), lambda b: (0, b, 0))]
    flat = [x_tbc]
    const_bytes = 0
    for (w, sc, sh) in conv_params:
        in_specs += [wspec(w.shape), wspec(sc.shape), wspec(sh.shape)]
        flat += [w, sc, sh]
        const_bytes += _nbytes(w) + _nbytes(sc) + _nbytes(sh)

    scratch = [pltpu.VMEM((T_h, C_in0), jnp.bfloat16),
               pltpu.VMEM((T_h, C), jnp.bfloat16),
               pltpu.VMEM((T_h, C), jnp.bfloat16)] + slab_shapes
    scratch_bytes = 2 * (T_h * C_in0 + 2 * T_h * C) // 1 * 1  # bf16 bufs
    scratch_bytes = (T_h * C_in0 + 2 * T_h * C) * 2 + sum(T * wd * 2 for wd in width_idx)
    block_bytes = (T * BB * C_in0 + T * BB * C) * 4

    return pl.pallas_call(
        make_conv_bank_kernel(nconv, T, K, flags, layer_slab),
        out_shape=jax.ShapeDtypeStruct((T, B_pad, C), jnp.float32),
        grid=(B_pad // BB,),
        in_specs=in_specs,
        out_specs=pl.BlockSpec((T, BB, C), lambda b: (0, b, 0)),
        scratch_shapes=scratch,
        compiler_params=pltpu.CompilerParams(
            dimension_semantics=("parallel",),
            vmem_limit_bytes=_vmem_limit(block_bytes, const_bytes, scratch_bytes)),
    )(*flat)


# ---------------------------------------------------------------------------
# Kernel 2: bidirectional GRU (length-masked) + fused 1x1-conv skip connection
#   batch-blocked (BB rows per grid step), time-major, hoisted input+skip
#   projection in one matmul, no per-step output RMW.
# ---------------------------------------------------------------------------
def make_bigru_skip_kernel(T, H, C):
    def kernel(lens_ref, x_ref, wall_ref, ball_ref,
               whf_ref, bhf_ref, whb_ref, bhb_ref,
               o_ref, proj_ref, hf_ref, hb_ref):
        # lens_ref: (BB, 1) int32 valid lengths
        # x_ref:    (BB-block of conv output) (T, BB, C) f32, time-major
        # wall_ref: (C, 6H + C) bf16  [fwd r,z,n | bwd r,z,n | skip 1x1 conv]
        # ball_ref: (1, 6H + C) f32   matching biases
        # wh*_ref:  (H, 3H) bf16, bh*_ref: (1, 3H) f32 (per direction)
        # o_ref:    (T, BB, C) f32;  [..., :H]=fwd GRU, [..., H:]=bwd GRU, +skip
        # proj_ref: (T, BB, 6H + C) f32 scratch (hoisted projections + skip)
        # hf_ref / hb_ref: (T, BB, H) f32 scratch (masked per-step hidden states)
        lens = lens_ref[...]                                     # (BB, 1) int32

        # Hoisted projection: all 6 gates of both directions AND the 1x1-conv
        # skip in ONE (T*BB, C) @ (C, 6H+C) matmul (single pass over x).
        x2d = x_ref[...].astype(jnp.bfloat16).reshape(T * BB, C)
        proj = jnp.dot(x2d, wall_ref[...],
                       preferred_element_type=jnp.float32) + ball_ref[...]
        proj_ref[...] = proj.reshape(T, BB, 6 * H + C)

        whf = whf_ref[...]
        whb = whb_ref[...]
        bhf = bhf_ref[...]
        bhb = bhb_ref[...]

        def gru_step(g_in, h, wh, bh):
            # PyTorch GRU cell, gate order [r, z, n]; one (BB,H)@(H,3H) MXU dot.
            hh = jnp.dot(h.astype(jnp.bfloat16), wh,
                         preferred_element_type=jnp.float32) + bh   # (BB, 3H)
            r = jax.nn.sigmoid(g_in[:, 0:H] + hh[:, 0:H])
            z = jax.nn.sigmoid(g_in[:, H:2 * H] + hh[:, H:2 * H])
            n = jnp.tanh(g_in[:, 2 * H:3 * H] + r * hh[:, 2 * H:3 * H])
            return (1.0 - z) * n + z * h

        # TODO(synk): for H < 128 the gate slices are not lane-aligned; pad the
        # gate layout to 128-lane multiples for production configs if needed.
        def body(t, carry):
            h_f, h_b = carry
            # ---- forward direction, timestep t ----
            g_f = proj_ref[pl.ds(t, 1), :, 0:3 * H].reshape(BB, 3 * H)
            hf_new = gru_step(g_f, h_f, whf, bhf)
            m_f = t < lens                                       # (BB, 1) per-row mask
            h_f = jnp.where(m_f, hf_new, h_f)                    # freeze past length
            hf_ref[pl.ds(t, 1), :, :] = jnp.where(m_f, hf_new, 0.0).reshape(1, BB, H)
            # ---- backward direction, timestep T-1-t (independent -> interleaves) ----
            tb = T - 1 - t
            g_b = proj_ref[pl.ds(tb, 1), :, 3 * H:6 * H].reshape(BB, 3 * H)
            hb_new = gru_step(g_b, h_b, whb, bhb)
            m_b = tb < lens
            h_b = jnp.where(m_b, hb_new, h_b)
            hb_ref[pl.ds(tb, 1), :, :] = jnp.where(m_b, hb_new, 0.0).reshape(1, BB, H)
            return h_f, h_b

        h0 = jnp.zeros((BB, H), jnp.float32)
        lax.fori_loop(0, T, body, (h0, h0), unroll=2)

        # Single lane-dense output store: skip (all timesteps) + masked GRU states.
        hid = jnp.concatenate([hf_ref[...], hb_ref[...]], axis=-1)   # (T, BB, 2H)
        o_ref[...] = proj_ref[:, :, 6 * H:6 * H + C] + hid

    return kernel


def bigru_with_skip(x_tbc, lens, gru_params):
    # x_tbc: (T, B_pad, C) f32 time-major; lens: (B_pad,) int32.
    T, B_pad, C = x_tbc.shape
    H = C // 2
    w_all, b_all, wh_f, bh_f, wh_b, bh_b = gru_params
    lens2d = lens.reshape(B_pad, 1).astype(jnp.int32)

    def wspec(shape):
        n = len(shape)
        return pl.BlockSpec(shape, lambda b, _n=n: (0,) * _n)

    in_specs = [pl.BlockSpec((BB, 1), lambda b: (b, 0)),
                pl.BlockSpec((T, BB, C), lambda b: (0, b, 0)),
                wspec(w_all.shape), wspec(b_all.shape),
                wspec(wh_f.shape), wspec(bh_f.shape),
                wspec(wh_b.shape), wspec(bh_b.shape)]
    scratch = [pltpu.VMEM((T, BB, 6 * H + C), jnp.float32),
               pltpu.VMEM((T, BB, H), jnp.float32),
               pltpu.VMEM((T, BB, H), jnp.float32)]

    block_bytes = BB * 4 + 2 * T * BB * C * 4
    const_bytes = sum(_nbytes(a) for a in (w_all, b_all, wh_f, bh_f, wh_b, bh_b))
    scratch_bytes = (T * BB * (6 * H + C) + 2 * T * BB * H) * 4

    return pl.pallas_call(
        make_bigru_skip_kernel(T, H, C),
        out_shape=jax.ShapeDtypeStruct((T, B_pad, C), jnp.float32),
        grid=(B_pad // BB,),
        in_specs=in_specs,
        out_specs=pl.BlockSpec((T, BB, C), lambda b: (0, b, 0)),
        scratch_shapes=scratch,
        compiler_params=pltpu.CompilerParams(
            dimension_semantics=("parallel",),
            vmem_limit_bytes=_vmem_limit(block_bytes, const_bytes, scratch_bytes)),
    )(lens2d, x_tbc, w_all, b_all, wh_f, bh_f, wh_b, bh_b)


# ---------------------------------------------------------------------------
# Parameter init (deterministic, synthetic, kernel-friendly layouts, bf16
# pre-cast weights, conv bias folded into the BN shift) and the forward pass.
# ---------------------------------------------------------------------------
def init_params(key, hp):
    C_sym = hp["symbols_embedding_dim"]
    C = hp["encoder_embedding_dim"]
    K = hp["encoder_kernel_size"]
    H = C // 2
    nconv = hp["encoder_n_convolutions"]
    eps = 1e-5
    keys = iter(jax.random.split(key, 4 * nconv + 12))

    convs = []
    for i in range(nconv):
        cin = C if i else C_sym
        w = 0.1 * jax.random.normal(next(keys), (K, cin, C), jnp.float32)
        b = 0.1 * jax.random.normal(next(keys), (1, C), jnp.float32)
        gamma = 1.0 + 0.1 * jax.random.normal(next(keys), (1, C), jnp.float32)
        beta = 0.1 * jax.random.normal(next(keys), (1, C), jnp.float32)
        running_mean = jnp.zeros((1, C), jnp.float32)   # eval-mode running stats
        running_var = jnp.ones((1, C), jnp.float32)
        scale = gamma / jnp.sqrt(running_var + eps)                 # BN fold
        shift = beta - running_mean * scale + b * scale             # + conv bias fold
        w_flat = w.reshape(K * cin, C).astype(jnp.bfloat16)         # tap-major rows
        convs.append((w_flat, scale, shift))

    # GRU weights, transposed & gate-concatenated: [r, z, n] per direction,
    # with the 1x1-conv skip weight appended (single hoisted matmul in-kernel).
    wi_f = 0.1 * jax.random.normal(next(keys), (C, 3 * H), jnp.float32)
    wi_b = 0.1 * jax.random.normal(next(keys), (C, 3 * H), jnp.float32)
    wskip = 0.1 * jax.random.normal(next(keys), (C, C), jnp.float32)
    bi_f = 0.1 * jax.random.normal(next(keys), (1, 3 * H), jnp.float32)
    bi_b = 0.1 * jax.random.normal(next(keys), (1, 3 * H), jnp.float32)
    bskip = 0.1 * jax.random.normal(next(keys), (1, C), jnp.float32)
    w_all = jnp.concatenate([wi_f, wi_b, wskip], axis=1).astype(jnp.bfloat16)
    b_all = jnp.concatenate([bi_f, bi_b, bskip], axis=1)
    wh_f = (0.1 * jax.random.normal(next(keys), (H, 3 * H), jnp.float32)).astype(jnp.bfloat16)
    bh_f = 0.1 * jax.random.normal(next(keys), (1, 3 * H), jnp.float32)
    wh_b = (0.1 * jax.random.normal(next(keys), (H, 3 * H), jnp.float32)).astype(jnp.bfloat16)
    bh_b = 0.1 * jax.random.normal(next(keys), (1, 3 * H), jnp.float32)

    return dict(convs=convs, gru=(w_all, b_all, wh_f, bh_f, wh_b, bh_b))


def encoder_forward(x, input_lengths, params, hp):
    # x: (B, symbols_embedding_dim, T) — the module's input contract.
    # Switch once to time-major (T, B, C); both kernels stay in that layout
    # (contiguous per-timestep GRU loads), one cheap transpose back at the end.
    # TODO(synk): fuse conv bank + GRU into one pallas_call to also drop the
    # (T, B, C) HBM intermediate (most valuable on v5e's HBM bandwidth).
    B = x.shape[0]
    B_pad = ((B + BB - 1) // BB) * BB
    x_tbc = jnp.transpose(x, (2, 0, 1))                   # (T, B, C_sym)
    lens = input_lengths.astype(jnp.int32)
    if B_pad != B:
        x_tbc = jnp.pad(x_tbc, ((0, 0), (0, B_pad - B), (0, 0)))
        lens = jnp.pad(lens, (0, B_pad - B))              # padded rows: length 0
    y = conv_bank(x_tbc, params["convs"], hp["encoder_kernel_size"])
    out_tbc = bigru_with_skip(y, lens, params["gru"])
    return jnp.transpose(out_tbc, (1, 0, 2))[:B]          # (B, T, C)


if __name__ == "__main__":
    hp = dict(symbols_embedding_dim=32,
              encoder_embedding_dim=32,
              encoder_n_convolutions=3,
              encoder_kernel_size=5,
              skip_rnn=True)
    B, T = 2, 16
    key = jax.random.PRNGKey(0)
    k_x, k_p = jax.random.split(key)
    x = jax.random.normal(k_x, (B, hp["symbols_embedding_dim"], T), jnp.float32)
    input_lengths = jnp.array([16, 11], jnp.int32)   # sorted desc (pack_padded contract)
    params = init_params(k_p, hp)

    out = encoder_forward(x, input_lengths, params, hp)
    out = jax.block_until_ready(out)
    assert out.shape == (B, T, hp["encoder_embedding_dim"])
    assert bool(jnp.all(jnp.isfinite(out)))
    print("KERNEL_OK")
</pallas_src>

<mosaic_0001>
module attributes {stable_mosaic.version = 11 : i64} {
  func.func @kernel(%arg0: i32, %arg1: memref<16x8x32xf32, #tpu.memory_space<vmem>>, %arg2: memref<160x32xbf16, #tpu.memory_space<vmem>>, %arg3: memref<1x32xf32, #tpu.memory_space<vmem>>, %arg4: memref<1x32xf32, #tpu.memory_space<vmem>>, %arg5: memref<160x32xbf16, #tpu.memory_space<vmem>>, %arg6: memref<1x32xf32, #tpu.memory_space<vmem>>, %arg7: memref<1x32xf32, #tpu.memory_space<vmem>>, %arg8: memref<160x32xbf16, #tpu.memory_space<vmem>>, %arg9: memref<1x32xf32, #tpu.memory_space<vmem>>, %arg10: memref<1x32xf32, #tpu.memory_space<vmem>>, %arg11: memref<16x8x32xf32, #tpu.memory_space<vmem>>, %arg12: memref<32x32xbf16, #tpu.memory_space<vmem>>, %arg13: memref<32x32xbf16, #tpu.memory_space<vmem>>, %arg14: memref<32x32xbf16, #tpu.memory_space<vmem>>, %arg15: memref<16x160xbf16, #tpu.memory_space<vmem>>) attributes {dimension_semantics = [#tpu.dimension_semantics<parallel>], iteration_bounds = array<i64: 1>, scalar_prefetch = 0 : i64, scratch_operands = 4 : i64, tpu.core_type = #tpu.core_type<tc>, window_params = [{transform_indices = @transform_0, window_bounds = array<i64: 16, 8, 32>}, {pipeline_mode = #tpu.pipeline_mode<synchronous>, transform_indices = @transform_1, window_bounds = array<i64: 160, 32>}, {pipeline_mode = #tpu.pipeline_mode<synchronous>, transform_indices = @transform_2, window_bounds = array<i64: 1, 32>}, {pipeline_mode = #tpu.pipeline_mode<synchronous>, transform_indices = @transform_3, window_bounds = array<i64: 1, 32>}, {pipeline_mode = #tpu.pipeline_mode<synchronous>, transform_indices = @transform_4, window_bounds = array<i64: 160, 32>}, {pipeline_mode = #tpu.pipeline_mode<synchronous>, transform_indices = @transform_5, window_bounds = array<i64: 1, 32>}, {pipeline_mode = #tpu.pipeline_mode<synchronous>, transform_indices = @transform_6, window_bounds = array<i64: 1, 32>}, {pipeline_mode = #tpu.pipeline_mode<synchronous>, transform_indices = @transform_7, window_bounds = array<i64: 160, 32>}, {pipeline_mode = #tpu.pipeline_mode<synchronous>, transform_indices = @transform_8, window_bounds = array<i64: 1, 32>}, {pipeline_mode = #tpu.pipeline_mode<synchronous>, transform_indices = @transform_9, window_bounds = array<i64: 1, 32>}, {transform_indices = @transform_10, window_bounds = array<i64: 16, 8, 32>}]} {
    %cst = arith.constant 0.000000e+00 : bf16
    %0 = vector.broadcast %cst : bf16 to vector<8x32xbf16>
    %c0 = arith.constant 0 : index
    %c0_0 = arith.constant 0 : index
    %1 = vector.load %arg12[%c0, %c0_0] : memref<32x32xbf16, #tpu.memory_space<vmem>>, vector<8x32xbf16>
    tpu.vector_store %arg12[%c0, %c0_0], %0 {strides = array<i32>} : memref<32x32xbf16, #tpu.memory_space<vmem>>, vector<8x32xbf16>,
    %cst_1 = arith.constant 0.000000e+00 : bf16
    %2 = vector.broadcast %cst_1 : bf16 to vector<8x32xbf16>
    %c24 = arith.constant 24 : index
    %c0_2 = arith.constant 0 : index
    %3 = vector.load %arg12[%c24, %c0_2] : memref<32x32xbf16, #tpu.memory_space<vmem>>, vector<8x32xbf16>
    tpu.vector_store %arg12[%c24, %c0_2], %2 {strides = array<i32>} : memref<32x32xbf16, #tpu.memory_space<vmem>>, vector<8x32xbf16>,
    %cst_3 = arith.constant 0.000000e+00 : bf16
    %4 = vector.broadcast %cst_3 : bf16 to vector<8x32xbf16>
    %c0_4 = arith.constant 0 : index
    %c0_5 = arith.constant 0 : index
    %5 = vector.load %arg13[%c0_4, %c0_5] : memref<32x32xbf16, #tpu.memory_space<vmem>>, vector<8x32xbf16>
    tpu.vector_store %arg13[%c0_4, %c0_5], %4 {strides = array<i32>} : memref<32x32xbf16, #tpu.memory_space<vmem>>, vector<8x32xbf16>,
    %cst_6 = arith.constant 0.000000e+00 : bf16
    %6 = vector.broadcast %cst_6 : bf16 to vector<8x32xbf16>
    %c24_7 = arith.constant 24 : index
    %c0_8 = arith.constant 0 : index
    %7 = vector.load %arg13[%c24_7, %c0_8] : memref<32x32xbf16, #tpu.memory_space<vmem>>, vector<8x32xbf16>
    tpu.vector_store %arg13[%c24_7, %c0_8], %6 {strides = array<i32>} : memref<32x32xbf16, #tpu.memory_space<vmem>>, vector<8x32xbf16>,
    %cst_9 = arith.constant 0.000000e+00 : bf16
    %8 = vector.broadcast %cst_9 : bf16 to vector<8x32xbf16>
    %c0_10 = arith.constant 0 : index
    %c0_11 = arith.constant 0 : index
    %9 = vector.load %arg14[%c0_10, %c0_11] : memref<32x32xbf16, #tpu.memory_space<vmem>>, vector<8x32xbf16>
    tpu.vector_store %arg14[%c0_10, %c0_11], %8 {strides = array<i32>} : memref<32x32xbf16, #tpu.memory_space<vmem>>, vector<8x32xbf16>,
    %cst_12 = arith.constant 0.000000e+00 : bf16
    %10 = vector.broadcast %cst_12 : bf16 to vector<8x32xbf16>
    %c24_13 = arith.constant 24 : index
    %c0_14 = arith.constant 0 : index
    %11 = vector.load %arg14[%c24_13, %c0_14] : memref<32x32xbf16, #tpu.memory_space<vmem>>, vector<8x32xbf16>
    tpu.vector_store %arg14[%c24_13, %c0_14], %10 {strides = array<i32>} : memref<32x32xbf16, #tpu.memory_space<vmem>>, vector<8x32xbf16>,
    %c0_15 = arith.constant 0 : index
    %c0_16 = arith.constant 0 : index
    %c0_17 = arith.constant 0 : index
    %12 = vector.load %arg1[%c0_15, %c0_16, %c0_17] : memref<16x8x32xf32, #tpu.memory_space<vmem>>, vector<16x1x32xf32>
    %13 = vector.shape_cast %12 : vector<16x1x32xf32> to vector<16x32xf32>
    %14 = arith.truncf %13 : vector<16x32xf32> to vector<16x32xbf16>
    %c8 = arith.constant 8 : index
    %c0_18 = arith.constant 0 : index
    %15 = vector.load %arg12[%c8, %c0_18] : memref<32x32xbf16, #tpu.memory_space<vmem>>, vector<16x32xbf16>
    tpu.vector_store %arg12[%c8, %c0_18], %14 {strides = array<i32>} : memref<32x32xbf16, #tpu.memory_space<vmem>>, vector<16x32xbf16>,
    %c6 = arith.constant 6 : index
    %c0_19 = arith.constant 0 : index
    %16 = vector.load %arg12[%c6, %c0_19] : memref<32x32xbf16, #tpu.memory_space<vmem>>, vector<16x32xbf16>
    %c0_20 = arith.constant 0 : index
    %c0_21 = arith.constant 0 : index
    %17 = vector.load %arg15[%c0_20, %c0_21] : memref<16x160xbf16, #tpu.memory_space<vmem>>, vector<16x32xbf16>
    tpu.vector_store %arg15[%c0_20, %c0_21], %16 {strides = array<i32>} : memref<16x160xbf16, #tpu.memory_space<vmem>>, vector<16x32xbf16>,
    %c7 = arith.constant 7 : index
    %c0_22 = arith.constant 0 : index
    %18 = vector.load %arg12[%c7, %c0_22] : memref<32x32xbf16, #tpu.memory_space<vmem>>, vector<16x32xbf16>
    %c0_23 = arith.constant 0 : index
    %c32 = arith.constant 32 : index
    %19 = vector.load %arg15[%c0_23, %c32] : memref<16x160xbf16, #tpu.memory_space<vmem>>, vector<16x32xbf16>
    tpu.vector_store %arg15[%c0_23, %c32], %18 {strides = array<i32>} : memref<16x160xbf16, #tpu.memory_space<vmem>>, vector<16x32xbf16>,
    %c8_24 = arith.constant 8 : index
    %c0_25 = arith.constant 0 : index
    %20 = vector.load %arg12[%c8_24, %c0_25] : memref<32x32xbf16, #tpu.memory_space<vmem>>, vector<16x32xbf16>
    %c0_26 = arith.constant 0 : index
    %c64 = arith.constant 64 : index
    %21 = vector.load %arg15[%c0_26, %c64] : memref<16x160xbf16, #tpu.memory_space<vmem>>, vector<16x32xbf16>
    tpu.vector_store %arg15[%c0_26, %c64], %20 {strides = array<i32>} : memref<16x160xbf16, #tpu.memory_space<vmem>>, vector<16x32xbf16>,
    %c9 = arith.constant 9 : index
    %c0_27 = arith.constant 0 : index
    %22 = vector.load %arg12[%c9, %c0_27] : memref<32x32xbf16, #tpu.memory_space<vmem>>, vector<16x32xbf16>
    %c0_28 = arith.constant 0 : index
    %c96 = arith.constant 96 : index
    %23 = vector.load %arg15[%c0_28, %c96] : memref<16x160xbf16, #tpu.memory_space<vmem>>, vector<16x32xbf16>
    tpu.vector_store %arg15[%c0_28, %c96], %22 {strides = array<i32>} : memref<16x160xbf16, #tpu.memory_space<vmem>>, vector<16x32xbf16>,
    %c10 = arith.constant 10 : index
    %c0_29 = arith.constant 0 : index
    %24 = vector.load %arg12[%c10, %c0_29] : memref<32x32xbf16, #tpu.memory_space<vmem>>, vector<16x32xbf16>
    %c0_30 = arith.constant 0 : index
    %c128 = arith.constant 128 : index
    %25 = vector.load %arg15[%c0_30, %c128] : memref<16x160xbf16, #tpu.memory_space<vmem>>, vector<16x32xbf16>
    tpu.vector_store %arg15[%c0_30, %c128], %24 {strides = array<i32>} : memref<16x160xbf16, #tpu.memory_space<vmem>>, vector<16x32xbf16>,
    %c0_31 = arith.constant 0 : index
    %c0_32 = arith.constant 0 : index
    %26 = vector.load %arg15[%c0_31, %c0_32] : memref<16x160xbf16, #tpu.memory_space<vmem>>, vector<16x160xbf16>
    %c0_33 = arith.constant 0 : index
    %c0_34 = arith.constant 0 : index
    %27 = vector.load %arg2[%c0_33, %c0_34] : memref<160x32xbf16, #tpu.memory_space<vmem>>, vector<160x32xbf16>
    %cst_35 = arith.constant dense<0.000000e+00> : vector<16x32xf32>
    %28 = tpu.matmul %26, %27, %cst_35 {dimension_numbers = #tpu.dot_dimension_numbers<[1], [0], [0], [1], [0, 0, 1, 1], [], []>} : vector<16x160xbf16>, vector<160x32xbf16>, vector<16x32xf32> -> vector<16x32xf32>
    %c0_36 = arith.constant 0 : index
    %c0_37 = arith.constant 0 : index
    %29 = vector.load %arg3[%c0_36, %c0_37] : memref<1x32xf32, #tpu.memory_space<vmem>>, vector<1x32xf32>
    %30 = vector.broadcast %29 : vector<1x32xf32> to vector<16x32xf32>
    %31 = arith.mulf %28, %30 : vector<16x32xf32>
    %c0_38 = arith.constant 0 : index
    %c0_39 = arith.constant 0 : index
    %32 = vector.load %arg4[%c0_38, %c0_39] : memref<1x32xf32, #tpu.memory_space<vmem>>, vector<1x32xf32>
    %33 = vector.broadcast %32 : vector<1x32xf32> to vector<16x32xf32>
    %34 = arith.addf %31, %33 : vector<16x32xf32>
    %cst_40 = arith.constant 0.000000e+00 : f32
    %35 = vector.broadcast %cst_40 : f32 to vector<16x32xf32>
    %36 = arith.maximumf %34, %35 : vector<16x32xf32>
    %37 = arith.truncf %36 : vector<16x32xf32> to vector<16x32xbf16>
    %c8_41 = arith.constant 8 : index
    %c0_42 = arith.constant 0 : index
    %38 = vector.load %arg13[%c8_41, %c0_42] : memref<32x32xbf16, #tpu.memory_space<vmem>>, vector<16x32xbf16>
    tpu.vector_store %arg13[%c8_41, %c0_42], %37 {strides = array<i32>} : memref<32x32xbf16, #tpu.memory_space<vmem>>, vector<16x32xbf16>,
    %c6_43 = arith.constant 6 : index
    %c0_44 = arith.constant 0 : index
    %39 = vector.load %arg13[%c6_43, %c0_44] : memref<32x32xbf16, #tpu.memory_space<vmem>>, vector<16x32xbf16>
    %c0_45 = arith.constant 0 : index
    %c0_46 = arith.constant 0 : index
    %40 = vector.load %arg15[%c0_45, %c0_46] : memref<16x160xbf16, #tpu.memory_space<vmem>>, vector<16x32xbf16>
    tpu.vector_store %arg15[%c0_45, %c0_46], %39 {strides = array<i32>} : memref<16x160xbf16, #tpu.memory_space<vmem>>, vector<16x32xbf16>,
    %c7_47 = arith.constant 7 : index
    %c0_48 = arith.constant 0 : index
    %41 = vector.load %arg13[%c7_47, %c0_48] : memref<32x32xbf16, #tpu.memory_space<vmem>>, vector<16x32xbf16>
    %c0_49 = arith.constant 0 : index
    %c32_50 = arith.constant 32 : index
    %42 = vector.load %arg15[%c0_49, %c32_50] : memref<16x160xbf16, #tpu.memory_space<vmem>>, vector<16x32xbf16>
    tpu.vector_store %arg15[%c0_49, %c32_50], %41 {strides = array<i32>} : memref<16x160xbf16, #tpu.memory_space<vmem>>, vector<16x32xbf16>,
    %c8_51 = arith.constant 8 : index
    %c0_52 = arith.constant 0 : index
    %43 = vector.load %arg13[%c8_51, %c0_52] : memref<32x32xbf16, #tpu.memory_space<vmem>>, vector<16x32xbf16>
    %c0_53 = arith.constant 0 : index
    %c64_54 = arith.constant 64 : index
    %44 = vector.load %arg15[%c0_53, %c64_54] : memref<16x160xbf16, #tpu.memory_space<vmem>>, vector<16x32xbf16>
    tpu.vector_store %arg15[%c0_53, %c64_54], %43 {strides = array<i32>} : memref<16x160xbf16, #tpu.memory_space<vmem>>, vector<16x32xbf16>,
    %c9_55 = arith.constant 9 : index
    %c0_56 = arith.constant 0 : index
    %45 = vector.load %arg13[%c9_55, %c0_56] : memref<32x32xbf16, #tpu.memory_space<vmem>>, vector<16x32xbf16>
    %c0_57 = arith.constant 0 : index
    %c96_58 = arith.constant 96 : index
    %46 = vector.load %arg15[%c0_57, %c96_58] : memref<16x160xbf16, #tpu.memory_space<vmem>>, vector<16x32xbf16>
    tpu.vector_store %arg15[%c0_57, %c96_58], %45 {strides = array<i32>} : memref<16x160xbf16, #tpu.memory_space<vmem>>, vector<16x32xbf16>,
    %c10_59 = arith.constant 10 : index
    %c0_60 = arith.constant 0 : index
    %47 = vector.load %arg13[%c10_59, %c0_60] : memref<32x32xbf16, #tpu.memory_space<vmem>>, vector<16x32xbf16>
    %c0_61 = arith.constant 0 : index
    %c128_62 = arith.constant 128 : index
    %48 = vector.load %arg15[%c0_61, %c128_62] : memref<16x160xbf16, #tpu.memory_space<vmem>>, vector<16x32xbf16>
    tpu.vector_store %arg15[%c0_61, %c128_62], %47 {strides = array<i32>} : memref<16x160xbf16, #tpu.memory_space<vmem>>, vector<16x32xbf16>,
    %c0_63 = arith.constant 0 : index
    %c0_64 = arith.constant 0 : index
    %49 = vector.load %arg15[%c0_63, %c0_64] : memref<16x160xbf16, #tpu.memory_space<vmem>>, vector<16x160xbf16>
    %c0_65 = arith.constant 0 : index
    %c0_66 = arith.constant 0 : index
    %50 = vector.load %arg5[%c0_65, %c0_66] : memref<160x32xbf16, #tpu.memory_space<vmem>>, vector<160x32xbf16>
    %cst_67 = arith.constant dense<0.000000e+00> : vector<16x32xf32>
    %51 = tpu.matmul %49, %50, %cst_67 {dimension_numbers = #tpu.dot_dimension_numbers<[1], [0], [0], [1], [0, 0, 1, 1], [], []>} : vector<16x160xbf16>, vector<160x32xbf16>, vector<16x32xf32> -> vector<16x32xf32>
    %c0_68 = arith.constant 0 : index
    %c0_69 = arith.constant 0 : index
    %52 = vector.load %arg6[%c0_68, %c0_69] : memref<1x32xf32, #tpu.memory_space<vmem>>, vector<1x32xf32>
    %53 = vector.broadcast %52 : vector<1x32xf32> to vector<16x32xf32>
    %54 = arith.mulf %51, %53 : vector<16x32xf32>
    %c0_70 = arith.constant 0 : index
    %c0_71 = arith.constant 0 : index
    %55 = vector.load %arg7[%c0_70, %c0_71] : memref<1x32xf32, #tpu.memory_space<vmem>>, vector<1x32xf32>
    %56 = vector.broadcast %55 : vector<1x32xf32> to vector<16x32xf32>
    %57 = arith.addf %54, %56 : vector<16x32xf32>
    %cst_72 = arith.constant 0.000000e+00 : f32
    %58 = vector.broadcast %cst_72 : f32 to vector<16x32xf32>
    %59 = arith.maximumf %57, %58 : vector<16x32xf32>
    %60 = arith.truncf %59 : vector<16x32xf32> to vector<16x32xbf16>
    %c8_73 = arith.constant 8 : index
    %c0_74 = arith.constant 0 : index
    %61 = vector.load %arg14[%c8_73, %c0_74] : memref<32x32xbf16, #tpu.memory_space<vmem>>, vector<16x32xbf16>
    tpu.vector_store %arg14[%c8_73, %c0_74], %60 {strides = array<i32>} : memref<32x32xbf16, #tpu.memory_space<vmem>>, vector<16x32xbf16>,
    %c6_75 = arith.constant 6 : index
    %c0_76 = arith.constant 0 : index
    %62 = vector.load %arg14[%c6_75, %c0_76] : memref<32x32xbf16, #tpu.memory_space<vmem>>, vector<16x32xbf16>
    %c0_77 = arith.constant 0 : index
    %c0_78 = arith.constant 0 : index
    %63 = vector.load %arg15[%c0_77, %c0_78] : memref<16x160xbf16, #tpu.memory_space<vmem>>, vector<16x32xbf16>
    tpu.vector_store %arg15[%c0_77, %c0_78], %62 {strides = array<i32>} : memref<16x160xbf16, #tpu.memory_space<vmem>>, vector<16x32xbf16>,
    %c7_79 = arith.constant 7 : index
    %c0_80 = arith.constant 0 : index
    %64 = vector.load %arg14[%c7_79, %c0_80] : memref<32x32xbf16, #tpu.memory_space<vmem>>, vector<16x32xbf16>
    %c0_81 = arith.constant 0 : index
    %c32_82 = arith.constant 32 : index
    %65 = vector.load %arg15[%c0_81, %c32_82] : memref<16x160xbf16, #tpu.memory_space<vmem>>, vector<16x32xbf16>
    tpu.vector_store %arg15[%c0_81, %c32_82], %64 {strides = array<i32>} : memref<16x160xbf16, #tpu.memory_space<vmem>>, vector<16x32xbf16>,
    %c8_83 = arith.constant 8 : index
    %c0_84 = arith.constant 0 : index
    %66 = vector.load %arg14[%c8_83, %c0_84] : memref<32x32xbf16, #tpu.memory_space<vmem>>, vector<16x32xbf16>
    %c0_85 = arith.constant 0 : index
    %c64_86 = arith.constant 64 : index
    %67 = vector.load %arg15[%c0_85, %c64_86] : memref<16x160xbf16, #tpu.memory_space<vmem>>, vector<16x32xbf16>
    tpu.vector_store %arg15[%c0_85, %c64_86], %66 {strides = array<i32>} : memref<16x160xbf16, #tpu.memory_space<vmem>>, vector<16x32xbf16>,
    %c9_87 = arith.constant 9 : index
    %c0_88 = arith.constant 0 : index
    %68 = vector.load %arg14[%c9_87, %c0_88] : memref<32x32xbf16, #tpu.memory_space<vmem>>, vector<16x32xbf16>
    %c0_89 = arith.constant 0 : index
    %c96_90 = arith.constant 96 : index
    %69 = vector.load %arg15[%c0_89, %c96_90] : memref<16x160xbf16, #tpu.memory_space<vmem>>, vector<16x32xbf16>
    tpu.vector_store %arg15[%c0_89, %c96_90], %68 {strides = array<i32>} : memref<16x160xbf16, #tpu.memory_space<vmem>>, vector<16x32xbf16>,
    %c10_91 = arith.constant 10 : index
    %c0_92 = arith.constant 0 : index
    %70 = vector.load %arg14[%c10_91, %c0_92] : memref<32x32xbf16, #tpu.memory_space<vmem>>, vector<16x32xbf16>
    %c0_93 = arith.constant 0 : index
    %c128_94 = arith.constant 128 : index
    %71 = vector.load %arg15[%c0_93, %c128_94] : memref<16x160xbf16, #tpu.memory_space<vmem>>, vector<16x32xbf16>
    tpu.vector_store %arg15[%c0_93, %c128_94], %70 {strides = array<i32>} : memref<16x160xbf16, #tpu.memory_space<vmem>>, vector<16x32xbf16>,
    %c0_95 = arith.constant 0 : index
    %c0_96 = arith.constant 0 : index
    %72 = vector.load %arg15[%c0_95, %c0_96] : memref<16x160xbf16, #tpu.memory_space<vmem>>, vector<16x160xbf16>
    %c0_97 = arith.constant 0 : index
    %c0_98 = arith.constant 0 : index
    %73 = vector.load %arg8[%c0_97, %c0_98] : memref<160x32xbf16, #tpu.memory_space<vmem>>, vector<160x32xbf16>
    %cst_99 = arith.constant dense<0.000000e+00> : vector<16x32xf32>
    %74 = tpu.matmul %72, %73, %cst_99 {dimension_numbers = #tpu.dot_dimension_numbers<[1], [0], [0], [1], [0, 0, 1, 1], [], []>} : vector<16x160xbf16>, vector<160x32xbf16>, vector<16x32xf32> -> vector<16x32xf32>
    %c0_100 = arith.constant 0 : index
    %c0_101 = arith.constant 0 : index
    %75 = vector.load %arg9[%c0_100, %c0_101] : memref<1x32xf32, #tpu.memory_space<vmem>>, vector<1x32xf32>
    %76 = vector.broadcast %75 : vector<1x32xf32> to vector<16x32xf32>
    %77 = arith.mulf %74, %76 : vector<16x32xf32>
    %c0_102 = arith.constant 0 : index
    %c0_103 = arith.constant 0 : index
    %78 = vector.load %arg10[%c0_102, %c0_103] : memref<1x32xf32, #tpu.memory_space<vmem>>, vector<1x32xf32>
    %79 = vector.broadcast %78 : vector<1x32xf32> to vector<16x32xf32>
    %80 = arith.addf %77, %79 : vector<16x32xf32>
    %cst_104 = arith.constant 0.000000e+00 : f32
    %81 = vector.broadcast %cst_104 : f32 to vector<16x32xf32>
    %82 = arith.maximumf %80, %81 : vector<16x32xf32>
    %c0_105 = arith.constant 0 : index
    %c0_106 = arith.constant 0 : index
    %c0_107 = arith.constant 0 : index
    %83 = vector.load %arg11[%c0_105, %c0_106, %c0_107] : memref<16x8x32xf32, #tpu.memory_space<vmem>>, vector<16x1x32xf32>
    %84 = vector.shape_cast %83 : vector<16x1x32xf32> to vector<16x32xf32>
    %85 = vector.shape_cast %82 : vector<16x32xf32> to vector<16x1x32xf32>
    tpu.vector_store %arg11[%c0_105, %c0_106, %c0_107], %85 {strides = array<i32>} : memref<16x8x32xf32, #tpu.memory_space<vmem>>, vector<16x1x32xf32>,
    %c0_108 = arith.constant 0 : index
    %c1 = arith.constant 1 : index
    %c0_109 = arith.constant 0 : index
    %86 = vector.load %arg1[%c0_108, %c1, %c0_109] : memref<16x8x32xf32, #tpu.memory_space<vmem>>, vector<16x1x32xf32>
    %87 = vector.shape_cast %86 : vector<16x1x32xf32> to vector<16x32xf32>
    %88 = arith.truncf %87 : vector<16x32xf32> to vector<16x32xbf16>
    %c8_110 = arith.constant 8 : index
    %c0_111 = arith.constant 0 : index
    %89 = vector.load %arg12[%c8_110, %c0_111] : memref<32x32xbf16, #tpu.memory_space<vmem>>, vector<16x32xbf16>
    tpu.vector_store %arg12[%c8_110, %c0_111], %88 {strides = array<i32>} : memref<32x32xbf16, #tpu.memory_space<vmem>>, vector<16x32xbf16>,
    %c6_112 = arith.constant 6 : index
    %c0_113 = arith.constant 0 : index
    %90 = vector.load %arg12[%c6_112, %c0_113] : memref<32x32xbf16, #tpu.memory_space<vmem>>, vector<16x32xbf16>
    %c0_114 = arith.constant 0 : index
    %c0_115 = arith.constant 0 : index
    %91 = vector.load %arg15[%c0_114, %c0_115] : memref<16x160xbf16, #tpu.memory_space<vmem>>, vector<16x32xbf16>
    tpu.vector_store %arg15[%c0_114, %c0_115], %90 {strides = array<i32>} : memref<16x160xbf16, #tpu.memory_space<vmem>>, vector<16x32xbf16>,
    %c7_116 = arith.constant 7 : index
    %c0_117 = arith.constant 0 : index
    %92 = vector.load %arg12[%c7_116, %c0_117] : memref<32x32xbf16, #tpu.memory_space<vmem>>, vector<16x32xbf16>
    %c0_118 = arith.constant 0 : index
    %c32_119 = arith.constant 32 : index
    %93 = vector.load %arg15[%c0_118, %c32_119] : memref<16x160xbf16, #tpu.memory_space<vmem>>, vector<16x32xbf16>
    tpu.vector_store %arg15[%c0_118, %c32_119], %92 {strides = array<i32>} : memref<16x160xbf16, #tpu.memory_space<vmem>>, vector<16x32xbf16>,
    %c8_120 = arith.constant 8 : index
    %c0_121 = arith.constant 0 : index
    %94 = vector.load %arg12[%c8_120, %c0_121] : memref<32x32xbf16, #tpu.memory_space<vmem>>, vector<16x32xbf16>
    %c0_122 = arith.constant 0 : index
    %c64_123 = arith.constant 64 : index
    %95 = vector.load %arg15[%c0_122, %c64_123] : memref<16x160xbf16, #tpu.memory_space<vmem>>, vector<16x32xbf16>
    tpu.vector_store %arg15[%c0_122, %c64_123], %94 {strides = array<i32>} : memref<16x160xbf16, #tpu.memory_space<vmem>>, vector<16x32xbf16>,
    %c9_124 = arith.constant 9 : index
    %c0_125 = arith.constant 0 : index
    %96 = vector.load %arg12[%c9_124, %c0_125] : memref<32x32xbf16, #tpu.memory_space<vmem>>, vector<16x32xbf16>
    %c0_126 = arith.constant 0 : index
    %c96_127 = arith.constant 96 : index
    %97 = vector.load %arg15[%c0_126, %c96_127] : memref<16x160xbf16, #tpu.memory_space<vmem>>, vector<16x32xbf16>
    tpu.vector_store %arg15[%c0_126, %c96_127], %96 {strides = array<i32>} : memref<16x160xbf16, #tpu.memory_space<vmem>>, vector<16x32xbf16>,
    %c10_128 = arith.constant 10 : index
    %c0_129 = arith.constant 0 : index
    %98 = vector.load %arg12[%c10_128, %c0_129] : memref<32x32xbf16, #tpu.memory_space<vmem>>, vector<16x32xbf16>
    %c0_130 = arith.constant 0 : index
    %c128_131 = arith.constant 128 : index
    %99 = vector.load %arg15[%c0_130, %c128_131] : memref<16x160xbf16, #tpu.memory_space<vmem>>, vector<16x32xbf16>
    tpu.vector_store %arg15[%c0_130, %c128_131], %98 {strides = array<i32>} : memref<16x160xbf16, #tpu.memory_space<vmem>>, vector<16x32xbf16>,
    %c0_132 = arith.constant 0 : index
    %c0_133 = arith.constant 0 : index
    %100 = vector.load %arg15[%c0_132, %c0_133] : memref<16x160xbf16, #tpu.memory_space<vmem>>, vector<16x160xbf16>
    %c0_134 = arith.constant 0 : index
    %c0_135 = arith.constant 0 : index
    %101 = vector.load %arg2[%c0_134, %c0_135] : memref<160x32xbf16, #tpu.memory_space<vmem>>, vector<160x32xbf16>
    %cst_136 = arith.constant dense<0.000000e+00> : vector<16x32xf32>
    %102 = tpu.matmul %100, %101, %cst_136 {dimension_numbers = #tpu.dot_dimension_numbers<[1], [0], [0], [1], [0, 0, 1, 1], [], []>} : vector<16x160xbf16>, vector<160x32xbf16>, vector<16x32xf32> -> vector<16x32xf32>
    %c0_137 = arith.constant 0 : index
    %c0_138 = arith.constant 0 : index
    %103 = vector.load %arg3[%c0_137, %c0_138] : memref<1x32xf32, #tpu.memory_space<vmem>>, vector<1x32xf32>
    %104 = vector.broadcast %103 : vector<1x32xf32> to vector<16x32xf32>
    %105 = arith.mulf %102, %104 : vector<16x32xf32>
    %c0_139 = arith.constant 0 : index
    %c0_140 = arith.constant 0 : index
    %106 = vector.load %arg4[%c0_139, %c0_140] : memref<1x32xf32, #tpu.memory_space<vmem>>, vector<1x32xf32>
    %107 = vector.broadcast %106 : vector<1x32xf32> to vector<16x32xf32>
    %108 = arith.addf %105, %107 : vector<16x32xf32>
    %cst_141 = arith.constant 0.000000e+00 : f32
    %109 = vector.broadcast %cst_141 : f32 to vector<16x32xf32>
    %110 = arith.maximumf %108, %109 : vector<16x32xf32>
    %111 = arith.truncf %110 : vector<16x32xf32> to vector<16x32xbf16>
    %c8_142 = arith.constant 8 : index
    %c0_143 = arith.constant 0 : index
    %112 = vector.load %arg13[%c8_142, %c0_143] : memref<32x32xbf16, #tpu.memory_space<vmem>>, vector<16x32xbf16>
    tpu.vector_store %arg13[%c8_142, %c0_143], %111 {strides = array<i32>} : memref<32x32xbf16, #tpu.memory_space<vmem>>, vector<16x32xbf16>,
    %c6_144 = arith.constant 6 : index
    %c0_145 = arith.constant 0 : index
    %113 = vector.load %arg13[%c6_144, %c0_145] : memref<32x32xbf16, #tpu.memory_space<vmem>>, vector<16x32xbf16>
    %c0_146 = arith.constant 0 : index
    %c0_147 = arith.constant 0 : index
    %114 = vector.load %arg15[%c0_146, %c0_147] : memref<16x160xbf16, #tpu.memory_space<vmem>>, vector<16x32xbf16>
    tpu.vector_store %arg15[%c0_146, %c0_147], %113 {strides = array<i32>} : memref<16x160xbf16, #tpu.memory_space<vmem>>, vector<16x32xbf16>,
    %c7_148 = arith.constant 7 : index
    %c0_149 = arith.constant 0 : index
    %115 = vector.load %arg13[%c7_148, %c0_149] : memref<32x32xbf16, #tpu.memory_space<vmem>>, vector<16x32xbf16>
    %c0_150 = arith.constant 0 : index
    %c32_151 = arith.constant 32 : index
    %116 = vector.load %arg15[%c0_150, %c32_151] : memref<16x160xbf16, #tpu.memory_space<vmem>>, vector<16x32xbf16>
    tpu.vector_store %arg15[%c0_150, %c32_151], %115 {strides = array<i32>} : memref<16x160xbf16, #tpu.memory_space<vmem>>, vector<16x32xbf16>,
    %c8_152 = arith.constant 8 : index
    %c0_153 = arith.constant 0 : index
    %117 = vector.load %arg13[%c8_152, %c0_153] : memref<32x32xbf16, #tpu.memory_space<vmem>>, vector<16x32xbf16>
    %c0_154 = arith.constant 0 : index
    %c64_155 = arith.constant 64 : index
    %118 = vector.load %arg15[%c0_154, %c64_155] : memref<16x160xbf16, #tpu.memory_space<vmem>>, vector<16x32xbf16>
    tpu.vector_store %arg15[%c0_154, %c64_155], %117 {strides = array<i32>} : memref<16x160xbf16, #tpu.memory_space<vmem>>, vector<16x32xbf16>,
    %c9_156 = arith.constant 9 : index
    %c0_157 = arith.constant 0 : index
    %119 = vector.load %arg13[%c9_156, %c0_157] : memref<32x32xbf16, #tpu.memory_space<vmem>>, vector<16x32xbf16>
    %c0_158 = arith.constant 0 : index
    %c96_159 = arith.constant 96 : index
    %120 = vector.load %arg15[%c0_158, %c96_159] : memref<16x160xbf16, #tpu.memory_space<vmem>>, vector<16x32xbf16>
    tpu.vector_store %arg15[%c0_158, %c96_159], %119 {strides = array<i32>} : memref<16x160xbf16, #tpu.memory_space<vmem>>, vector<16x32xbf16>,
    %c10_160 = arith.constant 10 : index
    %c0_161 = arith.constant 0 : index
    %121 = vector.load %arg13[%c10_160, %c0_161] : memref<32x32xbf16, #tpu.memory_space<vmem>>, vector<16x32xbf16>
    %c0_162 = arith.constant 0 : index
    %c128_163 = arith.constant 128 : index
    %122 = vector.load %arg15[%c0_162, %c128_163] : memref<16x160xbf16, #tpu.memory_space<vmem>>, vector<16x32xbf16>
    tpu.vector_store %arg15[%c0_162, %c128_163], %121 {strides = array<i32>} : memref<16x160xbf16, #tpu.memory_space<vmem>>, vector<16x32xbf16>,
    %c0_164 = arith.constant 0 : index
    %c0_165 = arith.constant 0 : index
    %123 = vector.load %arg15[%c0_164, %c0_165] : memref<16x160xbf16, #tpu.memory_space<vmem>>, vector<16x160xbf16>
    %c0_166 = arith.constant 0 : index
    %c0_167 = arith.constant 0 : index
    %124 = vector.load %arg5[%c0_166, %c0_167] : memref<160x32xbf16, #tpu.memory_space<vmem>>, vector<160x32xbf16>
    %cst_168 = arith.constant dense<0.000000e+00> : vector<16x32xf32>
    %125 = tpu.matmul %123, %124, %cst_168 {dimension_numbers = #tpu.dot_dimension_numbers<[1], [0], [0], [1], [0, 0, 1, 1], [], []>} : vector<16x160xbf16>, vector<160x32xbf16>, vector<16x32xf32> -> vector<16x32xf32>
    %c0_169 = arith.constant 0 : index
    %c0_170 = arith.constant 0 : index
    %126 = vector.load %arg6[%c0_169, %c0_170] : memref<1x32xf32, #tpu.memory_space<vmem>>, vector<1x32xf32>
    %127 = vector.broadcast %126 : vector<1x32xf32> to vector<16x32xf32>
    %128 = arith.mulf %125, %127 : vector<16x32xf32>
    %c0_171 = arith.constant 0 : index
    %c0_172 = arith.constant 0 : index
    %129 = vector.load %arg7[%c0_171, %c0_172] : memref<1x32xf32, #tpu.memory_space<vmem>>, vector<1x32xf32>
    %130 = vector.broadcast %129 : vector<1x32xf32> to vector<16x32xf32>
    %131 = arith.addf %128, %130 : vector<16x32xf32>
    %cst_173 = arith.constant 0.000000e+00 : f32
    %132 = vector.broadcast %cst_173 : f32 to vector<16x32xf32>
    %133 = arith.maximumf %131, %132 : vector<16x32xf32>
    %134 = arith.truncf %133 : vector<16x32xf32> to vector<16x32xbf16>
    %c8_174 = arith.constant 8 : index
    %c0_175 = arith.constant 0 : index
    %135 = vector.load %arg14[%c8_174, %c0_175] : memref<32x32xbf16, #tpu.memory_space<vmem>>, vector<16x32xbf16>
    tpu.vector_store %arg14[%c8_174, %c0_175], %134 {strides = array<i32>} : memref<32x32xbf16, #tpu.memory_space<vmem>>, vector<16x32xbf16>,
    %c6_176 = arith.constant 6 : index
    %c0_177 = arith.constant 0 : index
    %136 = vector.load %arg14[%c6_176, %c0_177] : memref<32x32xbf16, #tpu.memory_space<vmem>>, vector<16x32xbf16>
    %c0_178 = arith.constant 0 : index
    %c0_179 = arith.constant 0 : index
    %137 = vector.load %arg15[%c0_178, %c0_179] : memref<16x160xbf16, #tpu.memory_space<vmem>>, vector<16x32xbf16>
    tpu.vector_store %arg15[%c0_178, %c0_179], %136 {strides = array<i32>} : memref<16x160xbf16, #tpu.memory_space<vmem>>, vector<16x32xbf16>,
    %c7_180 = arith.constant 7 : index
    %c0_181 = arith.constant 0 : index
    %138 = vector.load %arg14[%c7_180, %c0_181] : memref<32x32xbf16, #tpu.memory_space<vmem>>, vector<16x32xbf16>
    %c0_182 = arith.constant 0 : index
    %c32_183 = arith.constant 32 : index
    %139 = vector.load %arg15[%c0_182, %c32_183] : memref<16x160xbf16, #tpu.memory_space<vmem>>, vector<16x32xbf16>
    tpu.vector_store %arg15[%c0_182, %c32_183], %138 {strides = array<i32>} : memref<16x160xbf16, #tpu.memory_space<vmem>>, vector<16x32xbf16>,
    %c8_184 = arith.constant 8 : index
    %c0_185 = arith.constant 0 : index
    %140 = vector.load %arg14[%c8_184, %c0_185] : memref<32x32xbf16, #tpu.memory_space<vmem>>, vector<16x32xbf16>
    %c0_186 = arith.constant 0 : index
    %c64_187 = arith.constant 64 : index
    %141 = vector.load %arg15[%c0_186, %c64_187] : memref<16x160xbf16, #tpu.memory_space<vmem>>, vector<16x32xbf16>
    tpu.vector_store %arg15[%c0_186, %c64_187], %140 {strides = array<i32>} : memref<16x160xbf16, #tpu.memory_space<vmem>>, vector<16x32xbf16>,
    %c9_188 = arith.constant 9 : index
    %c0_189 = arith.constant 0 : index
    %142 = vector.load %arg14[%c9_188, %c0_189] : memref<32x32xbf16, #tpu.memory_space<vmem>>, vector<16x32xbf16>
    %c0_190 = arith.constant 0 : index
    %c96_191 = arith.constant 96 : index
    %143 = vector.load %arg15[%c0_190, %c96_191] : memref<16x160xbf16, #tpu.memory_space<vmem>>, vector<16x32xbf16>
    tpu.vector_store %arg15[%c0_190, %c96_191], %142 {strides = array<i32>} : memref<16x160xbf16, #tpu.memory_space<vmem>>, vector<16x32xbf16>,
    %c10_192 = arith.constant 10 : index
    %c0_193 = arith.constant 0 : index
    %144 = vector.load %arg14[%c10_192, %c0_193] : memref<32x32xbf16, #tpu.memory_space<vmem>>, vector<16x32xbf16>
    %c0_194 = arith.constant 0 : index
    %c128_195 = arith.constant 128 : index
    %145 = vector.load %arg15[%c0_194, %c128_195] : memref<16x160xbf16, #tpu.memory_space<vmem>>, vector<16x32xbf16>
    tpu.vector_store %arg15[%c0_194, %c128_195], %144 {strides = array<i32>} : memref<16x160xbf16, #tpu.memory_space<vmem>>, vector<16x32xbf16>,
    %c0_196 = arith.constant 0 : index
    %c0_197 = arith.constant 0 : index
    %146 = vector.load %arg15[%c0_196, %c0_197] : memref<16x160xbf16, #tpu.memory_space<vmem>>, vector<16x160xbf16>
    %c0_198 = arith.constant 0 : index
    %c0_199 = arith.constant 0 : index
    %147 = vector.load %arg8[%c0_198, %c0_199] : memref<160x32xbf16, #tpu.memory_space<vmem>>, vector<160x32xbf16>
    %cst_200 = arith.constant dense<0.000000e+00> : vector<16x32xf32>
    %148 = tpu.matmul %146, %147, %cst_200 {dimension_numbers = #tpu.dot_dimension_numbers<[1], [0], [0], [1], [0, 0, 1, 1], [], []>} : vector<16x160xbf16>, vector<160x32xbf16>, vector<16x32xf32> -> vector<16x32xf32>
    %c0_201 = arith.constant 0 : index
    %c0_202 = arith.constant 0 : index
    %149 = vector.load %arg9[%c0_201, %c0_202] : memref<1x32xf32, #tpu.memory_space<vmem>>, vector<1x32xf32>
    %150 = vector.broadcast %149 : vector<1x32xf32> to vector<16x32xf32>
    %151 = arith.mulf %148, %150 : vector<16x32xf32>
    %c0_203 = arith.constant 0 : index
    %c0_204 = arith.constant 0 : index
    %152 = vector.load %arg10[%c0_203, %c0_204] : memref<1x32xf32, #tpu.memory_space<vmem>>, vector<1x32xf32>
    %153 = vector.broadcast %152 : vector<1x32xf32> to vector<16x32xf32>
    %154 = arith.addf %151, %153 : vector<16x32xf32>
    %cst_205 = arith.constant 0.000000e+00 : f32
    %155 = vector.broadcast %cst_205 : f32 to vector<16x32xf32>
    %156 = arith.maximumf %154, %155 : vector<16x32xf32>
    %c0_206 = arith.constant 0 : index
    %c1_207 = arith.constant 1 : index
    %c0_208 = arith.constant 0 : index
    %157 = vector.load %arg11[%c0_206, %c1_207, %c0_208] : memref<16x8x32xf32, #tpu.memory_space<vmem>>, vector<16x1x32xf32>
    %158 = vector.shape_cast %157 : vector<16x1x32xf32> to vector<16x32xf32>
    %159 = vector.shape_cast %156 : vector<16x32xf32> to vector<16x1x32xf32>
    tpu.vector_store %arg11[%c0_206, %c1_207, %c0_208], %159 {strides = array<i32>} : memref<16x8x32xf32, #tpu.memory_space<vmem>>, vector<16x1x32xf32>,
    %c0_209 = arith.constant 0 : index
    %c2 = arith.constant 2 : index
    %c0_210 = arith.constant 0 : index
    %160 = vector.load %arg1[%c0_209, %c2, %c0_210] : memref<16x8x32xf32, #tpu.memory_space<vmem>>, vector<16x1x32xf32>
    %161 = vector.shape_cast %160 : vector<16x1x32xf32> to vector<16x32xf32>
    %162 = arith.truncf %161 : vector<16x32xf32> to vector<16x32xbf16>
    %c8_211 = arith.constant 8 : index
    %c0_212 = arith.constant 0 : index
    %163 = vector.load %arg12[%c8_211, %c0_212] : memref<32x32xbf16, #tpu.memory_space<vmem>>, vector<16x32xbf16>
    tpu.vector_store %arg12[%c8_211, %c0_212], %162 {strides = array<i32>} : memref<32x32xbf16, #tpu.memory_space<vmem>>, vector<16x32xbf16>,
    %c6_213 = arith.constant 6 : index
    %c0_214 = arith.constant 0 : index
    %164 = vector.load %arg12[%c6_213, %c0_214] : memref<32x32xbf16, #tpu.memory_space<vmem>>, vector<16x32xbf16>
    %c0_215 = arith.constant 0 : index
    %c0_216 = arith.constant 0 : index
    %165 = vector.load %arg15[%c0_215, %c0_216] : memref<16x160xbf16, #tpu.memory_space<vmem>>, vector<16x32xbf16>
    tpu.vector_store %arg15[%c0_215, %c0_216], %164 {strides = array<i32>} : memref<16x160xbf16, #tpu.memory_space<vmem>>, vector<16x32xbf16>,
    %c7_217 = arith.constant 7 : index
    %c0_218 = arith.constant 0 : index
    %166 = vector.load %arg12[%c7_217, %c0_218] : memref<32x32xbf16, #tpu.memory_space<vmem>>, vector<16x32xbf16>
    %c0_219 = arith.constant 0 : index
    %c32_220 = arith.constant 32 : index
    %167 = vector.load %arg15[%c0_219, %c32_220] : memref<16x160xbf16, #tpu.memory_space<vmem>>, vector<16x32xbf16>
    tpu.vector_store %arg15[%c0_219, %c32_220], %166 {strides = array<i32>} : memref<16x160xbf16, #tpu.memory_space<vmem>>, vector<16x32xbf16>,
    %c8_221 = arith.constant 8 : index
    %c0_222 = arith.constant 0 : index
    %168 = vector.load %arg12[%c8_221, %c0_222] : memref<32x32xbf16, #tpu.memory_space<vmem>>, vector<16x32xbf16>
    %c0_223 = arith.constant 0 : index
    %c64_224 = arith.constant 64 : index
    %169 = vector.load %arg15[%c0_223, %c64_224] : memref<16x160xbf16, #tpu.memory_space<vmem>>, vector<16x32xbf16>
    tpu.vector_store %arg15[%c0_223, %c64_224], %168 {strides = array<i32>} : memref<16x160xbf16, #tpu.memory_space<vmem>>, vector<16x32xbf16>,
    %c9_225 = arith.constant 9 : index
    %c0_226 = arith.constant 0 : index
    %170 = vector.load %arg12[%c9_225, %c0_226] : memref<32x32xbf16, #tpu.memory_space<vmem>>, vector<16x32xbf16>
    %c0_227 = arith.constant 0 : index
    %c96_228 = arith.constant 96 : index
    %171 = vector.load %arg15[%c0_227, %c96_228] : memref<16x160xbf16, #tpu.memory_space<vmem>>, vector<16x32xbf16>
    tpu.vector_store %arg15[%c0_227, %c96_228], %170 {strides = array<i32>} : memref<16x160xbf16, #tpu.memory_space<vmem>>, vector<16x32xbf16>,
    %c10_229 = arith.constant 10 : index
    %c0_230 = arith.constant 0 : index
    %172 = vector.load %arg12[%c10_229, %c0_230] : memref<32x32xbf16, #tpu.memory_space<vmem>>, vector<16x32xbf16>
    %c0_231 = arith.constant 0 : index
    %c128_232 = arith.constant 128 : index
    %173 = vector.load %arg15[%c0_231, %c128_232] : memref<16x160xbf16, #tpu.memory_space<vmem>>, vector<16x32xbf16>
    tpu.vector_store %arg15[%c0_231, %c128_232], %172 {strides = array<i32>} : memref<16x160xbf16, #tpu.memory_space<vmem>>, vector<16x32xbf16>,
    %c0_233 = arith.constant 0 : index
    %c0_234 = arith.constant 0 : index
    %174 = vector.load %arg15[%c0_233, %c0_234] : memref<16x160xbf16, #tpu.memory_space<vmem>>, vector<16x160xbf16>
    %c0_235 = arith.constant 0 : index
    %c0_236 = arith.constant 0 : index
    %175 = vector.load %arg2[%c0_235, %c0_236] : memref<160x32xbf16, #tpu.memory_space<vmem>>, vector<160x32xbf16>
    %cst_237 = arith.constant dense<0.000000e+00> : vector<16x32xf32>
    %176 = tpu.matmul %174, %175, %cst_237 {dimension_numbers = #tpu.dot_dimension_numbers<[1], [0], [0], [1], [0, 0, 1, 1], [], []>} : vector<16x160xbf16>, vector<160x32xbf16>, vector<16x32xf32> -> vector<16x32xf32>
    %c0_238 = arith.constant 0 : index
    %c0_239 = arith.constant 0 : index
    %177 = vector.load %arg3[%c0_238, %c0_239] : memref<1x32xf32, #tpu.memory_space<vmem>>, vector<1x32xf32>
    %178 = vector.broadcast %177 : vector<1x32xf32> to vector<16x32xf32>
    %179 = arith.mulf %176, %178 : vector<16x32xf32>
    %c0_240 = arith.constant 0 : index
    %c0_241 = arith.constant 0 : index
    %180 = vector.load %arg4[%c0_240, %c0_241] : memref<1x32xf32, #tpu.memory_space<vmem>>, vector<1x32xf32>
    %181 = vector.broadcast %180 : vector<1x32xf32> to vector<16x32xf32>
    %182 = arith.addf %179, %181 : vector<16x32xf32>
    %cst_242 = arith.constant 0.000000e+00 : f32
    %183 = vector.broadcast %cst_242 : f32 to vector<16x32xf32>
    %184 = arith.maximumf %182, %183 : vector<16x32xf32>
    %185 = arith.truncf %184 : vector<16x32xf32> to vector<16x32xbf16>
    %c8_243 = arith.constant 8 : index
    %c0_244 = arith.constant 0 : index
    %186 = vector.load %arg13[%c8_243, %c0_244] : memref<32x32xbf16, #tpu.memory_space<vmem>>, vector<16x32xbf16>
    tpu.vector_store %arg13[%c8_243, %c0_244], %185 {strides = array<i32>} : memref<32x32xbf16, #tpu.memory_space<vmem>>, vector<16x32xbf16>,
    %c6_245 = arith.constant 6 : index
    %c0_246 = arith.constant 0 : index
    %187 = vector.load %arg13[%c6_245, %c0_246] : memref<32x32xbf16, #tpu.memory_space<vmem>>, vector<16x32xbf16>
    %c0_247 = arith.constant 0 : index
    %c0_248 = arith.constant 0 : index
    %188 = vector.load %arg15[%c0_247, %c0_248] : memref<16x160xbf16, #tpu.memory_space<vmem>>, vector<16x32xbf16>
    tpu.vector_store %arg15[%c0_247, %c0_248], %187 {strides = array<i32>} : memref<16x160xbf16, #tpu.memory_space<vmem>>, vector<16x32xbf16>,
    %c7_249 = arith.constant 7 : index
    %c0_250 = arith.constant 0 : index
    %189 = vector.load %arg13[%c7_249, %c0_250] : memref<32x32xbf16, #tpu.memory_space<vmem>>, vector<16x32xbf16>
    %c0_251 = arith.constant 0 : index
    %c32_252 = arith.constant 32 : index
    %190 = vector.load %arg15[%c0_251, %c32_252] : memref<16x160xbf16, #tpu.memory_space<vmem>>, vector<16x32xbf16>
    tpu.vector_store %arg15[%c0_251, %c32_252], %189 {strides = array<i32>} : memref<16x160xbf16, #tpu.memory_space<vmem>>, vector<16x32xbf16>,
    %c8_253 = arith.constant 8 : index
    %c0_254 = arith.constant 0 : index
    %191 = vector.load %arg13[%c8_253, %c0_254] : memref<32x32xbf16, #tpu.memory_space<vmem>>, vector<16x32xbf16>
    %c0_255 = arith.constant 0 : index
    %c64_256 = arith.constant 64 : index
    %192 = vector.load %arg15[%c0_255, %c64_256] : memref<16x160xbf16, #tpu.memory_space<vmem>>, vector<16x32xbf16>
    tpu.vector_store %arg15[%c0_255, %c64_256], %191 {strides = array<i32>} : memref<16x160xbf16, #tpu.memory_space<vmem>>, vector<16x32xbf16>,
    %c9_257 = arith.constant 9 : index
    %c0_258 = arith.constant 0 : index
    %193 = vector.load %arg13[%c9_257, %c0_258] : memref<32x32xbf16, #tpu.memory_space<vmem>>, vector<16x32xbf16>
    %c0_259 = arith.constant 0 : index
    %c96_260 = arith.constant 96 : index
    %194 = vector.load %arg15[%c0_259, %c96_260] : memref<16x160xbf16, #tpu.memory_space<vmem>>, vector<16x32xbf16>
    tpu.vector_store %arg15[%c0_259, %c96_260], %193 {strides = array<i32>} : memref<16x160xbf16, #tpu.memory_space<vmem>>, vector<16x32xbf16>,
    %c10_261 = arith.constant 10 : index
    %c0_262 = arith.constant 0 : index
    %195 = vector.load %arg13[%c10_261, %c0_262] : memref<32x32xbf16, #tpu.memory_space<vmem>>, vector<16x32xbf16>
    %c0_263 = arith.constant 0 : index
    %c128_264 = arith.constant 128 : index
    %196 = vector.load %arg15[%c0_263, %c128_264] : memref<16x160xbf16, #tpu.memory_space<vmem>>, vector<16x32xbf16>
    tpu.vector_store %arg15[%c0_263, %c128_264], %195 {strides = array<i32>} : memref<16x160xbf16, #tpu.memory_space<vmem>>, vector<16x32xbf16>,
    %c0_265 = arith.constant 0 : index
    %c0_266 = arith.constant 0 : index
    %197 = vector.load %arg15[%c0_265, %c0_266] : memref<16x160xbf16, #tpu.memory_space<vmem>>, vector<16x160xbf16>
    %c0_267 = arith.constant 0 : index
    %c0_268 = arith.constant 0 : index
    %198 = vector.load %arg5[%c0_267, %c0_268] : memref<160x32xbf16, #tpu.memory_space<vmem>>, vector<160x32xbf16>
    %cst_269 = arith.constant dense<0.000000e+00> : vector<16x32xf32>
    %199 = tpu.matmul %197, %198, %cst_269 {dimension_numbers = #tpu.dot_dimension_numbers<[1], [0], [0], [1], [0, 0, 1, 1], [], []>} : vector<16x160xbf16>, vector<160x32xbf16>, vector<16x32xf32> -> vector<16x32xf32>
    %c0_270 = arith.constant 0 : index
    %c0_271 = arith.constant 0 : index
    %200 = vector.load %arg6[%c0_270, %c0_271] : memref<1x32xf32, #tpu.memory_space<vmem>>, vector<1x32xf32>
    %201 = vector.broadcast %200 : vector<1x32xf32> to vector<16x32xf32>
    %202 = arith.mulf %199, %201 : vector<16x32xf32>
    %c0_272 = arith.constant 0 : index
    %c0_273 = arith.constant 0 : index
    %203 = vector.load %arg7[%c0_272, %c0_273] : memref<1x32xf32, #tpu.memory_space<vmem>>, vector<1x32xf32>
    %204 = vector.broadcast %203 : vector<1x32xf32> to vector<16x32xf32>
    %205 = arith.addf %202, %204 : vector<16x32xf32>
    %cst_274 = arith.constant 0.000000e+00 : f32
    %206 = vector.broadcast %cst_274 : f32 to vector<16x32xf32>
    %207 = arith.maximumf %205, %206 : vector<16x32xf32>
    %208 = arith.truncf %207 : vector<16x32xf32> to vector<16x32xbf16>
    %c8_275 = arith.constant 8 : index
    %c0_276 = arith.constant 0 : index
    %209 = vector.load %arg14[%c8_275, %c0_276] : memref<32x32xbf16, #tpu.memory_space<vmem>>, vector<16x32xbf16>
    tpu.vector_store %arg14[%c8_275, %c0_276], %208 {strides = array<i32>} : memref<32x32xbf16, #tpu.memory_space<vmem>>, vector<16x32xbf16>,
    %c6_277 = arith.constant 6 : index
    %c0_278 = arith.constant 0 : index
    %210 = vector.load %arg14[%c6_277, %c0_278] : memref<32x32xbf16, #tpu.memory_space<vmem>>, vector<16x32xbf16>
    %c0_279 = arith.constant 0 : index
    %c0_280 = arith.constant 0 : index
    %211 = vector.load %arg15[%c0_279, %c0_280] : memref<16x160xbf16, #tpu.memory_space<vmem>>, vector<16x32xbf16>
    tpu.vector_store %arg15[%c0_279, %c0_280], %210 {strides = array<i32>} : memref<16x160xbf16, #tpu.memory_space<vmem>>, vector<16x32xbf16>,
    %c7_281 = arith.constant 7 : index
    %c0_282 = arith.constant 0 : index
    %212 = vector.load %arg14[%c7_281, %c0_282] : memref<32x32xbf16, #tpu.memory_space<vmem>>, vector<16x32xbf16>
    %c0_283 = arith.constant 0 : index
    %c32_284 = arith.constant 32 : index
    %213 = vector.load %arg15[%c0_283, %c32_284] : memref<16x160xbf16, #tpu.memory_space<vmem>>, vector<16x32xbf16>
    tpu.vector_store %arg15[%c0_283, %c32_284], %212 {strides = array<i32>} : memref<16x160xbf16, #tpu.memory_space<vmem>>, vector<16x32xbf16>,
    %c8_285 = arith.constant 8 : index
    %c0_286 = arith.constant 0 : index
    %214 = vector.load %arg14[%c8_285, %c0_286] : memref<32x32xbf16, #tpu.memory_space<vmem>>, vector<16x32xbf16>
    %c0_287 = arith.constant 0 : index
    %c64_288 = arith.constant 64 : index
    %215 = vector.load %arg15[%c0_287, %c64_288] : memref<16x160xbf16, #tpu.memory_space<vmem>>, vector<16x32xbf16>
    tpu.vector_store %arg15[%c0_287, %c64_288], %214 {strides = array<i32>} : memref<16x160xbf16, #tpu.memory_space<vmem>>, vector<16x32xbf16>,
    %c9_289 = arith.constant 9 : index
    %c0_290 = arith.constant 0 : index
    %216 = vector.load %arg14[%c9_289, %c0_290] : memref<32x32xbf16, #tpu.memory_space<vmem>>, vector<16x32xbf16>
    %c0_291 = arith.constant 0 : index
    %c96_292 = arith.constant 96 : index
    %217 = vector.load %arg15[%c0_291, %c96_292] : memref<16x160xbf16, #tpu.memory_space<vmem>>, vector<16x32xbf16>
    tpu.vector_store %arg15[%c0_291, %c96_292], %216 {strides = array<i32>} : memref<16x160xbf16, #tpu.memory_space<vmem>>, vector<16x32xbf16>,
    %c10_293 = arith.constant 10 : index
    %c0_294 = arith.constant 0 : index
    %218 = vector.load %arg14[%c10_293, %c0_294] : memref<32x32xbf16, #tpu.memory_space<vmem>>, vector<16x32xbf16>
    %c0_295 = arith.constant 0 : index
    %c128_296 = arith.constant 128 : index
    %219 = vector.load %arg15[%c0_295, %c128_296] : memref<16x160xbf16, #tpu.memory_space<vmem>>, vector<16x32xbf16>
    tpu.vector_store %arg15[%c0_295, %c128_296], %218 {strides = array<i32>} : memref<16x160xbf16, #tpu.memory_space<vmem>>, vector<16x32xbf16>,
    %c0_297 = arith.constant 0 : index
    %c0_298 = arith.constant 0 : index
    %220 = vector.load %arg15[%c0_297, %c0_298] : memref<16x160xbf16, #tpu.memory_space<vmem>>, vector<16x160xbf16>
    %c0_299 = arith.constant 0 : index
    %c0_300 = arith.constant 0 : index
    %221 = vector.load %arg8[%c0_299, %c0_300] : memref<160x32xbf16, #tpu.memory_space<vmem>>, vector<160x32xbf16>
    %cst_301 = arith.constant dense<0.000000e+00> : vector<16x32xf32>
    %222 = tpu.matmul %220, %221, %cst_301 {dimension_numbers = #tpu.dot_dimension_numbers<[1], [0], [0], [1], [0, 0, 1, 1], [], []>} : vector<16x160xbf16>, vector<160x32xbf16>, vector<16x32xf32> -> vector<16x32xf32>
    %c0_302 = arith.constant 0 : index
    %c0_303 = arith.constant 0 : index
    %223 = vector.load %arg9[%c0_302, %c0_303] : memref<1x32xf32, #tpu.memory_space<vmem>>, vector<1x32xf32>
    %224 = vector.broadcast %223 : vector<1x32xf32> to vector<16x32xf32>
    %225 = arith.mulf %222, %224 : vector<16x32xf32>
    %c0_304 = arith.constant 0 : index
    %c0_305 = arith.constant 0 : index
    %226 = vector.load %arg10[%c0_304, %c0_305] : memref<1x32xf32, #tpu.memory_space<vmem>>, vector<1x32xf32>
    %227 = vector.broadcast %226 : vector<1x32xf32> to vector<16x32xf32>
    %228 = arith.addf %225, %227 : vector<16x32xf32>
    %cst_306 = arith.constant 0.000000e+00 : f32
    %229 = vector.broadcast %cst_306 : f32 to vector<16x32xf32>
    %230 = arith.maximumf %228, %229 : vector<16x32xf32>
    %c0_307 = arith.constant 0 : index
    %c2_308 = arith.constant 2 : index
    %c0_309 = arith.constant 0 : index
    %231 = vector.load %arg11[%c0_307, %c2_308, %c0_309] : memref<16x8x32xf32, #tpu.memory_space<vmem>>, vector<16x1x32xf32>
    %232 = vector.shape_cast %231 : vector<16x1x32xf32> to vector<16x32xf32>
    %233 = vector.shape_cast %230 : vector<16x32xf32> to vector<16x1x32xf32>
    tpu.vector_store %arg11[%c0_307, %c2_308, %c0_309], %233 {strides = array<i32>} : memref<16x8x32xf32, #tpu.memory_space<vmem>>, vector<16x1x32xf32>,
    %c0_310 = arith.constant 0 : index
    %c3 = arith.constant 3 : index
    %c0_311 = arith.constant 0 : index
    %234 = vector.load %arg1[%c0_310, %c3, %c0_311] : memref<16x8x32xf32, #tpu.memory_space<vmem>>, vector<16x1x32xf32>
    %235 = vector.shape_cast %234 : vector<16x1x32xf32> to vector<16x32xf32>
    %236 = arith.truncf %235 : vector<16x32xf32> to vector<16x32xbf16>
    %c8_312 = arith.constant 8 : index
    %c0_313 = arith.constant 0 : index
    %237 = vector.load %arg12[%c8_312, %c0_313] : memref<32x32xbf16, #tpu.memory_space<vmem>>, vector<16x32xbf16>
    tpu.vector_store %arg12[%c8_312, %c0_313], %236 {strides = array<i32>} : memref<32x32xbf16, #tpu.memory_space<vmem>>, vector<16x32xbf16>,
    %c6_314 = arith.constant 6 : index
    %c0_315 = arith.constant 0 : index
    %238 = vector.load %arg12[%c6_314, %c0_315] : memref<32x32xbf16, #tpu.memory_space<vmem>>, vector<16x32xbf16>
    %c0_316 = arith.constant 0 : index
    %c0_317 = arith.constant 0 : index
    %239 = vector.load %arg15[%c0_316, %c0_317] : memref<16x160xbf16, #tpu.memory_space<vmem>>, vector<16x32xbf16>
    tpu.vector_store %arg15[%c0_316, %c0_317], %238 {strides = array<i32>} : memref<16x160xbf16, #tpu.memory_space<vmem>>, vector<16x32xbf16>,
    %c7_318 = arith.constant 7 : index
    %c0_319 = arith.constant 0 : index
    %240 = vector.load %arg12[%c7_318, %c0_319] : memref<32x32xbf16, #tpu.memory_space<vmem>>, vector<16x32xbf16>
    %c0_320 = arith.constant 0 : index
    %c32_321 = arith.constant 32 : index
    %241 = vector.load %arg15[%c0_320, %c32_321] : memref<16x160xbf16, #tpu.memory_space<vmem>>, vector<16x32xbf16>
    tpu.vector_store %arg15[%c0_320, %c32_321], %240 {strides = array<i32>} : memref<16x160xbf16, #tpu.memory_space<vmem>>, vector<16x32xbf16>,
    %c8_322 = arith.constant 8 : index
    %c0_323 = arith.constant 0 : index
    %242 = vector.load %arg12[%c8_322, %c0_323] : memref<32x32xbf16, #tpu.memory_space<vmem>>, vector<16x32xbf16>
    %c0_324 = arith.constant 0 : index
    %c64_325 = arith.constant 64 : index
    %243 = vector.load %arg15[%c0_324, %c64_325] : memref<16x160xbf16, #tpu.memory_space<vmem>>, vector<16x32xbf16>
    tpu.vector_store %arg15[%c0_324, %c64_325], %242 {strides = array<i32>} : memref<16x160xbf16, #tpu.memory_space<vmem>>, vector<16x32xbf16>,
    %c9_326 = arith.constant 9 : index
    %c0_327 = arith.constant 0 : index
    %244 = vector.load %arg12[%c9_326, %c0_327] : memref<32x32xbf16, #tpu.memory_space<vmem>>, vector<16x32xbf16>
    %c0_328 = arith.constant 0 : index
    %c96_329 = arith.constant 96 : index
    %245 = vector.load %arg15[%c0_328, %c96_329] : memref<16x160xbf16, #tpu.memory_space<vmem>>, vector<16x32xbf16>
    tpu.vector_store %arg15[%c0_328, %c96_329], %244 {strides = array<i32>} : memref<16x160xbf16, #tpu.memory_space<vmem>>, vector<16x32xbf16>,
    %c10_330 = arith.constant 10 : index
    %c0_331 = arith.constant 0 : index
    %246 = vector.load %arg12[%c10_330, %c0_331] : memref<32x32xbf16, #tpu.memory_space<vmem>>, vector<16x32xbf16>
    %c0_332 = arith.constant 0 : index
    %c128_333 = arith.constant 128 : index
    %247 = vector.load %arg15[%c0_332, %c128_333] : memref<16x160xbf16, #tpu.memory_space<vmem>>, vector<16x32xbf16>
    tpu.vector_store %arg15[%c0_332, %c128_333], %246 {strides = array<i32>} : memref<16x160xbf16, #tpu.memory_space<vmem>>, vector<16x32xbf16>,
    %c0_334 = arith.constant 0 : index
    %c0_335 = arith.constant 0 : index
    %248 = vector.load %arg15[%c0_334, %c0_335] : memref<16x160xbf16, #tpu.memory_space<vmem>>, vector<16x160xbf16>
    %c0_336 = arith.constant 0 : index
    %c0_337 = arith.constant 0 : index
    %249 = vector.load %arg2[%c0_336, %c0_337] : memref<160x32xbf16, #tpu.memory_space<vmem>>, vector<160x32xbf16>
    %cst_338 = arith.constant dense<0.000000e+00> : vector<16x32xf32>
    %250 = tpu.matmul %248, %249, %cst_338 {dimension_numbers = #tpu.dot_dimension_numbers<[1], [0], [0], [1], [0, 0, 1, 1], [], []>} : vector<16x160xbf16>, vector<160x32xbf16>, vector<16x32xf32> -> vector<16x32xf32>
    %c0_339 = arith.constant 0 : index
    %c0_340 = arith.constant 0 : index
    %251 = vector.load %arg3[%c0_339, %c0_340] : memref<1x32xf32, #tpu.memory_space<vmem>>, vector<1x32xf32>
    %252 = vector.broadcast %251 : vector<1x32xf32> to vector<16x32xf32>
    %253 = arith.mulf %250, %252 : vector<16x32xf32>
    %c0_341 = arith.constant 0 : index
    %c0_342 = arith.constant 0 : index
    %254 = vector.load %arg4[%c0_341, %c0_342] : memref<1x32xf32, #tpu.memory_space<vmem>>, vector<1x32xf32>
    %255 = vector.broadcast %254 : vector<1x32xf32> to vector<16x32xf32>
    %256 = arith.addf %253, %255 : vector<16x32xf32>
    %cst_343 = arith.constant 0.000000e+00 : f32
    %257 = vector.broadcast %cst_343 : f32 to vector<16x32xf32>
    %258 = arith.maximumf %256, %257 : vector<16x32xf32>
    %259 = arith.truncf %258 : vector<16x32xf32> to vector<16x32xbf16>
    %c8_344 = arith.constant 8 : index
    %c0_345 = arith.constant 0 : index
    %260 = vector.load %arg13[%c8_344, %c0_345] : memref<32x32xbf16, #tpu.memory_space<vmem>>, vector<16x32xbf16>
    tpu.vector_store %arg13[%c8_344, %c0_345], %259 {strides = array<i32>} : memref<32x32xbf16, #tpu.memory_space<vmem>>, vector<16x32xbf16>,
    %c6_346 = arith.constant 6 : index
    %c0_347 = arith.constant 0 : index
    %261 = vector.load %arg13[%c6_346, %c0_347] : memref<32x32xbf16, #tpu.memory_space<vmem>>, vector<16x32xbf16>
    %c0_348 = arith.constant 0 : index
    %c0_349 = arith.constant 0 : index
    %262 = vector.load %arg15[%c0_348, %c0_349] : memref<16x160xbf16, #tpu.memory_space<vmem>>, vector<16x32xbf16>
    tpu.vector_store %arg15[%c0_348, %c0_349], %261 {strides = array<i32>} : memref<16x160xbf16, #tpu.memory_space<vmem>>, vector<16x32xbf16>,
    %c7_350 = arith.constant 7 : index
    %c0_351 = arith.constant 0 : index
    %263 = vector.load %arg13[%c7_350, %c0_351] : memref<32x32xbf16, #tpu.memory_space<vmem>>, vector<16x32xbf16>
    %c0_352 = arith.constant 0 : index
    %c32_353 = arith.constant 32 : index
    %264 = vector.load %arg15[%c0_352, %c32_353] : memref<16x160xbf16, #tpu.memory_space<vmem>>, vector<16x32xbf16>
    tpu.vector_store %arg15[%c0_352, %c32_353], %263 {strides = array<i32>} : memref<16x160xbf16, #tpu.memory_space<vmem>>, vector<16x32xbf16>,
    %c8_354 = arith.constant 8 : index
    %c0_355 = arith.constant 0 : index
    %265 = vector.load %arg13[%c8_354, %c0_355] : memref<32x32xbf16, #tpu.memory_space<vmem>>, vector<16x32xbf16>
    %c0_356 = arith.constant 0 : index
    %c64_357 = arith.constant 64 : index
    %266 = vector.load %arg15[%c0_356, %c64_357] : memref<16x160xbf16, #tpu.memory_space<vmem>>, vector<16x32xbf16>
    tpu.vector_store %arg15[%c0_356, %c64_357], %265 {strides = array<i32>} : memref<16x160xbf16, #tpu.memory_space<vmem>>, vector<16x32xbf16>,
    %c9_358 = arith.constant 9 : index
    %c0_359 = arith.constant 0 : index
    %267 = vector.load %arg13[%c9_358, %c0_359] : memref<32x32xbf16, #tpu.memory_space<vmem>>, vector<16x32xbf16>
    %c0_360 = arith.constant 0 : index
    %c96_361 = arith.constant 96 : index
    %268 = vector.load %arg15[%c0_360, %c96_361] : memref<16x160xbf16, #tpu.memory_space<vmem>>, vector<16x32xbf16>
    tpu.vector_store %arg15[%c0_360, %c96_361], %267 {strides = array<i32>} : memref<16x160xbf16, #tpu.memory_space<vmem>>, vector<16x32xbf16>,
    %c10_362 = arith.constant 10 : index
    %c0_363 = arith.constant 0 : index
    %269 = vector.load %arg13[%c10_362, %c0_363] : memref<32x32xbf16, #tpu.memory_space<vmem>>, vector<16x32xbf16>
    %c0_364 = arith.constant 0 : index
    %c128_365 = arith.constant 128 : index
    %270 = vector.load %arg15[%c0_364, %c128_365] : memref<16x160xbf16, #tpu.memory_space<vmem>>, vector<16x32xbf16>
    tpu.vector_store %arg15[%c0_364, %c128_365], %269 {strides = array<i32>} : memref<16x160xbf16, #tpu.memory_space<vmem>>, vector<16x32xbf16>,
    %c0_366 = arith.constant 0 : index
    %c0_367 = arith.constant 0 : index
    %271 = vector.load %arg15[%c0_366, %c0_367] : memref<16x160xbf16, #tpu.memory_space<vmem>>, vector<16x160xbf16>
    %c0_368 = arith.constant 0 : index
    %c0_369 = arith.constant 0 : index
    %272 = vector.load %arg5[%c0_368, %c0_369] : memref<160x32xbf16, #tpu.memory_space<vmem>>, vector<160x32xbf16>
    %cst_370 = arith.constant dense<0.000000e+00> : vector<16x32xf32>
    %273 = tpu.matmul %271, %272, %cst_370 {dimension_numbers = #tpu.dot_dimension_numbers<[1], [0], [0], [1], [0, 0, 1, 1], [], []>} : vector<16x160xbf16>, vector<160x32xbf16>, vector<16x32xf32> -> vector<16x32xf32>
    %c0_371 = arith.constant 0 : index
    %c0_372 = arith.constant 0 : index
    %274 = vector.load %arg6[%c0_371, %c0_372] : memref<1x32xf32, #tpu.memory_space<vmem>>, vector<1x32xf32>
    %275 = vector.broadcast %274 : vector<1x32xf32> to vector<16x32xf32>
    %276 = arith.mulf %273, %275 : vector<16x32xf32>
    %c0_373 = arith.constant 0 : index
    %c0_374 = arith.constant 0 : index
    %277 = vector.load %arg7[%c0_373, %c0_374] : memref<1x32xf32, #tpu.memory_space<vmem>>, vector<1x32xf32>
    %278 = vector.broadcast %277 : vector<1x32xf32> to vector<16x32xf32>
    %279 = arith.addf %276, %278 : vector<16x32xf32>
    %cst_375 = arith.constant 0.000000e+00 : f32
    %280 = vector.broadcast %cst_375 : f32 to vector<16x32xf32>
    %281 = arith.maximumf %279, %280 : vector<16x32xf32>
    %282 = arith.truncf %281 : vector<16x32xf32> to vector<16x32xbf16>
    %c8_376 = arith.constant 8 : index
    %c0_377 = arith.constant 0 : index
    %283 = vector.load %arg14[%c8_376, %c0_377] : memref<32x32xbf16, #tpu.memory_space<vmem>>, vector<16x32xbf16>
    tpu.vector_store %arg14[%c8_376, %c0_377], %282 {strides = array<i32>} : memref<32x32xbf16, #tpu.memory_space<vmem>>, vector<16x32xbf16>,
    %c6_378 = arith.constant 6 : index
    %c0_379 = arith.constant 0 : index
    %284 = vector.load %arg14[%c6_378, %c0_379] : memref<32x32xbf16, #tpu.memory_space<vmem>>, vector<16x32xbf16>
    %c0_380 = arith.constant 0 : index
    %c0_381 = arith.constant 0 : index
    %285 = vector.load %arg15[%c0_380, %c0_381] : memref<16x160xbf16, #tpu.memory_space<vmem>>, vector<16x32xbf16>
    tpu.vector_store %arg15[%c0_380, %c0_381], %284 {strides = array<i32>} : memref<16x160xbf16, #tpu.memory_space<vmem>>, vector<16x32xbf16>,
    %c7_382 = arith.constant 7 : index
    %c0_383 = arith.constant 0 : index
    %286 = vector.load %arg14[%c7_382, %c0_383] : memref<32x32xbf16, #tpu.memory_space<vmem>>, vector<16x32xbf16>
    %c0_384 = arith.constant 0 : index
    %c32_385 = arith.constant 32 : index
    %287 = vector.load %arg15[%c0_384, %c32_385] : memref<16x160xbf16, #tpu.memory_space<vmem>>, vector<16x32xbf16>
    tpu.vector_store %arg15[%c0_384, %c32_385], %286 {strides = array<i32>} : memref<16x160xbf16, #tpu.memory_space<vmem>>, vector<16x32xbf16>,
    %c8_386 = arith.constant 8 : index
    %c0_387 = arith.constant 0 : index
    %288 = vector.load %arg14[%c8_386, %c0_387] : memref<32x32xbf16, #tpu.memory_space<vmem>>, vector<16x32xbf16>
    %c0_388 = arith.constant 0 : index
    %c64_389 = arith.constant 64 : index
    %289 = vector.load %arg15[%c0_388, %c64_389] : memref<16x160xbf16, #tpu.memory_space<vmem>>, vector<16x32xbf16>
    tpu.vector_store %arg15[%c0_388, %c64_389], %288 {strides = array<i32>} : memref<16x160xbf16, #tpu.memory_space<vmem>>, vector<16x32xbf16>,
    %c9_390 = arith.constant 9 : index
    %c0_391 = arith.constant 0 : index
    %290 = vector.load %arg14[%c9_390, %c0_391] : memref<32x32xbf16, #tpu.memory_space<vmem>>, vector<16x32xbf16>
    %c0_392 = arith.constant 0 : index
    %c96_393 = arith.constant 96 : index
    %291 = vector.load %arg15[%c0_392, %c96_393] : memref<16x160xbf16, #tpu.memory_space<vmem>>, vector<16x32xbf16>
    tpu.vector_store %arg15[%c0_392, %c96_393], %290 {strides = array<i32>} : memref<16x160xbf16, #tpu.memory_space<vmem>>, vector<16x32xbf16>,
    %c10_394 = arith.constant 10 : index
    %c0_395 = arith.constant 0 : index
    %292 = vector.load %arg14[%c10_394, %c0_395] : memref<32x32xbf16, #tpu.memory_space<vmem>>, vector<16x32xbf16>
    %c0_396 = arith.constant 0 : index
    %c128_397 = arith.constant 128 : index
    %293 = vector.load %arg15[%c0_396, %c128_397] : memref<16x160xbf16, #tpu.memory_space<vmem>>, vector<16x32xbf16>
    tpu.vector_store %arg15[%c0_396, %c128_397], %292 {strides = array<i32>} : memref<16x160xbf16, #tpu.memory_space<vmem>>, vector<16x32xbf16>,
    %c0_398 = arith.constant 0 : index
    %c0_399 = arith.constant 0 : index
    %294 = vector.load %arg15[%c0_398, %c0_399] : memref<16x160xbf16, #tpu.memory_space<vmem>>, vector<16x160xbf16>
    %c0_400 = arith.constant 0 : index
    %c0_401 = arith.constant 0 : index
    %295 = vector.load %arg8[%c0_400, %c0_401] : memref<160x32xbf16, #tpu.memory_space<vmem>>, vector<160x32xbf16>
    %cst_402 = arith.constant dense<0.000000e+00> : vector<16x32xf32>
    %296 = tpu.matmul %294, %295, %cst_402 {dimension_numbers = #tpu.dot_dimension_numbers<[1], [0], [0], [1], [0, 0, 1, 1], [], []>} : vector<16x160xbf16>, vector<160x32xbf16>, vector<16x32xf32> -> vector<16x32xf32>
    %c0_403 = arith.constant 0 : index
    %c0_404 = arith.constant 0 : index
    %297 = vector.load %arg9[%c0_403, %c0_404] : memref<1x32xf32, #tpu.memory_space<vmem>>, vector<1x32xf32>
    %298 = vector.broadcast %297 : vector<1x32xf32> to vector<16x32xf32>
    %299 = arith.mulf %296, %298 : vector<16x32xf32>
    %c0_405 = arith.constant 0 : index
    %c0_406 = arith.constant 0 : index
    %300 = vector.load %arg10[%c0_405, %c0_406] : memref<1x32xf32, #tpu.memory_space<vmem>>, vector<1x32xf32>
    %301 = vector.broadcast %300 : vector<1x32xf32> to vector<16x32xf32>
    %302 = arith.addf %299, %301 : vector<16x32xf32>
    %cst_407 = arith.constant 0.000000e+00 : f32
    %303 = vector.broadcast %cst_407 : f32 to vector<16x32xf32>
    %304 = arith.maximumf %302, %303 : vector<16x32xf32>
    %c0_408 = arith.constant 0 : index
    %c3_409 = arith.constant 3 : index
    %c0_410 = arith.constant 0 : index
    %305 = vector.load %arg11[%c0_408, %c3_409, %c0_410] : memref<16x8x32xf32, #tpu.memory_space<vmem>>, vector<16x1x32xf32>
    %306 = vector.shape_cast %305 : vector<16x1x32xf32> to vector<16x32xf32>
    %307 = vector.shape_cast %304 : vector<16x32xf32> to vector<16x1x32xf32>
    tpu.vector_store %arg11[%c0_408, %c3_409, %c0_410], %307 {strides = array<i32>} : memref<16x8x32xf32, #tpu.memory_space<vmem>>, vector<16x1x32xf32>,
    %c0_411 = arith.constant 0 : index
    %c4 = arith.constant 4 : index
    %c0_412 = arith.constant 0 : index
    %308 = vector.load %arg1[%c0_411, %c4, %c0_412] : memref<16x8x32xf32, #tpu.memory_space<vmem>>, vector<16x1x32xf32>
    %309 = vector.shape_cast %308 : vector<16x1x32xf32> to vector<16x32xf32>
    %310 = arith.truncf %309 : vector<16x32xf32> to vector<16x32xbf16>
    %c8_413 = arith.constant 8 : index
    %c0_414 = arith.constant 0 : index
    %311 = vector.load %arg12[%c8_413, %c0_414] : memref<32x32xbf16, #tpu.memory_space<vmem>>, vector<16x32xbf16>
    tpu.vector_store %arg12[%c8_413, %c0_414], %310 {strides = array<i32>} : memref<32x32xbf16, #tpu.memory_space<vmem>>, vector<16x32xbf16>,
    %c6_415 = arith.constant 6 : index
    %c0_416 = arith.constant 0 : index
    %312 = vector.load %arg12[%c6_415, %c0_416] : memref<32x32xbf16, #tpu.memory_space<vmem>>, vector<16x32xbf16>
    %c0_417 = arith.constant 0 : index
    %c0_418 = arith.constant 0 : index
    %313 = vector.load %arg15[%c0_417, %c0_418] : memref<16x160xbf16, #tpu.memory_space<vmem>>, vector<16x32xbf16>
    tpu.vector_store %arg15[%c0_417, %c0_418], %312 {strides = array<i32>} : memref<16x160xbf16, #tpu.memory_space<vmem>>, vector<16x32xbf16>,
    %c7_419 = arith.constant 7 : index
    %c0_420 = arith.constant 0 : index
    %314 = vector.load %arg12[%c7_419, %c0_420] : memref<32x32xbf16, #tpu.memory_space<vmem>>, vector<16x32xbf16>
    %c0_421 = arith.constant 0 : index
    %c32_422 = arith.constant 32 : index
    %315 = vector.load %arg15[%c0_421, %c32_422] : memref<16x160xbf16, #tpu.memory_space<vmem>>, vector<16x32xbf16>
    tpu.vector_store %arg15[%c0_421, %c32_422], %314 {strides = array<i32>} : memref<16x160xbf16, #tpu.memory_space<vmem>>, vector<16x32xbf16>,
    %c8_423 = arith.constant 8 : index
    %c0_424 = arith.constant 0 : index
    %316 = vector.load %arg12[%c8_423, %c0_424] : memref<32x32xbf16, #tpu.memory_space<vmem>>, vector<16x32xbf16>
    %c0_425 = arith.constant 0 : index
    %c64_426 = arith.constant 64 : index
    %317 = vector.load %arg15[%c0_425, %c64_426] : memref<16x160xbf16, #tpu.memory_space<vmem>>, vector<16x32xbf16>
    tpu.vector_store %arg15[%c0_425, %c64_426], %316 {strides = array<i32>} : memref<16x160xbf16, #tpu.memory_space<vmem>>, vector<16x32xbf16>,
    %c9_427 = arith.constant 9 : index
    %c0_428 = arith.constant 0 : index
    %318 = vector.load %arg12[%c9_427, %c0_428] : memref<32x32xbf16, #tpu.memory_space<vmem>>, vector<16x32xbf16>
    %c0_429 = arith.constant 0 : index
    %c96_430 = arith.constant 96 : index
    %319 = vector.load %arg15[%c0_429, %c96_430] : memref<16x160xbf16, #tpu.memory_space<vmem>>, vector<16x32xbf16>
    tpu.vector_store %arg15[%c0_429, %c96_430], %318 {strides = array<i32>} : memref<16x160xbf16, #tpu.memory_space<vmem>>, vector<16x32xbf16>,
    %c10_431 = arith.constant 10 : index
    %c0_432 = arith.constant 0 : index
    %320 = vector.load %arg12[%c10_431, %c0_432] : memref<32x32xbf16, #tpu.memory_space<vmem>>, vector<16x32xbf16>
    %c0_433 = arith.constant 0 : index
    %c128_434 = arith.constant 128 : index
    %321 = vector.load %arg15[%c0_433, %c128_434] : memref<16x160xbf16, #tpu.memory_space<vmem>>, vector<16x32xbf16>
    tpu.vector_store %arg15[%c0_433, %c128_434], %320 {strides = array<i32>} : memref<16x160xbf16, #tpu.memory_space<vmem>>, vector<16x32xbf16>,
    %c0_435 = arith.constant 0 : index
    %c0_436 = arith.constant 0 : index
    %322 = vector.load %arg15[%c0_435, %c0_436] : memref<16x160xbf16, #tpu.memory_space<vmem>>, vector<16x160xbf16>
    %c0_437 = arith.constant 0 : index
    %c0_438 = arith.constant 0 : index
    %323 = vector.load %arg2[%c0_437, %c0_438] : memref<160x32xbf16, #tpu.memory_space<vmem>>, vector<160x32xbf16>
    %cst_439 = arith.constant dense<0.000000e+00> : vector<16x32xf32>
    %324 = tpu.matmul %322, %323, %cst_439 {dimension_numbers = #tpu.dot_dimension_numbers<[1], [0], [0], [1], [0, 0, 1, 1], [], []>} : vector<16x160xbf16>, vector<160x32xbf16>, vector<16x32xf32> -> vector<16x32xf32>
    %c0_440 = arith.constant 0 : index
    %c0_441 = arith.constant 0 : index
    %325 = vector.load %arg3[%c0_440, %c0_441] : memref<1x32xf32, #tpu.memory_space<vmem>>, vector<1x32xf32>
    %326 = vector.broadcast %325 : vector<1x32xf32> to vector<16x32xf32>
    %327 = arith.mulf %324, %326 : vector<16x32xf32>
    %c0_442 = arith.constant 0 : index
    %c0_443 = arith.constant 0 : index
    %328 = vector.load %arg4[%c0_442, %c0_443] : memref<1x32xf32, #tpu.memory_space<vmem>>, vector<1x32xf32>
    %329 = vector.broadcast %328 : vector<1x32xf32> to vector<16x32xf32>
    %330 = arith.addf %327, %329 : vector<16x32xf32>
    %cst_444 = arith.constant 0.000000e+00 : f32
    %331 = vector.broadcast %cst_444 : f32 to vector<16x32xf32>
    %332 = arith.maximumf %330, %331 : vector<16x32xf32>
    %333 = arith.truncf %332 : vector<16x32xf32> to vector<16x32xbf16>
    %c8_445 = arith.constant 8 : index
    %c0_446 = arith.constant 0 : index
    %334 = vector.load %arg13[%c8_445, %c0_446] : memref<32x32xbf16, #tpu.memory_space<vmem>>, vector<16x32xbf16>
    tpu.vector_store %arg13[%c8_445, %c0_446], %333 {strides = array<i32>} : memref<32x32xbf16, #tpu.memory_space<vmem>>, vector<16x32xbf16>,
    %c6_447 = arith.constant 6 : index
    %c0_448 = arith.constant 0 : index
    %335 = vector.load %arg13[%c6_447, %c0_448] : memref<32x32xbf16, #tpu.memory_space<vmem>>, vector<16x32xbf16>
    %c0_449 = arith.constant 0 : index
    %c0_450 = arith.constant 0 : index
    %336 = vector.load %arg15[%c0_449, %c0_450] : memref<16x160xbf16, #tpu.memory_space<vmem>>, vector<16x32xbf16>
    tpu.vector_store %arg15[%c0_449, %c0_450], %335 {strides = array<i32>} : memref<16x160xbf16, #tpu.memory_space<vmem>>, vector<16x32xbf16>,
    %c7_451 = arith.constant 7 : index
    %c0_452 = arith.constant 0 : index
    %337 = vector.load %arg13[%c7_451, %c0_452] : memref<32x32xbf16, #tpu.memory_space<vmem>>, vector<16x32xbf16>
    %c0_453 = arith.constant 0 : index
    %c32_454 = arith.constant 32 : index
    %338 = vector.load %arg15[%c0_453, %c32_454] : memref<16x160xbf16, #tpu.memory_space<vmem>>, vector<16x32xbf16>
    tpu.vector_store %arg15[%c0_453, %c32_454], %337 {strides = array<i32>} : memref<16x160xbf16, #tpu.memory_space<vmem>>, vector<16x32xbf16>,
    %c8_455 = arith.constant 8 : index
    %c0_456 = arith.constant 0 : index
    %339 = vector.load %arg13[%c8_455, %c0_456] : memref<32x32xbf16, #tpu.memory_space<vmem>>, vector<16x32xbf16>
    %c0_457 = arith.constant 0 : index
    %c64_458 = arith.constant 64 : index
    %340 = vector.load %arg15[%c0_457, %c64_458] : memref<16x160xbf16, #tpu.memory_space<vmem>>, vector<16x32xbf16>
    tpu.vector_store %arg15[%c0_457, %c64_458], %339 {strides = array<i32>} : memref<16x160xbf16, #tpu.memory_space<vmem>>, vector<16x32xbf16>,
    %c9_459 = arith.constant 9 : index
    %c0_460 = arith.constant 0 : index
    %341 = vector.load %arg13[%c9_459, %c0_460] : memref<32x32xbf16, #tpu.memory_space<vmem>>, vector<16x32xbf16>
    %c0_461 = arith.constant 0 : index
    %c96_462 = arith.constant 96 : index
    %342 = vector.load %arg15[%c0_461, %c96_462] : memref<16x160xbf16, #tpu.memory_space<vmem>>, vector<16x32xbf16>
    tpu.vector_store %arg15[%c0_461, %c96_462], %341 {strides = array<i32>} : memref<16x160xbf16, #tpu.memory_space<vmem>>, vector<16x32xbf16>,
    %c10_463 = arith.constant 10 : index
    %c0_464 = arith.constant 0 : index
    %343 = vector.load %arg13[%c10_463, %c0_464] : memref<32x32xbf16, #tpu.memory_space<vmem>>, vector<16x32xbf16>
    %c0_465 = arith.constant 0 : index
    %c128_466 = arith.constant 128 : index
    %344 = vector.load %arg15[%c0_465, %c128_466] : memref<16x160xbf16, #tpu.memory_space<vmem>>, vector<16x32xbf16>
    tpu.vector_store %arg15[%c0_465, %c128_466], %343 {strides = array<i32>} : memref<16x160xbf16, #tpu.memory_space<vmem>>, vector<16x32xbf16>,
    %c0_467 = arith.constant 0 : index
    %c0_468 = arith.constant 0 : index
    %345 = vector.load %arg15[%c0_467, %c0_468] : memref<16x160xbf16, #tpu.memory_space<vmem>>, vector<16x160xbf16>
    %c0_469 = arith.constant 0 : index
    %c0_470 = arith.constant 0 : index
    %346 = vector.load %arg5[%c0_469, %c0_470] : memref<160x32xbf16, #tpu.memory_space<vmem>>, vector<160x32xbf16>
    %cst_471 = arith.constant dense<0.000000e+00> : vector<16x32xf32>
    %347 = tpu.matmul %345, %346, %cst_471 {dimension_numbers = #tpu.dot_dimension_numbers<[1], [0], [0], [1], [0, 0, 1, 1], [], []>} : vector<16x160xbf16>, vector<160x32xbf16>, vector<16x32xf32> -> vector<16x32xf32>
    %c0_472 = arith.constant 0 : index
    %c0_473 = arith.constant 0 : index
    %348 = vector.load %arg6[%c0_472, %c0_473] : memref<1x32xf32, #tpu.memory_space<vmem>>, vector<1x32xf32>
    %349 = vector.broadcast %348 : vector<1x32xf32> to vector<16x32xf32>
    %350 = arith.mulf %347, %349 : vector<16x32xf32>
    %c0_474 = arith.constant 0 : index
    %c0_475 = arith.constant 0 : index
    %351 = vector.load %arg7[%c0_474, %c0_475] : memref<1x32xf32, #tpu.memory_space<vmem>>, vector<1x32xf32>
    %352 = vector.broadcast %351 : vector<1x32xf32> to vector<16x32xf32>
    %353 = arith.addf %350, %352 : vector<16x32xf32>
    %cst_476 = arith.constant 0.000000e+00 : f32
    %354 = vector.broadcast %cst_476 : f32 to vector<16x32xf32>
    %355 = arith.maximumf %353, %354 : vector<16x32xf32>
    %356 = arith.truncf %355 : vector<16x32xf32> to vector<16x32xbf16>
    %c8_477 = arith.constant 8 : index
    %c0_478 = arith.constant 0 : index
    %357 = vector.load %arg14[%c8_477, %c0_478] : memref<32x32xbf16, #tpu.memory_space<vmem>>, vector<16x32xbf16>
    tpu.vector_store %arg14[%c8_477, %c0_478], %356 {strides = array<i32>} : memref<32x32xbf16, #tpu.memory_space<vmem>>, vector<16x32xbf16>,
    %c6_479 = arith.constant 6 : index
    %c0_480 = arith.constant 0 : index
    %358 = vector.load %arg14[%c6_479, %c0_480] : memref<32x32xbf16, #tpu.memory_space<vmem>>, vector<16x32xbf16>
    %c0_481 = arith.constant 0 : index
    %c0_482 = arith.constant 0 : index
    %359 = vector.load %arg15[%c0_481, %c0_482] : memref<16x160xbf16, #tpu.memory_space<vmem>>, vector<16x32xbf16>
    tpu.vector_store %arg15[%c0_481, %c0_482], %358 {strides = array<i32>} : memref<16x160xbf16, #tpu.memory_space<vmem>>, vector<16x32xbf16>,
    %c7_483 = arith.constant 7 : index
    %c0_484 = arith.constant 0 : index
    %360 = vector.load %arg14[%c7_483, %c0_484] : memref<32x32xbf16, #tpu.memory_space<vmem>>, vector<16x32xbf16>
    %c0_485 = arith.constant 0 : index
    %c32_486 = arith.constant 32 : index
    %361 = vector.load %arg15[%c0_485, %c32_486] : memref<16x160xbf16, #tpu.memory_space<vmem>>, vector<16x32xbf16>
    tpu.vector_store %arg15[%c0_485, %c32_486], %360 {strides = array<i32>} : memref<16x160xbf16, #tpu.memory_space<vmem>>, vector<16x32xbf16>,
    %c8_487 = arith.constant 8 : index
    %c0_488 = arith.constant 0 : index
    %362 = vector.load %arg14[%c8_487, %c0_488] : memref<32x32xbf16, #tpu.memory_space<vmem>>, vector<16x32xbf16>
    %c0_489 = arith.constant 0 : index
    %c64_490 = arith.constant 64 : index
    %363 = vector.load %arg15[%c0_489, %c64_490] : memref<16x160xbf16, #tpu.memory_space<vmem>>, vector<16x32xbf16>
    tpu.vector_store %arg15[%c0_489, %c64_490], %362 {strides = array<i32>} : memref<16x160xbf16, #tpu.memory_space<vmem>>, vector<16x32xbf16>,
    %c9_491 = arith.constant 9 : index
    %c0_492 = arith.constant 0 : index
    %364 = vector.load %arg14[%c9_491, %c0_492] : memref<32x32xbf16, #tpu.memory_space<vmem>>, vector<16x32xbf16>
    %c0_493 = arith.constant 0 : index
    %c96_494 = arith.constant 96 : index
    %365 = vector.load %arg15[%c0_493, %c96_494] : memref<16x160xbf16, #tpu.memory_space<vmem>>, vector<16x32xbf16>
    tpu.vector_store %arg15[%c0_493, %c96_494], %364 {strides = array<i32>} : memref<16x160xbf16, #tpu.memory_space<vmem>>, vector<16x32xbf16>,
    %c10_495 = arith.constant 10 : index
    %c0_496 = arith.constant 0 : index
    %366 = vector.load %arg14[%c10_495, %c0_496] : memref<32x32xbf16, #tpu.memory_space<vmem>>, vector<16x32xbf16>
    %c0_497 = arith.constant 0 : index
    %c128_498 = arith.constant 128 : index
    %367 = vector.load %arg15[%c0_497, %c128_498] : memref<16x160xbf16, #tpu.memory_space<vmem>>, vector<16x32xbf16>
    tpu.vector_store %arg15[%c0_497, %c128_498], %366 {strides = array<i32>} : memref<16x160xbf16, #tpu.memory_space<vmem>>, vector<16x32xbf16>,
    %c0_499 = arith.constant 0 : index
    %c0_500 = arith.constant 0 : index
    %368 = vector.load %arg15[%c0_499, %c0_500] : memref<16x160xbf16, #tpu.memory_space<vmem>>, vector<16x160xbf16>
    %c0_501 = arith.constant 0 : index
    %c0_502 = arith.constant 0 : index
    %369 = vector.load %arg8[%c0_501, %c0_502] : memref<160x32xbf16, #tpu.memory_space<vmem>>, vector<160x32xbf16>
    %cst_503 = arith.constant dense<0.000000e+00> : vector<16x32xf32>
    %370 = tpu.matmul %368, %369, %cst_503 {dimension_numbers = #tpu.dot_dimension_numbers<[1], [0], [0], [1], [0, 0, 1, 1], [], []>} : vector<16x160xbf16>, vector<160x32xbf16>, vector<16x32xf32> -> vector<16x32xf32>
    %c0_504 = arith.constant 0 : index
    %c0_505 = arith.constant 0 : index
    %371 = vector.load %arg9[%c0_504, %c0_505] : memref<1x32xf32, #tpu.memory_space<vmem>>, vector<1x32xf32>
    %372 = vector.broadcast %371 : vector<1x32xf32> to vector<16x32xf32>
    %373 = arith.mulf %370, %372 : vector<16x32xf32>
    %c0_506 = arith.constant 0 : index
    %c0_507 = arith.constant 0 : index
    %374 = vector.load %arg10[%c0_506, %c0_507] : memref<1x32xf32, #tpu.memory_space<vmem>>, vector<1x32xf32>
    %375 = vector.broadcast %374 : vector<1x32xf32> to vector<16x32xf32>
    %376 = arith.addf %373, %375 : vector<16x32xf32>
    %cst_508 = arith.constant 0.000000e+00 : f32
    %377 = vector.broadcast %cst_508 : f32 to vector<16x32xf32>
    %378 = arith.maximumf %376, %377 : vector<16x32xf32>
    %c0_509 = arith.constant 0 : index
    %c4_510 = arith.constant 4 : index
    %c0_511 = arith.constant 0 : index
    %379 = vector.load %arg11[%c0_509, %c4_510, %c0_511] : memref<16x8x32xf32, #tpu.memory_space<vmem>>, vector<16x1x32xf32>
    %380 = vector.shape_cast %379 : vector<16x1x32xf32> to vector<16x32xf32>
    %381 = vector.shape_cast %378 : vector<16x32xf32> to vector<16x1x32xf32>
    tpu.vector_store %arg11[%c0_509, %c4_510, %c0_511], %381 {strides = array<i32>} : memref<16x8x32xf32, #tpu.memory_space<vmem>>, vector<16x1x32xf32>,
    %c0_512 = arith.constant 0 : index
    %c5 = arith.constant 5 : index
    %c0_513 = arith.constant 0 : index
    %382 = vector.load %arg1[%c0_512, %c5, %c0_513] : memref<16x8x32xf32, #tpu.memory_space<vmem>>, vector<16x1x32xf32>
    %383 = vector.shape_cast %382 : vector<16x1x32xf32> to vector<16x32xf32>
    %384 = arith.truncf %383 : vector<16x32xf32> to vector<16x32xbf16>
    %c8_514 = arith.constant 8 : index
    %c0_515 = arith.constant 0 : index
    %385 = vector.load %arg12[%c8_514, %c0_515] : memref<32x32xbf16, #tpu.memory_space<vmem>>, vector<16x32xbf16>
    tpu.vector_store %arg12[%c8_514, %c0_515], %384 {strides = array<i32>} : memref<32x32xbf16, #tpu.memory_space<vmem>>, vector<16x32xbf16>,
    %c6_516 = arith.constant 6 : index
    %c0_517 = arith.constant 0 : index
    %386 = vector.load %arg12[%c6_516, %c0_517] : memref<32x32xbf16, #tpu.memory_space<vmem>>, vector<16x32xbf16>
    %c0_518 = arith.constant 0 : index
    %c0_519 = arith.constant 0 : index
    %387 = vector.load %arg15[%c0_518, %c0_519] : memref<16x160xbf16, #tpu.memory_space<vmem>>, vector<16x32xbf16>
    tpu.vector_store %arg15[%c0_518, %c0_519], %386 {strides = array<i32>} : memref<16x160xbf16, #tpu.memory_space<vmem>>, vector<16x32xbf16>,
    %c7_520 = arith.constant 7 : index
    %c0_521 = arith.constant 0 : index
    %388 = vector.load %arg12[%c7_520, %c0_521] : memref<32x32xbf16, #tpu.memory_space<vmem>>, vector<16x32xbf16>
    %c0_522 = arith.constant 0 : index
    %c32_523 = arith.constant 32 : index
    %389 = vector.load %arg15[%c0_522, %c32_523] : memref<16x160xbf16, #tpu.memory_space<vmem>>, vector<16x32xbf16>
    tpu.vector_store %arg15[%c0_522, %c32_523], %388 {strides = array<i32>} : memref<16x160xbf16, #tpu.memory_space<vmem>>, vector<16x32xbf16>,
    %c8_524 = arith.constant 8 : index
    %c0_525 = arith.constant 0 : index
    %390 = vector.load %arg12[%c8_524, %c0_525] : memref<32x32xbf16, #tpu.memory_space<vmem>>, vector<16x32xbf16>
    %c0_526 = arith.constant 0 : index
    %c64_527 = arith.constant 64 : index
    %391 = vector.load %arg15[%c0_526, %c64_527] : memref<16x160xbf16, #tpu.memory_space<vmem>>, vector<16x32xbf16>
    tpu.vector_store %arg15[%c0_526, %c64_527], %390 {strides = array<i32>} : memref<16x160xbf16, #tpu.memory_space<vmem>>, vector<16x32xbf16>,
    %c9_528 = arith.constant 9 : index
    %c0_529 = arith.constant 0 : index
    %392 = vector.load %arg12[%c9_528, %c0_529] : memref<32x32xbf16, #tpu.memory_space<vmem>>, vector<16x32xbf16>
    %c0_530 = arith.constant 0 : index
    %c96_531 = arith.constant 96 : index
    %393 = vector.load %arg15[%c0_530, %c96_531] : memref<16x160xbf16, #tpu.memory_space<vmem>>, vector<16x32xbf16>
    tpu.vector_store %arg15[%c0_530, %c96_531], %392 {strides = array<i32>} : memref<16x160xbf16, #tpu.memory_space<vmem>>, vector<16x32xbf16>,
    %c10_532 = arith.constant 10 : index
    %c0_533 = arith.constant 0 : index
    %394 = vector.load %arg12[%c10_532, %c0_533] : memref<32x32xbf16, #tpu.memory_space<vmem>>, vector<16x32xbf16>
    %c0_534 = arith.constant 0 : index
    %c128_535 = arith.constant 128 : index
    %395 = vector.load %arg15[%c0_534, %c128_535] : memref<16x160xbf16, #tpu.memory_space<vmem>>, vector<16x32xbf16>
    tpu.vector_store %arg15[%c0_534, %c128_535], %394 {strides = array<i32>} : memref<16x160xbf16, #tpu.memory_space<vmem>>, vector<16x32xbf16>,
    %c0_536 = arith.constant 0 : index
    %c0_537 = arith.constant 0 : index
    %396 = vector.load %arg15[%c0_536, %c0_537] : memref<16x160xbf16, #tpu.memory_space<vmem>>, vector<16x160xbf16>
    %c0_538 = arith.constant 0 : index
    %c0_539 = arith.constant 0 : index
    %397 = vector.load %arg2[%c0_538, %c0_539] : memref<160x32xbf16, #tpu.memory_space<vmem>>, vector<160x32xbf16>
    %cst_540 = arith.constant dense<0.000000e+00> : vector<16x32xf32>
    %398 = tpu.matmul %396, %397, %cst_540 {dimension_numbers = #tpu.dot_dimension_numbers<[1], [0], [0], [1], [0, 0, 1, 1], [], []>} : vector<16x160xbf16>, vector<160x32xbf16>, vector<16x32xf32> -> vector<16x32xf32>
    %c0_541 = arith.constant 0 : index
    %c0_542 = arith.constant 0 : index
    %399 = vector.load %arg3[%c0_541, %c0_542] : memref<1x32xf32, #tpu.memory_space<vmem>>, vector<1x32xf32>
    %400 = vector.broadcast %399 : vector<1x32xf32> to vector<16x32xf32>
    %401 = arith.mulf %398, %400 : vector<16x32xf32>
    %c0_543 = arith.constant 0 : index
    %c0_544 = arith.constant 0 : index
    %402 = vector.load %arg4[%c0_543, %c0_544] : memref<1x32xf32, #tpu.memory_space<vmem>>, vector<1x32xf32>
    %403 = vector.broadcast %402 : vector<1x32xf32> to vector<16x32xf32>
    %404 = arith.addf %401, %403 : vector<16x32xf32>
    %cst_545 = arith.constant 0.000000e+00 : f32
    %405 = vector.broadcast %cst_545 : f32 to vector<16x32xf32>
    %406 = arith.maximumf %404, %405 : vector<16x32xf32>
    %407 = arith.truncf %406 : vector<16x32xf32> to vector<16x32xbf16>
    %c8_546 = arith.constant 8 : index
    %c0_547 = arith.constant 0 : index
    %408 = vector.load %arg13[%c8_546, %c0_547] : memref<32x32xbf16, #tpu.memory_space<vmem>>, vector<16x32xbf16>
    tpu.vector_store %arg13[%c8_546, %c0_547], %407 {strides = array<i32>} : memref<32x32xbf16, #tpu.memory_space<vmem>>, vector<16x32xbf16>,
    %c6_548 = arith.constant 6 : index
    %c0_549 = arith.constant 0 : index
    %409 = vector.load %arg13[%c6_548, %c0_549] : memref<32x32xbf16, #tpu.memory_space<vmem>>, vector<16x32xbf16>
    %c0_550 = arith.constant 0 : index
    %c0_551 = arith.constant 0 : index
    %410 = vector.load %arg15[%c0_550, %c0_551] : memref<16x160xbf16, #tpu.memory_space<vmem>>, vector<16x32xbf16>
    tpu.vector_store %arg15[%c0_550, %c0_551], %409 {strides = array<i32>} : memref<16x160xbf16, #tpu.memory_space<vmem>>, vector<16x32xbf16>,
    %c7_552 = arith.constant 7 : index
    %c0_553 = arith.constant 0 : index
    %411 = vector.load %arg13[%c7_552, %c0_553] : memref<32x32xbf16, #tpu.memory_space<vmem>>, vector<16x32xbf16>
    %c0_554 = arith.constant 0 : index
    %c32_555 = arith.constant 32 : index
    %412 = vector.load %arg15[%c0_554, %c32_555] : memref<16x160xbf16, #tpu.memory_space<vmem>>, vector<16x32xbf16>
    tpu.vector_store %arg15[%c0_554, %c32_555], %411 {strides = array<i32>} : memref<16x160xbf16, #tpu.memory_space<vmem>>, vector<16x32xbf16>,
    %c8_556 = arith.constant 8 : index
    %c0_557 = arith.constant 0 : index
    %413 = vector.load %arg13[%c8_556, %c0_557] : memref<32x32xbf16, #tpu.memory_space<vmem>>, vector<16x32xbf16>
    %c0_558 = arith.constant 0 : index
    %c64_559 = arith.constant 64 : index
    %414 = vector.load %arg15[%c0_558, %c64_559] : memref<16x160xbf16, #tpu.memory_space<vmem>>, vector<16x32xbf16>
    tpu.vector_store %arg15[%c0_558, %c64_559], %413 {strides = array<i32>} : memref<16x160xbf16, #tpu.memory_space<vmem>>, vector<16x32xbf16>,
    %c9_560 = arith.constant 9 : index
    %c0_561 = arith.constant 0 : index
    %415 = vector.load %arg13[%c9_560, %c0_561] : memref<32x32xbf16, #tpu.memory_space<vmem>>, vector<16x32xbf16>
    %c0_562 = arith.constant 0 : index
    %c96_563 = arith.constant 96 : index
    %416 = vector.load %arg15[%c0_562, %c96_563] : memref<16x160xbf16, #tpu.memory_space<vmem>>, vector<16x32xbf16>
    tpu.vector_store %arg15[%c0_562, %c96_563], %415 {strides = array<i32>} : memref<16x160xbf16, #tpu.memory_space<vmem>>, vector<16x32xbf16>,
    %c10_564 = arith.constant 10 : index
    %c0_565 = arith.constant 0 : index
    %417 = vector.load %arg13[%c10_564, %c0_565] : memref<32x32xbf16, #tpu.memory_space<vmem>>, vector<16x32xbf16>
    %c0_566 = arith.constant 0 : index
    %c128_567 = arith.constant 128 : index
    %418 = vector.load %arg15[%c0_566, %c128_567] : memref<16x160xbf16, #tpu.memory_space<vmem>>, vector<16x32xbf16>
    tpu.vector_store %arg15[%c0_566, %c128_567], %417 {strides = array<i32>} : memref<16x160xbf16, #tpu.memory_space<vmem>>, vector<16x32xbf16>,
    %c0_568 = arith.constant 0 : index
    %c0_569 = arith.constant 0 : index
    %419 = vector.load %arg15[%c0_568, %c0_569] : memref<16x160xbf16, #tpu.memory_space<vmem>>, vector<16x160xbf16>
    %c0_570 = arith.constant 0 : index
    %c0_571 = arith.constant 0 : index
    %420 = vector.load %arg5[%c0_570, %c0_571] : memref<160x32xbf16, #tpu.memory_space<vmem>>, vector<160x32xbf16>
    %cst_572 = arith.constant dense<0.000000e+00> : vector<16x32xf32>
    %421 = tpu.matmul %419, %420, %cst_572 {dimension_numbers = #tpu.dot_dimension_numbers<[1], [0], [0], [1], [0, 0, 1, 1], [], []>} : vector<16x160xbf16>, vector<160x32xbf16>, vector<16x32xf32> -> vector<16x32xf32>
    %c0_573 = arith.constant 0 : index
    %c0_574 = arith.constant 0 : index
    %422 = vector.load %arg6[%c0_573, %c0_574] : memref<1x32xf32, #tpu.memory_space<vmem>>, vector<1x32xf32>
    %423 = vector.broadcast %422 : vector<1x32xf32> to vector<16x32xf32>
    %424 = arith.mulf %421, %423 : vector<16x32xf32>
    %c0_575 = arith.constant 0 : index
    %c0_576 = arith.constant 0 : index
    %425 = vector.load %arg7[%c0_575, %c0_576] : memref<1x32xf32, #tpu.memory_space<vmem>>, vector<1x32xf32>
    %426 = vector.broadcast %425 : vector<1x32xf32> to vector<16x32xf32>
    %427 = arith.addf %424, %426 : vector<16x32xf32>
    %cst_577 = arith.constant 0.000000e+00 : f32
    %428 = vector.broadcast %cst_577 : f32 to vector<16x32xf32>
    %429 = arith.maximumf %427, %428 : vector<16x32xf32>
    %430 = arith.truncf %429 : vector<16x32xf32> to vector<16x32xbf16>
    %c8_578 = arith.constant 8 : index
    %c0_579 = arith.constant 0 : index
    %431 = vector.load %arg14[%c8_578, %c0_579] : memref<32x32xbf16, #tpu.memory_space<vmem>>, vector<16x32xbf16>
    tpu.vector_store %arg14[%c8_578, %c0_579], %430 {strides = array<i32>} : memref<32x32xbf16, #tpu.memory_space<vmem>>, vector<16x32xbf16>,
    %c6_580 = arith.constant 6 : index
    %c0_581 = arith.constant 0 : index
    %432 = vector.load %arg14[%c6_580, %c0_581] : memref<32x32xbf16, #tpu.memory_space<vmem>>, vector<16x32xbf16>
    %c0_582 = arith.constant 0 : index
    %c0_583 = arith.constant 0 : index
    %433 = vector.load %arg15[%c0_582, %c0_583] : memref<16x160xbf16, #tpu.memory_space<vmem>>, vector<16x32xbf16>
    tpu.vector_store %arg15[%c0_582, %c0_583], %432 {strides = array<i32>} : memref<16x160xbf16, #tpu.memory_space<vmem>>, vector<16x32xbf16>,
    %c7_584 = arith.constant 7 : index
    %c0_585 = arith.constant 0 : index
    %434 = vector.load %arg14[%c7_584, %c0_585] : memref<32x32xbf16, #tpu.memory_space<vmem>>, vector<16x32xbf16>
    %c0_586 = arith.constant 0 : index
    %c32_587 = arith.constant 32 : index
    %435 = vector.load %arg15[%c0_586, %c32_587] : memref<16x160xbf16, #tpu.memory_space<vmem>>, vector<16x32xbf16>
    tpu.vector_store %arg15[%c0_586, %c32_587], %434 {strides = array<i32>} : memref<16x160xbf16, #tpu.memory_space<vmem>>, vector<16x32xbf16>,
    %c8_588 = arith.constant 8 : index
    %c0_589 = arith.constant 0 : index
    %436 = vector.load %arg14[%c8_588, %c0_589] : memref<32x32xbf16, #tpu.memory_space<vmem>>, vector<16x32xbf16>
    %c0_590 = arith.constant 0 : index
    %c64_591 = arith.constant 64 : index
    %437 = vector.load %arg15[%c0_590, %c64_591] : memref<16x160xbf16, #tpu.memory_space<vmem>>, vector<16x32xbf16>
    tpu.vector_store %arg15[%c0_590, %c64_591], %436 {strides = array<i32>} : memref<16x160xbf16, #tpu.memory_space<vmem>>, vector<16x32xbf16>,
    %c9_592 = arith.constant 9 : index
    %c0_593 = arith.constant 0 : index
    %438 = vector.load %arg14[%c9_592, %c0_593] : memref<32x32xbf16, #tpu.memory_space<vmem>>, vector<16x32xbf16>
    %c0_594 = arith.constant 0 : index
    %c96_595 = arith.constant 96 : index
    %439 = vector.load %arg15[%c0_594, %c96_595] : memref<16x160xbf16, #tpu.memory_space<vmem>>, vector<16x32xbf16>
    tpu.vector_store %arg15[%c0_594, %c96_595], %438 {strides = array<i32>} : memref<16x160xbf16, #tpu.memory_space<vmem>>, vector<16x32xbf16>,
    %c10_596 = arith.constant 10 : index
    %c0_597 = arith.constant 0 : index
    %440 = vector.load %arg14[%c10_596, %c0_597] : memref<32x32xbf16, #tpu.memory_space<vmem>>, vector<16x32xbf16>
    %c0_598 = arith.constant 0 : index
    %c128_599 = arith.constant 128 : index
    %441 = vector.load %arg15[%c0_598, %c128_599] : memref<16x160xbf16, #tpu.memory_space<vmem>>, vector<16x32xbf16>
    tpu.vector_store %arg15[%c0_598, %c128_599], %440 {strides = array<i32>} : memref<16x160xbf16, #tpu.memory_space<vmem>>, vector<16x32xbf16>,
    %c0_600 = arith.constant 0 : index
    %c0_601 = arith.constant 0 : index
    %442 = vector.load %arg15[%c0_600, %c0_601] : memref<16x160xbf16, #tpu.memory_space<vmem>>, vector<16x160xbf16>
    %c0_602 = arith.constant 0 : index
    %c0_603 = arith.constant 0 : index
    %443 = vector.load %arg8[%c0_602, %c0_603] : memref<160x32xbf16, #tpu.memory_space<vmem>>, vector<160x32xbf16>
    %cst_604 = arith.constant dense<0.000000e+00> : vector<16x32xf32>
    %444 = tpu.matmul %442, %443, %cst_604 {dimension_numbers = #tpu.dot_dimension_numbers<[1], [0], [0], [1], [0, 0, 1, 1], [], []>} : vector<16x160xbf16>, vector<160x32xbf16>, vector<16x32xf32> -> vector<16x32xf32>
    %c0_605 = arith.constant 0 : index
    %c0_606 = arith.constant 0 : index
    %445 = vector.load %arg9[%c0_605, %c0_606] : memref<1x32xf32, #tpu.memory_space<vmem>>, vector<1x32xf32>
    %446 = vector.broadcast %445 : vector<1x32xf32> to vector<16x32xf32>
    %447 = arith.mulf %444, %446 : vector<16x32xf32>
    %c0_607 = arith.constant 0 : index
    %c0_608 = arith.constant 0 : index
    %448 = vector.load %arg10[%c0_607, %c0_608] : memref<1x32xf32, #tpu.memory_space<vmem>>, vector<1x32xf32>
    %449 = vector.broadcast %448 : vector<1x32xf32> to vector<16x32xf32>
    %450 = arith.addf %447, %449 : vector<16x32xf32>
    %cst_609 = arith.constant 0.000000e+00 : f32
    %451 = vector.broadcast %cst_609 : f32 to vector<16x32xf32>
    %452 = arith.maximumf %450, %451 : vector<16x32xf32>
    %c0_610 = arith.constant 0 : index
    %c5_611 = arith.constant 5 : index
    %c0_612 = arith.constant 0 : index
    %453 = vector.load %arg11[%c0_610, %c5_611, %c0_612] : memref<16x8x32xf32, #tpu.memory_space<vmem>>, vector<16x1x32xf32>
    %454 = vector.shape_cast %453 : vector<16x1x32xf32> to vector<16x32xf32>
    %455 = vector.shape_cast %452 : vector<16x32xf32> to vector<16x1x32xf32>
    tpu.vector_store %arg11[%c0_610, %c5_611, %c0_612], %455 {strides = array<i32>} : memref<16x8x32xf32, #tpu.memory_space<vmem>>, vector<16x1x32xf32>,
    %c0_613 = arith.constant 0 : index
    %c6_614 = arith.constant 6 : index
    %c0_615 = arith.constant 0 : index
    %456 = vector.load %arg1[%c0_613, %c6_614, %c0_615] : memref<16x8x32xf32, #tpu.memory_space<vmem>>, vector<16x1x32xf32>
    %457 = vector.shape_cast %456 : vector<16x1x32xf32> to vector<16x32xf32>
    %458 = arith.truncf %457 : vector<16x32xf32> to vector<16x32xbf16>
    %c8_616 = arith.constant 8 : index
    %c0_617 = arith.constant 0 : index
    %459 = vector.load %arg12[%c8_616, %c0_617] : memref<32x32xbf16, #tpu.memory_space<vmem>>, vector<16x32xbf16>
    tpu.vector_store %arg12[%c8_616, %c0_617], %458 {strides = array<i32>} : memref<32x32xbf16, #tpu.memory_space<vmem>>, vector<16x32xbf16>,
    %c6_618 = arith.constant 6 : index
    %c0_619 = arith.constant 0 : index
    %460 = vector.load %arg12[%c6_618, %c0_619] : memref<32x32xbf16, #tpu.memory_space<vmem>>, vector<16x32xbf16>
    %c0_620 = arith.constant 0 : index
    %c0_621 = arith.constant 0 : index
    %461 = vector.load %arg15[%c0_620, %c0_621] : memref<16x160xbf16, #tpu.memory_space<vmem>>, vector<16x32xbf16>
    tpu.vector_store %arg15[%c0_620, %c0_621], %460 {strides = array<i32>} : memref<16x160xbf16, #tpu.memory_space<vmem>>, vector<16x32xbf16>,
    %c7_622 = arith.constant 7 : index
    %c0_623 = arith.constant 0 : index
    %462 = vector.load %arg12[%c7_622, %c0_623] : memref<32x32xbf16, #tpu.memory_space<vmem>>, vector<16x32xbf16>
    %c0_624 = arith.constant 0 : index
    %c32_625 = arith.constant 32 : index
    %463 = vector.load %arg15[%c0_624, %c32_625] : memref<16x160xbf16, #tpu.memory_space<vmem>>, vector<16x32xbf16>
    tpu.vector_store %arg15[%c0_624, %c32_625], %462 {strides = array<i32>} : memref<16x160xbf16, #tpu.memory_space<vmem>>, vector<16x32xbf16>,
    %c8_626 = arith.constant 8 : index
    %c0_627 = arith.constant 0 : index
    %464 = vector.load %arg12[%c8_626, %c0_627] : memref<32x32xbf16, #tpu.memory_space<vmem>>, vector<16x32xbf16>
    %c0_628 = arith.constant 0 : index
    %c64_629 = arith.constant 64 : index
    %465 = vector.load %arg15[%c0_628, %c64_629] : memref<16x160xbf16, #tpu.memory_space<vmem>>, vector<16x32xbf16>
    tpu.vector_store %arg15[%c0_628, %c64_629], %464 {strides = array<i32>} : memref<16x160xbf16, #tpu.memory_space<vmem>>, vector<16x32xbf16>,
    %c9_630 = arith.constant 9 : index
    %c0_631 = arith.constant 0 : index
    %466 = vector.load %arg12[%c9_630, %c0_631] : memref<32x32xbf16, #tpu.memory_space<vmem>>, vector<16x32xbf16>
    %c0_632 = arith.constant 0 : index
    %c96_633 = arith.constant 96 : index
    %467 = vector.load %arg15[%c0_632, %c96_633] : memref<16x160xbf16, #tpu.memory_space<vmem>>, vector<16x32xbf16>
    tpu.vector_store %arg15[%c0_632, %c96_633], %466 {strides = array<i32>} : memref<16x160xbf16, #tpu.memory_space<vmem>>, vector<16x32xbf16>,
    %c10_634 = arith.constant 10 : index
    %c0_635 = arith.constant 0 : index
    %468 = vector.load %arg12[%c10_634, %c0_635] : memref<32x32xbf16, #tpu.memory_space<vmem>>, vector<16x32xbf16>
    %c0_636 = arith.constant 0 : index
    %c128_637 = arith.constant 128 : index
    %469 = vector.load %arg15[%c0_636, %c128_637] : memref<16x160xbf16, #tpu.memory_space<vmem>>, vector<16x32xbf16>
    tpu.vector_store %arg15[%c0_636, %c128_637], %468 {strides = array<i32>} : memref<16x160xbf16, #tpu.memory_space<vmem>>, vector<16x32xbf16>,
    %c0_638 = arith.constant 0 : index
    %c0_639 = arith.constant 0 : index
    %470 = vector.load %arg15[%c0_638, %c0_639] : memref<16x160xbf16, #tpu.memory_space<vmem>>, vector<16x160xbf16>
    %c0_640 = arith.constant 0 : index
    %c0_641 = arith.constant 0 : index
    %471 = vector.load %arg2[%c0_640, %c0_641] : memref<160x32xbf16, #tpu.memory_space<vmem>>, vector<160x32xbf16>
    %cst_642 = arith.constant dense<0.000000e+00> : vector<16x32xf32>
    %472 = tpu.matmul %470, %471, %cst_642 {dimension_numbers = #tpu.dot_dimension_numbers<[1], [0], [0], [1], [0, 0, 1, 1], [], []>} : vector<16x160xbf16>, vector<160x32xbf16>, vector<16x32xf32> -> vector<16x32xf32>
    %c0_643 = arith.constant 0 : index
    %c0_644 = arith.constant 0 : index
    %473 = vector.load %arg3[%c0_643, %c0_644] : memref<1x32xf32, #tpu.memory_space<vmem>>, vector<1x32xf32>
    %474 = vector.broadcast %473 : vector<1x32xf32> to vector<16x32xf32>
    %475 = arith.mulf %472, %474 : vector<16x32xf32>
    %c0_645 = arith.constant 0 : index
    %c0_646 = arith.constant 0 : index
    %476 = vector.load %arg4[%c0_645, %c0_646] : memref<1x32xf32, #tpu.memory_space<vmem>>, vector<1x32xf32>
    %477 = vector.broadcast %476 : vector<1x32xf32> to vector<16x32xf32>
    %478 = arith.addf %475, %477 : vector<16x32xf32>
    %cst_647 = arith.constant 0.000000e+00 : f32
    %479 = vector.broadcast %cst_647 : f32 to vector<16x32xf32>
    %480 = arith.maximumf %478, %479 : vector<16x32xf32>
    %481 = arith.truncf %480 : vector<16x32xf32> to vector<16x32xbf16>
    %c8_648 = arith.constant 8 : index
    %c0_649 = arith.constant 0 : index
    %482 = vector.load %arg13[%c8_648, %c0_649] : memref<32x32xbf16, #tpu.memory_space<vmem>>, vector<16x32xbf16>
    tpu.vector_store %arg13[%c8_648, %c0_649], %481 {strides = array<i32>} : memref<32x32xbf16, #tpu.memory_space<vmem>>, vector<16x32xbf16>,
    %c6_650 = arith.constant 6 : index
    %c0_651 = arith.constant 0 : index
    %483 = vector.load %arg13[%c6_650, %c0_651] : memref<32x32xbf16, #tpu.memory_space<vmem>>, vector<16x32xbf16>
    %c0_652 = arith.constant 0 : index
    %c0_653 = arith.constant 0 : index
    %484 = vector.load %arg15[%c0_652, %c0_653] : memref<16x160xbf16, #tpu.memory_space<vmem>>, vector<16x32xbf16>
    tpu.vector_store %arg15[%c0_652, %c0_653], %483 {strides = array<i32>} : memref<16x160xbf16, #tpu.memory_space<vmem>>, vector<16x32xbf16>,
    %c7_654 = arith.constant 7 : index
    %c0_655 = arith.constant 0 : index
    %485 = vector.load %arg13[%c7_654, %c0_655] : memref<32x32xbf16, #tpu.memory_space<vmem>>, vector<16x32xbf16>
    %c0_656 = arith.constant 0 : index
    %c32_657 = arith.constant 32 : index
    %486 = vector.load %arg15[%c0_656, %c32_657] : memref<16x160xbf16, #tpu.memory_space<vmem>>, vector<16x32xbf16>
    tpu.vector_store %arg15[%c0_656, %c32_657], %485 {strides = array<i32>} : memref<16x160xbf16, #tpu.memory_space<vmem>>, vector<16x32xbf16>,
    %c8_658 = arith.constant 8 : index
    %c0_659 = arith.constant 0 : index
    %487 = vector.load %arg13[%c8_658, %c0_659] : memref<32x32xbf16, #tpu.memory_space<vmem>>, vector<16x32xbf16>
    %c0_660 = arith.constant 0 : index
    %c64_661 = arith.constant 64 : index
    %488 = vector.load %arg15[%c0_660, %c64_661] : memref<16x160xbf16, #tpu.memory_space<vmem>>, vector<16x32xbf16>
    tpu.vector_store %arg15[%c0_660, %c64_661], %487 {strides = array<i32>} : memref<16x160xbf16, #tpu.memory_space<vmem>>, vector<16x32xbf16>,
    %c9_662 = arith.constant 9 : index
    %c0_663 = arith.constant 0 : index
    %489 = vector.load %arg13[%c9_662, %c0_663] : memref<32x32xbf16, #tpu.memory_space<vmem>>, vector<16x32xbf16>
    %c0_664 = arith.constant 0 : index
    %c96_665 = arith.constant 96 : index
    %490 = vector.load %arg15[%c0_664, %c96_665] : memref<16x160xbf16, #tpu.memory_space<vmem>>, vector<16x32xbf16>
    tpu.vector_store %arg15[%c0_664, %c96_665], %489 {strides = array<i32>} : memref<16x160xbf16, #tpu.memory_space<vmem>>, vector<16x32xbf16>,
    %c10_666 = arith.constant 10 : index
    %c0_667 = arith.constant 0 : index
    %491 = vector.load %arg13[%c10_666, %c0_667] : memref<32x32xbf16, #tpu.memory_space<vmem>>, vector<16x32xbf16>
    %c0_668 = arith.constant 0 : index
    %c128_669 = arith.constant 128 : index
    %492 = vector.load %arg15[%c0_668, %c128_669] : memref<16x160xbf16, #tpu.memory_space<vmem>>, vector<16x32xbf16>
    tpu.vector_store %arg15[%c0_668, %c128_669], %491 {strides = array<i32>} : memref<16x160xbf16, #tpu.memory_space<vmem>>, vector<16x32xbf16>,
    %c0_670 = arith.constant 0 : index
    %c0_671 = arith.constant 0 : index
    %493 = vector.load %arg15[%c0_670, %c0_671] : memref<16x160xbf16, #tpu.memory_space<vmem>>, vector<16x160xbf16>
    %c0_672 = arith.constant 0 : index
    %c0_673 = arith.constant 0 : index
    %494 = vector.load %arg5[%c0_672, %c0_673] : memref<160x32xbf16, #tpu.memory_space<vmem>>, vector<160x32xbf16>
    %cst_674 = arith.constant dense<0.000000e+00> : vector<16x32xf32>
    %495 = tpu.matmul %493, %494, %cst_674 {dimension_numbers = #tpu.dot_dimension_numbers<[1], [0], [0], [1], [0, 0, 1, 1], [], []>} : vector<16x160xbf16>, vector<160x32xbf16>, vector<16x32xf32> -> vector<16x32xf32>
    %c0_675 = arith.constant 0 : index
    %c0_676 = arith.constant 0 : index
    %496 = vector.load %arg6[%c0_675, %c0_676] : memref<1x32xf32, #tpu.memory_space<vmem>>, vector<1x32xf32>
    %497 = vector.broadcast %496 : vector<1x32xf32> to vector<16x32xf32>
    %498 = arith.mulf %495, %497 : vector<16x32xf32>
    %c0_677 = arith.constant 0 : index
    %c0_678 = arith.constant 0 : index
    %499 = vector.load %arg7[%c0_677, %c0_678] : memref<1x32xf32, #tpu.memory_space<vmem>>, vector<1x32xf32>
    %500 = vector.broadcast %499 : vector<1x32xf32> to vector<16x32xf32>
    %501 = arith.addf %498, %500 : vector<16x32xf32>
    %cst_679 = arith.constant 0.000000e+00 : f32
    %502 = vector.broadcast %cst_679 : f32 to vector<16x32xf32>
    %503 = arith.maximumf %501, %502 : vector<16x32xf32>
    %504 = arith.truncf %503 : vector<16x32xf32> to vector<16x32xbf16>
    %c8_680 = arith.constant 8 : index
    %c0_681 = arith.constant 0 : index
    %505 = vector.load %arg14[%c8_680, %c0_681] : memref<32x32xbf16, #tpu.memory_space<vmem>>, vector<16x32xbf16>
    tpu.vector_store %arg14[%c8_680, %c0_681], %504 {strides = array<i32>} : memref<32x32xbf16, #tpu.memory_space<vmem>>, vector<16x32xbf16>,
    %c6_682 = arith.constant 6 : index
    %c0_683 = arith.constant 0 : index
    %506 = vector.load %arg14[%c6_682, %c0_683] : memref<32x32xbf16, #tpu.memory_space<vmem>>, vector<16x32xbf16>
    %c0_684 = arith.constant 0 : index
    %c0_685 = arith.constant 0 : index
    %507 = vector.load %arg15[%c0_684, %c0_685] : memref<16x160xbf16, #tpu.memory_space<vmem>>, vector<16x32xbf16>
    tpu.vector_store %arg15[%c0_684, %c0_685], %506 {strides = array<i32>} : memref<16x160xbf16, #tpu.memory_space<vmem>>, vector<16x32xbf16>,
    %c7_686 = arith.constant 7 : index
    %c0_687 = arith.constant 0 : index
    %508 = vector.load %arg14[%c7_686, %c0_687] : memref<32x32xbf16, #tpu.memory_space<vmem>>, vector<16x32xbf16>
    %c0_688 = arith.constant 0 : index
    %c32_689 = arith.constant 32 : index
    %509 = vector.load %arg15[%c0_688, %c32_689] : memref<16x160xbf16, #tpu.memory_space<vmem>>, vector<16x32xbf16>
    tpu.vector_store %arg15[%c0_688, %c32_689], %508 {strides = array<i32>} : memref<16x160xbf16, #tpu.memory_space<vmem>>, vector<16x32xbf16>,
    %c8_690 = arith.constant 8 : index
    %c0_691 = arith.constant 0 : index
    %510 = vector.load %arg14[%c8_690, %c0_691] : memref<32x32xbf16, #tpu.memory_space<vmem>>, vector<16x32xbf16>
    %c0_692 = arith.constant 0 : index
    %c64_693 = arith.constant 64 : index
    %511 = vector.load %arg15[%c0_692, %c64_693] : memref<16x160xbf16, #tpu.memory_space<vmem>>, vector<16x32xbf16>
    tpu.vector_store %arg15[%c0_692, %c64_693], %510 {strides = array<i32>} : memref<16x160xbf16, #tpu.memory_space<vmem>>, vector<16x32xbf16>,
    %c9_694 = arith.constant 9 : index
    %c0_695 = arith.constant 0 : index
    %512 = vector.load %arg14[%c9_694, %c0_695] : memref<32x32xbf16, #tpu.memory_space<vmem>>, vector<16x32xbf16>
    %c0_696 = arith.constant 0 : index
    %c96_697 = arith.constant 96 : index
    %513 = vector.load %arg15[%c0_696, %c96_697] : memref<16x160xbf16, #tpu.memory_space<vmem>>, vector<16x32xbf16>
    tpu.vector_store %arg15[%c0_696, %c96_697], %512 {strides = array<i32>} : memref<16x160xbf16, #tpu.memory_space<vmem>>, vector<16x32xbf16>,
    %c10_698 = arith.constant 10 : index
    %c0_699 = arith.constant 0 : index
    %514 = vector.load %arg14[%c10_698, %c0_699] : memref<32x32xbf16, #tpu.memory_space<vmem>>, vector<16x32xbf16>
    %c0_700 = arith.constant 0 : index
    %c128_701 = arith.constant 128 : index
    %515 = vector.load %arg15[%c0_700, %c128_701] : memref<16x160xbf16, #tpu.memory_space<vmem>>, vector<16x32xbf16>
    tpu.vector_store %arg15[%c0_700, %c128_701], %514 {strides = array<i32>} : memref<16x160xbf16, #tpu.memory_space<vmem>>, vector<16x32xbf16>,
    %c0_702 = arith.constant 0 : index
    %c0_703 = arith.constant 0 : index
    %516 = vector.load %arg15[%c0_702, %c0_703] : memref<16x160xbf16, #tpu.memory_space<vmem>>, vector<16x160xbf16>
    %c0_704 = arith.constant 0 : index
    %c0_705 = arith.constant 0 : index
    %517 = vector.load %arg8[%c0_704, %c0_705] : memref<160x32xbf16, #tpu.memory_space<vmem>>, vector<160x32xbf16>
    %cst_706 = arith.constant dense<0.000000e+00> : vector<16x32xf32>
    %518 = tpu.matmul %516, %517, %cst_706 {dimension_numbers = #tpu.dot_dimension_numbers<[1], [0], [0], [1], [0, 0, 1, 1], [], []>} : vector<16x160xbf16>, vector<160x32xbf16>, vector<16x32xf32> -> vector<16x32xf32>
    %c0_707 = arith.constant 0 : index
    %c0_708 = arith.constant 0 : index
    %519 = vector.load %arg9[%c0_707, %c0_708] : memref<1x32xf32, #tpu.memory_space<vmem>>, vector<1x32xf32>
    %520 = vector.broadcast %519 : vector<1x32xf32> to vector<16x32xf32>
    %521 = arith.mulf %518, %520 : vector<16x32xf32>
    %c0_709 = arith.constant 0 : index
    %c0_710 = arith.constant 0 : index
    %522 = vector.load %arg10[%c0_709, %c0_710] : memref<1x32xf32, #tpu.memory_space<vmem>>, vector<1x32xf32>
    %523 = vector.broadcast %522 : vector<1x32xf32> to vector<16x32xf32>
    %524 = arith.addf %521, %523 : vector<16x32xf32>
    %cst_711 = arith.constant 0.000000e+00 : f32
    %525 = vector.broadcast %cst_711 : f32 to vector<16x32xf32>
    %526 = arith.maximumf %524, %525 : vector<16x32xf32>
    %c0_712 = arith.constant 0 : index
    %c6_713 = arith.constant 6 : index
    %c0_714 = arith.constant 0 : index
    %527 = vector.load %arg11[%c0_712, %c6_713, %c0_714] : memref<16x8x32xf32, #tpu.memory_space<vmem>>, vector<16x1x32xf32>
    %528 = vector.shape_cast %527 : vector<16x1x32xf32> to vector<16x32xf32>
    %529 = vector.shape_cast %526 : vector<16x32xf32> to vector<16x1x32xf32>
    tpu.vector_store %arg11[%c0_712, %c6_713, %c0_714], %529 {strides = array<i32>} : memref<16x8x32xf32, #tpu.memory_space<vmem>>, vector<16x1x32xf32>,
    %c0_715 = arith.constant 0 : index
    %c7_716 = arith.constant 7 : index
    %c0_717 = arith.constant 0 : index
    %530 = vector.load %arg1[%c0_715, %c7_716, %c0_717] : memref<16x8x32xf32, #tpu.memory_space<vmem>>, vector<16x1x32xf32>
    %531 = vector.shape_cast %530 : vector<16x1x32xf32> to vector<16x32xf32>
    %532 = arith.truncf %531 : vector<16x32xf32> to vector<16x32xbf16>
    %c8_718 = arith.constant 8 : index
    %c0_719 = arith.constant 0 : index
    %533 = vector.load %arg12[%c8_718, %c0_719] : memref<32x32xbf16, #tpu.memory_space<vmem>>, vector<16x32xbf16>
    tpu.vector_store %arg12[%c8_718, %c0_719], %532 {strides = array<i32>} : memref<32x32xbf16, #tpu.memory_space<vmem>>, vector<16x32xbf16>,
    %c6_720 = arith.constant 6 : index
    %c0_721 = arith.constant 0 : index
    %534 = vector.load %arg12[%c6_720, %c0_721] : memref<32x32xbf16, #tpu.memory_space<vmem>>, vector<16x32xbf16>
    %c0_722 = arith.constant 0 : index
    %c0_723 = arith.constant 0 : index
    %535 = vector.load %arg15[%c0_722, %c0_723] : memref<16x160xbf16, #tpu.memory_space<vmem>>, vector<16x32xbf16>
    tpu.vector_store %arg15[%c0_722, %c0_723], %534 {strides = array<i32>} : memref<16x160xbf16, #tpu.memory_space<vmem>>, vector<16x32xbf16>,
    %c7_724 = arith.constant 7 : index
    %c0_725 = arith.constant 0 : index
    %536 = vector.load %arg12[%c7_724, %c0_725] : memref<32x32xbf16, #tpu.memory_space<vmem>>, vector<16x32xbf16>
    %c0_726 = arith.constant 0 : index
    %c32_727 = arith.constant 32 : index
    %537 = vector.load %arg15[%c0_726, %c32_727] : memref<16x160xbf16, #tpu.memory_space<vmem>>, vector<16x32xbf16>
    tpu.vector_store %arg15[%c0_726, %c32_727], %536 {strides = array<i32>} : memref<16x160xbf16, #tpu.memory_space<vmem>>, vector<16x32xbf16>,
    %c8_728 = arith.constant 8 : index
    %c0_729 = arith.constant 0 : index
    %538 = vector.load %arg12[%c8_728, %c0_729] : memref<32x32xbf16, #tpu.memory_space<vmem>>, vector<16x32xbf16>
    %c0_730 = arith.constant 0 : index
    %c64_731 = arith.constant 64 : index
    %539 = vector.load %arg15[%c0_730, %c64_731] : memref<16x160xbf16, #tpu.memory_space<vmem>>, vector<16x32xbf16>
    tpu.vector_store %arg15[%c0_730, %c64_731], %538 {strides = array<i32>} : memref<16x160xbf16, #tpu.memory_space<vmem>>, vector<16x32xbf16>,
    %c9_732 = arith.constant 9 : index
    %c0_733 = arith.constant 0 : index
    %540 = vector.load %arg12[%c9_732, %c0_733] : memref<32x32xbf16, #tpu.memory_space<vmem>>, vector<16x32xbf16>
    %c0_734 = arith.constant 0 : index
    %c96_735 = arith.constant 96 : index
    %541 = vector.load %arg15[%c0_734, %c96_735] : memref<16x160xbf16, #tpu.memory_space<vmem>>, vector<16x32xbf16>
    tpu.vector_store %arg15[%c0_734, %c96_735], %540 {strides = array<i32>} : memref<16x160xbf16, #tpu.memory_space<vmem>>, vector<16x32xbf16>,
    %c10_736 = arith.constant 10 : index
    %c0_737 = arith.constant 0 : index
    %542 = vector.load %arg12[%c10_736, %c0_737] : memref<32x32xbf16, #tpu.memory_space<vmem>>, vector<16x32xbf16>
    %c0_738 = arith.constant 0 : index
    %c128_739 = arith.constant 128 : index
    %543 = vector.load %arg15[%c0_738, %c128_739] : memref<16x160xbf16, #tpu.memory_space<vmem>>, vector<16x32xbf16>
    tpu.vector_store %arg15[%c0_738, %c128_739], %542 {strides = array<i32>} : memref<16x160xbf16, #tpu.memory_space<vmem>>, vector<16x32xbf16>,
    %c0_740 = arith.constant 0 : index
    %c0_741 = arith.constant 0 : index
    %544 = vector.load %arg15[%c0_740, %c0_741] : memref<16x160xbf16, #tpu.memory_space<vmem>>, vector<16x160xbf16>
    %c0_742 = arith.constant 0 : index
    %c0_743 = arith.constant 0 : index
    %545 = vector.load %arg2[%c0_742, %c0_743] : memref<160x32xbf16, #tpu.memory_space<vmem>>, vector<160x32xbf16>
    %cst_744 = arith.constant dense<0.000000e+00> : vector<16x32xf32>
    %546 = tpu.matmul %544, %545, %cst_744 {dimension_numbers = #tpu.dot_dimension_numbers<[1], [0], [0], [1], [0, 0, 1, 1], [], []>} : vector<16x160xbf16>, vector<160x32xbf16>, vector<16x32xf32> -> vector<16x32xf32>
    %c0_745 = arith.constant 0 : index
    %c0_746 = arith.constant 0 : index
    %547 = vector.load %arg3[%c0_745, %c0_746] : memref<1x32xf32, #tpu.memory_space<vmem>>, vector<1x32xf32>
    %548 = vector.broadcast %547 : vector<1x32xf32> to vector<16x32xf32>
    %549 = arith.mulf %546, %548 : vector<16x32xf32>
    %c0_747 = arith.constant 0 : index
    %c0_748 = arith.constant 0 : index
    %550 = vector.load %arg4[%c0_747, %c0_748] : memref<1x32xf32, #tpu.memory_space<vmem>>, vector<1x32xf32>
    %551 = vector.broadcast %550 : vector<1x32xf32> to vector<16x32xf32>
    %552 = arith.addf %549, %551 : vector<16x32xf32>
    %cst_749 = arith.constant 0.000000e+00 : f32
    %553 = vector.broadcast %cst_749 : f32 to vector<16x32xf32>
    %554 = arith.maximumf %552, %553 : vector<16x32xf32>
    %555 = arith.truncf %554 : vector<16x32xf32> to vector<16x32xbf16>
    %c8_750 = arith.constant 8 : index
    %c0_751 = arith.constant 0 : index
    %556 = vector.load %arg13[%c8_750, %c0_751] : memref<32x32xbf16, #tpu.memory_space<vmem>>, vector<16x32xbf16>
    tpu.vector_store %arg13[%c8_750, %c0_751], %555 {strides = array<i32>} : memref<32x32xbf16, #tpu.memory_space<vmem>>, vector<16x32xbf16>,
    %c6_752 = arith.constant 6 : index
    %c0_753 = arith.constant 0 : index
    %557 = vector.load %arg13[%c6_752, %c0_753] : memref<32x32xbf16, #tpu.memory_space<vmem>>, vector<16x32xbf16>
    %c0_754 = arith.constant 0 : index
    %c0_755 = arith.constant 0 : index
    %558 = vector.load %arg15[%c0_754, %c0_755] : memref<16x160xbf16, #tpu.memory_space<vmem>>, vector<16x32xbf16>
    tpu.vector_store %arg15[%c0_754, %c0_755], %557 {strides = array<i32>} : memref<16x160xbf16, #tpu.memory_space<vmem>>, vector<16x32xbf16>,
    %c7_756 = arith.constant 7 : index
    %c0_757 = arith.constant 0 : index
    %559 = vector.load %arg13[%c7_756, %c0_757] : memref<32x32xbf16, #tpu.memory_space<vmem>>, vector<16x32xbf16>
    %c0_758 = arith.constant 0 : index
    %c32_759 = arith.constant 32 : index
    %560 = vector.load %arg15[%c0_758, %c32_759] : memref<16x160xbf16, #tpu.memory_space<vmem>>, vector<16x32xbf16>
    tpu.vector_store %arg15[%c0_758, %c32_759], %559 {strides = array<i32>} : memref<16x160xbf16, #tpu.memory_space<vmem>>, vector<16x32xbf16>,
    %c8_760 = arith.constant 8 : index
    %c0_761 = arith.constant 0 : index
    %561 = vector.load %arg13[%c8_760, %c0_761] : memref<32x32xbf16, #tpu.memory_space<vmem>>, vector<16x32xbf16>
    %c0_762 = arith.constant 0 : index
    %c64_763 = arith.constant 64 : index
    %562 = vector.load %arg15[%c0_762, %c64_763] : memref<16x160xbf16, #tpu.memory_space<vmem>>, vector<16x32xbf16>
    tpu.vector_store %arg15[%c0_762, %c64_763], %561 {strides = array<i32>} : memref<16x160xbf16, #tpu.memory_space<vmem>>, vector<16x32xbf16>,
    %c9_764 = arith.constant 9 : index
    %c0_765 = arith.constant 0 : index
    %563 = vector.load %arg13[%c9_764, %c0_765] : memref<32x32xbf16, #tpu.memory_space<vmem>>, vector<16x32xbf16>
    %c0_766 = arith.constant 0 : index
    %c96_767 = arith.constant 96 : index
    %564 = vector.load %arg15[%c0_766, %c96_767] : memref<16x160xbf16, #tpu.memory_space<vmem>>, vector<16x32xbf16>
    tpu.vector_store %arg15[%c0_766, %c96_767], %563 {strides = array<i32>} : memref<16x160xbf16, #tpu.memory_space<vmem>>, vector<16x32xbf16>,
    %c10_768 = arith.constant 10 : index
    %c0_769 = arith.constant 0 : index
    %565 = vector.load %arg13[%c10_768, %c0_769] : memref<32x32xbf16, #tpu.memory_space<vmem>>, vector<16x32xbf16>
    %c0_770 = arith.constant 0 : index
    %c128_771 = arith.constant 128 : index
    %566 = vector.load %arg15[%c0_770, %c128_771] : memref<16x160xbf16, #tpu.memory_space<vmem>>, vector<16x32xbf16>
    tpu.vector_store %arg15[%c0_770, %c128_771], %565 {strides = array<i32>} : memref<16x160xbf16, #tpu.memory_space<vmem>>, vector<16x32xbf16>,
    %c0_772 = arith.constant 0 : index
    %c0_773 = arith.constant 0 : index
    %567 = vector.load %arg15[%c0_772, %c0_773] : memref<16x160xbf16, #tpu.memory_space<vmem>>, vector<16x160xbf16>
    %c0_774 = arith.constant 0 : index
    %c0_775 = arith.constant 0 : index
    %568 = vector.load %arg5[%c0_774, %c0_775] : memref<160x32xbf16, #tpu.memory_space<vmem>>, vector<160x32xbf16>
    %cst_776 = arith.constant dense<0.000000e+00> : vector<16x32xf32>
    %569 = tpu.matmul %567, %568, %cst_776 {dimension_numbers = #tpu.dot_dimension_numbers<[1], [0], [0], [1], [0, 0, 1, 1], [], []>} : vector<16x160xbf16>, vector<160x32xbf16>, vector<16x32xf32> -> vector<16x32xf32>
    %c0_777 = arith.constant 0 : index
    %c0_778 = arith.constant 0 : index
    %570 = vector.load %arg6[%c0_777, %c0_778] : memref<1x32xf32, #tpu.memory_space<vmem>>, vector<1x32xf32>
    %571 = vector.broadcast %570 : vector<1x32xf32> to vector<16x32xf32>
    %572 = arith.mulf %569, %571 : vector<16x32xf32>
    %c0_779 = arith.constant 0 : index
    %c0_780 = arith.constant 0 : index
    %573 = vector.load %arg7[%c0_779, %c0_780] : memref<1x32xf32, #tpu.memory_space<vmem>>, vector<1x32xf32>
    %574 = vector.broadcast %573 : vector<1x32xf32> to vector<16x32xf32>
    %575 = arith.addf %572, %574 : vector<16x32xf32>
    %cst_781 = arith.constant 0.000000e+00 : f32
    %576 = vector.broadcast %cst_781 : f32 to vector<16x32xf32>
    %577 = arith.maximumf %575, %576 : vector<16x32xf32>
    %578 = arith.truncf %577 : vector<16x32xf32> to vector<16x32xbf16>
    %c8_782 = arith.constant 8 : index
    %c0_783 = arith.constant 0 : index
    %579 = vector.load %arg14[%c8_782, %c0_783] : memref<32x32xbf16, #tpu.memory_space<vmem>>, vector<16x32xbf16>
    tpu.vector_store %arg14[%c8_782, %c0_783], %578 {strides = array<i32>} : memref<32x32xbf16, #tpu.memory_space<vmem>>, vector<16x32xbf16>,
    %c6_784 = arith.constant 6 : index
    %c0_785 = arith.constant 0 : index
    %580 = vector.load %arg14[%c6_784, %c0_785] : memref<32x32xbf16, #tpu.memory_space<vmem>>, vector<16x32xbf16>
    %c0_786 = arith.constant 0 : index
    %c0_787 = arith.constant 0 : index
    %581 = vector.load %arg15[%c0_786, %c0_787] : memref<16x160xbf16, #tpu.memory_space<vmem>>, vector<16x32xbf16>
    tpu.vector_store %arg15[%c0_786, %c0_787], %580 {strides = array<i32>} : memref<16x160xbf16, #tpu.memory_space<vmem>>, vector<16x32xbf16>,
    %c7_788 = arith.constant 7 : index
    %c0_789 = arith.constant 0 : index
    %582 = vector.load %arg14[%c7_788, %c0_789] : memref<32x32xbf16, #tpu.memory_space<vmem>>, vector<16x32xbf16>
    %c0_790 = arith.constant 0 : index
    %c32_791 = arith.constant 32 : index
    %583 = vector.load %arg15[%c0_790, %c32_791] : memref<16x160xbf16, #tpu.memory_space<vmem>>, vector<16x32xbf16>
    tpu.vector_store %arg15[%c0_790, %c32_791], %582 {strides = array<i32>} : memref<16x160xbf16, #tpu.memory_space<vmem>>, vector<16x32xbf16>,
    %c8_792 = arith.constant 8 : index
    %c0_793 = arith.constant 0 : index
    %584 = vector.load %arg14[%c8_792, %c0_793] : memref<32x32xbf16, #tpu.memory_space<vmem>>, vector<16x32xbf16>
    %c0_794 = arith.constant 0 : index
    %c64_795 = arith.constant 64 : index
    %585 = vector.load %arg15[%c0_794, %c64_795] : memref<16x160xbf16, #tpu.memory_space<vmem>>, vector<16x32xbf16>
    tpu.vector_store %arg15[%c0_794, %c64_795], %584 {strides = array<i32>} : memref<16x160xbf16, #tpu.memory_space<vmem>>, vector<16x32xbf16>,
    %c9_796 = arith.constant 9 : index
    %c0_797 = arith.constant 0 : index
    %586 = vector.load %arg14[%c9_796, %c0_797] : memref<32x32xbf16, #tpu.memory_space<vmem>>, vector<16x32xbf16>
    %c0_798 = arith.constant 0 : index
    %c96_799 = arith.constant 96 : index
    %587 = vector.load %arg15[%c0_798, %c96_799] : memref<16x160xbf16, #tpu.memory_space<vmem>>, vector<16x32xbf16>
    tpu.vector_store %arg15[%c0_798, %c96_799], %586 {strides = array<i32>} : memref<16x160xbf16, #tpu.memory_space<vmem>>, vector<16x32xbf16>,
    %c10_800 = arith.constant 10 : index
    %c0_801 = arith.constant 0 : index
    %588 = vector.load %arg14[%c10_800, %c0_801] : memref<32x32xbf16, #tpu.memory_space<vmem>>, vector<16x32xbf16>
    %c0_802 = arith.constant 0 : index
    %c128_803 = arith.constant 128 : index
    %589 = vector.load %arg15[%c0_802, %c128_803] : memref<16x160xbf16, #tpu.memory_space<vmem>>, vector<16x32xbf16>
    tpu.vector_store %arg15[%c0_802, %c128_803], %588 {strides = array<i32>} : memref<16x160xbf16, #tpu.memory_space<vmem>>, vector<16x32xbf16>,
    %c0_804 = arith.constant 0 : index
    %c0_805 = arith.constant 0 : index
    %590 = vector.load %arg15[%c0_804, %c0_805] : memref<16x160xbf16, #tpu.memory_space<vmem>>, vector<16x160xbf16>
    %c0_806 = arith.constant 0 : index
    %c0_807 = arith.constant 0 : index
    %591 = vector.load %arg8[%c0_806, %c0_807] : memref<160x32xbf16, #tpu.memory_space<vmem>>, vector<160x32xbf16>
    %cst_808 = arith.constant dense<0.000000e+00> : vector<16x32xf32>
    %592 = tpu.matmul %590, %591, %cst_808 {dimension_numbers = #tpu.dot_dimension_numbers<[1], [0], [0], [1], [0, 0, 1, 1], [], []>} : vector<16x160xbf16>, vector<160x32xbf16>, vector<16x32xf32> -> vector<16x32xf32>
    %c0_809 = arith.constant 0 : index
    %c0_810 = arith.constant 0 : index
    %593 = vector.load %arg9[%c0_809, %c0_810] : memref<1x32xf32, #tpu.memory_space<vmem>>, vector<1x32xf32>
    %594 = vector.broadcast %593 : vector<1x32xf32> to vector<16x32xf32>
    %595 = arith.mulf %592, %594 : vector<16x32xf32>
    %c0_811 = arith.constant 0 : index
    %c0_812 = arith.constant 0 : index
    %596 = vector.load %arg10[%c0_811, %c0_812] : memref<1x32xf32, #tpu.memory_space<vmem>>, vector<1x32xf32>
    %597 = vector.broadcast %596 : vector<1x32xf32> to vector<16x32xf32>
    %598 = arith.addf %595, %597 : vector<16x32xf32>
    %cst_813 = arith.constant 0.000000e+00 : f32
    %599 = vector.broadcast %cst_813 : f32 to vector<16x32xf32>
    %600 = arith.maximumf %598, %599 : vector<16x32xf32>
    %c0_814 = arith.constant 0 : index
    %c7_815 = arith.constant 7 : index
    %c0_816 = arith.constant 0 : index
    %601 = vector.load %arg11[%c0_814, %c7_815, %c0_816] : memref<16x8x32xf32, #tpu.memory_space<vmem>>, vector<16x1x32xf32>
    %602 = vector.shape_cast %601 : vector<16x1x32xf32> to vector<16x32xf32>
    %603 = vector.shape_cast %600 : vector<16x32xf32> to vector<16x1x32xf32>
    tpu.vector_store %arg11[%c0_814, %c7_815, %c0_816], %603 {strides = array<i32>} : memref<16x8x32xf32, #tpu.memory_space<vmem>>, vector<16x1x32xf32>,
    return
  }
  func.func @transform_0(%arg0: i32) -> (i32, i32, i32) {
    %c0_i32 = arith.constant 0 : i32
    %c0_i32_0 = arith.constant 0 : i32
    %c0_i32_1 = arith.constant 0 : i32
    return %c0_i32, %arg0, %c0_i32_0 : i32, i32, i32
  }
  func.func @transform_1(%arg0: i32) -> (i32, i32) {
    %c0_i32 = arith.constant 0 : i32
    %c0_i32_0 = arith.constant 0 : i32
    %c0_i32_1 = arith.constant 0 : i32
    return %c0_i32, %c0_i32_0 : i32, i32
  }
  func.func @transform_2(%arg0: i32) -> (i32, i32) {
    %c0_i32 = arith.constant 0 : i32
    %c0_i32_0 = arith.constant 0 : i32
    %c0_i32_1 = arith.constant 0 : i32
    return %c0_i32, %c0_i32_0 : i32, i32
  }
  func.func @transform_3(%arg0: i32) -> (i32, i32) {
    %c0_i32 = arith.constant 0 : i32
    %c0_i32_0 = arith.constant 0 : i32
    %c0_i32_1 = arith.constant 0 : i32
    return %c0_i32, %c0_i32_0 : i32, i32
  }
  func.func @transform_4(%arg0: i32) -> (i32, i32) {
    %c0_i32 = arith.constant 0 : i32
    %c0_i32_0 = arith.constant 0 : i32
    %c0_i32_1 = arith.constant 0 : i32
    return %c0_i32, %c0_i32_0 : i32, i32
  }
  func.func @transform_5(%arg0: i32) -> (i32, i32) {
    %c0_i32 = arith.constant 0 : i32
    %c0_i32_0 = arith.constant 0 : i32
    %c0_i32_1 = arith.constant 0 : i32
    return %c0_i32, %c0_i32_0 : i32, i32
  }
  func.func @transform_6(%arg0: i32) -> (i32, i32) {
    %c0_i32 = arith.constant 0 : i32
    %c0_i32_0 = arith.constant 0 : i32
    %c0_i32_1 = arith.constant 0 : i32
    return %c0_i32, %c0_i32_0 : i32, i32
  }
  func.func @transform_7(%arg0: i32) -> (i32, i32) {
    %c0_i32 = arith.constant 0 : i32
    %c0_i32_0 = arith.constant 0 : i32
    %c0_i32_1 = arith.constant 0 : i32
    return %c0_i32, %c0_i32_0 : i32, i32
  }
  func.func @transform_8(%arg0: i32) -> (i32, i32) {
    %c0_i32 = arith.constant 0 : i32
    %c0_i32_0 = arith.constant 0 : i32
    %c0_i32_1 = arith.constant 0 : i32
    return %c0_i32, %c0_i32_0 : i32, i32
  }
  func.func @transform_9(%arg0: i32) -> (i32, i32) {
    %c0_i32 = arith.constant 0 : i32
    %c0_i32_0 = arith.constant 0 : i32
    %c0_i32_1 = arith.constant 0 : i32
    return %c0_i32, %c0_i32_0 : i32, i32
  }
  func.func @transform_10(%arg0: i32) -> (i32, i32, i32) {
    %c0_i32 = arith.constant 0 : i32
    %c0_i32_0 = arith.constant 0 : i32
    %c0_i32_1 = arith.constant 0 : i32
    return %c0_i32, %arg0, %c0_i32_0 : i32, i32, i32
  }
}

</mosaic_0001>

<llo_original>
// kernel: tpu_custom_call.1
$region0: #{tpu_custom_call.1}
  #allocation0 [shape = 'u32[]', space=smem, size = 0x4, offset = 0x4, fixed_abs, tag = 'smem constant byte address 0x4 - core index']
  #allocation1 [shape = 'u32[144,128]{1,0:T(1,128)}', space=vmem, size = 0x12000, scoped, tag = 'internal scratch']
  #allocation2 [shape = 'bf16[32,32]{1,0:T(16,128)(2,1)}', space=vmem, size = 0x2000, scoped, tag = 'scratch operand']
  #allocation3 [shape = 'bf16[32,32]{1,0:T(16,128)(2,1)}', space=vmem, size = 0x2000, scoped, tag = 'scratch operand']
  #allocation4 [shape = 'bf16[32,32]{1,0:T(16,128)(2,1)}', space=vmem, size = 0x2000, scoped, tag = 'scratch operand']
  #allocation5 [shape = 'bf16[16,160]{1,0:T(16,128)(2,1)}', space=vmem, size = 0x2000, scoped, tag = 'scratch operand']
  %s0 = inlined_call_operand.vmem [shape: f32[16,8,32], index: 0, kind: input, shape index: {}]
  %s1 = inlined_call_operand.vmem [shape: bf16[160,32], index: 1, kind: input, shape index: {}]
  %s2 = inlined_call_operand.vmem [shape: f32[1,32], index: 2, kind: input, shape index: {}]
  %s3 = inlined_call_operand.vmem [shape: f32[1,32], index: 3, kind: input, shape index: {}]
  %s4 = inlined_call_operand.vmem [shape: bf16[160,32], index: 4, kind: input, shape index: {}]
  %s5 = inlined_call_operand.vmem [shape: f32[1,32], index: 5, kind: input, shape index: {}]
  %s6 = inlined_call_operand.vmem [shape: f32[1,32], index: 6, kind: input, shape index: {}]
  %s7 = inlined_call_operand.vmem [shape: bf16[160,32], index: 7, kind: input, shape index: {}]
  %s8 = inlined_call_operand.vmem [shape: f32[1,32], index: 8, kind: input, shape index: {}]
  %s9 = inlined_call_operand.vmem [shape: f32[1,32], index: 9, kind: input, shape index: {}]
  %s10 = inlined_call_operand.hbm [shape: f32[16,8,32], index: 10, kind: output, shape index: {}]
  %s11 = sld [smem:[#allocation0]]
  $region50: #{tpu_custom_call.1} parent=0
    _
  %s13 = ssub.s32 1, %s11
  %s14 = scalar_select 0, %s13, %s11
  $region1: #{tpu_custom_call.1} parent=0
    #allocation6 [shape = 'u8[65536]{0}', space=vmem, size = 0x10000, scoped, tag = 'output window, operand 0, single buffered']
    #allocation7 [shape = 's32[1]{0}', space=sflag, size = 0x4, scoped, tag = 'scoped memory for tpu_custom_call.1']
    %15 = vsyncpa [#allocation7], 0
    // Predicated region
    $region2: #{tpu_custom_call.1} parent=1 // pred_check
      _
    $region3: #{tpu_custom_call.1} parent=1 // pred_check_branch
      %17 = sbr.rel (0) target = $region5
    $region4: #{tpu_custom_call.1} parent=1 // pred_region
      _
    $region5: #{tpu_custom_call.1} parent=1 // pred_fallthru
      _
    // Predicated region
    $region6: #{tpu_custom_call.1} parent=1 // pred_check
      _
    $region7: #{tpu_custom_call.1} parent=1 // pred_check_branch
      %19 = sbr.rel (0) target = $region9
    $region8: #{tpu_custom_call.1} parent=1 // pred_region
      _
    $region9: #{tpu_custom_call.1} parent=1 // pred_fallthru
      _
    // Predicated region
    $region10: #{tpu_custom_call.1} parent=1 // pred_check
      _
    $region11: #{tpu_custom_call.1} parent=1 // pred_check_branch
      %21 = sbr.rel (0) target = $region13
    $region12: #{tpu_custom_call.1} parent=1 // pred_region
      _
    $region13: #{tpu_custom_call.1} parent=1 // pred_fallthru
      _
    // Predicated region
    $region14: #{tpu_custom_call.1} parent=1 // pred_check
      _
    $region15: #{tpu_custom_call.1} parent=1 // pred_check_branch
      %23 = sbr.rel (0) target = $region17
    $region16: #{tpu_custom_call.1} parent=1 // pred_region
      _
    $region17: #{tpu_custom_call.1} parent=1 // pred_fallthru
      _
    // Predicated region
    $region18: #{tpu_custom_call.1} parent=1 // pred_check
      _
    $region19: #{tpu_custom_call.1} parent=1 // pred_check_branch
      %25 = sbr.rel (0) target = $region21
    $region20: #{tpu_custom_call.1} parent=1 // pred_region
      _
    $region21: #{tpu_custom_call.1} parent=1 // pred_fallthru
      _
    // Predicated region
    $region22: #{tpu_custom_call.1} parent=1 // pred_check
      _
    $region23: #{tpu_custom_call.1} parent=1 // pred_check_branch
      %27 = sbr.rel (0) target = $region25
    $region24: #{tpu_custom_call.1} parent=1 // pred_region
      _
    $region25: #{tpu_custom_call.1} parent=1 // pred_fallthru
      _
    // Predicated region
    $region26: #{tpu_custom_call.1} parent=1 // pred_check
      _
    $region27: #{tpu_custom_call.1} parent=1 // pred_check_branch
      %29 = sbr.rel (0) target = $region29
    $region28: #{tpu_custom_call.1} parent=1 // pred_region
      _
    $region29: #{tpu_custom_call.1} parent=1 // pred_fallthru
      _
    // Predicated region
    $region30: #{tpu_custom_call.1} parent=1 // pred_check
      _
    $region31: #{tpu_custom_call.1} parent=1 // pred_check_branch
      %31 = sbr.rel (0) target = $region33
    $region32: #{tpu_custom_call.1} parent=1 // pred_region
      _
    $region33: #{tpu_custom_call.1} parent=1 // pred_fallthru
      _
    // Predicated region
    $region34: #{tpu_custom_call.1} parent=1 // pred_check
      _
    $region35: #{tpu_custom_call.1} parent=1 // pred_check_branch
      %33 = sbr.rel (0) target = $region37
    $region36: #{tpu_custom_call.1} parent=1 // pred_region
      _
    $region37: #{tpu_custom_call.1} parent=1 // pred_fallthru
      _
    // Predicated region
    $region38: #{tpu_custom_call.1} parent=1 // pred_check
      _
    $region39: #{tpu_custom_call.1} parent=1 // pred_check_branch
      %35 = sbr.rel (0) target = $region41
    $region40: #{tpu_custom_call.1} parent=1 // pred_region
      _
    $region41: #{tpu_custom_call.1} parent=1 // pred_fallthru
      _
    %vm37 = vcmask 257024
    %38 = vst.msk [vmem:[#allocation2] sm:$0xf] %vm37, 0
    %vm39 = vcmask 261124
    %40 = vst.msk [vmem:[#allocation2 + $0x8] sm:$0xf0] %vm39, 0
    %41 = vst.msk [vmem:[#allocation3] sm:$0xf] %vm37, 0
    %42 = vst.msk [vmem:[#allocation3 + $0x8] sm:$0xf0] %vm39, 0
    %43 = vst.msk [vmem:[#allocation4] sm:$0xf] %vm37, 0
    %44 = vst.msk [vmem:[#allocation4 + $0x8] sm:$0xf0] %vm39, 0
    %v45 = vld [vmem:[%s0] sm:$0x1]
    %v46 = vld [vmem:[%s0 + $0x8] sm:$0x1]
    %v47 = vld [vmem:[%s0 + $0x10] sm:$0x1]
    %v48 = vld [vmem:[%s0 + $0x18] sm:$0x1]
    %v49 = vld [vmem:[%s0 + $0x20] sm:$0x1]
    %v50 = vld [vmem:[%s0 + $0x28] sm:$0x1]
    %v51 = vld [vmem:[%s0 + $0x30] sm:$0x1]
    %v52 = vld [vmem:[%s0 + $0x38] sm:$0x1]
    %v53 = vld [vmem:[%s0 + $0x40] sm:$0x1]
    %v54 = vld [vmem:[%s0 + $0x48] sm:$0x1]
    %v55 = vld [vmem:[%s0 + $0x50] sm:$0x1]
    %v56 = vld [vmem:[%s0 + $0x58] sm:$0x1]
    %v57 = vld [vmem:[%s0 + $0x60] sm:$0x1]
    %v58 = vld [vmem:[%s0 + $0x68] sm:$0x1]
    %v59 = vld [vmem:[%s0 + $0x70] sm:$0x1]
    %v60 = vld [vmem:[%s0 + $0x78] sm:$0x1]
    %v61 = vpack.c.bf16 %v45, %v45
    %v62 = vpack.c.bf16 %v46, %v46
    %v63 = vpack.c.bf16 %v47, %v47
    %v64 = vpack.c.bf16 %v48, %v48
    %v65 = vpack.c.bf16 %v49, %v49
    %v66 = vpack.c.bf16 %v50, %v50
    %v67 = vpack.c.bf16 %v51, %v51
    %v68 = vpack.c.bf16 %v52, %v52
    %v69 = vpack.c.bf16 %v53, %v53
    %v70 = vpack.c.bf16 %v54, %v54
    %v71 = vpack.c.bf16 %v55, %v55
    %v72 = vpack.c.bf16 %v56, %v56
    %v73 = vpack.c.bf16 %v57, %v57
    %v74 = vpack.c.bf16 %v58, %v58
    %v75 = vpack.c.bf16 %v59, %v59
    %v76 = vpack.c.bf16 %v60, %v60
    %v93 = vunpack.c.l.b16 %v61
    %v94 = vunpack.c.l.b16 %v62
    %v95 = vunpack.c.l.b16 %v63
    %v96 = vunpack.c.l.b16 %v64
    %v97 = vunpack.c.l.b16 %v65
    %v98 = vunpack.c.l.b16 %v66
    %v99 = vunpack.c.l.b16 %v67
    %v100 = vunpack.c.l.b16 %v68
    %v101 = vunpack.c.l.b16 %v69
    %v102 = vunpack.c.l.b16 %v70
    %v103 = vunpack.c.l.b16 %v71
    %v104 = vunpack.c.l.b16 %v72
    %v105 = vunpack.c.l.b16 %v73
    %v106 = vunpack.c.l.b16 %v74
    %v107 = vunpack.c.l.b16 %v75
    %v108 = vunpack.c.l.b16 %v76
    %v109 = vrot.slane %v94, 7
    %vm110 = vcmask 1041409
    %v111 = vsel %vm110, %v109, %v93
    %v112 = vrot.slane %v95, 6
    %vm113 = vcmask 1042434
    %v114 = vsel %vm113, %v112, %v111
    %v115 = vrot.slane %v96, 5
    %vm116 = vcmask 1043459
    %v117 = vsel %vm116, %v115, %v114
    %v118 = vrot.slane %v97, 4
    %vm119 = vcmask 1044484
    %v120 = vsel %vm119, %v118, %v117
    %v121 = vrot.slane %v98, 3
    %vm122 = vcmask 1045509
    %v123 = vsel %vm122, %v121, %v120
    %v124 = vrot.slane %v99, 2
    %vm125 = vcmask 1046534
    %v126 = vsel %vm125, %v124, %v123
    %v127 = vrot.slane %v100, 1
    %vm128 = vcmask 1047559
    %v129 = vsel %vm128, %v127, %v126
    %v130 = vrot.slane %v102, 7
    %v131 = vsel %vm110, %v130, %v101
    %v132 = vrot.slane %v103, 6
    %v133 = vsel %vm113, %v132, %v131
    %v134 = vrot.slane %v104, 5
    %v135 = vsel %vm116, %v134, %v133
    %v136 = vrot.slane %v105, 4
    %v137 = vsel %vm119, %v136, %v135
    %v138 = vrot.slane %v106, 3
    %v139 = vsel %vm122, %v138, %v137
    %v140 = vrot.slane %v107, 2
    %v141 = vsel %vm125, %v140, %v139
    %v142 = vrot.slane %v108, 1
    %v143 = vsel %vm128, %v142, %v141
    %v144 = vpack.c.b16 %v129, %v129
    %v145 = vpack.c.b16 %v143, %v143
    %148 = vst.msk [vmem:[#allocation2] sm:$0xf0] %vm39, %v144
    %149 = vst.msk [vmem:[#allocation2 + $0x8] sm:$0xf] %vm37, %v145
    %v150 = vld [vmem:[#allocation2] sm:$0xf8]
    %v151 = vld [vmem:[#allocation2 + $0x8] sm:$0x7]
    %vm154 = vcmask 1044480
    %v155 = vrot.slane %v150, 3
    %v156 = vrot.slane %v151, 3
    %v157 = vsel %vm154, %v155, %v156
    %vm159 = vcmask 261120
    %160 = vst.msk [vmem:[#allocation5] sm:$0xff] %vm159, %v157
    %v161 = vld [vmem:[#allocation2] sm:$0xf8]
    %v162 = vld [vmem:[#allocation2 + $0x8] sm:$0xf]
    %vm163 = vsmask.f32 4352
    %v165 = vshrl.u32 %v161, 16
    %v167 = vrot.slane %v165, 3
    %v168 = vshll.u32 %v161, 16
    %v170 = vrot.slane %v168, 4
    %v171 = vor.u32 %v167, %v170
    %v173 = vshrl.u32 %v162, 16
    %v175 = vrot.slane %v173, 3
    %v176 = vshll.u32 %v162, 16
    %v178 = vrot.slane %v176, 4
    %v179 = vor.u32 %v175, %v178
    %v180 = vsel %vm163, %v171, %v179
    %181 = vrot.lane.b32.xlu0 %v180, 32
    %v182 = vpop.permute.xlu0 %181
    %vm184 = vcmask 523520
    %185 = vst.msk [vmem:[#allocation5] sm:$0xff] %vm184, %v182
    %v186 = vld [vmem:[#allocation2] sm:$0xf0]
    %v187 = vld [vmem:[#allocation2 + $0x8] sm:$0xf]
    %vm190 = vcmask 1043456
    %v191 = vrot.slane %v186, 4
    %v192 = vrot.slane %v187, 4
    %v193 = vsel %vm190, %v191, %v192
    %194 = vrot.lane.b32.xlu0 %v193, 64
    %v195 = vpop.permute.xlu0 %194
    %vm197 = vcmask 785920
    %198 = vst.msk [vmem:[#allocation5] sm:$0xff] %vm197, %v195
    %v199 = vld [vmem:[#allocation2] sm:$0xf0]
    %v200 = vld [vmem:[#allocation2 + $0x8] sm:$0x1f]
    %vm201 = vsmask.f32 3328
    %v203 = vshrl.u32 %v199, 16
    %v205 = vrot.slane %v203, 4
    %v206 = vshll.u32 %v199, 16
    %v208 = vrot.slane %v206, 5
    %v209 = vor.u32 %v205, %v208
    %v211 = vshrl.u32 %v200, 16
    %v213 = vrot.slane %v211, 4
    %v214 = vshll.u32 %v200, 16
    %v216 = vrot.slane %v214, 5
    %v217 = vor.u32 %v213, %v216
    %v218 = vsel %vm201, %v209, %v217
    %219 = vrot.lane.b32.xlu0 %v218, 96
    %v220 = vpop.permute.xlu0 %219
    %vm222 = vcmask 1048320
    %223 = vst.msk [vmem:[#allocation5] sm:$0xff] %vm222, %v220
    %v224 = vld [vmem:[#allocation2] sm:$0xe0]
    %v225 = vld [vmem:[#allocation2 + $0x8] sm:$0x1f]
    %vm228 = vcmask 1042432
    %v229 = vrot.slane %v224, 5
    %v230 = vrot.slane %v225, 5
    %v231 = vsel %vm228, %v229, %v230
    %233 = vst.msk [vmem:[#allocation5 + $0x8] sm:$0xff] %vm159, %v231
    %v234 = vld [vmem:[#allocation5] sm:$0xff]
    %v235 = vld [vmem:[#allocation5 + $0x8] sm:$0xff]
    %v236 = vld [vmem:[%s1] sm:$0xf]
    %v237 = vld [vmem:[%s1 + $0x4] sm:$0xf]
    %v238 = vld [vmem:[%s1 + $0x8] sm:$0xf]
    %v239 = vld [vmem:[%s1 + $0xc] sm:$0xf]
    %v240 = vld [vmem:[%s1 + $0x10] sm:$0xf]
    %v241 = vld [vmem:[%s1 + $0x14] sm:$0xf]
    %v242 = vld [vmem:[%s1 + $0x18] sm:$0xf]
    %v243 = vld [vmem:[%s1 + $0x1c] sm:$0xf]
    %v244 = vld [vmem:[%s1 + $0x20] sm:$0xf]
    %v245 = vld [vmem:[%s1 + $0x24] sm:$0xf]
    %v246 = vld [vmem:[%s1 + $0x28] sm:$0xf]
    %v247 = vld [vmem:[%s1 + $0x2c] sm:$0xf]
    %v248 = vld [vmem:[%s1 + $0x30] sm:$0xf]
    %v249 = vld [vmem:[%s1 + $0x34] sm:$0xf]
    %v250 = vld [vmem:[%s1 + $0x38] sm:$0xf]
    %v251 = vld [vmem:[%s1 + $0x3c] sm:$0xf]
    %v252 = vld [vmem:[%s1 + $0x40] sm:$0xf]
    %v253 = vld [vmem:[%s1 + $0x44] sm:$0xf]
    %v254 = vld [vmem:[%s1 + $0x48] sm:$0xf]
    %v255 = vld [vmem:[%s1 + $0x4c] sm:$0xf]
    %v276 = vunpack.c.l.b16 %v236
    %v277 = vunpack.c.l.b16 %v237
    %v278 = vunpack.c.l.b16 %v238
    %v279 = vunpack.c.l.b16 %v239
    %v280 = vunpack.c.l.b16 %v240
    %v281 = vunpack.c.l.b16 %v241
    %v282 = vunpack.c.l.b16 %v242
    %v283 = vunpack.c.l.b16 %v243
    %v284 = vunpack.c.l.b16 %v244
    %v285 = vunpack.c.l.b16 %v245
    %v286 = vunpack.c.l.b16 %v246
    %v287 = vunpack.c.l.b16 %v247
    %v288 = vunpack.c.l.b16 %v248
    %v289 = vunpack.c.l.b16 %v249
    %v290 = vunpack.c.l.b16 %v250
    %v291 = vunpack.c.l.b16 %v251
    %v292 = vunpack.c.l.b16 %v252
    %v293 = vunpack.c.l.b16 %v253
    %v294 = vunpack.c.l.b16 %v254
    %v295 = vunpack.c.l.b16 %v255
    %v296 = vpack.c.b16 %v277, %v276
    %v297 = vpack.c.b16 %v279, %v278
    %v298 = vpack.c.b16 %v281, %v280
    %v299 = vpack.c.b16 %v283, %v282
    %v300 = vpack.c.b16 %v285, %v284
    %v301 = vpack.c.b16 %v287, %v286
    %v302 = vpack.c.b16 %v289, %v288
    %v303 = vpack.c.b16 %v291, %v290
    %v304 = vpack.c.b16 %v293, %v292
    %v305 = vpack.c.b16 %v295, %v294
    %v317 = vsel %vm159, %v235, 0
    %319 = vmatprep.subr.bf16.mxu0 0
    %320 = vmatpush1.bf16.msra.mxu0 %v296
    %321 = vmatprep.subr.bf16.mxu0 0
    %322 = vmatpush1.bf16.msra.mxu0 %v297
    %323 = vmatprep.subr.bf16.mxu0 0
    %324 = vmatpush1.bf16.msra.mxu0 %v298
    %325 = vmatprep.subr.bf16.mxu0 0
    %326 = vmatpush1.bf16.msra.mxu0 %v299
    %327 = vmatprep.subr.bf16.mxu0 0
    %328 = vmatpush1.bf16.msra.mxu0 %v300
    %329 = vmatprep.subr.bf16.mxu0 0
    %330 = vmatpush1.bf16.msra.mxu0 %v301
    %331 = vmatprep.subr.bf16.mxu0 0
    %332 = vmatpush1.bf16.msra.mxu0 %v302
    %333 = vmatprep.subr.bf16.mxu0 0
    %334 = vmatpush1.bf16.msra.mxu0 %v303
    %335 = vmatprep.subr.bf16.mxu0 0
    %336 = vmatpush1.bf16.msra.mxu0 %v304
    %337 = vmatprep.subr.bf16.mxu0 0
    %338 = vmatpush1.bf16.msra.mxu0 %v305
    %339 = vmatprep.subr.bf16.mxu0 0
    %340 = vmatpush1.bf16.msra.mxu0 0
    %341 = vmatprep.subr.bf16.mxu0 0
    %342 = vmatpush1.bf16.msra.mxu0 0
    %343 = vmatprep.subr.bf16.mxu0 0
    %344 = vmatpush1.bf16.msra.mxu0 0
    %345 = vmatprep.subr.bf16.mxu0 0
    %346 = vmatpush1.bf16.msra.mxu0 0
    %347 = vmatprep.subr.bf16.mxu0 0
    %348 = vmatpush1.bf16.msra.mxu0 0
    %349 = vmatprep.subr.bf16.mxu0 0
    %350 = vmatpush1.bf16.msra.mxu0 0
    %351 = vmatprep.mubr.bf16.mxu0 %v317
    %352 = vmatmul.mubr.bf16.gmra.mrb[0].mxu0 %v234
    %v353 = vpop.f32.mrb[0].mxu0
    %v354 = vadd.f32 0.0, %v353
    %v355 = vpop.f32.mrb[0].mxu0
    %v356 = vpop.f32.mrb[0].mxu0
    %v357 = vadd.f32 0.0, %v356
    %v358 = vpop.f32.mrb[0].mxu0
    %359 = vdwg.mxu0
    %v360 = vld [vmem:[%s2] sm:$0x1]
    %v362 = vlaneseq
    %v363 = vshrl.u32 %v362, 7
    %v364 = vsub.s32 0, %v363
    %v365 = vrot.slane %v360, %v364
    %v367 = vmul.f32 %v354, %v365
    %v368 = vmul.f32 %v357, %v365
    %v369 = vld [vmem:[%s3] sm:$0x1]
    %v371 = vlaneseq
    %v372 = vshrl.u32 %v371, 7
    %v373 = vsub.s32 0, %v372
    %v374 = vrot.slane %v369, %v373
    %v376 = vadd.f32 %v367, %v374
    %v377 = vadd.f32 %v368, %v374
    %v378 = vmax.f32 %v376, 0.0
    %v379 = vmax.f32 %v377, 0.0
    %v380 = vpack.c.bf16 %v379, %v378
    %v382 = vrot.slane %v380, 4
    %384 = vst.msk [vmem:[#allocation3] sm:$0xf0] %vm39, %v382
    %385 = vst.msk [vmem:[#allocation3 + $0x8] sm:$0xf] %vm37, %v382
    %v386 = vld [vmem:[#allocation3] sm:$0xf8]
    %v387 = vld [vmem:[#allocation3 + $0x8] sm:$0x7]
    %v390 = vrot.slane %v386, 3
    %v391 = vrot.slane %v387, 3
    %v392 = vsel %vm154, %v390, %v391
    %394 = vst.msk [vmem:[#allocation5] sm:$0xff] %vm159, %v392
    %v395 = vld [vmem:[#allocation3] sm:$0xf8]
    %v396 = vld [vmem:[#allocation3 + $0x8] sm:$0xf]
    %v398 = vshrl.u32 %v395, 16
    %v400 = vrot.slane %v398, 3
    %v401 = vshll.u32 %v395, 16
    %v403 = vrot.slane %v401, 4
    %v404 = vor.u32 %v400, %v403
    %v406 = vshrl.u32 %v396, 16
    %v408 = vrot.slane %v406, 3
    %v409 = vshll.u32 %v396, 16
    %v411 = vrot.slane %v409, 4
    %v412 = vor.u32 %v408, %v411
    %v413 = vsel %vm163, %v404, %v412
    %414 = vrot.lane.b32.xlu0 %v413, 32
    %v415 = vpop.permute.xlu0 %414
    %417 = vst.msk [vmem:[#allocation5] sm:$0xff] %vm184, %v415
    %v418 = vld [vmem:[#allocation3] sm:$0xf0]
    %v419 = vld [vmem:[#allocation3 + $0x8] sm:$0xf]
    %v422 = vrot.slane %v418, 4
    %v423 = vrot.slane %v419, 4
    %v424 = vsel %vm190, %v422, %v423
    %425 = vrot.lane.b32.xlu0 %v424, 64
    %v426 = vpop.permute.xlu0 %425
    %428 = vst.msk [vmem:[#allocation5] sm:$0xff] %vm197, %v426
    %v429 = vld [vmem:[#allocation3] sm:$0xf0]
    %v430 = vld [vmem:[#allocation3 + $0x8] sm:$0x1f]
    %v432 = vshrl.u32 %v429, 16
    %v434 = vrot.slane %v432, 4
    %v435 = vshll.u32 %v429, 16
    %v437 = vrot.slane %v435, 5
    %v438 = vor.u32 %v434, %v437
    %v440 = vshrl.u32 %v430, 16
    %v442 = vrot.slane %v440, 4
    %v443 = vshll.u32 %v430, 16
    %v445 = vrot.slane %v443, 5
    %v446 = vor.u32 %v442, %v445
    %v447 = vsel %vm201, %v438, %v446
    %448 = vrot.lane.b32.xlu0 %v447, 96
    %v449 = vpop.permute.xlu0 %448
    %451 = vst.msk [vmem:[#allocation5] sm:$0xff] %vm222, %v449
    %v452 = vld [vmem:[#allocation3] sm:$0xe0]
    %v453 = vld [vmem:[#allocation3 + $0x8] sm:$0x1f]
    %v456 = vrot.slane %v452, 5
    %v457 = vrot.slane %v453, 5
    %v458 = vsel %vm228, %v456, %v457
    %460 = vst.msk [vmem:[#allocation5 + $0x8] sm:$0xff] %vm159, %v458
    %v461 = vld [vmem:[#allocation5] sm:$0xff]
    %v462 = vld [vmem:[#allocation5 + $0x8] sm:$0xff]
    %v463 = vld [vmem:[%s4] sm:$0xf]
    %v464 = vld [vmem:[%s4 + $0x4] sm:$0xf]
    %v465 = vld [vmem:[%s4 + $0x8] sm:$0xf]
    %v466 = vld [vmem:[%s4 + $0xc] sm:$0xf]
    %v467 = vld [vmem:[%s4 + $0x10] sm:$0xf]
    %v468 = vld [vmem:[%s4 + $0x14] sm:$0xf]
    %v469 = vld [vmem:[%s4 + $0x18] sm:$0xf]
    %v470 = vld [vmem:[%s4 + $0x1c] sm:$0xf]
    %v471 = vld [vmem:[%s4 + $0x20] sm:$0xf]
    %v472 = vld [vmem:[%s4 + $0x24] sm:$0xf]
    %v473 = vld [vmem:[%s4 + $0x28] sm:$0xf]
    %v474 = vld [vmem:[%s4 + $0x2c] sm:$0xf]
    %v475 = vld [vmem:[%s4 + $0x30] sm:$0xf]
    %v476 = vld [vmem:[%s4 + $0x34] sm:$0xf]
    %v477 = vld [vmem:[%s4 + $0x38] sm:$0xf]
    %v478 = vld [vmem:[%s4 + $0x3c] sm:$0xf]
    %v479 = vld [vmem:[%s4 + $0x40] sm:$0xf]
    %v480 = vld [vmem:[%s4 + $0x44] sm:$0xf]
    %v481 = vld [vmem:[%s4 + $0x48] sm:$0xf]
    %v482 = vld [vmem:[%s4 + $0x4c] sm:$0xf]
    %v503 = vunpack.c.l.b16 %v463
    %v504 = vunpack.c.l.b16 %v464
    %v505 = vunpack.c.l.b16 %v465
    %v506 = vunpack.c.l.b16 %v466
    %v507 = vunpack.c.l.b16 %v467
    %v508 = vunpack.c.l.b16 %v468
    %v509 = vunpack.c.l.b16 %v469
    %v510 = vunpack.c.l.b16 %v470
    %v511 = vunpack.c.l.b16 %v471
    %v512 = vunpack.c.l.b16 %v472
    %v513 = vunpack.c.l.b16 %v473
    %v514 = vunpack.c.l.b16 %v474
    %v515 = vunpack.c.l.b16 %v475
    %v516 = vunpack.c.l.b16 %v476
    %v517 = vunpack.c.l.b16 %v477
    %v518 = vunpack.c.l.b16 %v478
    %v519 = vunpack.c.l.b16 %v479
    %v520 = vunpack.c.l.b16 %v480
    %v521 = vunpack.c.l.b16 %v481
    %v522 = vunpack.c.l.b16 %v482
    %v523 = vpack.c.b16 %v504, %v503
    %v524 = vpack.c.b16 %v506, %v505
    %v525 = vpack.c.b16 %v508, %v507
    %v526 = vpack.c.b16 %v510, %v509
    %v527 = vpack.c.b16 %v512, %v511
    %v528 = vpack.c.b16 %v514, %v513
    %v529 = vpack.c.b16 %v516, %v515
    %v530 = vpack.c.b16 %v518, %v517
    %v531 = vpack.c.b16 %v520, %v519
    %v532 = vpack.c.b16 %v522, %v521
    %v544 = vsel %vm159, %v462, 0
    %546 = vmatprep.subr.bf16.mxu0 0
    %547 = vmatpush1.bf16.msra.mxu0 %v523
    %548 = vmatprep.subr.bf16.mxu0 0
    %549 = vmatpush1.bf16.msra.mxu0 %v524
    %550 = vmatprep.subr.bf16.mxu0 0
    %551 = vmatpush1.bf16.msra.mxu0 %v525
    %552 = vmatprep.subr.bf16.mxu0 0
    %553 = vmatpush1.bf16.msra.mxu0 %v526
    %554 = vmatprep.subr.bf16.mxu0 0
    %555 = vmatpush1.bf16.msra.mxu0 %v527
    %556 = vmatprep.subr.bf16.mxu0 0
    %557 = vmatpush1.bf16.msra.mxu0 %v528
    %558 = vmatprep.subr.bf16.mxu0 0
    %559 = vmatpush1.bf16.msra.mxu0 %v529
    %560 = vmatprep.subr.bf16.mxu0 0
    %561 = vmatpush1.bf16.msra.mxu0 %v530
    %562 = vmatprep.subr.bf16.mxu0 0
    %563 = vmatpush1.bf16.msra.mxu0 %v531
    %564 = vmatprep.subr.bf16.mxu0 0
    %565 = vmatpush1.bf16.msra.mxu0 %v532
    %566 = vmatprep.subr.bf16.mxu0 0
    %567 = vmatpush1.bf16.msra.mxu0 0
    %568 = vmatprep.subr.bf16.mxu0 0
    %569 = vmatpush1.bf16.msra.mxu0 0
    %570 = vmatprep.subr.bf16.mxu0 0
    %571 = vmatpush1.bf16.msra.mxu0 0
    %572 = vmatprep.subr.bf16.mxu0 0
    %573 = vmatpush1.bf16.msra.mxu0 0
    %574 = vmatprep.subr.bf16.mxu0 0
    %575 = vmatpush1.bf16.msra.mxu0 0
    %576 = vmatprep.subr.bf16.mxu0 0
    %577 = vmatpush1.bf16.msra.mxu0 0
    %578 = vmatprep.mubr.bf16.mxu0 %v544
    %579 = vmatmul.mubr.bf16.gmra.mrb[0].mxu0 %v461
    %v580 = vpop.f32.mrb[0].mxu0
    %v581 = vadd.f32 0.0, %v580
    %v582 = vpop.f32.mrb[0].mxu0
    %v583 = vpop.f32.mrb[0].mxu0
    %v584 = vadd.f32 0.0, %v583
    %v585 = vpop.f32.mrb[0].mxu0
    %586 = vdwg.mxu0
    %v587 = vld [vmem:[%s5] sm:$0x1]
    %v589 = vlaneseq
    %v590 = vshrl.u32 %v589, 7
    %v591 = vsub.s32 0, %v590
    %v592 = vrot.slane %v587, %v591
    %v594 = vmul.f32 %v581, %v592
    %v595 = vmul.f32 %v584, %v592
    %v596 = vld [vmem:[%s6] sm:$0x1]
    %v598 = vlaneseq
    %v599 = vshrl.u32 %v598, 7
    %v600 = vsub.s32 0, %v599
    %v601 = vrot.slane %v596, %v600
    %v603 = vadd.f32 %v594, %v601
    %v604 = vadd.f32 %v595, %v601
    %v605 = vmax.f32 %v603, 0.0
    %v606 = vmax.f32 %v604, 0.0
    %v607 = vpack.c.bf16 %v606, %v605
    %v609 = vrot.slane %v607, 4
    %611 = vst.msk [vmem:[#allocation4] sm:$0xf0] %vm39, %v609
    %612 = vst.msk [vmem:[#allocation4 + $0x8] sm:$0xf] %vm37, %v609
    %v613 = vld [vmem:[#allocation4] sm:$0xf8]
    %v614 = vld [vmem:[#allocation4 + $0x8] sm:$0x7]
    %v617 = vrot.slane %v613, 3
    %v618 = vrot.slane %v614, 3
    %v619 = vsel %vm154, %v617, %v618
    %621 = vst.msk [vmem:[#allocation5] sm:$0xff] %vm159, %v619
    %v622 = vld [vmem:[#allocation4] sm:$0xf8]
    %v623 = vld [vmem:[#allocation4 + $0x8] sm:$0xf]
    %v625 = vshrl.u32 %v622, 16
    %v627 = vrot.slane %v625, 3
    %v628 = vshll.u32 %v622, 16
    %v630 = vrot.slane %v628, 4
    %v631 = vor.u32 %v627, %v630
    %v633 = vshrl.u32 %v623, 16
    %v635 = vrot.slane %v633, 3
    %v636 = vshll.u32 %v623, 16
    %v638 = vrot.slane %v636, 4
    %v639 = vor.u32 %v635, %v638
    %v640 = vsel %vm163, %v631, %v639
    %641 = vrot.lane.b32.xlu0 %v640, 32
    %v642 = vpop.permute.xlu0 %641
    %644 = vst.msk [vmem:[#allocation5] sm:$0xff] %vm184, %v642
    %v645 = vld [vmem:[#allocation4] sm:$0xf0]
    %v646 = vld [vmem:[#allocation4 + $0x8] sm:$0xf]
    %v649 = vrot.slane %v645, 4
    %v650 = vrot.slane %v646, 4
    %v651 = vsel %vm190, %v649, %v650
    %652 = vrot.lane.b32.xlu0 %v651, 64
    %v653 = vpop.permute.xlu0 %652
    %655 = vst.msk [vmem:[#allocation5] sm:$0xff] %vm197, %v653
    %v656 = vld [vmem:[#allocation4] sm:$0xf0]
    %v657 = vld [vmem:[#allocation4 + $0x8] sm:$0x1f]
    %v659 = vshrl.u32 %v656, 16
    %v661 = vrot.slane %v659, 4
    %v662 = vshll.u32 %v656, 16
    %v664 = vrot.slane %v662, 5
    %v665 = vor.u32 %v661, %v664
    %v667 = vshrl.u32 %v657, 16
    %v669 = vrot.slane %v667, 4
    %v670 = vshll.u32 %v657, 16
    %v672 = vrot.slane %v670, 5
    %v673 = vor.u32 %v669, %v672
    %v674 = vsel %vm201, %v665, %v673
    %675 = vrot.lane.b32.xlu0 %v674, 96
    %v676 = vpop.permute.xlu0 %675
    %678 = vst.msk [vmem:[#allocation5] sm:$0xff] %vm222, %v676
    %v679 = vld [vmem:[#allocation4] sm:$0xe0]
    %v680 = vld [vmem:[#allocation4 + $0x8] sm:$0x1f]
    %v683 = vrot.slane %v679, 5
    %v684 = vrot.slane %v680, 5
    %v685 = vsel %vm228, %v683, %v684
    %687 = vst.msk [vmem:[#allocation5 + $0x8] sm:$0xff] %vm159, %v685
    %v688 = vld [vmem:[#allocation5] sm:$0xff]
    %v689 = vld [vmem:[#allocation5 + $0x8] sm:$0xff]
    %v690 = vld [vmem:[%s7] sm:$0xf]
    %v691 = vld [vmem:[%s7 + $0x4] sm:$0xf]
    %v692 = vld [vmem:[%s7 + $0x8] sm:$0xf]
    %v693 = vld [vmem:[%s7 + $0xc] sm:$0xf]
    %v694 = vld [vmem:[%s7 + $0x10] sm:$0xf]
    %v695 = vld [vmem:[%s7 + $0x14] sm:$0xf]
    %v696 = vld [vmem:[%s7 + $0x18] sm:$0xf]
    %v697 = vld [vmem:[%s7 + $0x1c] sm:$0xf]
    %v698 = vld [vmem:[%s7 + $0x20] sm:$0xf]
    %v699 = vld [vmem:[%s7 + $0x24] sm:$0xf]
    %v700 = vld [vmem:[%s7 + $0x28] sm:$0xf]
    %v701 = vld [vmem:[%s7 + $0x2c] sm:$0xf]
    %v702 = vld [vmem:[%s7 + $0x30] sm:$0xf]
    %v703 = vld [vmem:[%s7 + $0x34] sm:$0xf]
    %v704 = vld [vmem:[%s7 + $0x38] sm:$0xf]
    %v705 = vld [vmem:[%s7 + $0x3c] sm:$0xf]
    %v706 = vld [vmem:[%s7 + $0x40] sm:$0xf]
    %v707 = vld [vmem:[%s7 + $0x44] sm:$0xf]
    %v708 = vld [vmem:[%s7 + $0x48] sm:$0xf]
    %v709 = vld [vmem:[%s7 + $0x4c] sm:$0xf]
    %v730 = vunpack.c.l.b16 %v690
    %v731 = vunpack.c.l.b16 %v691
    %v732 = vunpack.c.l.b16 %v692
    %v733 = vunpack.c.l.b16 %v693
    %v734 = vunpack.c.l.b16 %v694
    %v735 = vunpack.c.l.b16 %v695
    %v736 = vunpack.c.l.b16 %v696
    %v737 = vunpack.c.l.b16 %v697
    %v738 = vunpack.c.l.b16 %v698
    %v739 = vunpack.c.l.b16 %v699
    %v740 = vunpack.c.l.b16 %v700
    %v741 = vunpack.c.l.b16 %v701
    %v742 = vunpack.c.l.b16 %v702
    %v743 = vunpack.c.l.b16 %v703
    %v744 = vunpack.c.l.b16 %v704
    %v745 = vunpack.c.l.b16 %v705
    %v746 = vunpack.c.l.b16 %v706
    %v747 = vunpack.c.l.b16 %v707
    %v748 = vunpack.c.l.b16 %v708
    %v749 = vunpack.c.l.b16 %v709
    %v750 = vpack.c.b16 %v731, %v730
    %v751 = vpack.c.b16 %v733, %v732
    %v752 = vpack.c.b16 %v735, %v734
    %v753 = vpack.c.b16 %v737, %v736
    %v754 = vpack.c.b16 %v739, %v738
    %v755 = vpack.c.b16 %v741, %v740
    %v756 = vpack.c.b16 %v743, %v742
    %v757 = vpack.c.b16 %v745, %v744
    %v758 = vpack.c.b16 %v747, %v746
    %v759 = vpack.c.b16 %v749, %v748
    %v771 = vsel %vm159, %v689, 0
    %773 = vmatprep.subr.bf16.mxu0 0
    %774 = vmatpush1.bf16.msra.mxu0 %v750
    %775 = vmatprep.subr.bf16.mxu0 0
    %776 = vmatpush1.bf16.msra.mxu0 %v751
    %777 = vmatprep.subr.bf16.mxu0 0
    %778 = vmatpush1.bf16.msra.mxu0 %v752
    %779 = vmatprep.subr.bf16.mxu0 0
    %780 = vmatpush1.bf16.msra.mxu0 %v753
    %781 = vmatprep.subr.bf16.mxu0 0
    %782 = vmatpush1.bf16.msra.mxu0 %v754
    %783 = vmatprep.subr.bf16.mxu0 0
    %784 = vmatpush1.bf16.msra.mxu0 %v755
    %785 = vmatprep.subr.bf16.mxu0 0
    %786 = vmatpush1.bf16.msra.mxu0 %v756
    %787 = vmatprep.subr.bf16.mxu0 0
    %788 = vmatpush1.bf16.msra.mxu0 %v757
    %789 = vmatprep.subr.bf16.mxu0 0
    %790 = vmatpush1.bf16.msra.mxu0 %v758
    %791 = vmatprep.subr.bf16.mxu0 0
    %792 = vmatpush1.bf16.msra.mxu0 %v759
    %793 = vmatprep.subr.bf16.mxu0 0
    %794 = vmatpush1.bf16.msra.mxu0 0
    %795 = vmatprep.subr.bf16.mxu0 0
    %796 = vmatpush1.bf16.msra.mxu0 0
    %797 = vmatprep.subr.bf16.mxu0 0
    %798 = vmatpush1.bf16.msra.mxu0 0
    %799 = vmatprep.subr.bf16.mxu0 0
    %800 = vmatpush1.bf16.msra.mxu0 0
    %801 = vmatprep.subr.bf16.mxu0 0
    %802 = vmatpush1.bf16.msra.mxu0 0
    %803 = vmatprep.subr.bf16.mxu0 0
    %804 = vmatpush1.bf16.msra.mxu0 0
    %805 = vmatprep.mubr.bf16.mxu0 %v771
    %806 = vmatmul.mubr.bf16.gmra.mrb[0].mxu0 %v688
    %v807 = vpop.f32.mrb[0].mxu0
    %v808 = vadd.f32 0.0, %v807
    %v809 = vpop.f32.mrb[0].mxu0
    %v810 = vpop.f32.mrb[0].mxu0
    %v811 = vadd.f32 0.0, %v810
    %v812 = vpop.f32.mrb[0].mxu0
    %813 = vdwg.mxu0
    %v814 = vld [vmem:[%s8] sm:$0x1]
    %v816 = vlaneseq
    %v817 = vshrl.u32 %v816, 7
    %v818 = vsub.s32 0, %v817
    %v819 = vrot.slane %v814, %v818
    %v821 = vmul.f32 %v808, %v819
    %v822 = vmul.f32 %v811, %v819
    %v823 = vld [vmem:[%s9] sm:$0x1]
    %v825 = vlaneseq
    %v826 = vshrl.u32 %v825, 7
    %v827 = vsub.s32 0, %v826
    %v828 = vrot.slane %v823, %v827
    %v830 = vadd.f32 %v821, %v828
    %v831 = vadd.f32 %v822, %v828
    %v832 = vmax.f32 %v830, 0.0
    %v833 = vmax.f32 %v831, 0.0
    %v836 = vcombine.high %v832, %v832
    %v838 = vunpack.c.l.s4 1966171168
    %v839 = vunpack.c.0.s8 %v838
    %v840 = vlaneseq
    %v841 = vshrl.u32 %v840, 7
    %v842 = vsub.s32 %v839, %v841
    %v843 = vrot.slane %v832, %v842
    %v845 = vunpack.c.l.s4 1966171168
    %v846 = vunpack.c.0.s8 %v845
    %v847 = vlaneseq
    %v848 = vshrl.u32 %v847, 7
    %v849 = vsub.s32 %v846, %v848
    %v850 = vrot.slane %v836, %v849
    %v851 = vcombine.high %v843, %v843
    %v852 = vcombine.high %v850, %v850
    %v854 = vunpack.c.l.s4 1966171168
    %v855 = vunpack.c.0.s8 %v854
    %v856 = vlaneseq
    %v857 = vshrl.u32 %v856, 7
    %v858 = vsub.s32 %v855, %v857
    %v859 = vrot.slane %v843, %v858
    %v861 = vunpack.c.l.s4 1966171168
    %v862 = vunpack.c.0.s8 %v861
    %v863 = vlaneseq
    %v864 = vshrl.u32 %v863, 7
    %v865 = vsub.s32 %v862, %v864
    %v866 = vrot.slane %v850, %v865
    %v868 = vunpack.c.l.s4 1966171168
    %v869 = vunpack.c.0.s8 %v868
    %v870 = vlaneseq
    %v871 = vshrl.u32 %v870, 7
    %v872 = vsub.s32 %v869, %v871
    %v873 = vrot.slane %v851, %v872
    %v875 = vunpack.c.l.s4 1966171168
    %v876 = vunpack.c.0.s8 %v875
    %v877 = vlaneseq
    %v878 = vshrl.u32 %v877, 7
    %v879 = vsub.s32 %v876, %v878
    %v880 = vrot.slane %v852, %v879
    %v881 = vcombine.high %v859, %v859
    %v882 = vcombine.high %v866, %v866
    %v883 = vcombine.high %v873, %v873
    %v884 = vcombine.high %v880, %v880
    %v885 = vcombine.high %v833, %v833
    %v887 = vunpack.c.l.s4 1966171168
    %v888 = vunpack.c.0.s8 %v887
    %v889 = vlaneseq
    %v890 = vshrl.u32 %v889, 7
    %v891 = vsub.s32 %v888, %v890
    %v892 = vrot.slane %v833, %v891
    %v894 = vunpack.c.l.s4 1966171168
    %v895 = vunpack.c.0.s8 %v894
    %v896 = vlaneseq
    %v897 = vshrl.u32 %v896, 7
    %v898 = vsub.s32 %v895, %v897
    %v899 = vrot.slane %v885, %v898
    %v900 = vcombine.high %v892, %v892
    %v901 = vcombine.high %v899, %v899
    %v903 = vunpack.c.l.s4 1966171168
    %v904 = vunpack.c.0.s8 %v903
    %v905 = vlaneseq
    %v906 = vshrl.u32 %v905, 7
    %v907 = vsub.s32 %v904, %v906
    %v908 = vrot.slane %v892, %v907
    %v910 = vunpack.c.l.s4 1966171168
    %v911 = vunpack.c.0.s8 %v910
    %v912 = vlaneseq
    %v913 = vshrl.u32 %v912, 7
    %v914 = vsub.s32 %v911, %v913
    %v915 = vrot.slane %v899, %v914
    %v917 = vunpack.c.l.s4 1966171168
    %v918 = vunpack.c.0.s8 %v917
    %v919 = vlaneseq
    %v920 = vshrl.u32 %v919, 7
    %v921 = vsub.s32 %v918, %v920
    %v922 = vrot.slane %v900, %v921
    %v924 = vunpack.c.l.s4 1966171168
    %v925 = vunpack.c.0.s8 %v924
    %v926 = vlaneseq
    %v927 = vshrl.u32 %v926, 7
    %v928 = vsub.s32 %v925, %v927
    %v929 = vrot.slane %v901, %v928
    %v930 = vcombine.high %v908, %v908
    %v931 = vcombine.high %v915, %v915
    %v932 = vcombine.high %v922, %v922
    %v933 = vcombine.high %v929, %v929
    %vm950 = vcmask 253952
    %951 = vst.msk [vmem:[#allocation6] sm:$0x1] %vm950, %v859
    %952 = vst.msk [vmem:[#allocation6 + $0x8] sm:$0x1] %vm950, %v873
    %953 = vst.msk [vmem:[#allocation6 + $0x10] sm:$0x1] %vm950, %v881
    %954 = vst.msk [vmem:[#allocation6 + $0x18] sm:$0x1] %vm950, %v883
    %955 = vst.msk [vmem:[#allocation6 + $0x20] sm:$0x1] %vm950, %v866
    %956 = vst.msk [vmem:[#allocation6 + $0x28] sm:$0x1] %vm950, %v880
    %957 = vst.msk [vmem:[#allocation6 + $0x30] sm:$0x1] %vm950, %v882
    %958 = vst.msk [vmem:[#allocation6 + $0x38] sm:$0x1] %vm950, %v884
    %959 = vst.msk [vmem:[#allocation6 + $0x40] sm:$0x1] %vm950, %v908
    %960 = vst.msk [vmem:[#allocation6 + $0x48] sm:$0x1] %vm950, %v922
    %961 = vst.msk [vmem:[#allocation6 + $0x50] sm:$0x1] %vm950, %v930
    %962 = vst.msk [vmem:[#allocation6 + $0x58] sm:$0x1] %vm950, %v932
    %963 = vst.msk [vmem:[#allocation6 + $0x60] sm:$0x1] %vm950, %v915
    %964 = vst.msk [vmem:[#allocation6 + $0x68] sm:$0x1] %vm950, %v929
    %965 = vst.msk [vmem:[#allocation6 + $0x70] sm:$0x1] %vm950, %v931
    %966 = vst.msk [vmem:[#allocation6 + $0x78] sm:$0x1] %vm950, %v933
    %v967 = vld [vmem:[%s0 + $0x1] sm:$0x1]
    %v968 = vld [vmem:[%s0 + $0x9] sm:$0x1]
    %v969 = vld [vmem:[%s0 + $0x11] sm:$0x1]
    %v970 = vld [vmem:[%s0 + $0x19] sm:$0x1]
    %v971 = vld [vmem:[%s0 + $0x21] sm:$0x1]
    %v972 = vld [vmem:[%s0 + $0x29] sm:$0x1]
    %v973 = vld [vmem:[%s0 + $0x31] sm:$0x1]
    %v974 = vld [vmem:[%s0 + $0x39] sm:$0x1]
    %v975 = vld [vmem:[%s0 + $0x41] sm:$0x1]
    %v976 = vld [vmem:[%s0 + $0x49] sm:$0x1]
    %v977 = vld [vmem:[%s0 + $0x51] sm:$0x1]
    %v978 = vld [vmem:[%s0 + $0x59] sm:$0x1]
    %v979 = vld [vmem:[%s0 + $0x61] sm:$0x1]
    %v980 = vld [vmem:[%s0 + $0x69] sm:$0x1]
    %v981 = vld [vmem:[%s0 + $0x71] sm:$0x1]
    %v982 = vld [vmem:[%s0 + $0x79] sm:$0x1]
    %v983 = vpack.c.bf16 %v967, %v967
    %v984 = vpack.c.bf16 %v968, %v968
    %v985 = vpack.c.bf16 %v969, %v969
    %v986 = vpack.c.bf16 %v970, %v970
    %v987 = vpack.c.bf16 %v971, %v971
    %v988 = vpack.c.bf16 %v972, %v972
    %v989 = vpack.c.bf16 %v973, %v973
    %v990 = vpack.c.bf16 %v974, %v974
    %v991 = vpack.c.bf16 %v975, %v975
    %v992 = vpack.c.bf16 %v976, %v976
    %v993 = vpack.c.bf16 %v977, %v977
    %v994 = vpack.c.bf16 %v978, %v978
    %v995 = vpack.c.bf16 %v979, %v979
    %v996 = vpack.c.bf16 %v980, %v980
    %v997 = vpack.c.bf16 %v981, %v981
    %v998 = vpack.c.bf16 %v982, %v982
    %v1015 = vunpack.c.l.b16 %v983
    %v1016 = vunpack.c.l.b16 %v984
    %v1017 = vunpack.c.l.b16 %v985
    %v1018 = vunpack.c.l.b16 %v986
    %v1019 = vunpack.c.l.b16 %v987
    %v1020 = vunpack.c.l.b16 %v988
    %v1021 = vunpack.c.l.b16 %v989
    %v1022 = vunpack.c.l.b16 %v990
    %v1023 = vunpack.c.l.b16 %v991
    %v1024 = vunpack.c.l.b16 %v992
    %v1025 = vunpack.c.l.b16 %v993
    %v1026 = vunpack.c.l.b16 %v994
    %v1027 = vunpack.c.l.b16 %v995
    %v1028 = vunpack.c.l.b16 %v996
    %v1029 = vunpack.c.l.b16 %v997
    %v1030 = vunpack.c.l.b16 %v998
    %v1031 = vrot.slane %v1016, 7
    %v1032 = vsel %vm110, %v1031, %v1015
    %v1033 = vrot.slane %v1017, 6
    %v1034 = vsel %vm113, %v1033, %v1032
    %v1035 = vrot.slane %v1018, 5
    %v1036 = vsel %vm116, %v1035, %v1034
    %v1037 = vrot.slane %v1019, 4
    %v1038 = vsel %vm119, %v1037, %v1036
    %v1039 = vrot.slane %v1020, 3
    %v1040 = vsel %vm122, %v1039, %v1038
    %v1041 = vrot.slane %v1021, 2
    %v1042 = vsel %vm125, %v1041, %v1040
    %v1043 = vrot.slane %v1022, 1
    %v1044 = vsel %vm128, %v1043, %v1042
    %v1045 = vrot.slane %v1024, 7
    %v1046 = vsel %vm110, %v1045, %v1023
    %v1047 = vrot.slane %v1025, 6
    %v1048 = vsel %vm113, %v1047, %v1046
    %v1049 = vrot.slane %v1026, 5
    %v1050 = vsel %vm116, %v1049, %v1048
    %v1051 = vrot.slane %v1027, 4
    %v1052 = vsel %vm119, %v1051, %v1050
    %v1053 = vrot.slane %v1028, 3
    %v1054 = vsel %vm122, %v1053, %v1052
    %v1055 = vrot.slane %v1029, 2
    %v1056 = vsel %vm125, %v1055, %v1054
    %v1057 = vrot.slane %v1030, 1
    %v1058 = vsel %vm128, %v1057, %v1056
    %v1059 = vpack.c.b16 %v1044, %v1044
    %v1060 = vpack.c.b16 %v1058, %v1058
    %1063 = vst.msk [vmem:[#allocation2] sm:$0xf0] %vm39, %v1059
    %1064 = vst.msk [vmem:[#allocation2 + $0x8] sm:$0xf] %vm37, %v1060
    %v1065 = vld [vmem:[#allocation2] sm:$0xf8]
    %v1066 = vld [vmem:[#allocation2 + $0x8] sm:$0x7]
    %v1069 = vrot.slane %v1065, 3
    %v1070 = vrot.slane %v1066, 3
    %v1071 = vsel %vm154, %v1069, %v1070
    %1073 = vst.msk [vmem:[#allocation5] sm:$0xff] %vm159, %v1071
    %v1074 = vld [vmem:[#allocation2] sm:$0xf8]
    %v1075 = vld [vmem:[#allocation2 + $0x8] sm:$0xf]
    %v1077 = vshrl.u32 %v1074, 16
    %v1079 = vrot.slane %v1077, 3
    %v1080 = vshll.u32 %v1074, 16
    %v1082 = vrot.slane %v1080, 4
    %v1083 = vor.u32 %v1079, %v1082
    %v1085 = vshrl.u32 %v1075, 16
    %v1087 = vrot.slane %v1085, 3
    %v1088 = vshll.u32 %v1075, 16
    %v1090 = vrot.slane %v1088, 4
    %v1091 = vor.u32 %v1087, %v1090
    %v1092 = vsel %vm163, %v1083, %v1091
    %1093 = vrot.lane.b32.xlu0 %v1092, 32
    %v1094 = vpop.permute.xlu0 %1093
    %1096 = vst.msk [vmem:[#allocation5] sm:$0xff] %vm184, %v1094
    %v1097 = vld [vmem:[#allocation2] sm:$0xf0]
    %v1098 = vld [vmem:[#allocation2 + $0x8] sm:$0xf]
    %v1101 = vrot.slane %v1097, 4
    %v1102 = vrot.slane %v1098, 4
    %v1103 = vsel %vm190, %v1101, %v1102
    %1104 = vrot.lane.b32.xlu0 %v1103, 64
    %v1105 = vpop.permute.xlu0 %1104
    %1107 = vst.msk [vmem:[#allocation5] sm:$0xff] %vm197, %v1105
    %v1108 = vld [vmem:[#allocation2] sm:$0xf0]
    %v1109 = vld [vmem:[#allocation2 + $0x8] sm:$0x1f]
    %v1111 = vshrl.u32 %v1108, 16
    %v1113 = vrot.slane %v1111, 4
    %v1114 = vshll.u32 %v1108, 16
    %v1116 = vrot.slane %v1114, 5
    %v1117 = vor.u32 %v1113, %v1116
    %v1119 = vshrl.u32 %v1109, 16
    %v1121 = vrot.slane %v1119, 4
    %v1122 = vshll.u32 %v1109, 16
    %v1124 = vrot.slane %v1122, 5
    %v1125 = vor.u32 %v1121, %v1124
    %v1126 = vsel %vm201, %v1117, %v1125
    %1127 = vrot.lane.b32.xlu0 %v1126, 96
    %v1128 = vpop.permute.xlu0 %1127
    %1130 = vst.msk [vmem:[#allocation5] sm:$0xff] %vm222, %v1128
    %v1131 = vld [vmem:[#allocation2] sm:$0xe0]
    %v1132 = vld [vmem:[#allocation2 + $0x8] sm:$0x1f]
    %v1135 = vrot.slane %v1131, 5
    %v1136 = vrot.slane %v1132, 5
    %v1137 = vsel %vm228, %v1135, %v1136
    %1139 = vst.msk [vmem:[#allocation5 + $0x8] sm:$0xff] %vm159, %v1137
    %v1140 = vld [vmem:[#allocation5] sm:$0xff]
    %v1141 = vld [vmem:[#allocation5 + $0x8] sm:$0xff]
    %v1142 = vld [vmem:[%s1] sm:$0xf]
    %v1143 = vld [vmem:[%s1 + $0x4] sm:$0xf]
    %v1144 = vld [vmem:[%s1 + $0x8] sm:$0xf]
    %v1145 = vld [vmem:[%s1 + $0xc] sm:$0xf]
    %v1146 = vld [vmem:[%s1 + $0x10] sm:$0xf]
    %v1147 = vld [vmem:[%s1 + $0x14] sm:$0xf]
    %v1148 = vld [vmem:[%s1 + $0x18] sm:$0xf]
    %v1149 = vld [vmem:[%s1 + $0x1c] sm:$0xf]
    %v1150 = vld [vmem:[%s1 + $0x20] sm:$0xf]
    %v1151 = vld [vmem:[%s1 + $0x24] sm:$0xf]
    %v1152 = vld [vmem:[%s1 + $0x28] sm:$0xf]
    %v1153 = vld [vmem:[%s1 + $0x2c] sm:$0xf]
    %v1154 = vld [vmem:[%s1 + $0x30] sm:$0xf]
    %v1155 = vld [vmem:[%s1 + $0x34] sm:$0xf]
    %v1156 = vld [vmem:[%s1 + $0x38] sm:$0xf]
    %v1157 = vld [vmem:[%s1 + $0x3c] sm:$0xf]
    %v1158 = vld [vmem:[%s1 + $0x40] sm:$0xf]
    %v1159 = vld [vmem:[%s1 + $0x44] sm:$0xf]
    %v1160 = vld [vmem:[%s1 + $0x48] sm:$0xf]
    %v1161 = vld [vmem:[%s1 + $0x4c] sm:$0xf]
    %v1182 = vunpack.c.l.b16 %v1142
    %v1183 = vunpack.c.l.b16 %v1143
    %v1184 = vunpack.c.l.b16 %v1144
    %v1185 = vunpack.c.l.b16 %v1145
    %v1186 = vunpack.c.l.b16 %v1146
    %v1187 = vunpack.c.l.b16 %v1147
    %v1188 = vunpack.c.l.b16 %v1148
    %v1189 = vunpack.c.l.b16 %v1149
    %v1190 = vunpack.c.l.b16 %v1150
    %v1191 = vunpack.c.l.b16 %v1151
    %v1192 = vunpack.c.l.b16 %v1152
    %v1193 = vunpack.c.l.b16 %v1153
    %v1194 = vunpack.c.l.b16 %v1154
    %v1195 = vunpack.c.l.b16 %v1155
    %v1196 = vunpack.c.l.b16 %v1156
    %v1197 = vunpack.c.l.b16 %v1157
    %v1198 = vunpack.c.l.b16 %v1158
    %v1199 = vunpack.c.l.b16 %v1159
    %v1200 = vunpack.c.l.b16 %v1160
    %v1201 = vunpack.c.l.b16 %v1161
    %v1202 = vpack.c.b16 %v1183, %v1182
    %v1203 = vpack.c.b16 %v1185, %v1184
    %v1204 = vpack.c.b16 %v1187, %v1186
    %v1205 = vpack.c.b16 %v1189, %v1188
    %v1206 = vpack.c.b16 %v1191, %v1190
    %v1207 = vpack.c.b16 %v1193, %v1192
    %v1208 = vpack.c.b16 %v1195, %v1194
    %v1209 = vpack.c.b16 %v1197, %v1196
    %v1210 = vpack.c.b16 %v1199, %v1198
    %v1211 = vpack.c.b16 %v1201, %v1200
    %v1223 = vsel %vm159, %v1141, 0
    %1225 = vmatprep.subr.bf16.mxu0 0
    %1226 = vmatpush1.bf16.msra.mxu0 %v1202
    %1227 = vmatprep.subr.bf16.mxu0 0
    %1228 = vmatpush1.bf16.msra.mxu0 %v1203
    %1229 = vmatprep.subr.bf16.mxu0 0
    %1230 = vmatpush1.bf16.msra.mxu0 %v1204
    %1231 = vmatprep.subr.bf16.mxu0 0
    %1232 = vmatpush1.bf16.msra.mxu0 %v1205
    %1233 = vmatprep.subr.bf16.mxu0 0
    %1234 = vmatpush1.bf16.msra.mxu0 %v1206
    %1235 = vmatprep.subr.bf16.mxu0 0
    %1236 = vmatpush1.bf16.msra.mxu0 %v1207
    %1237 = vmatprep.subr.bf16.mxu0 0
    %1238 = vmatpush1.bf16.msra.mxu0 %v1208
    %1239 = vmatprep.subr.bf16.mxu0 0
    %1240 = vmatpush1.bf16.msra.mxu0 %v1209
    %1241 = vmatprep.subr.bf16.mxu0 0
    %1242 = vmatpush1.bf16.msra.mxu0 %v1210
    %1243 = vmatprep.subr.bf16.mxu0 0
    %1244 = vmatpush1.bf16.msra.mxu0 %v1211
    %1245 = vmatprep.subr.bf16.mxu0 0
    %1246 = vmatpush1.bf16.msra.mxu0 0
    %1247 = vmatprep.subr.bf16.mxu0 0
    %1248 = vmatpush1.bf16.msra.mxu0 0
    %1249 = vmatprep.subr.bf16.mxu0 0
    %1250 = vmatpush1.bf16.msra.mxu0 0
    %1251 = vmatprep.subr.bf16.mxu0 0
    %1252 = vmatpush1.bf16.msra.mxu0 0
    %1253 = vmatprep.subr.bf16.mxu0 0
    %1254 = vmatpush1.bf16.msra.mxu0 0
    %1255 = vmatprep.subr.bf16.mxu0 0
    %1256 = vmatpush1.bf16.msra.mxu0 0
    %1257 = vmatprep.mubr.bf16.mxu0 %v1223
    %1258 = vmatmul.mubr.bf16.gmra.mrb[0].mxu0 %v1140
    %v1259 = vpop.f32.mrb[0].mxu0
    %v1260 = vadd.f32 0.0, %v1259
    %v1261 = vpop.f32.mrb[0].mxu0
    %v1262 = vpop.f32.mrb[0].mxu0
    %v1263 = vadd.f32 0.0, %v1262
    %v1264 = vpop.f32.mrb[0].mxu0
    %1265 = vdwg.mxu0
    %v1266 = vld [vmem:[%s2] sm:$0x1]
    %v1268 = vlaneseq
    %v1269 = vshrl.u32 %v1268, 7
    %v1270 = vsub.s32 0, %v1269
    %v1271 = vrot.slane %v1266, %v1270
    %v1273 = vmul.f32 %v1260, %v1271
    %v1274 = vmul.f32 %v1263, %v1271
    %v1275 = vld [vmem:[%s3] sm:$0x1]
    %v1277 = vlaneseq
    %v1278 = vshrl.u32 %v1277, 7
    %v1279 = vsub.s32 0, %v1278
    %v1280 = vrot.slane %v1275, %v1279
    %v1282 = vadd.f32 %v1273, %v1280
    %v1283 = vadd.f32 %v1274, %v1280
    %v1284 = vmax.f32 %v1282, 0.0
    %v1285 = vmax.f32 %v1283, 0.0
    %v1286 = vpack.c.bf16 %v1285, %v1284
    %v1288 = vrot.slane %v1286, 4
    %1290 = vst.msk [vmem:[#allocation3] sm:$0xf0] %vm39, %v1288
    %1291 = vst.msk [vmem:[#allocation3 + $0x8] sm:$0xf] %vm37, %v1288
    %v1292 = vld [vmem:[#allocation3] sm:$0xf8]
    %v1293 = vld [vmem:[#allocation3 + $0x8] sm:$0x7]
    %v1296 = vrot.slane %v1292, 3
    %v1297 = vrot.slane %v1293, 3
    %v1298 = vsel %vm154, %v1296, %v1297
    %1300 = vst.msk [vmem:[#allocation5] sm:$0xff] %vm159, %v1298
    %v1301 = vld [vmem:[#allocation3] sm:$0xf8]
    %v1302 = vld [vmem:[#allocation3 + $0x8] sm:$0xf]
    %v1304 = vshrl.u32 %v1301, 16
    %v1306 = vrot.slane %v1304, 3
    %v1307 = vshll.u32 %v1301, 16
    %v1309 = vrot.slane %v1307, 4
    %v1310 = vor.u32 %v1306, %v1309
    %v1312 = vshrl.u32 %v1302, 16
    %v1314 = vrot.slane %v1312, 3
    %v1315 = vshll.u32 %v1302, 16
    %v1317 = vrot.slane %v1315, 4
    %v1318 = vor.u32 %v1314, %v1317
    %v1319 = vsel %vm163, %v1310, %v1318
    %1320 = vrot.lane.b32.xlu0 %v1319, 32
    %v1321 = vpop.permute.xlu0 %1320
    %1323 = vst.msk [vmem:[#allocation5] sm:$0xff] %vm184, %v1321
    %v1324 = vld [vmem:[#allocation3] sm:$0xf0]
    %v1325 = vld [vmem:[#allocation3 + $0x8] sm:$0xf]
    %v1328 = vrot.slane %v1324, 4
    %v1329 = vrot.slane %v1325, 4
    %v1330 = vsel %vm190, %v1328, %v1329
    %1331 = vrot.lane.b32.xlu0 %v1330, 64
    %v1332 = vpop.permute.xlu0 %1331
    %1334 = vst.msk [vmem:[#allocation5] sm:$0xff] %vm197, %v1332
    %v1335 = vld [vmem:[#allocation3] sm:$0xf0]
    %v1336 = vld [vmem:[#allocation3 + $0x8] sm:$0x1f]
    %v1338 = vshrl.u32 %v1335, 16
    %v1340 = vrot.slane %v1338, 4
    %v1341 = vshll.u32 %v1335, 16
    %v1343 = vrot.slane %v1341, 5
    %v1344 = vor.u32 %v1340, %v1343
    %v1346 = vshrl.u32 %v1336, 16
    %v1348 = vrot.slane %v1346, 4
    %v1349 = vshll.u32 %v1336, 16
    %v1351 = vrot.slane %v1349, 5
    %v1352 = vor.u32 %v1348, %v1351
    %v1353 = vsel %vm201, %v1344, %v1352
    %1354 = vrot.lane.b32.xlu0 %v1353, 96
    %v1355 = vpop.permute.xlu0 %1354
    %1357 = vst.msk [vmem:[#allocation5] sm:$0xff] %vm222, %v1355
    %v1358 = vld [vmem:[#allocation3] sm:$0xe0]
    %v1359 = vld [vmem:[#allocation3 + $0x8] sm:$0x1f]
    %v1362 = vrot.slane %v1358, 5
    %v1363 = vrot.slane %v1359, 5
    %v1364 = vsel %vm228, %v1362, %v1363
    %1366 = vst.msk [vmem:[#allocation5 + $0x8] sm:$0xff] %vm159, %v1364
    %v1367 = vld [vmem:[#allocation5] sm:$0xff]
    %v1368 = vld [vmem:[#allocation5 + $0x8] sm:$0xff]
    %v1369 = vld [vmem:[%s4] sm:$0xf]
    %v1370 = vld [vmem:[%s4 + $0x4] sm:$0xf]
    %v1371 = vld [vmem:[%s4 + $0x8] sm:$0xf]
    %v1372 = vld [vmem:[%s4 + $0xc] sm:$0xf]
    %v1373 = vld [vmem:[%s4 + $0x10] sm:$0xf]
    %v1374 = vld [vmem:[%s4 + $0x14] sm:$0xf]
    %v1375 = vld [vmem:[%s4 + $0x18] sm:$0xf]
    %v1376 = vld [vmem:[%s4 + $0x1c] sm:$0xf]
    %v1377 = vld [vmem:[%s4 + $0x20] sm:$0xf]
    %v1378 = vld [vmem:[%s4 + $0x24] sm:$0xf]
    %v1379 = vld [vmem:[%s4 + $0x28] sm:$0xf]
    %v1380 = vld [vmem:[%s4 + $0x2c] sm:$0xf]
    %v1381 = vld [vmem:[%s4 + $0x30] sm:$0xf]
    %v1382 = vld [vmem:[%s4 + $0x34] sm:$0xf]
    %v1383 = vld [vmem:[%s4 + $0x38] sm:$0xf]
    %v1384 = vld [vmem:[%s4 + $0x3c] sm:$0xf]
    %v1385 = vld [vmem:[%s4 + $0x40] sm:$0xf]
    %v1386 = vld [vmem:[%s4 + $0x44] sm:$0xf]
    %v1387 = vld [vmem:[%s4 + $0x48] sm:$0xf]
    %v1388 = vld [vmem:[%s4 + $0x4c] sm:$0xf]
    %v1409 = vunpack.c.l.b16 %v1369
    %v1410 = vunpack.c.l.b16 %v1370
    %v1411 = vunpack.c.l.b16 %v1371
    %v1412 = vunpack.c.l.b16 %v1372
    %v1413 = vunpack.c.l.b16 %v1373
    %v1414 = vunpack.c.l.b16 %v1374
    %v1415 = vunpack.c.l.b16 %v1375
    %v1416 = vunpack.c.l.b16 %v1376
    %v1417 = vunpack.c.l.b16 %v1377
    %v1418 = vunpack.c.l.b16 %v1378
    %v1419 = vunpack.c.l.b16 %v1379
    %v1420 = vunpack.c.l.b16 %v1380
    %v1421 = vunpack.c.l.b16 %v1381
    %v1422 = vunpack.c.l.b16 %v1382
    %v1423 = vunpack.c.l.b16 %v1383
    %v1424 = vunpack.c.l.b16 %v1384
    %v1425 = vunpack.c.l.b16 %v1385
    %v1426 = vunpack.c.l.b16 %v1386
    %v1427 = vunpack.c.l.b16 %v1387
    %v1428 = vunpack.c.l.b16 %v1388
    %v1429 = vpack.c.b16 %v1410, %v1409
    %v1430 = vpack.c.b16 %v1412, %v1411
    %v1431 = vpack.c.b16 %v1414, %v1413
    %v1432 = vpack.c.b16 %v1416, %v1415
    %v1433 = vpack.c.b16 %v1418, %v1417
    %v1434 = vpack.c.b16 %v1420, %v1419
    %v1435 = vpack.c.b16 %v1422, %v1421
    %v1436 = vpack.c.b16 %v1424, %v1423
    %v1437 = vpack.c.b16 %v1426, %v1425
    %v1438 = vpack.c.b16 %v1428, %v1427
    %v1450 = vsel %vm159, %v1368, 0
    %1452 = vmatprep.subr.bf16.mxu0 0
    %1453 = vmatpush1.bf16.msra.mxu0 %v1429
    %1454 = vmatprep.subr.bf16.mxu0 0
    %1455 = vmatpush1.bf16.msra.mxu0 %v1430
    %1456 = vmatprep.subr.bf16.mxu0 0
    %1457 = vmatpush1.bf16.msra.mxu0 %v1431
    %1458 = vmatprep.subr.bf16.mxu0 0
    %1459 = vmatpush1.bf16.msra.mxu0 %v1432
    %1460 = vmatprep.subr.bf16.mxu0 0
    %1461 = vmatpush1.bf16.msra.mxu0 %v1433
    %1462 = vmatprep.subr.bf16.mxu0 0
    %1463 = vmatpush1.bf16.msra.mxu0 %v1434
    %1464 = vmatprep.subr.bf16.mxu0 0
    %1465 = vmatpush1.bf16.msra.mxu0 %v1435
    %1466 = vmatprep.subr.bf16.mxu0 0
    %1467 = vmatpush1.bf16.msra.mxu0 %v1436
    %1468 = vmatprep.subr.bf16.mxu0 0
    %1469 = vmatpush1.bf16.msra.mxu0 %v1437
    %1470 = vmatprep.subr.bf16.mxu0 0
    %1471 = vmatpush1.bf16.msra.mxu0 %v1438
    %1472 = vmatprep.subr.bf16.mxu0 0
    %1473 = vmatpush1.bf16.msra.mxu0 0
    %1474 = vmatprep.subr.bf16.mxu0 0
    %1475 = vmatpush1.bf16.msra.mxu0 0
    %1476 = vmatprep.subr.bf16.mxu0 0
    %1477 = vmatpush1.bf16.msra.mxu0 0
    %1478 = vmatprep.subr.bf16.mxu0 0
    %1479 = vmatpush1.bf16.msra.mxu0 0
    %1480 = vmatprep.subr.bf16.mxu0 0
    %1481 = vmatpush1.bf16.msra.mxu0 0
    %1482 = vmatprep.subr.bf16.mxu0 0
    %1483 = vmatpush1.bf16.msra.mxu0 0
    %1484 = vmatprep.mubr.bf16.mxu0 %v1450
    %1485 = vmatmul.mubr.bf16.gmra.mrb[0].mxu0 %v1367
    %v1486 = vpop.f32.mrb[0].mxu0
    %v1487 = vadd.f32 0.0, %v1486
    %v1488 = vpop.f32.mrb[0].mxu0
    %v1489 = vpop.f32.mrb[0].mxu0
    %v1490 = vadd.f32 0.0, %v1489
    %v1491 = vpop.f32.mrb[0].mxu0
    %1492 = vdwg.mxu0
    %v1493 = vld [vmem:[%s5] sm:$0x1]
    %v1495 = vlaneseq
    %v1496 = vshrl.u32 %v1495, 7
    %v1497 = vsub.s32 0, %v1496
    %v1498 = vrot.slane %v1493, %v1497
    %v1500 = vmul.f32 %v1487, %v1498
    %v1501 = vmul.f32 %v1490, %v1498
    %v1502 = vld [vmem:[%s6] sm:$0x1]
    %v1504 = vlaneseq
    %v1505 = vshrl.u32 %v1504, 7
    %v1506 = vsub.s32 0, %v1505
    %v1507 = vrot.slane %v1502, %v1506
    %v1509 = vadd.f32 %v1500, %v1507
    %v1510 = vadd.f32 %v1501, %v1507
    %v1511 = vmax.f32 %v1509, 0.0
    %v1512 = vmax.f32 %v1510, 0.0
    %v1513 = vpack.c.bf16 %v1512, %v1511
    %v1515 = vrot.slane %v1513, 4
    %1517 = vst.msk [vmem:[#allocation4] sm:$0xf0] %vm39, %v1515
    %1518 = vst.msk [vmem:[#allocation4 + $0x8] sm:$0xf] %vm37, %v1515
    %v1519 = vld [vmem:[#allocation4] sm:$0xf8]
    %v1520 = vld [vmem:[#allocation4 + $0x8] sm:$0x7]
    %v1523 = vrot.slane %v1519, 3
    %v1524 = vrot.slane %v1520, 3
    %v1525 = vsel %vm154, %v1523, %v1524
    %1527 = vst.msk [vmem:[#allocation5] sm:$0xff] %vm159, %v1525
    %v1528 = vld [vmem:[#allocation4] sm:$0xf8]
    %v1529 = vld [vmem:[#allocation4 + $0x8] sm:$0xf]
    %v1531 = vshrl.u32 %v1528, 16
    %v1533 = vrot.slane %v1531, 3
    %v1534 = vshll.u32 %v1528, 16
    %v1536 = vrot.slane %v1534, 4
    %v1537 = vor.u32 %v1533, %v1536
    %v1539 = vshrl.u32 %v1529, 16
    %v1541 = vrot.slane %v1539, 3
    %v1542 = vshll.u32 %v1529, 16
    %v1544 = vrot.slane %v1542, 4
    %v1545 = vor.u32 %v1541, %v1544
    %v1546 = vsel %vm163, %v1537, %v1545
    %1547 = vrot.lane.b32.xlu0 %v1546, 32
    %v1548 = vpop.permute.xlu0 %1547
    %1550 = vst.msk [vmem:[#allocation5] sm:$0xff] %vm184, %v1548
    %v1551 = vld [vmem:[#allocation4] sm:$0xf0]
    %v1552 = vld [vmem:[#allocation4 + $0x8] sm:$0xf]
    %v1555 = vrot.slane %v1551, 4
    %v1556 = vrot.slane %v1552, 4
    %v1557 = vsel %vm190, %v1555, %v1556
    %1558 = vrot.lane.b32.xlu0 %v1557, 64
    %v1559 = vpop.permute.xlu0 %1558
    %1561 = vst.msk [vmem:[#allocation5] sm:$0xff] %vm197, %v1559
    %v1562 = vld [vmem:[#allocation4] sm:$0xf0]
    %v1563 = vld [vmem:[#allocation4 + $0x8] sm:$0x1f]
    %v1565 = vshrl.u32 %v1562, 16
    %v1567 = vrot.slane %v1565, 4
    %v1568 = vshll.u32 %v1562, 16
    %v1570 = vrot.slane %v1568, 5
    %v1571 = vor.u32 %v1567, %v1570
    %v1573 = vshrl.u32 %v1563, 16
    %v1575 = vrot.slane %v1573, 4
    %v1576 = vshll.u32 %v1563, 16
    %v1578 = vrot.slane %v1576, 5
    %v1579 = vor.u32 %v1575, %v1578
    %v1580 = vsel %vm201, %v1571, %v1579
    %1581 = vrot.lane.b32.xlu0 %v1580, 96
    %v1582 = vpop.permute.xlu0 %1581
    %1584 = vst.msk [vmem:[#allocation5] sm:$0xff] %vm222, %v1582
    %v1585 = vld [vmem:[#allocation4] sm:$0xe0]
    %v1586 = vld [vmem:[#allocation4 + $0x8] sm:$0x1f]
    %v1589 = vrot.slane %v1585, 5
    %v1590 = vrot.slane %v1586, 5
    %v1591 = vsel %vm228, %v1589, %v1590
    %1593 = vst.msk [vmem:[#allocation5 + $0x8] sm:$0xff] %vm159, %v1591
    %v1594 = vld [vmem:[#allocation5] sm:$0xff]
    %v1595 = vld [vmem:[#allocation5 + $0x8] sm:$0xff]
    %v1596 = vld [vmem:[%s7] sm:$0xf]
    %v1597 = vld [vmem:[%s7 + $0x4] sm:$0xf]
    %v1598 = vld [vmem:[%s7 + $0x8] sm:$0xf]
    %v1599 = vld [vmem:[%s7 + $0xc] sm:$0xf]
    %v1600 = vld [vmem:[%s7 + $0x10] sm:$0xf]
    %v1601 = vld [vmem:[%s7 + $0x14] sm:$0xf]
    %v1602 = vld [vmem:[%s7 + $0x18] sm:$0xf]
    %v1603 = vld [vmem:[%s7 + $0x1c] sm:$0xf]
    %v1604 = vld [vmem:[%s7 + $0x20] sm:$0xf]
    %v1605 = vld [vmem:[%s7 + $0x24] sm:$0xf]
    %v1606 = vld [vmem:[%s7 + $0x28] sm:$0xf]
    %v1607 = vld [vmem:[%s7 + $0x2c] sm:$0xf]
    %v1608 = vld [vmem:[%s7 + $0x30] sm:$0xf]
    %v1609 = vld [vmem:[%s7 + $0x34] sm:$0xf]
    %v1610 = vld [vmem:[%s7 + $0x38] sm:$0xf]
    %v1611 = vld [vmem:[%s7 + $0x3c] sm:$0xf]
    %v1612 = vld [vmem:[%s7 + $0x40] sm:$0xf]
    %v1613 = vld [vmem:[%s7 + $0x44] sm:$0xf]
    %v1614 = vld [vmem:[%s7 + $0x48] sm:$0xf]
    %v1615 = vld [vmem:[%s7 + $0x4c] sm:$0xf]
    %v1636 = vunpack.c.l.b16 %v1596
    %v1637 = vunpack.c.l.b16 %v1597
    %v1638 = vunpack.c.l.b16 %v1598
    %v1639 = vunpack.c.l.b16 %v1599
    %v1640 = vunpack.c.l.b16 %v1600
    %v1641 = vunpack.c.l.b16 %v1601
    %v1642 = vunpack.c.l.b16 %v1602
    %v1643 = vunpack.c.l.b16 %v1603
    %v1644 = vunpack.c.l.b16 %v1604
    %v1645 = vunpack.c.l.b16 %v1605
    %v1646 = vunpack.c.l.b16 %v1606
    %v1647 = vunpack.c.l.b16 %v1607
    %v1648 = vunpack.c.l.b16 %v1608
    %v1649 = vunpack.c.l.b16 %v1609
    %v1650 = vunpack.c.l.b16 %v1610
    %v1651 = vunpack.c.l.b16 %v1611
    %v1652 = vunpack.c.l.b16 %v1612
    %v1653 = vunpack.c.l.b16 %v1613
    %v1654 = vunpack.c.l.b16 %v1614
    %v1655 = vunpack.c.l.b16 %v1615
    %v1656 = vpack.c.b16 %v1637, %v1636
    %v1657 = vpack.c.b16 %v1639, %v1638
    %v1658 = vpack.c.b16 %v1641, %v1640
    %v1659 = vpack.c.b16 %v1643, %v1642
    %v1660 = vpack.c.b16 %v1645, %v1644
    %v1661 = vpack.c.b16 %v1647, %v1646
    %v1662 = vpack.c.b16 %v1649, %v1648
    %v1663 = vpack.c.b16 %v1651, %v1650
    %v1664 = vpack.c.b16 %v1653, %v1652
    %v1665 = vpack.c.b16 %v1655, %v1654
    %v1677 = vsel %vm159, %v1595, 0
    %1679 = vmatprep.subr.bf16.mxu0 0
    %1680 = vmatpush1.bf16.msra.mxu0 %v1656
    %1681 = vmatprep.subr.bf16.mxu0 0
    %1682 = vmatpush1.bf16.msra.mxu0 %v1657
    %1683 = vmatprep.subr.bf16.mxu0 0
    %1684 = vmatpush1.bf16.msra.mxu0 %v1658
    %1685 = vmatprep.subr.bf16.mxu0 0
    %1686 = vmatpush1.bf16.msra.mxu0 %v1659
    %1687 = vmatprep.subr.bf16.mxu0 0
    %1688 = vmatpush1.bf16.msra.mxu0 %v1660
    %1689 = vmatprep.subr.bf16.mxu0 0
    %1690 = vmatpush1.bf16.msra.mxu0 %v1661
    %1691 = vmatprep.subr.bf16.mxu0 0
    %1692 = vmatpush1.bf16.msra.mxu0 %v1662
    %1693 = vmatprep.subr.bf16.mxu0 0
    %1694 = vmatpush1.bf16.msra.mxu0 %v1663
    %1695 = vmatprep.subr.bf16.mxu0 0
    %1696 = vmatpush1.bf16.msra.mxu0 %v1664
    %1697 = vmatprep.subr.bf16.mxu0 0
    %1698 = vmatpush1.bf16.msra.mxu0 %v1665
    %1699 = vmatprep.subr.bf16.mxu0 0
    %1700 = vmatpush1.bf16.msra.mxu0 0
    %1701 = vmatprep.subr.bf16.mxu0 0
    %1702 = vmatpush1.bf16.msra.mxu0 0
    %1703 = vmatprep.subr.bf16.mxu0 0
    %1704 = vmatpush1.bf16.msra.mxu0 0
    %1705 = vmatprep.subr.bf16.mxu0 0
    %1706 = vmatpush1.bf16.msra.mxu0 0
    %1707 = vmatprep.subr.bf16.mxu0 0
    %1708 = vmatpush1.bf16.msra.mxu0 0
    %1709 = vmatprep.subr.bf16.mxu0 0
    %1710 = vmatpush1.bf16.msra.mxu0 0
    %1711 = vmatprep.mubr.bf16.mxu0 %v1677
    %1712 = vmatmul.mubr.bf16.gmra.mrb[0].mxu0 %v1594
    %v1713 = vpop.f32.mrb[0].mxu0
    %v1714 = vadd.f32 0.0, %v1713
    %v1715 = vpop.f32.mrb[0].mxu0
    %v1716 = vpop.f32.mrb[0].mxu0
    %v1717 = vadd.f32 0.0, %v1716
    %v1718 = vpop.f32.mrb[0].mxu0
    %1719 = vdwg.mxu0
    %v1720 = vld [vmem:[%s8] sm:$0x1]
    %v1722 = vlaneseq
    %v1723 = vshrl.u32 %v1722, 7
    %v1724 = vsub.s32 0, %v1723
    %v1725 = vrot.slane %v1720, %v1724
    %v1727 = vmul.f32 %v1714, %v1725
    %v1728 = vmul.f32 %v1717, %v1725
    %v1729 = vld [vmem:[%s9] sm:$0x1]
    %v1731 = vlaneseq
    %v1732 = vshrl.u32 %v1731, 7
    %v1733 = vsub.s32 0, %v1732
    %v1734 = vrot.slane %v1729, %v1733
    %v1736 = vadd.f32 %v1727, %v1734
    %v1737 = vadd.f32 %v1728, %v1734
    %v1738 = vmax.f32 %v1736, 0.0
    %v1739 = vmax.f32 %v1737, 0.0
    %v1742 = vcombine.high %v1738, %v1738
    %v1744 = vunpack.c.l.s4 1966171168
    %v1745 = vunpack.c.0.s8 %v1744
    %v1746 = vlaneseq
    %v1747 = vshrl.u32 %v1746, 7
    %v1748 = vsub.s32 %v1745, %v1747
    %v1749 = vrot.slane %v1738, %v1748
    %v1751 = vunpack.c.l.s4 1966171168
    %v1752 = vunpack.c.0.s8 %v1751
    %v1753 = vlaneseq
    %v1754 = vshrl.u32 %v1753, 7
    %v1755 = vsub.s32 %v1752, %v1754
    %v1756 = vrot.slane %v1742, %v1755
    %v1757 = vcombine.high %v1749, %v1749
    %v1758 = vcombine.high %v1756, %v1756
    %v1760 = vunpack.c.l.s4 1966171168
    %v1761 = vunpack.c.0.s8 %v1760
    %v1762 = vlaneseq
    %v1763 = vshrl.u32 %v1762, 7
    %v1764 = vsub.s32 %v1761, %v1763
    %v1765 = vrot.slane %v1749, %v1764
    %v1767 = vunpack.c.l.s4 1966171168
    %v1768 = vunpack.c.0.s8 %v1767
    %v1769 = vlaneseq
    %v1770 = vshrl.u32 %v1769, 7
    %v1771 = vsub.s32 %v1768, %v1770
    %v1772 = vrot.slane %v1756, %v1771
    %v1774 = vunpack.c.l.s4 1966171168
    %v1775 = vunpack.c.0.s8 %v1774
    %v1776 = vlaneseq
    %v1777 = vshrl.u32 %v1776, 7
    %v1778 = vsub.s32 %v1775, %v1777
    %v1779 = vrot.slane %v1757, %v1778
    %v1781 = vunpack.c.l.s4 1966171168
    %v1782 = vunpack.c.0.s8 %v1781
    %v1783 = vlaneseq
    %v1784 = vshrl.u32 %v1783, 7
    %v1785 = vsub.s32 %v1782, %v1784
    %v1786 = vrot.slane %v1758, %v1785
    %v1787 = vcombine.high %v1765, %v1765
    %v1788 = vcombine.high %v1772, %v1772
    %v1789 = vcombine.high %v1779, %v1779
    %v1790 = vcombine.high %v1786, %v1786
    %v1791 = vcombine.high %v1739, %v1739
    %v1793 = vunpack.c.l.s4 1966171168
    %v1794 = vunpack.c.0.s8 %v1793
    %v1795 = vlaneseq
    %v1796 = vshrl.u32 %v1795, 7
    %v1797 = vsub.s32 %v1794, %v1796
    %v1798 = vrot.slane %v1739, %v1797
    %v1800 = vunpack.c.l.s4 1966171168
    %v1801 = vunpack.c.0.s8 %v1800
    %v1802 = vlaneseq
    %v1803 = vshrl.u32 %v1802, 7
    %v1804 = vsub.s32 %v1801, %v1803
    %v1805 = vrot.slane %v1791, %v1804
    %v1806 = vcombine.high %v1798, %v1798
    %v1807 = vcombine.high %v1805, %v1805
    %v1809 = vunpack.c.l.s4 1966171168
    %v1810 = vunpack.c.0.s8 %v1809
    %v1811 = vlaneseq
    %v1812 = vshrl.u32 %v1811, 7
    %v1813 = vsub.s32 %v1810, %v1812
    %v1814 = vrot.slane %v1798, %v1813
    %v1816 = vunpack.c.l.s4 1966171168
    %v1817 = vunpack.c.0.s8 %v1816
    %v1818 = vlaneseq
    %v1819 = vshrl.u32 %v1818, 7
    %v1820 = vsub.s32 %v1817, %v1819
    %v1821 = vrot.slane %v1805, %v1820
    %v1823 = vunpack.c.l.s4 1966171168
    %v1824 = vunpack.c.0.s8 %v1823
    %v1825 = vlaneseq
    %v1826 = vshrl.u32 %v1825, 7
    %v1827 = vsub.s32 %v1824, %v1826
    %v1828 = vrot.slane %v1806, %v1827
    %v1830 = vunpack.c.l.s4 1966171168
    %v1831 = vunpack.c.0.s8 %v1830
    %v1832 = vlaneseq
    %v1833 = vshrl.u32 %v1832, 7
    %v1834 = vsub.s32 %v1831, %v1833
    %v1835 = vrot.slane %v1807, %v1834
    %v1836 = vcombine.high %v1814, %v1814
    %v1837 = vcombine.high %v1821, %v1821
    %v1838 = vcombine.high %v1828, %v1828
    %v1839 = vcombine.high %v1835, %v1835
    %1856 = vst.msk [vmem:[#allocation6 + $0x1] sm:$0x1] %vm950, %v1765
    %1857 = vst.msk [vmem:[#allocation6 + $0x9] sm:$0x1] %vm950, %v1779
    %1858 = vst.msk [vmem:[#allocation6 + $0x11] sm:$0x1] %vm950, %v1787
    %1859 = vst.msk [vmem:[#allocation6 + $0x19] sm:$0x1] %vm950, %v1789
    %1860 = vst.msk [vmem:[#allocation6 + $0x21] sm:$0x1] %vm950, %v1772
    %1861 = vst.msk [vmem:[#allocation6 + $0x29] sm:$0x1] %vm950, %v1786
    %1862 = vst.msk [vmem:[#allocation6 + $0x31] sm:$0x1] %vm950, %v1788
    %1863 = vst.msk [vmem:[#allocation6 + $0x39] sm:$0x1] %vm950, %v1790
    %1864 = vst.msk [vmem:[#allocation6 + $0x41] sm:$0x1] %vm950, %v1814
    %1865 = vst.msk [vmem:[#allocation6 + $0x49] sm:$0x1] %vm950, %v1828
    %1866 = vst.msk [vmem:[#allocation6 + $0x51] sm:$0x1] %vm950, %v1836
    %1867 = vst.msk [vmem:[#allocation6 + $0x59] sm:$0x1] %vm950, %v1838
    %1868 = vst.msk [vmem:[#allocation6 + $0x61] sm:$0x1] %vm950, %v1821
    %1869 = vst.msk [vmem:[#allocation6 + $0x69] sm:$0x1] %vm950, %v1835
    %1870 = vst.msk [vmem:[#allocation6 + $0x71] sm:$0x1] %vm950, %v1837
    %1871 = vst.msk [vmem:[#allocation6 + $0x79] sm:$0x1] %vm950, %v1839
    %v1872 = vld [vmem:[%s0 + $0x2] sm:$0x1]
    %v1873 = vld [vmem:[%s0 + $0xa] sm:$0x1]
    %v1874 = vld [vmem:[%s0 + $0x12] sm:$0x1]
    %v1875 = vld [vmem:[%s0 + $0x1a] sm:$0x1]
    %v1876 = vld [vmem:[%s0 + $0x22] sm:$0x1]
    %v1877 = vld [vmem:[%s0 + $0x2a] sm:$0x1]
    %v1878 = vld [vmem:[%s0 + $0x32] sm:$0x1]
    %v1879 = vld [vmem:[%s0 + $0x3a] sm:$0x1]
    %v1880 = vld [vmem:[%s0 + $0x42] sm:$0x1]
    %v1881 = vld [vmem:[%s0 + $0x4a] sm:$0x1]
    %v1882 = vld [vmem:[%s0 + $0x52] sm:$0x1]
    %v1883 = vld [vmem:[%s0 + $0x5a] sm:$0x1]
    %v1884 = vld [vmem:[%s0 + $0x62] sm:$0x1]
    %v1885 = vld [vmem:[%s0 + $0x6a] sm:$0x1]
    %v1886 = vld [vmem:[%s0 + $0x72] sm:$0x1]
    %v1887 = vld [vmem:[%s0 + $0x7a] sm:$0x1]
    %v1888 = vpack.c.bf16 %v1872, %v1872
    %v1889 = vpack.c.bf16 %v1873, %v1873
    %v1890 = vpack.c.bf16 %v1874, %v1874
    %v1891 = vpack.c.bf16 %v1875, %v1875
    %v1892 = vpack.c.bf16 %v1876, %v1876
    %v1893 = vpack.c.bf16 %v1877, %v1877
    %v1894 = vpack.c.bf16 %v1878, %v1878
    %v1895 = vpack.c.bf16 %v1879, %v1879
    %v1896 = vpack.c.bf16 %v1880, %v1880
    %v1897 = vpack.c.bf16 %v1881, %v1881
    %v1898 = vpack.c.bf16 %v1882, %v1882
    %v1899 = vpack.c.bf16 %v1883, %v1883
    %v1900 = vpack.c.bf16 %v1884, %v1884
    %v1901 = vpack.c.bf16 %v1885, %v1885
    %v1902 = vpack.c.bf16 %v1886, %v1886
    %v1903 = vpack.c.bf16 %v1887, %v1887
    %v1920 = vunpack.c.l.b16 %v1888
    %v1921 = vunpack.c.l.b16 %v1889
    %v1922 = vunpack.c.l.b16 %v1890
    %v1923 = vunpack.c.l.b16 %v1891
    %v1924 = vunpack.c.l.b16 %v1892
    %v1925 = vunpack.c.l.b16 %v1893
    %v1926 = vunpack.c.l.b16 %v1894
    %v1927 = vunpack.c.l.b16 %v1895
    %v1928 = vunpack.c.l.b16 %v1896
    %v1929 = vunpack.c.l.b16 %v1897
    %v1930 = vunpack.c.l.b16 %v1898
    %v1931 = vunpack.c.l.b16 %v1899
    %v1932 = vunpack.c.l.b16 %v1900
    %v1933 = vunpack.c.l.b16 %v1901
    %v1934 = vunpack.c.l.b16 %v1902
    %v1935 = vunpack.c.l.b16 %v1903
    %v1936 = vrot.slane %v1921, 7
    %v1937 = vsel %vm110, %v1936, %v1920
    %v1938 = vrot.slane %v1922, 6
    %v1939 = vsel %vm113, %v1938, %v1937
    %v1940 = vrot.slane %v1923, 5
    %v1941 = vsel %vm116, %v1940, %v1939
    %v1942 = vrot.slane %v1924, 4
    %v1943 = vsel %vm119, %v1942, %v1941
    %v1944 = vrot.slane %v1925, 3
    %v1945 = vsel %vm122, %v1944, %v1943
    %v1946 = vrot.slane %v1926, 2
    %v1947 = vsel %vm125, %v1946, %v1945
    %v1948 = vrot.slane %v1927, 1
    %v1949 = vsel %vm128, %v1948, %v1947
    %v1950 = vrot.slane %v1929, 7
    %v1951 = vsel %vm110, %v1950, %v1928
    %v1952 = vrot.slane %v1930, 6
    %v1953 = vsel %vm113, %v1952, %v1951
    %v1954 = vrot.slane %v1931, 5
    %v1955 = vsel %vm116, %v1954, %v1953
    %v1956 = vrot.slane %v1932, 4
    %v1957 = vsel %vm119, %v1956, %v1955
    %v1958 = vrot.slane %v1933, 3
    %v1959 = vsel %vm122, %v1958, %v1957
    %v1960 = vrot.slane %v1934, 2
    %v1961 = vsel %vm125, %v1960, %v1959
    %v1962 = vrot.slane %v1935, 1
    %v1963 = vsel %vm128, %v1962, %v1961
    %v1964 = vpack.c.b16 %v1949, %v1949
    %v1965 = vpack.c.b16 %v1963, %v1963
    %1968 = vst.msk [vmem:[#allocation2] sm:$0xf0] %vm39, %v1964
    %1969 = vst.msk [vmem:[#allocation2 + $0x8] sm:$0xf] %vm37, %v1965
    %v1970 = vld [vmem:[#allocation2] sm:$0xf8]
    %v1971 = vld [vmem:[#allocation2 + $0x8] sm:$0x7]
    %v1974 = vrot.slane %v1970, 3
    %v1975 = vrot.slane %v1971, 3
    %v1976 = vsel %vm154, %v1974, %v1975
    %1978 = vst.msk [vmem:[#allocation5] sm:$0xff] %vm159, %v1976
    %v1979 = vld [vmem:[#allocation2] sm:$0xf8]
    %v1980 = vld [vmem:[#allocation2 + $0x8] sm:$0xf]
    %v1982 = vshrl.u32 %v1979, 16
    %v1984 = vrot.slane %v1982, 3
    %v1985 = vshll.u32 %v1979, 16
    %v1987 = vrot.slane %v1985, 4
    %v1988 = vor.u32 %v1984, %v1987
    %v1990 = vshrl.u32 %v1980, 16
    %v1992 = vrot.slane %v1990, 3
    %v1993 = vshll.u32 %v1980, 16
    %v1995 = vrot.slane %v1993, 4
    %v1996 = vor.u32 %v1992, %v1995
    %v1997 = vsel %vm163, %v1988, %v1996
    %1998 = vrot.lane.b32.xlu0 %v1997, 32
    %v1999 = vpop.permute.xlu0 %1998
    %2001 = vst.msk [vmem:[#allocation5] sm:$0xff] %vm184, %v1999
    %v2002 = vld [vmem:[#allocation2] sm:$0xf0]
    %v2003 = vld [vmem:[#allocation2 + $0x8] sm:$0xf]
    %v2006 = vrot.slane %v2002, 4
    %v2007 = vrot.slane %v2003, 4
    %v2008 = vsel %vm190, %v2006, %v2007
    %2009 = vrot.lane.b32.xlu0 %v2008, 64
    %v2010 = vpop.permute.xlu0 %2009
    %2012 = vst.msk [vmem:[#allocation5] sm:$0xff] %vm197, %v2010
    %v2013 = vld [vmem:[#allocation2] sm:$0xf0]
    %v2014 = vld [vmem:[#allocation2 + $0x8] sm:$0x1f]
    %v2016 = vshrl.u32 %v2013, 16
    %v2018 = vrot.slane %v2016, 4
    %v2019 = vshll.u32 %v2013, 16
    %v2021 = vrot.slane %v2019, 5
    %v2022 = vor.u32 %v2018, %v2021
    %v2024 = vshrl.u32 %v2014, 16
    %v2026 = vrot.slane %v2024, 4
    %v2027 = vshll.u32 %v2014, 16
    %v2029 = vrot.slane %v2027, 5
    %v2030 = vor.u32 %v2026, %v2029
    %v2031 = vsel %vm201, %v2022, %v2030
    %2032 = vrot.lane.b32.xlu0 %v2031, 96
    %v2033 = vpop.permute.xlu0 %2032
    %2035 = vst.msk [vmem:[#allocation5] sm:$0xff] %vm222, %v2033
    %v2036 = vld [vmem:[#allocation2] sm:$0xe0]
    %v2037 = vld [vmem:[#allocation2 + $0x8] sm:$0x1f]
    %v2040 = vrot.slane %v2036, 5
    %v2041 = vrot.slane %v2037, 5
    %v2042 = vsel %vm228, %v2040, %v2041
    %2044 = vst.msk [vmem:[#allocation5 + $0x8] sm:$0xff] %vm159, %v2042
    %v2045 = vld [vmem:[#allocation5] sm:$0xff]
    %v2046 = vld [vmem:[#allocation5 + $0x8] sm:$0xff]
    %v2047 = vld [vmem:[%s1] sm:$0xf]
    %v2048 = vld [vmem:[%s1 + $0x4] sm:$0xf]
    %v2049 = vld [vmem:[%s1 + $0x8] sm:$0xf]
    %v2050 = vld [vmem:[%s1 + $0xc] sm:$0xf]
    %v2051 = vld [vmem:[%s1 + $0x10] sm:$0xf]
    %v2052 = vld [vmem:[%s1 + $0x14] sm:$0xf]
    %v2053 = vld [vmem:[%s1 + $0x18] sm:$0xf]
    %v2054 = vld [vmem:[%s1 + $0x1c] sm:$0xf]
    %v2055 = vld [vmem:[%s1 + $0x20] sm:$0xf]
    %v2056 = vld [vmem:[%s1 + $0x24] sm:$0xf]
    %v2057 = vld [vmem:[%s1 + $0x28] sm:$0xf]
    %v2058 = vld [vmem:[%s1 + $0x2c] sm:$0xf]
    %v2059 = vld [vmem:[%s1 + $0x30] sm:$0xf]
    %v2060 = vld [vmem:[%s1 + $0x34] sm:$0xf]
    %v2061 = vld [vmem:[%s1 + $0x38] sm:$0xf]
    %v2062 = vld [vmem:[%s1 + $0x3c] sm:$0xf]
    %v2063 = vld [vmem:[%s1 + $0x40] sm:$0xf]
    %v2064 = vld [vmem:[%s1 + $0x44] sm:$0xf]
    %v2065 = vld [vmem:[%s1 + $0x48] sm:$0xf]
    %v2066 = vld [vmem:[%s1 + $0x4c] sm:$0xf]
    %v2087 = vunpack.c.l.b16 %v2047
    %v2088 = vunpack.c.l.b16 %v2048
    %v2089 = vunpack.c.l.b16 %v2049
    %v2090 = vunpack.c.l.b16 %v2050
    %v2091 = vunpack.c.l.b16 %v2051
    %v2092 = vunpack.c.l.b16 %v2052
    %v2093 = vunpack.c.l.b16 %v2053
    %v2094 = vunpack.c.l.b16 %v2054
    %v2095 = vunpack.c.l.b16 %v2055
    %v2096 = vunpack.c.l.b16 %v2056
    %v2097 = vunpack.c.l.b16 %v2057
    %v2098 = vunpack.c.l.b16 %v2058
    %v2099 = vunpack.c.l.b16 %v2059
    %v2100 = vunpack.c.l.b16 %v2060
    %v2101 = vunpack.c.l.b16 %v2061
    %v2102 = vunpack.c.l.b16 %v2062
    %v2103 = vunpack.c.l.b16 %v2063
    %v2104 = vunpack.c.l.b16 %v2064
    %v2105 = vunpack.c.l.b16 %v2065
    %v2106 = vunpack.c.l.b16 %v2066
    %v2107 = vpack.c.b16 %v2088, %v2087
    %v2108 = vpack.c.b16 %v2090, %v2089
    %v2109 = vpack.c.b16 %v2092, %v2091
    %v2110 = vpack.c.b16 %v2094, %v2093
    %v2111 = vpack.c.b16 %v2096, %v2095
    %v2112 = vpack.c.b16 %v2098, %v2097
    %v2113 = vpack.c.b16 %v2100, %v2099
    %v2114 = vpack.c.b16 %v2102, %v2101
    %v2115 = vpack.c.b16 %v2104, %v2103
    %v2116 = vpack.c.b16 %v2106, %v2105
    %v2128 = vsel %vm159, %v2046, 0
    %2130 = vmatprep.subr.bf16.mxu0 0
    %2131 = vmatpush1.bf16.msra.mxu0 %v2107
    %2132 = vmatprep.subr.bf16.mxu0 0
    %2133 = vmatpush1.bf16.msra.mxu0 %v2108
    %2134 = vmatprep.subr.bf16.mxu0 0
    %2135 = vmatpush1.bf16.msra.mxu0 %v2109
    %2136 = vmatprep.subr.bf16.mxu0 0
    %2137 = vmatpush1.bf16.msra.mxu0 %v2110
    %2138 = vmatprep.subr.bf16.mxu0 0
    %2139 = vmatpush1.bf16.msra.mxu0 %v2111
    %2140 = vmatprep.subr.bf16.mxu0 0
    %2141 = vmatpush1.bf16.msra.mxu0 %v2112
    %2142 = vmatprep.subr.bf16.mxu0 0
    %2143 = vmatpush1.bf16.msra.mxu0 %v2113
    %2144 = vmatprep.subr.bf16.mxu0 0
    %2145 = vmatpush1.bf16.msra.mxu0 %v2114
    %2146 = vmatprep.subr.bf16.mxu0 0
    %2147 = vmatpush1.bf16.msra.mxu0 %v2115
    %2148 = vmatprep.subr.bf16.mxu0 0
    %2149 = vmatpush1.bf16.msra.mxu0 %v2116
    %2150 = vmatprep.subr.bf16.mxu0 0
    %2151 = vmatpush1.bf16.msra.mxu0 0
    %2152 = vmatprep.subr.bf16.mxu0 0
    %2153 = vmatpush1.bf16.msra.mxu0 0
    %2154 = vmatprep.subr.bf16.mxu0 0
    %2155 = vmatpush1.bf16.msra.mxu0 0
    %2156 = vmatprep.subr.bf16.mxu0 0
    %2157 = vmatpush1.bf16.msra.mxu0 0
    %2158 = vmatprep.subr.bf16.mxu0 0
    %2159 = vmatpush1.bf16.msra.mxu0 0
    %2160 = vmatprep.subr.bf16.mxu0 0
    %2161 = vmatpush1.bf16.msra.mxu0 0
    %2162 = vmatprep.mubr.bf16.mxu0 %v2128
    %2163 = vmatmul.mubr.bf16.gmra.mrb[0].mxu0 %v2045
    %v2164 = vpop.f32.mrb[0].mxu0
    %v2165 = vadd.f32 0.0, %v2164
    %v2166 = vpop.f32.mrb[0].mxu0
    %v2167 = vpop.f32.mrb[0].mxu0
    %v2168 = vadd.f32 0.0, %v2167
    %v2169 = vpop.f32.mrb[0].mxu0
    %2170 = vdwg.mxu0
    %v2171 = vld [vmem:[%s2] sm:$0x1]
    %v2173 = vlaneseq
    %v2174 = vshrl.u32 %v2173, 7
    %v2175 = vsub.s32 0, %v2174
    %v2176 = vrot.slane %v2171, %v2175
    %v2178 = vmul.f32 %v2165, %v2176
    %v2179 = vmul.f32 %v2168, %v2176
    %v2180 = vld [vmem:[%s3] sm:$0x1]
    %v2182 = vlaneseq
    %v2183 = vshrl.u32 %v2182, 7
    %v2184 = vsub.s32 0, %v2183
    %v2185 = vrot.slane %v2180, %v2184
    %v2187 = vadd.f32 %v2178, %v2185
    %v2188 = vadd.f32 %v2179, %v2185
    %v2189 = vmax.f32 %v2187, 0.0
    %v2190 = vmax.f32 %v2188, 0.0
    %v2191 = vpack.c.bf16 %v2190, %v2189
    %v2193 = vrot.slane %v2191, 4
    %2195 = vst.msk [vmem:[#allocation3] sm:$0xf0] %vm39, %v2193
    %2196 = vst.msk [vmem:[#allocation3 + $0x8] sm:$0xf] %vm37, %v2193
    %v2197 = vld [vmem:[#allocation3] sm:$0xf8]
    %v2198 = vld [vmem:[#allocation3 + $0x8] sm:$0x7]
    %v2201 = vrot.slane %v2197, 3
    %v2202 = vrot.slane %v2198, 3
    %v2203 = vsel %vm154, %v2201, %v2202
    %2205 = vst.msk [vmem:[#allocation5] sm:$0xff] %vm159, %v2203
    %v2206 = vld [vmem:[#allocation3] sm:$0xf8]
    %v2207 = vld [vmem:[#allocation3 + $0x8] sm:$0xf]
    %v2209 = vshrl.u32 %v2206, 16
    %v2211 = vrot.slane %v2209, 3
    %v2212 = vshll.u32 %v2206, 16
    %v2214 = vrot.slane %v2212, 4
    %v2215 = vor.u32 %v2211, %v2214
    %v2217 = vshrl.u32 %v2207, 16
    %v2219 = vrot.slane %v2217, 3
    %v2220 = vshll.u32 %v2207, 16
    %v2222 = vrot.slane %v2220, 4
    %v2223 = vor.u32 %v2219, %v2222
    %v2224 = vsel %vm163, %v2215, %v2223
    %2225 = vrot.lane.b32.xlu0 %v2224, 32
    %v2226 = vpop.permute.xlu0 %2225
    %2228 = vst.msk [vmem:[#allocation5] sm:$0xff] %vm184, %v2226
    %v2229 = vld [vmem:[#allocation3] sm:$0xf0]
    %v2230 = vld [vmem:[#allocation3 + $0x8] sm:$0xf]
    %v2233 = vrot.slane %v2229, 4
    %v2234 = vrot.slane %v2230, 4
    %v2235 = vsel %vm190, %v2233, %v2234
    %2236 = vrot.lane.b32.xlu0 %v2235, 64
    %v2237 = vpop.permute.xlu0 %2236
    %2239 = vst.msk [vmem:[#allocation5] sm:$0xff] %vm197, %v2237
    %v2240 = vld [vmem:[#allocation3] sm:$0xf0]
    %v2241 = vld [vmem:[#allocation3 + $0x8] sm:$0x1f]
    %v2243 = vshrl.u32 %v2240, 16
    %v2245 = vrot.slane %v2243, 4
    %v2246 = vshll.u32 %v2240, 16
    %v2248 = vrot.slane %v2246, 5
    %v2249 = vor.u32 %v2245, %v2248
    %v2251 = vshrl.u32 %v2241, 16
    %v2253 = vrot.slane %v2251, 4
    %v2254 = vshll.u32 %v2241, 16
    %v2256 = vrot.slane %v2254, 5
    %v2257 = vor.u32 %v2253, %v2256
    %v2258 = vsel %vm201, %v2249, %v2257
    %2259 = vrot.lane.b32.xlu0 %v2258, 96
    %v2260 = vpop.permute.xlu0 %2259
    %2262 = vst.msk [vmem:[#allocation5] sm:$0xff] %vm222, %v2260
    %v2263 = vld [vmem:[#allocation3] sm:$0xe0]
    %v2264 = vld [vmem:[#allocation3 + $0x8] sm:$0x1f]
    %v2267 = vrot.slane %v2263, 5
    %v2268 = vrot.slane %v2264, 5
    %v2269 = vsel %vm228, %v2267, %v2268
    %2271 = vst.msk [vmem:[#allocation5 + $0x8] sm:$0xff] %vm159, %v2269
    %v2272 = vld [vmem:[#allocation5] sm:$0xff]
    %v2273 = vld [vmem:[#allocation5 + $0x8] sm:$0xff]
    %v2274 = vld [vmem:[%s4] sm:$0xf]
    %v2275 = vld [vmem:[%s4 + $0x4] sm:$0xf]
    %v2276 = vld [vmem:[%s4 + $0x8] sm:$0xf]
    %v2277 = vld [vmem:[%s4 + $0xc] sm:$0xf]
    %v2278 = vld [vmem:[%s4 + $0x10] sm:$0xf]
    %v2279 = vld [vmem:[%s4 + $0x14] sm:$0xf]
    %v2280 = vld [vmem:[%s4 + $0x18] sm:$0xf]
    %v2281 = vld [vmem:[%s4 + $0x1c] sm:$0xf]
    %v2282 = vld [vmem:[%s4 + $0x20] sm:$0xf]
    %v2283 = vld [vmem:[%s4 + $0x24] sm:$0xf]
    %v2284 = vld [vmem:[%s4 + $0x28] sm:$0xf]
    %v2285 = vld [vmem:[%s4 + $0x2c] sm:$0xf]
    %v2286 = vld [vmem:[%s4 + $0x30] sm:$0xf]
    %v2287 = vld [vmem:[%s4 + $0x34] sm:$0xf]
    %v2288 = vld [vmem:[%s4 + $0x38] sm:$0xf]
    %v2289 = vld [vmem:[%s4 + $0x3c] sm:$0xf]
    %v2290 = vld [vmem:[%s4 + $0x40] sm:$0xf]
    %v2291 = vld [vmem:[%s4 + $0x44] sm:$0xf]
    %v2292 = vld [vmem:[%s4 + $0x48] sm:$0xf]
    %v2293 = vld [vmem:[%s4 + $0x4c] sm:$0xf]
    %v2314 = vunpack.c.l.b16 %v2274
    %v2315 = vunpack.c.l.b16 %v2275
    %v2316 = vunpack.c.l.b16 %v2276
    %v2317 = vunpack.c.l.b16 %v2277
    %v2318 = vunpack.c.l.b16 %v2278
    %v2319 = vunpack.c.l.b16 %v2279
    %v2320 = vunpack.c.l.b16 %v2280
    %v2321 = vunpack.c.l.b16 %v2281
    %v2322 = vunpack.c.l.b16 %v2282
    %v2323 = vunpack.c.l.b16 %v2283
    %v2324 = vunpack.c.l.b16 %v2284
    %v2325 = vunpack.c.l.b16 %v2285
    %v2326 = vunpack.c.l.b16 %v2286
    %v2327 = vunpack.c.l.b16 %v2287
    %v2328 = vunpack.c.l.b16 %v2288
    %v2329 = vunpack.c.l.b16 %v2289
    %v2330 = vunpack.c.l.b16 %v2290
    %v2331 = vunpack.c.l.b16 %v2291
    %v2332 = vunpack.c.l.b16 %v2292
    %v2333 = vunpack.c.l.b16 %v2293
    %v2334 = vpack.c.b16 %v2315, %v2314
    %v2335 = vpack.c.b16 %v2317, %v2316
    %v2336 = vpack.c.b16 %v2319, %v2318
    %v2337 = vpack.c.b16 %v2321, %v2320
    %v2338 = vpack.c.b16 %v2323, %v2322
    %v2339 = vpack.c.b16 %v2325, %v2324
    %v2340 = vpack.c.b16 %v2327, %v2326
    %v2341 = vpack.c.b16 %v2329, %v2328
    %v2342 = vpack.c.b16 %v2331, %v2330
    %v2343 = vpack.c.b16 %v2333, %v2332
    %v2355 = vsel %vm159, %v2273, 0
    %2357 = vmatprep.subr.bf16.mxu0 0
    %2358 = vmatpush1.bf16.msra.mxu0 %v2334
    %2359 = vmatprep.subr.bf16.mxu0 0
    %2360 = vmatpush1.bf16.msra.mxu0 %v2335
    %2361 = vmatprep.subr.bf16.mxu0 0
    %2362 = vmatpush1.bf16.msra.mxu0 %v2336
    %2363 = vmatprep.subr.bf16.mxu0 0
    %2364 = vmatpush1.bf16.msra.mxu0 %v2337
    %2365 = vmatprep.subr.bf16.mxu0 0
    %2366 = vmatpush1.bf16.msra.mxu0 %v2338
    %2367 = vmatprep.subr.bf16.mxu0 0
    %2368 = vmatpush1.bf16.msra.mxu0 %v2339
    %2369 = vmatprep.subr.bf16.mxu0 0
    %2370 = vmatpush1.bf16.msra.mxu0 %v2340
    %2371 = vmatprep.subr.bf16.mxu0 0
    %2372 = vmatpush1.bf16.msra.mxu0 %v2341
    %2373 = vmatprep.subr.bf16.mxu0 0
    %2374 = vmatpush1.bf16.msra.mxu0 %v2342
    %2375 = vmatprep.subr.bf16.mxu0 0
    %2376 = vmatpush1.bf16.msra.mxu0 %v2343
    %2377 = vmatprep.subr.bf16.mxu0 0
    %2378 = vmatpush1.bf16.msra.mxu0 0
    %2379 = vmatprep.subr.bf16.mxu0 0
    %2380 = vmatpush1.bf16.msra.mxu0 0
    %2381 = vmatprep.subr.bf16.mxu0 0
    %2382 = vmatpush1.bf16.msra.mxu0 0
    %2383 = vmatprep.subr.bf16.mxu0 0
    %2384 = vmatpush1.bf16.msra.mxu0 0
    %2385 = vmatprep.subr.bf16.mxu0 0
    %2386 = vmatpush1.bf16.msra.mxu0 0
    %2387 = vmatprep.subr.bf16.mxu0 0
    %2388 = vmatpush1.bf16.msra.mxu0 0
    %2389 = vmatprep.mubr.bf16.mxu0 %v2355
    %2390 = vmatmul.mubr.bf16.gmra.mrb[0].mxu0 %v2272
    %v2391 = vpop.f32.mrb[0].mxu0
    %v2392 = vadd.f32 0.0, %v2391
    %v2393 = vpop.f32.mrb[0].mxu0
    %v2394 = vpop.f32.mrb[0].mxu0
    %v2395 = vadd.f32 0.0, %v2394
    %v2396 = vpop.f32.mrb[0].mxu0
    %2397 = vdwg.mxu0
    %v2398 = vld [vmem:[%s5] sm:$0x1]
    %v2400 = vlaneseq
    %v2401 = vshrl.u32 %v2400, 7
    %v2402 = vsub.s32 0, %v2401
    %v2403 = vrot.slane %v2398, %v2402
    %v2405 = vmul.f32 %v2392, %v2403
    %v2406 = vmul.f32 %v2395, %v2403
    %v2407 = vld [vmem:[%s6] sm:$0x1]
    %v2409 = vlaneseq
    %v2410 = vshrl.u32 %v2409, 7
    %v2411 = vsub.s32 0, %v2410
    %v2412 = vrot.slane %v2407, %v2411
    %v2414 = vadd.f32 %v2405, %v2412
    %v2415 = vadd.f32 %v2406, %v2412
    %v2416 = vmax.f32 %v2414, 0.0
    %v2417 = vmax.f32 %v2415, 0.0
    %v2418 = vpack.c.bf16 %v2417, %v2416
    %v2420 = vrot.slane %v2418, 4
    %2422 = vst.msk [vmem:[#allocation4] sm:$0xf0] %vm39, %v2420
    %2423 = vst.msk [vmem:[#allocation4 + $0x8] sm:$0xf] %vm37, %v2420
    %v2424 = vld [vmem:[#allocation4] sm:$0xf8]
    %v2425 = vld [vmem:[#allocation4 + $0x8] sm:$0x7]
    %v2428 = vrot.slane %v2424, 3
    %v2429 = vrot.slane %v2425, 3
    %v2430 = vsel %vm154, %v2428, %v2429
    %2432 = vst.msk [vmem:[#allocation5] sm:$0xff] %vm159, %v2430
    %v2433 = vld [vmem:[#allocation4] sm:$0xf8]
    %v2434 = vld [vmem:[#allocation4 + $0x8] sm:$0xf]
    %v2436 = vshrl.u32 %v2433, 16
    %v2438 = vrot.slane %v2436, 3
    %v2439 = vshll.u32 %v2433, 16
    %v2441 = vrot.slane %v2439, 4
    %v2442 = vor.u32 %v2438, %v2441
    %v2444 = vshrl.u32 %v2434, 16
    %v2446 = vrot.slane %v2444, 3
    %v2447 = vshll.u32 %v2434, 16
    %v2449 = vrot.slane %v2447, 4
    %v2450 = vor.u32 %v2446, %v2449
    %v2451 = vsel %vm163, %v2442, %v2450
    %2452 = vrot.lane.b32.xlu0 %v2451, 32
    %v2453 = vpop.permute.xlu0 %2452
    %2455 = vst.msk [vmem:[#allocation5] sm:$0xff] %vm184, %v2453
    %v2456 = vld [vmem:[#allocation4] sm:$0xf0]
    %v2457 = vld [vmem:[#allocation4 + $0x8] sm:$0xf]
    %v2460 = vrot.slane %v2456, 4
    %v2461 = vrot.slane %v2457, 4
    %v2462 = vsel %vm190, %v2460, %v2461
    %2463 = vrot.lane.b32.xlu0 %v2462, 64
    %v2464 = vpop.permute.xlu0 %2463
    %2466 = vst.msk [vmem:[#allocation5] sm:$0xff] %vm197, %v2464
    %v2467 = vld [vmem:[#allocation4] sm:$0xf0]
    %v2468 = vld [vmem:[#allocation4 + $0x8] sm:$0x1f]
    %v2470 = vshrl.u32 %v2467, 16
    %v2472 = vrot.slane %v2470, 4
    %v2473 = vshll.u32 %v2467, 16
    %v2475 = vrot.slane %v2473, 5
    %v2476 = vor.u32 %v2472, %v2475
    %v2478 = vshrl.u32 %v2468, 16
    %v2480 = vrot.slane %v2478, 4
    %v2481 = vshll.u32 %v2468, 16
    %v2483 = vrot.slane %v2481, 5
    %v2484 = vor.u32 %v2480, %v2483
    %v2485 = vsel %vm201, %v2476, %v2484
    %2486 = vrot.lane.b32.xlu0 %v2485, 96
    %v2487 = vpop.permute.xlu0 %2486
    %2489 = vst.msk [vmem:[#allocation5] sm:$0xff] %vm222, %v2487
    %v2490 = vld [vmem:[#allocation4] sm:$0xe0]
    %v2491 = vld [vmem:[#allocation4 + $0x8] sm:$0x1f]
    %v2494 = vrot.slane %v2490, 5
    %v2495 = vrot.slane %v2491, 5
    %v2496 = vsel %vm228, %v2494, %v2495
    %2498 = vst.msk [vmem:[#allocation5 + $0x8] sm:$0xff] %vm159, %v2496
    %v2499 = vld [vmem:[#allocation5] sm:$0xff]
    %v2500 = vld [vmem:[#allocation5 + $0x8] sm:$0xff]
    %v2501 = vld [vmem:[%s7] sm:$0xf]
    %v2502 = vld [vmem:[%s7 + $0x4] sm:$0xf]
    %v2503 = vld [vmem:[%s7 + $0x8] sm:$0xf]
    %v2504 = vld [vmem:[%s7 + $0xc] sm:$0xf]
    %v2505 = vld [vmem:[%s7 + $0x10] sm:$0xf]
    %v2506 = vld [vmem:[%s7 + $0x14] sm:$0xf]
    %v2507 = vld [vmem:[%s7 + $0x18] sm:$0xf]
    %v2508 = vld [vmem:[%s7 + $0x1c] sm:$0xf]
    %v2509 = vld [vmem:[%s7 + $0x20] sm:$0xf]
    %v2510 = vld [vmem:[%s7 + $0x24] sm:$0xf]
    %v2511 = vld [vmem:[%s7 + $0x28] sm:$0xf]
    %v2512 = vld [vmem:[%s7 + $0x2c] sm:$0xf]
    %v2513 = vld [vmem:[%s7 + $0x30] sm:$0xf]
    %v2514 = vld [vmem:[%s7 + $0x34] sm:$0xf]
    %v2515 = vld [vmem:[%s7 + $0x38] sm:$0xf]
    %v2516 = vld [vmem:[%s7 + $0x3c] sm:$0xf]
    %v2517 = vld [vmem:[%s7 + $0x40] sm:$0xf]
    %v2518 = vld [vmem:[%s7 + $0x44] sm:$0xf]
    %v2519 = vld [vmem:[%s7 + $0x48] sm:$0xf]
    %v2520 = vld [vmem:[%s7 + $0x4c] sm:$0xf]
    %v2541 = vunpack.c.l.b16 %v2501
    %v2542 = vunpack.c.l.b16 %v2502
    %v2543 = vunpack.c.l.b16 %v2503
    %v2544 = vunpack.c.l.b16 %v2504
    %v2545 = vunpack.c.l.b16 %v2505
    %v2546 = vunpack.c.l.b16 %v2506
    %v2547 = vunpack.c.l.b16 %v2507
    %v2548 = vunpack.c.l.b16 %v2508
    %v2549 = vunpack.c.l.b16 %v2509
    %v2550 = vunpack.c.l.b16 %v2510
    %v2551 = vunpack.c.l.b16 %v2511
    %v2552 = vunpack.c.l.b16 %v2512
    %v2553 = vunpack.c.l.b16 %v2513
    %v2554 = vunpack.c.l.b16 %v2514
    %v2555 = vunpack.c.l.b16 %v2515
    %v2556 = vunpack.c.l.b16 %v2516
    %v2557 = vunpack.c.l.b16 %v2517
    %v2558 = vunpack.c.l.b16 %v2518
    %v2559 = vunpack.c.l.b16 %v2519
    %v2560 = vunpack.c.l.b16 %v2520
    %v2561 = vpack.c.b16 %v2542, %v2541
    %v2562 = vpack.c.b16 %v2544, %v2543
    %v2563 = vpack.c.b16 %v2546, %v2545
    %v2564 = vpack.c.b16 %v2548, %v2547
    %v2565 = vpack.c.b16 %v2550, %v2549
    %v2566 = vpack.c.b16 %v2552, %v2551
    %v2567 = vpack.c.b16 %v2554, %v2553
    %v2568 = vpack.c.b16 %v2556, %v2555
    %v2569 = vpack.c.b16 %v2558, %v2557
    %v2570 = vpack.c.b16 %v2560, %v2559
    %v2582 = vsel %vm159, %v2500, 0
    %2584 = vmatprep.subr.bf16.mxu0 0
    %2585 = vmatpush1.bf16.msra.mxu0 %v2561
    %2586 = vmatprep.subr.bf16.mxu0 0
    %2587 = vmatpush1.bf16.msra.mxu0 %v2562
    %2588 = vmatprep.subr.bf16.mxu0 0
    %2589 = vmatpush1.bf16.msra.mxu0 %v2563
    %2590 = vmatprep.subr.bf16.mxu0 0
    %2591 = vmatpush1.bf16.msra.mxu0 %v2564
    %2592 = vmatprep.subr.bf16.mxu0 0
    %2593 = vmatpush1.bf16.msra.mxu0 %v2565
    %2594 = vmatprep.subr.bf16.mxu0 0
    %2595 = vmatpush1.bf16.msra.mxu0 %v2566
    %2596 = vmatprep.subr.bf16.mxu0 0
    %2597 = vmatpush1.bf16.msra.mxu0 %v2567
    %2598 = vmatprep.subr.bf16.mxu0 0
    %2599 = vmatpush1.bf16.msra.mxu0 %v2568
    %2600 = vmatprep.subr.bf16.mxu0 0
    %2601 = vmatpush1.bf16.msra.mxu0 %v2569
    %2602 = vmatprep.subr.bf16.mxu0 0
    %2603 = vmatpush1.bf16.msra.mxu0 %v2570
    %2604 = vmatprep.subr.bf16.mxu0 0
    %2605 = vmatpush1.bf16.msra.mxu0 0
    %2606 = vmatprep.subr.bf16.mxu0 0
    %2607 = vmatpush1.bf16.msra.mxu0 0
    %2608 = vmatprep.subr.bf16.mxu0 0
    %2609 = vmatpush1.bf16.msra.mxu0 0
    %2610 = vmatprep.subr.bf16.mxu0 0
    %2611 = vmatpush1.bf16.msra.mxu0 0
    %2612 = vmatprep.subr.bf16.mxu0 0
    %2613 = vmatpush1.bf16.msra.mxu0 0
    %2614 = vmatprep.subr.bf16.mxu0 0
    %2615 = vmatpush1.bf16.msra.mxu0 0
    %2616 = vmatprep.mubr.bf16.mxu0 %v2582
    %2617 = vmatmul.mubr.bf16.gmra.mrb[0].mxu0 %v2499
    %v2618 = vpop.f32.mrb[0].mxu0
    %v2619 = vadd.f32 0.0, %v2618
    %v2620 = vpop.f32.mrb[0].mxu0
    %v2621 = vpop.f32.mrb[0].mxu0
    %v2622 = vadd.f32 0.0, %v2621
    %v2623 = vpop.f32.mrb[0].mxu0
    %2624 = vdwg.mxu0
    %v2625 = vld [vmem:[%s8] sm:$0x1]
    %v2627 = vlaneseq
    %v2628 = vshrl.u32 %v2627, 7
    %v2629 = vsub.s32 0, %v2628
    %v2630 = vrot.slane %v2625, %v2629
    %v2632 = vmul.f32 %v2619, %v2630
    %v2633 = vmul.f32 %v2622, %v2630
    %v2634 = vld [vmem:[%s9] sm:$0x1]
    %v2636 = vlaneseq
    %v2637 = vshrl.u32 %v2636, 7
    %v2638 = vsub.s32 0, %v2637
    %v2639 = vrot.slane %v2634, %v2638
    %v2641 = vadd.f32 %v2632, %v2639
    %v2642 = vadd.f32 %v2633, %v2639
    %v2643 = vmax.f32 %v2641, 0.0
    %v2644 = vmax.f32 %v2642, 0.0
    %v2647 = vcombine.high %v2643, %v2643
    %v2649 = vunpack.c.l.s4 1966171168
    %v2650 = vunpack.c.0.s8 %v2649
    %v2651 = vlaneseq
    %v2652 = vshrl.u32 %v2651, 7
    %v2653 = vsub.s32 %v2650, %v2652
    %v2654 = vrot.slane %v2643, %v2653
    %v2656 = vunpack.c.l.s4 1966171168
    %v2657 = vunpack.c.0.s8 %v2656
    %v2658 = vlaneseq
    %v2659 = vshrl.u32 %v2658, 7
    %v2660 = vsub.s32 %v2657, %v2659
    %v2661 = vrot.slane %v2647, %v2660
    %v2662 = vcombine.high %v2654, %v2654
    %v2663 = vcombine.high %v2661, %v2661
    %v2665 = vunpack.c.l.s4 1966171168
    %v2666 = vunpack.c.0.s8 %v2665
    %v2667 = vlaneseq
    %v2668 = vshrl.u32 %v2667, 7
    %v2669 = vsub.s32 %v2666, %v2668
    %v2670 = vrot.slane %v2654, %v2669
    %v2672 = vunpack.c.l.s4 1966171168
    %v2673 = vunpack.c.0.s8 %v2672
    %v2674 = vlaneseq
    %v2675 = vshrl.u32 %v2674, 7
    %v2676 = vsub.s32 %v2673, %v2675
    %v2677 = vrot.slane %v2661, %v2676
    %v2679 = vunpack.c.l.s4 1966171168
    %v2680 = vunpack.c.0.s8 %v2679
    %v2681 = vlaneseq
    %v2682 = vshrl.u32 %v2681, 7
    %v2683 = vsub.s32 %v2680, %v2682
    %v2684 = vrot.slane %v2662, %v2683
    %v2686 = vunpack.c.l.s4 1966171168
    %v2687 = vunpack.c.0.s8 %v2686
    %v2688 = vlaneseq
    %v2689 = vshrl.u32 %v2688, 7
    %v2690 = vsub.s32 %v2687, %v2689
    %v2691 = vrot.slane %v2663, %v2690
    %v2692 = vcombine.high %v2670, %v2670
    %v2693 = vcombine.high %v2677, %v2677
    %v2694 = vcombine.high %v2684, %v2684
    %v2695 = vcombine.high %v2691, %v2691
    %v2696 = vcombine.high %v2644, %v2644
    %v2698 = vunpack.c.l.s4 1966171168
    %v2699 = vunpack.c.0.s8 %v2698
    %v2700 = vlaneseq
    %v2701 = vshrl.u32 %v2700, 7
    %v2702 = vsub.s32 %v2699, %v2701
    %v2703 = vrot.slane %v2644, %v2702
    %v2705 = vunpack.c.l.s4 1966171168
    %v2706 = vunpack.c.0.s8 %v2705
    %v2707 = vlaneseq
    %v2708 = vshrl.u32 %v2707, 7
    %v2709 = vsub.s32 %v2706, %v2708
    %v2710 = vrot.slane %v2696, %v2709
    %v2711 = vcombine.high %v2703, %v2703
    %v2712 = vcombine.high %v2710, %v2710
    %v2714 = vunpack.c.l.s4 1966171168
    %v2715 = vunpack.c.0.s8 %v2714
    %v2716 = vlaneseq
    %v2717 = vshrl.u32 %v2716, 7
    %v2718 = vsub.s32 %v2715, %v2717
    %v2719 = vrot.slane %v2703, %v2718
    %v2721 = vunpack.c.l.s4 1966171168
    %v2722 = vunpack.c.0.s8 %v2721
    %v2723 = vlaneseq
    %v2724 = vshrl.u32 %v2723, 7
    %v2725 = vsub.s32 %v2722, %v2724
    %v2726 = vrot.slane %v2710, %v2725
    %v2728 = vunpack.c.l.s4 1966171168
    %v2729 = vunpack.c.0.s8 %v2728
    %v2730 = vlaneseq
    %v2731 = vshrl.u32 %v2730, 7
    %v2732 = vsub.s32 %v2729, %v2731
    %v2733 = vrot.slane %v2711, %v2732
    %v2735 = vunpack.c.l.s4 1966171168
    %v2736 = vunpack.c.0.s8 %v2735
    %v2737 = vlaneseq
    %v2738 = vshrl.u32 %v2737, 7
    %v2739 = vsub.s32 %v2736, %v2738
    %v2740 = vrot.slane %v2712, %v2739
    %v2741 = vcombine.high %v2719, %v2719
    %v2742 = vcombine.high %v2726, %v2726
    %v2743 = vcombine.high %v2733, %v2733
    %v2744 = vcombine.high %v2740, %v2740
    %2761 = vst.msk [vmem:[#allocation6 + $0x2] sm:$0x1] %vm950, %v2670
    %2762 = vst.msk [vmem:[#allocation6 + $0xa] sm:$0x1] %vm950, %v2684
    %2763 = vst.msk [vmem:[#allocation6 + $0x12] sm:$0x1] %vm950, %v2692
    %2764 = vst.msk [vmem:[#allocation6 + $0x1a] sm:$0x1] %vm950, %v2694
    %2765 = vst.msk [vmem:[#allocation6 + $0x22] sm:$0x1] %vm950, %v2677
    %2766 = vst.msk [vmem:[#allocation6 + $0x2a] sm:$0x1] %vm950, %v2691
    %2767 = vst.msk [vmem:[#allocation6 + $0x32] sm:$0x1] %vm950, %v2693
    %2768 = vst.msk [vmem:[#allocation6 + $0x3a] sm:$0x1] %vm950, %v2695
    %2769 = vst.msk [vmem:[#allocation6 + $0x42] sm:$0x1] %vm950, %v2719
    %2770 = vst.msk [vmem:[#allocation6 + $0x4a] sm:$0x1] %vm950, %v2733
    %2771 = vst.msk [vmem:[#allocation6 + $0x52] sm:$0x1] %vm950, %v2741
    %2772 = vst.msk [vmem:[#allocation6 + $0x5a] sm:$0x1] %vm950, %v2743
    %2773 = vst.msk [vmem:[#allocation6 + $0x62] sm:$0x1] %vm950, %v2726
    %2774 = vst.msk [vmem:[#allocation6 + $0x6a] sm:$0x1] %vm950, %v2740
    %2775 = vst.msk [vmem:[#allocation6 + $0x72] sm:$0x1] %vm950, %v2742
    %2776 = vst.msk [vmem:[#allocation6 + $0x7a] sm:$0x1] %vm950, %v2744
    %v2777 = vld [vmem:[%s0 + $0x3] sm:$0x1]
    %v2778 = vld [vmem:[%s0 + $0xb] sm:$0x1]
    %v2779 = vld [vmem:[%s0 + $0x13] sm:$0x1]
    %v2780 = vld [vmem:[%s0 + $0x1b] sm:$0x1]
    %v2781 = vld [vmem:[%s0 + $0x23] sm:$0x1]
    %v2782 = vld [vmem:[%s0 + $0x2b] sm:$0x1]
    %v2783 = vld [vmem:[%s0 + $0x33] sm:$0x1]
    %v2784 = vld [vmem:[%s0 + $0x3b] sm:$0x1]
    %v2785 = vld [vmem:[%s0 + $0x43] sm:$0x1]
    %v2786 = vld [vmem:[%s0 + $0x4b] sm:$0x1]
    %v2787 = vld [vmem:[%s0 + $0x53] sm:$0x1]
    %v2788 = vld [vmem:[%s0 + $0x5b] sm:$0x1]
    %v2789 = vld [vmem:[%s0 + $0x63] sm:$0x1]
    %v2790 = vld [vmem:[%s0 + $0x6b] sm:$0x1]
    %v2791 = vld [vmem:[%s0 + $0x73] sm:$0x1]
    %v2792 = vld [vmem:[%s0 + $0x7b] sm:$0x1]
    %v2793 = vpack.c.bf16 %v2777, %v2777
    %v2794 = vpack.c.bf16 %v2778, %v2778
    %v2795 = vpack.c.bf16 %v2779, %v2779
    %v2796 = vpack.c.bf16 %v2780, %v2780
    %v2797 = vpack.c.bf16 %v2781, %v2781
    %v2798 = vpack.c.bf16 %v2782, %v2782
    %v2799 = vpack.c.bf16 %v2783, %v2783
    %v2800 = vpack.c.bf16 %v2784, %v2784
    %v2801 = vpack.c.bf16 %v2785, %v2785
    %v2802 = vpack.c.bf16 %v2786, %v2786
    %v2803 = vpack.c.bf16 %v2787, %v2787
    %v2804 = vpack.c.bf16 %v2788, %v2788
    %v2805 = vpack.c.bf16 %v2789, %v2789
    %v2806 = vpack.c.bf16 %v2790, %v2790
    %v2807 = vpack.c.bf16 %v2791, %v2791
    %v2808 = vpack.c.bf16 %v2792, %v2792
    %v2825 = vunpack.c.l.b16 %v2793
    %v2826 = vunpack.c.l.b16 %v2794
    %v2827 = vunpack.c.l.b16 %v2795
    %v2828 = vunpack.c.l.b16 %v2796
    %v2829 = vunpack.c.l.b16 %v2797
    %v2830 = vunpack.c.l.b16 %v2798
    %v2831 = vunpack.c.l.b16 %v2799
    %v2832 = vunpack.c.l.b16 %v2800
    %v2833 = vunpack.c.l.b16 %v2801
    %v2834 = vunpack.c.l.b16 %v2802
    %v2835 = vunpack.c.l.b16 %v2803
    %v2836 = vunpack.c.l.b16 %v2804
    %v2837 = vunpack.c.l.b16 %v2805
    %v2838 = vunpack.c.l.b16 %v2806
    %v2839 = vunpack.c.l.b16 %v2807
    %v2840 = vunpack.c.l.b16 %v2808
    %v2841 = vrot.slane %v2826, 7
    %v2842 = vsel %vm110, %v2841, %v2825
    %v2843 = vrot.slane %v2827, 6
    %v2844 = vsel %vm113, %v2843, %v2842
    %v2845 = vrot.slane %v2828, 5
    %v2846 = vsel %vm116, %v2845, %v2844
    %v2847 = vrot.slane %v2829, 4
    %v2848 = vsel %vm119, %v2847, %v2846
    %v2849 = vrot.slane %v2830, 3
    %v2850 = vsel %vm122, %v2849, %v2848
    %v2851 = vrot.slane %v2831, 2
    %v2852 = vsel %vm125, %v2851, %v2850
    %v2853 = vrot.slane %v2832, 1
    %v2854 = vsel %vm128, %v2853, %v2852
    %v2855 = vrot.slane %v2834, 7
    %v2856 = vsel %vm110, %v2855, %v2833
    %v2857 = vrot.slane %v2835, 6
    %v2858 = vsel %vm113, %v2857, %v2856
    %v2859 = vrot.slane %v2836, 5
    %v2860 = vsel %vm116, %v2859, %v2858
    %v2861 = vrot.slane %v2837, 4
    %v2862 = vsel %vm119, %v2861, %v2860
    %v2863 = vrot.slane %v2838, 3
    %v2864 = vsel %vm122, %v2863, %v2862
    %v2865 = vrot.slane %v2839, 2
    %v2866 = vsel %vm125, %v2865, %v2864
    %v2867 = vrot.slane %v2840, 1
    %v2868 = vsel %vm128, %v2867, %v2866
    %v2869 = vpack.c.b16 %v2854, %v2854
    %v2870 = vpack.c.b16 %v2868, %v2868
    %2873 = vst.msk [vmem:[#allocation2] sm:$0xf0] %vm39, %v2869
    %2874 = vst.msk [vmem:[#allocation2 + $0x8] sm:$0xf] %vm37, %v2870
    %v2875 = vld [vmem:[#allocation2] sm:$0xf8]
    %v2876 = vld [vmem:[#allocation2 + $0x8] sm:$0x7]
    %v2879 = vrot.slane %v2875, 3
    %v2880 = vrot.slane %v2876, 3
    %v2881 = vsel %vm154, %v2879, %v2880
    %2883 = vst.msk [vmem:[#allocation5] sm:$0xff] %vm159, %v2881
    %v2884 = vld [vmem:[#allocation2] sm:$0xf8]
    %v2885 = vld [vmem:[#allocation2 + $0x8] sm:$0xf]
    %v2887 = vshrl.u32 %v2884, 16
    %v2889 = vrot.slane %v2887, 3
    %v2890 = vshll.u32 %v2884, 16
    %v2892 = vrot.slane %v2890, 4
    %v2893 = vor.u32 %v2889, %v2892
    %v2895 = vshrl.u32 %v2885, 16
    %v2897 = vrot.slane %v2895, 3
    %v2898 = vshll.u32 %v2885, 16
    %v2900 = vrot.slane %v2898, 4
    %v2901 = vor.u32 %v2897, %v2900
    %v2902 = vsel %vm163, %v2893, %v2901
    %2903 = vrot.lane.b32.xlu0 %v2902, 32
    %v2904 = vpop.permute.xlu0 %2903
    %2906 = vst.msk [vmem:[#allocation5] sm:$0xff] %vm184, %v2904
    %v2907 = vld [vmem:[#allocation2] sm:$0xf0]
    %v2908 = vld [vmem:[#allocation2 + $0x8] sm:$0xf]
    %v2911 = vrot.slane %v2907, 4
    %v2912 = vrot.slane %v2908, 4
    %v2913 = vsel %vm190, %v2911, %v2912
    %2914 = vrot.lane.b32.xlu0 %v2913, 64
    %v2915 = vpop.permute.xlu0 %2914
    %2917 = vst.msk [vmem:[#allocation5] sm:$0xff] %vm197, %v2915
    %v2918 = vld [vmem:[#allocation2] sm:$0xf0]
    %v2919 = vld [vmem:[#allocation2 + $0x8] sm:$0x1f]
    %v2921 = vshrl.u32 %v2918, 16
    %v2923 = vrot.slane %v2921, 4
    %v2924 = vshll.u32 %v2918, 16
    %v2926 = vrot.slane %v2924, 5
    %v2927 = vor.u32 %v2923, %v2926
    %v2929 = vshrl.u32 %v2919, 16
    %v2931 = vrot.slane %v2929, 4
    %v2932 = vshll.u32 %v2919, 16
    %v2934 = vrot.slane %v2932, 5
    %v2935 = vor.u32 %v2931, %v2934
    %v2936 = vsel %vm201, %v2927, %v2935
    %2937 = vrot.lane.b32.xlu0 %v2936, 96
    %v2938 = vpop.permute.xlu0 %2937
    %2940 = vst.msk [vmem:[#allocation5] sm:$0xff] %vm222, %v2938
    %v2941 = vld [vmem:[#allocation2] sm:$0xe0]
    %v2942 = vld [vmem:[#allocation2 + $0x8] sm:$0x1f]
    %v2945 = vrot.slane %v2941, 5
    %v2946 = vrot.slane %v2942, 5
    %v2947 = vsel %vm228, %v2945, %v2946
    %2949 = vst.msk [vmem:[#allocation5 + $0x8] sm:$0xff] %vm159, %v2947
    %v2950 = vld [vmem:[#allocation5] sm:$0xff]
    %v2951 = vld [vmem:[#allocation5 + $0x8] sm:$0xff]
    %v2952 = vld [vmem:[%s1] sm:$0xf]
    %v2953 = vld [vmem:[%s1 + $0x4] sm:$0xf]
    %v2954 = vld [vmem:[%s1 + $0x8] sm:$0xf]
    %v2955 = vld [vmem:[%s1 + $0xc] sm:$0xf]
    %v2956 = vld [vmem:[%s1 + $0x10] sm:$0xf]
    %v2957 = vld [vmem:[%s1 + $0x14] sm:$0xf]
    %v2958 = vld [vmem:[%s1 + $0x18] sm:$0xf]
    %v2959 = vld [vmem:[%s1 + $0x1c] sm:$0xf]
    %v2960 = vld [vmem:[%s1 + $0x20] sm:$0xf]
    %v2961 = vld [vmem:[%s1 + $0x24] sm:$0xf]
    %v2962 = vld [vmem:[%s1 + $0x28] sm:$0xf]
    %v2963 = vld [vmem:[%s1 + $0x2c] sm:$0xf]
    %v2964 = vld [vmem:[%s1 + $0x30] sm:$0xf]
    %v2965 = vld [vmem:[%s1 + $0x34] sm:$0xf]
    %v2966 = vld [vmem:[%s1 + $0x38] sm:$0xf]
    %v2967 = vld [vmem:[%s1 + $0x3c] sm:$0xf]
    %v2968 = vld [vmem:[%s1 + $0x40] sm:$0xf]
    %v2969 = vld [vmem:[%s1 + $0x44] sm:$0xf]
    %v2970 = vld [vmem:[%s1 + $0x48] sm:$0xf]
    %v2971 = vld [vmem:[%s1 + $0x4c] sm:$0xf]
    %v2992 = vunpack.c.l.b16 %v2952
    %v2993 = vunpack.c.l.b16 %v2953
    %v2994 = vunpack.c.l.b16 %v2954
    %v2995 = vunpack.c.l.b16 %v2955
    %v2996 = vunpack.c.l.b16 %v2956
    %v2997 = vunpack.c.l.b16 %v2957
    %v2998 = vunpack.c.l.b16 %v2958
    %v2999 = vunpack.c.l.b16 %v2959
    %v3000 = vunpack.c.l.b16 %v2960
    %v3001 = vunpack.c.l.b16 %v2961
    %v3002 = vunpack.c.l.b16 %v2962
    %v3003 = vunpack.c.l.b16 %v2963
    %v3004 = vunpack.c.l.b16 %v2964
    %v3005 = vunpack.c.l.b16 %v2965
    %v3006 = vunpack.c.l.b16 %v2966
    %v3007 = vunpack.c.l.b16 %v2967
    %v3008 = vunpack.c.l.b16 %v2968
    %v3009 = vunpack.c.l.b16 %v2969
    %v3010 = vunpack.c.l.b16 %v2970
    %v3011 = vunpack.c.l.b16 %v2971
    %v3012 = vpack.c.b16 %v2993, %v2992
    %v3013 = vpack.c.b16 %v2995, %v2994
    %v3014 = vpack.c.b16 %v2997, %v2996
    %v3015 = vpack.c.b16 %v2999, %v2998
    %v3016 = vpack.c.b16 %v3001, %v3000
    %v3017 = vpack.c.b16 %v3003, %v3002
    %v3018 = vpack.c.b16 %v3005, %v3004
    %v3019 = vpack.c.b16 %v3007, %v3006
    %v3020 = vpack.c.b16 %v3009, %v3008
    %v3021 = vpack.c.b16 %v3011, %v3010
    %v3033 = vsel %vm159, %v2951, 0
    %3035 = vmatprep.subr.bf16.mxu0 0
    %3036 = vmatpush1.bf16.msra.mxu0 %v3012
    %3037 = vmatprep.subr.bf16.mxu0 0
    %3038 = vmatpush1.bf16.msra.mxu0 %v3013
    %3039 = vmatprep.subr.bf16.mxu0 0
    %3040 = vmatpush1.bf16.msra.mxu0 %v3014
    %3041 = vmatprep.subr.bf16.mxu0 0
    %3042 = vmatpush1.bf16.msra.mxu0 %v3015
    %3043 = vmatprep.subr.bf16.mxu0 0
    %3044 = vmatpush1.bf16.msra.mxu0 %v3016
    %3045 = vmatprep.subr.bf16.mxu0 0
    %3046 = vmatpush1.bf16.msra.mxu0 %v3017
    %3047 = vmatprep.subr.bf16.mxu0 0
    %3048 = vmatpush1.bf16.msra.mxu0 %v3018
    %3049 = vmatprep.subr.bf16.mxu0 0
    %3050 = vmatpush1.bf16.msra.mxu0 %v3019
    %3051 = vmatprep.subr.bf16.mxu0 0
    %3052 = vmatpush1.bf16.msra.mxu0 %v3020
    %3053 = vmatprep.subr.bf16.mxu0 0
    %3054 = vmatpush1.bf16.msra.mxu0 %v3021
    %3055 = vmatprep.subr.bf16.mxu0 0
    %3056 = vmatpush1.bf16.msra.mxu0 0
    %3057 = vmatprep.subr.bf16.mxu0 0
    %3058 = vmatpush1.bf16.msra.mxu0 0
    %3059 = vmatprep.subr.bf16.mxu0 0
    %3060 = vmatpush1.bf16.msra.mxu0 0
    %3061 = vmatprep.subr.bf16.mxu0 0
    %3062 = vmatpush1.bf16.msra.mxu0 0
    %3063 = vmatprep.subr.bf16.mxu0 0
    %3064 = vmatpush1.bf16.msra.mxu0 0
    %3065 = vmatprep.subr.bf16.mxu0 0
    %3066 = vmatpush1.bf16.msra.mxu0 0
    %3067 = vmatprep.mubr.bf16.mxu0 %v3033
    %3068 = vmatmul.mubr.bf16.gmra.mrb[0].mxu0 %v2950
    %v3069 = vpop.f32.mrb[0].mxu0
    %v3070 = vadd.f32 0.0, %v3069
    %v3071 = vpop.f32.mrb[0].mxu0
    %v3072 = vpop.f32.mrb[0].mxu0
    %v3073 = vadd.f32 0.0, %v3072
    %v3074 = vpop.f32.mrb[0].mxu0
    %3075 = vdwg.mxu0
    %v3076 = vld [vmem:[%s2] sm:$0x1]
    %v3078 = vlaneseq
    %v3079 = vshrl.u32 %v3078, 7
    %v3080 = vsub.s32 0, %v3079
    %v3081 = vrot.slane %v3076, %v3080
    %v3083 = vmul.f32 %v3070, %v3081
    %v3084 = vmul.f32 %v3073, %v3081
    %v3085 = vld [vmem:[%s3] sm:$0x1]
    %v3087 = vlaneseq
    %v3088 = vshrl.u32 %v3087, 7
    %v3089 = vsub.s32 0, %v3088
    %v3090 = vrot.slane %v3085, %v3089
    %v3092 = vadd.f32 %v3083, %v3090
    %v3093 = vadd.f32 %v3084, %v3090
    %v3094 = vmax.f32 %v3092, 0.0
    %v3095 = vmax.f32 %v3093, 0.0
    %v3096 = vpack.c.bf16 %v3095, %v3094
    %v3098 = vrot.slane %v3096, 4
    %3100 = vst.msk [vmem:[#allocation3] sm:$0xf0] %vm39, %v3098
    %3101 = vst.msk [vmem:[#allocation3 + $0x8] sm:$0xf] %vm37, %v3098
    %v3102 = vld [vmem:[#allocation3] sm:$0xf8]
    %v3103 = vld [vmem:[#allocation3 + $0x8] sm:$0x7]
    %v3106 = vrot.slane %v3102, 3
    %v3107 = vrot.slane %v3103, 3
    %v3108 = vsel %vm154, %v3106, %v3107
    %3110 = vst.msk [vmem:[#allocation5] sm:$0xff] %vm159, %v3108
    %v3111 = vld [vmem:[#allocation3] sm:$0xf8]
    %v3112 = vld [vmem:[#allocation3 + $0x8] sm:$0xf]
    %v3114 = vshrl.u32 %v3111, 16
    %v3116 = vrot.slane %v3114, 3
    %v3117 = vshll.u32 %v3111, 16
    %v3119 = vrot.slane %v3117, 4
    %v3120 = vor.u32 %v3116, %v3119
    %v3122 = vshrl.u32 %v3112, 16
    %v3124 = vrot.slane %v3122, 3
    %v3125 = vshll.u32 %v3112, 16
    %v3127 = vrot.slane %v3125, 4
    %v3128 = vor.u32 %v3124, %v3127
    %v3129 = vsel %vm163, %v3120, %v3128
    %3130 = vrot.lane.b32.xlu0 %v3129, 32
    %v3131 = vpop.permute.xlu0 %3130
    %3133 = vst.msk [vmem:[#allocation5] sm:$0xff] %vm184, %v3131
    %v3134 = vld [vmem:[#allocation3] sm:$0xf0]
    %v3135 = vld [vmem:[#allocation3 + $0x8] sm:$0xf]
    %v3138 = vrot.slane %v3134, 4
    %v3139 = vrot.slane %v3135, 4
    %v3140 = vsel %vm190, %v3138, %v3139
    %3141 = vrot.lane.b32.xlu0 %v3140, 64
    %v3142 = vpop.permute.xlu0 %3141
    %3144 = vst.msk [vmem:[#allocation5] sm:$0xff] %vm197, %v3142
    %v3145 = vld [vmem:[#allocation3] sm:$0xf0]
    %v3146 = vld [vmem:[#allocation3 + $0x8] sm:$0x1f]
    %v3148 = vshrl.u32 %v3145, 16
    %v3150 = vrot.slane %v3148, 4
    %v3151 = vshll.u32 %v3145, 16
    %v3153 = vrot.slane %v3151, 5
    %v3154 = vor.u32 %v3150, %v3153
    %v3156 = vshrl.u32 %v3146, 16
    %v3158 = vrot.slane %v3156, 4
    %v3159 = vshll.u32 %v3146, 16
    %v3161 = vrot.slane %v3159, 5
    %v3162 = vor.u32 %v3158, %v3161
    %v3163 = vsel %vm201, %v3154, %v3162
    %3164 = vrot.lane.b32.xlu0 %v3163, 96
    %v3165 = vpop.permute.xlu0 %3164
    %3167 = vst.msk [vmem:[#allocation5] sm:$0xff] %vm222, %v3165
    %v3168 = vld [vmem:[#allocation3] sm:$0xe0]
    %v3169 = vld [vmem:[#allocation3 + $0x8] sm:$0x1f]
    %v3172 = vrot.slane %v3168, 5
    %v3173 = vrot.slane %v3169, 5
    %v3174 = vsel %vm228, %v3172, %v3173
    %3176 = vst.msk [vmem:[#allocation5 + $0x8] sm:$0xff] %vm159, %v3174
    %v3177 = vld [vmem:[#allocation5] sm:$0xff]
    %v3178 = vld [vmem:[#allocation5 + $0x8] sm:$0xff]
    %v3179 = vld [vmem:[%s4] sm:$0xf]
    %v3180 = vld [vmem:[%s4 + $0x4] sm:$0xf]
    %v3181 = vld [vmem:[%s4 + $0x8] sm:$0xf]
    %v3182 = vld [vmem:[%s4 + $0xc] sm:$0xf]
    %v3183 = vld [vmem:[%s4 + $0x10] sm:$0xf]
    %v3184 = vld [vmem:[%s4 + $0x14] sm:$0xf]
    %v3185 = vld [vmem:[%s4 + $0x18] sm:$0xf]
    %v3186 = vld [vmem:[%s4 + $0x1c] sm:$0xf]
    %v3187 = vld [vmem:[%s4 + $0x20] sm:$0xf]
    %v3188 = vld [vmem:[%s4 + $0x24] sm:$0xf]
    %v3189 = vld [vmem:[%s4 + $0x28] sm:$0xf]
    %v3190 = vld [vmem:[%s4 + $0x2c] sm:$0xf]
    %v3191 = vld [vmem:[%s4 + $0x30] sm:$0xf]
    %v3192 = vld [vmem:[%s4 + $0x34] sm:$0xf]
    %v3193 = vld [vmem:[%s4 + $0x38] sm:$0xf]
    %v3194 = vld [vmem:[%s4 + $0x3c] sm:$0xf]
    %v3195 = vld [vmem:[%s4 + $0x40] sm:$0xf]
    %v3196 = vld [vmem:[%s4 + $0x44] sm:$0xf]
    %v3197 = vld [vmem:[%s4 + $0x48] sm:$0xf]
    %v3198 = vld [vmem:[%s4 + $0x4c] sm:$0xf]
    %v3219 = vunpack.c.l.b16 %v3179
    %v3220 = vunpack.c.l.b16 %v3180
    %v3221 = vunpack.c.l.b16 %v3181
    %v3222 = vunpack.c.l.b16 %v3182
    %v3223 = vunpack.c.l.b16 %v3183
    %v3224 = vunpack.c.l.b16 %v3184
    %v3225 = vunpack.c.l.b16 %v3185
    %v3226 = vunpack.c.l.b16 %v3186
    %v3227 = vunpack.c.l.b16 %v3187
    %v3228 = vunpack.c.l.b16 %v3188
    %v3229 = vunpack.c.l.b16 %v3189
    %v3230 = vunpack.c.l.b16 %v3190
    %v3231 = vunpack.c.l.b16 %v3191
    %v3232 = vunpack.c.l.b16 %v3192
    %v3233 = vunpack.c.l.b16 %v3193
    %v3234 = vunpack.c.l.b16 %v3194
    %v3235 = vunpack.c.l.b16 %v3195
    %v3236 = vunpack.c.l.b16 %v3196
    %v3237 = vunpack.c.l.b16 %v3197
    %v3238 = vunpack.c.l.b16 %v3198
    %v3239 = vpack.c.b16 %v3220, %v3219
    %v3240 = vpack.c.b16 %v3222, %v3221
    %v3241 = vpack.c.b16 %v3224, %v3223
    %v3242 = vpack.c.b16 %v3226, %v3225
    %v3243 = vpack.c.b16 %v3228, %v3227
    %v3244 = vpack.c.b16 %v3230, %v3229
    %v3245 = vpack.c.b16 %v3232, %v3231
    %v3246 = vpack.c.b16 %v3234, %v3233
    %v3247 = vpack.c.b16 %v3236, %v3235
    %v3248 = vpack.c.b16 %v3238, %v3237
    %v3260 = vsel %vm159, %v3178, 0
    %3262 = vmatprep.subr.bf16.mxu0 0
    %3263 = vmatpush1.bf16.msra.mxu0 %v3239
    %3264 = vmatprep.subr.bf16.mxu0 0
    %3265 = vmatpush1.bf16.msra.mxu0 %v3240
    %3266 = vmatprep.subr.bf16.mxu0 0
    %3267 = vmatpush1.bf16.msra.mxu0 %v3241
    %3268 = vmatprep.subr.bf16.mxu0 0
    %3269 = vmatpush1.bf16.msra.mxu0 %v3242
    %3270 = vmatprep.subr.bf16.mxu0 0
    %3271 = vmatpush1.bf16.msra.mxu0 %v3243
    %3272 = vmatprep.subr.bf16.mxu0 0
    %3273 = vmatpush1.bf16.msra.mxu0 %v3244
    %3274 = vmatprep.subr.bf16.mxu0 0
    %3275 = vmatpush1.bf16.msra.mxu0 %v3245
    %3276 = vmatprep.subr.bf16.mxu0 0
    %3277 = vmatpush1.bf16.msra.mxu0 %v3246
    %3278 = vmatprep.subr.bf16.mxu0 0
    %3279 = vmatpush1.bf16.msra.mxu0 %v3247
    %3280 = vmatprep.subr.bf16.mxu0 0
    %3281 = vmatpush1.bf16.msra.mxu0 %v3248
    %3282 = vmatprep.subr.bf16.mxu0 0
    %3283 = vmatpush1.bf16.msra.mxu0 0
    %3284 = vmatprep.subr.bf16.mxu0 0
    %3285 = vmatpush1.bf16.msra.mxu0 0
    %3286 = vmatprep.subr.bf16.mxu0 0
    %3287 = vmatpush1.bf16.msra.mxu0 0
    %3288 = vmatprep.subr.bf16.mxu0 0
    %3289 = vmatpush1.bf16.msra.mxu0 0
    %3290 = vmatprep.subr.bf16.mxu0 0
    %3291 = vmatpush1.bf16.msra.mxu0 0
    %3292 = vmatprep.subr.bf16.mxu0 0
    %3293 = vmatpush1.bf16.msra.mxu0 0
    %3294 = vmatprep.mubr.bf16.mxu0 %v3260
    %3295 = vmatmul.mubr.bf16.gmra.mrb[0].mxu0 %v3177
    %v3296 = vpop.f32.mrb[0].mxu0
    %v3297 = vadd.f32 0.0, %v3296
    %v3298 = vpop.f32.mrb[0].mxu0
    %v3299 = vpop.f32.mrb[0].mxu0
    %v3300 = vadd.f32 0.0, %v3299
    %v3301 = vpop.f32.mrb[0].mxu0
    %3302 = vdwg.mxu0
    %v3303 = vld [vmem:[%s5] sm:$0x1]
    %v3305 = vlaneseq
    %v3306 = vshrl.u32 %v3305, 7
    %v3307 = vsub.s32 0, %v3306
    %v3308 = vrot.slane %v3303, %v3307
    %v3310 = vmul.f32 %v3297, %v3308
    %v3311 = vmul.f32 %v3300, %v3308
    %v3312 = vld [vmem:[%s6] sm:$0x1]
    %v3314 = vlaneseq
    %v3315 = vshrl.u32 %v3314, 7
    %v3316 = vsub.s32 0, %v3315
    %v3317 = vrot.slane %v3312, %v3316
    %v3319 = vadd.f32 %v3310, %v3317
    %v3320 = vadd.f32 %v3311, %v3317
    %v3321 = vmax.f32 %v3319, 0.0
    %v3322 = vmax.f32 %v3320, 0.0
    %v3323 = vpack.c.bf16 %v3322, %v3321
    %v3325 = vrot.slane %v3323, 4
    %3327 = vst.msk [vmem:[#allocation4] sm:$0xf0] %vm39, %v3325
    %3328 = vst.msk [vmem:[#allocation4 + $0x8] sm:$0xf] %vm37, %v3325
    %v3329 = vld [vmem:[#allocation4] sm:$0xf8]
    %v3330 = vld [vmem:[#allocation4 + $0x8] sm:$0x7]
    %v3333 = vrot.slane %v3329, 3
    %v3334 = vrot.slane %v3330, 3
    %v3335 = vsel %vm154, %v3333, %v3334
    %3337 = vst.msk [vmem:[#allocation5] sm:$0xff] %vm159, %v3335
    %v3338 = vld [vmem:[#allocation4] sm:$0xf8]
    %v3339 = vld [vmem:[#allocation4 + $0x8] sm:$0xf]
    %v3341 = vshrl.u32 %v3338, 16
    %v3343 = vrot.slane %v3341, 3
    %v3344 = vshll.u32 %v3338, 16
    %v3346 = vrot.slane %v3344, 4
    %v3347 = vor.u32 %v3343, %v3346
    %v3349 = vshrl.u32 %v3339, 16
    %v3351 = vrot.slane %v3349, 3
    %v3352 = vshll.u32 %v3339, 16
    %v3354 = vrot.slane %v3352, 4
    %v3355 = vor.u32 %v3351, %v3354
    %v3356 = vsel %vm163, %v3347, %v3355
    %3357 = vrot.lane.b32.xlu0 %v3356, 32
    %v3358 = vpop.permute.xlu0 %3357
    %3360 = vst.msk [vmem:[#allocation5] sm:$0xff] %vm184, %v3358
    %v3361 = vld [vmem:[#allocation4] sm:$0xf0]
    %v3362 = vld [vmem:[#allocation4 + $0x8] sm:$0xf]
    %v3365 = vrot.slane %v3361, 4
    %v3366 = vrot.slane %v3362, 4
    %v3367 = vsel %vm190, %v3365, %v3366
    %3368 = vrot.lane.b32.xlu0 %v3367, 64
    %v3369 = vpop.permute.xlu0 %3368
    %3371 = vst.msk [vmem:[#allocation5] sm:$0xff] %vm197, %v3369
    %v3372 = vld [vmem:[#allocation4] sm:$0xf0]
    %v3373 = vld [vmem:[#allocation4 + $0x8] sm:$0x1f]
    %v3375 = vshrl.u32 %v3372, 16
    %v3377 = vrot.slane %v3375, 4
    %v3378 = vshll.u32 %v3372, 16
    %v3380 = vrot.slane %v3378, 5
    %v3381 = vor.u32 %v3377, %v3380
    %v3383 = vshrl.u32 %v3373, 16
    %v3385 = vrot.slane %v3383, 4
    %v3386 = vshll.u32 %v3373, 16
    %v3388 = vrot.slane %v3386, 5
    %v3389 = vor.u32 %v3385, %v3388
    %v3390 = vsel %vm201, %v3381, %v3389
    %3391 = vrot.lane.b32.xlu0 %v3390, 96
    %v3392 = vpop.permute.xlu0 %3391
    %3394 = vst.msk [vmem:[#allocation5] sm:$0xff] %vm222, %v3392
    %v3395 = vld [vmem:[#allocation4] sm:$0xe0]
    %v3396 = vld [vmem:[#allocation4 + $0x8] sm:$0x1f]
    %v3399 = vrot.slane %v3395, 5
    %v3400 = vrot.slane %v3396, 5
    %v3401 = vsel %vm228, %v3399, %v3400
    %3403 = vst.msk [vmem:[#allocation5 + $0x8] sm:$0xff] %vm159, %v3401
    %v3404 = vld [vmem:[#allocation5] sm:$0xff]
    %v3405 = vld [vmem:[#allocation5 + $0x8] sm:$0xff]
    %v3406 = vld [vmem:[%s7] sm:$0xf]
    %v3407 = vld [vmem:[%s7 + $0x4] sm:$0xf]
    %v3408 = vld [vmem:[%s7 + $0x8] sm:$0xf]
    %v3409 = vld [vmem:[%s7 + $0xc] sm:$0xf]
    %v3410 = vld [vmem:[%s7 + $0x10] sm:$0xf]
    %v3411 = vld [vmem:[%s7 + $0x14] sm:$0xf]
    %v3412 = vld [vmem:[%s7 + $0x18] sm:$0xf]
    %v3413 = vld [vmem:[%s7 + $0x1c] sm:$0xf]
    %v3414 = vld [vmem:[%s7 + $0x20] sm:$0xf]
    %v3415 = vld [vmem:[%s7 + $0x24] sm:$0xf]
    %v3416 = vld [vmem:[%s7 + $0x28] sm:$0xf]
    %v3417 = vld [vmem:[%s7 + $0x2c] sm:$0xf]
    %v3418 = vld [vmem:[%s7 + $0x30] sm:$0xf]
    %v3419 = vld [vmem:[%s7 + $0x34] sm:$0xf]
    %v3420 = vld [vmem:[%s7 + $0x38] sm:$0xf]
    %v3421 = vld [vmem:[%s7 + $0x3c] sm:$0xf]
    %v3422 = vld [vmem:[%s7 + $0x40] sm:$0xf]
    %v3423 = vld [vmem:[%s7 + $0x44] sm:$0xf]
    %v3424 = vld [vmem:[%s7 + $0x48] sm:$0xf]
    %v3425 = vld [vmem:[%s7 + $0x4c] sm:$0xf]
    %v3446 = vunpack.c.l.b16 %v3406
    %v3447 = vunpack.c.l.b16 %v3407
    %v3448 = vunpack.c.l.b16 %v3408
    %v3449 = vunpack.c.l.b16 %v3409
    %v3450 = vunpack.c.l.b16 %v3410
    %v3451 = vunpack.c.l.b16 %v3411
    %v3452 = vunpack.c.l.b16 %v3412
    %v3453 = vunpack.c.l.b16 %v3413
    %v3454 = vunpack.c.l.b16 %v3414
    %v3455 = vunpack.c.l.b16 %v3415
    %v3456 = vunpack.c.l.b16 %v3416
    %v3457 = vunpack.c.l.b16 %v3417
    %v3458 = vunpack.c.l.b16 %v3418
    %v3459 = vunpack.c.l.b16 %v3419
    %v3460 = vunpack.c.l.b16 %v3420
    %v3461 = vunpack.c.l.b16 %v3421
    %v3462 = vunpack.c.l.b16 %v3422
    %v3463 = vunpack.c.l.b16 %v3423
    %v3464 = vunpack.c.l.b16 %v3424
    %v3465 = vunpack.c.l.b16 %v3425
    %v3466 = vpack.c.b16 %v3447, %v3446
    %v3467 = vpack.c.b16 %v3449, %v3448
    %v3468 = vpack.c.b16 %v3451, %v3450
    %v3469 = vpack.c.b16 %v3453, %v3452
    %v3470 = vpack.c.b16 %v3455, %v3454
    %v3471 = vpack.c.b16 %v3457, %v3456
    %v3472 = vpack.c.b16 %v3459, %v3458
    %v3473 = vpack.c.b16 %v3461, %v3460
    %v3474 = vpack.c.b16 %v3463, %v3462
    %v3475 = vpack.c.b16 %v3465, %v3464
    %v3487 = vsel %vm159, %v3405, 0
    %3489 = vmatprep.subr.bf16.mxu0 0
    %3490 = vmatpush1.bf16.msra.mxu0 %v3466
    %3491 = vmatprep.subr.bf16.mxu0 0
    %3492 = vmatpush1.bf16.msra.mxu0 %v3467
    %3493 = vmatprep.subr.bf16.mxu0 0
    %3494 = vmatpush1.bf16.msra.mxu0 %v3468
    %3495 = vmatprep.subr.bf16.mxu0 0
    %3496 = vmatpush1.bf16.msra.mxu0 %v3469
    %3497 = vmatprep.subr.bf16.mxu0 0
    %3498 = vmatpush1.bf16.msra.mxu0 %v3470
    %3499 = vmatprep.subr.bf16.mxu0 0
    %3500 = vmatpush1.bf16.msra.mxu0 %v3471
    %3501 = vmatprep.subr.bf16.mxu0 0
    %3502 = vmatpush1.bf16.msra.mxu0 %v3472
    %3503 = vmatprep.subr.bf16.mxu0 0
    %3504 = vmatpush1.bf16.msra.mxu0 %v3473
    %3505 = vmatprep.subr.bf16.mxu0 0
    %3506 = vmatpush1.bf16.msra.mxu0 %v3474
    %3507 = vmatprep.subr.bf16.mxu0 0
    %3508 = vmatpush1.bf16.msra.mxu0 %v3475
    %3509 = vmatprep.subr.bf16.mxu0 0
    %3510 = vmatpush1.bf16.msra.mxu0 0
    %3511 = vmatprep.subr.bf16.mxu0 0
    %3512 = vmatpush1.bf16.msra.mxu0 0
    %3513 = vmatprep.subr.bf16.mxu0 0
    %3514 = vmatpush1.bf16.msra.mxu0 0
    %3515 = vmatprep.subr.bf16.mxu0 0
    %3516 = vmatpush1.bf16.msra.mxu0 0
    %3517 = vmatprep.subr.bf16.mxu0 0
    %3518 = vmatpush1.bf16.msra.mxu0 0
    %3519 = vmatprep.subr.bf16.mxu0 0
    %3520 = vmatpush1.bf16.msra.mxu0 0
    %3521 = vmatprep.mubr.bf16.mxu0 %v3487
    %3522 = vmatmul.mubr.bf16.gmra.mrb[0].mxu0 %v3404
    %v3523 = vpop.f32.mrb[0].mxu0
    %v3524 = vadd.f32 0.0, %v3523
    %v3525 = vpop.f32.mrb[0].mxu0
    %v3526 = vpop.f32.mrb[0].mxu0
    %v3527 = vadd.f32 0.0, %v3526
    %v3528 = vpop.f32.mrb[0].mxu0
    %3529 = vdwg.mxu0
    %v3530 = vld [vmem:[%s8] sm:$0x1]
    %v3532 = vlaneseq
    %v3533 = vshrl.u32 %v3532, 7
    %v3534 = vsub.s32 0, %v3533
    %v3535 = vrot.slane %v3530, %v3534
    %v3537 = vmul.f32 %v3524, %v3535
    %v3538 = vmul.f32 %v3527, %v3535
    %v3539 = vld [vmem:[%s9] sm:$0x1]
    %v3541 = vlaneseq
    %v3542 = vshrl.u32 %v3541, 7
    %v3543 = vsub.s32 0, %v3542
    %v3544 = vrot.slane %v3539, %v3543
    %v3546 = vadd.f32 %v3537, %v3544
    %v3547 = vadd.f32 %v3538, %v3544
    %v3548 = vmax.f32 %v3546, 0.0
    %v3549 = vmax.f32 %v3547, 0.0
    %v3552 = vcombine.high %v3548, %v3548
    %v3554 = vunpack.c.l.s4 1966171168
    %v3555 = vunpack.c.0.s8 %v3554
    %v3556 = vlaneseq
    %v3557 = vshrl.u32 %v3556, 7
    %v3558 = vsub.s32 %v3555, %v3557
    %v3559 = vrot.slane %v3548, %v3558
    %v3561 = vunpack.c.l.s4 1966171168
    %v3562 = vunpack.c.0.s8 %v3561
    %v3563 = vlaneseq
    %v3564 = vshrl.u32 %v3563, 7
    %v3565 = vsub.s32 %v3562, %v3564
    %v3566 = vrot.slane %v3552, %v3565
    %v3567 = vcombine.high %v3559, %v3559
    %v3568 = vcombine.high %v3566, %v3566
    %v3570 = vunpack.c.l.s4 1966171168
    %v3571 = vunpack.c.0.s8 %v3570
    %v3572 = vlaneseq
    %v3573 = vshrl.u32 %v3572, 7
    %v3574 = vsub.s32 %v3571, %v3573
    %v3575 = vrot.slane %v3559, %v3574
    %v3577 = vunpack.c.l.s4 1966171168
    %v3578 = vunpack.c.0.s8 %v3577
    %v3579 = vlaneseq
    %v3580 = vshrl.u32 %v3579, 7
    %v3581 = vsub.s32 %v3578, %v3580
    %v3582 = vrot.slane %v3566, %v3581
    %v3584 = vunpack.c.l.s4 1966171168
    %v3585 = vunpack.c.0.s8 %v3584
    %v3586 = vlaneseq
    %v3587 = vshrl.u32 %v3586, 7
    %v3588 = vsub.s32 %v3585, %v3587
    %v3589 = vrot.slane %v3567, %v3588
    %v3591 = vunpack.c.l.s4 1966171168
    %v3592 = vunpack.c.0.s8 %v3591
    %v3593 = vlaneseq
    %v3594 = vshrl.u32 %v3593, 7
    %v3595 = vsub.s32 %v3592, %v3594
    %v3596 = vrot.slane %v3568, %v3595
    %v3597 = vcombine.high %v3575, %v3575
    %v3598 = vcombine.high %v3582, %v3582
    %v3599 = vcombine.high %v3589, %v3589
    %v3600 = vcombine.high %v3596, %v3596
    %v3601 = vcombine.high %v3549, %v3549
    %v3603 = vunpack.c.l.s4 1966171168
    %v3604 = vunpack.c.0.s8 %v3603
    %v3605 = vlaneseq
    %v3606 = vshrl.u32 %v3605, 7
    %v3607 = vsub.s32 %v3604, %v3606
    %v3608 = vrot.slane %v3549, %v3607
    %v3610 = vunpack.c.l.s4 1966171168
    %v3611 = vunpack.c.0.s8 %v3610
    %v3612 = vlaneseq
    %v3613 = vshrl.u32 %v3612, 7
    %v3614 = vsub.s32 %v3611, %v3613
    %v3615 = vrot.slane %v3601, %v3614
    %v3616 = vcombine.high %v3608, %v3608
    %v3617 = vcombine.high %v3615, %v3615
    %v3619 = vunpack.c.l.s4 1966171168
    %v3620 = vunpack.c.0.s8 %v3619
    %v3621 = vlaneseq
    %v3622 = vshrl.u32 %v3621, 7
    %v3623 = vsub.s32 %v3620, %v3622
    %v3624 = vrot.slane %v3608, %v3623
    %v3626 = vunpack.c.l.s4 1966171168
    %v3627 = vunpack.c.0.s8 %v3626
    %v3628 = vlaneseq
    %v3629 = vshrl.u32 %v3628, 7
    %v3630 = vsub.s32 %v3627, %v3629
    %v3631 = vrot.slane %v3615, %v3630
    %v3633 = vunpack.c.l.s4 1966171168
    %v3634 = vunpack.c.0.s8 %v3633
    %v3635 = vlaneseq
    %v3636 = vshrl.u32 %v3635, 7
    %v3637 = vsub.s32 %v3634, %v3636
    %v3638 = vrot.slane %v3616, %v3637
    %v3640 = vunpack.c.l.s4 1966171168
    %v3641 = vunpack.c.0.s8 %v3640
    %v3642 = vlaneseq
    %v3643 = vshrl.u32 %v3642, 7
    %v3644 = vsub.s32 %v3641, %v3643
    %v3645 = vrot.slane %v3617, %v3644
    %v3646 = vcombine.high %v3624, %v3624
    %v3647 = vcombine.high %v3631, %v3631
    %v3648 = vcombine.high %v3638, %v3638
    %v3649 = vcombine.high %v3645, %v3645
    %3666 = vst.msk [vmem:[#allocation6 + $0x3] sm:$0x1] %vm950, %v3575
    %3667 = vst.msk [vmem:[#allocation6 + $0xb] sm:$0x1] %vm950, %v3589
    %3668 = vst.msk [vmem:[#allocation6 + $0x13] sm:$0x1] %vm950, %v3597
    %3669 = vst.msk [vmem:[#allocation6 + $0x1b] sm:$0x1] %vm950, %v3599
    %3670 = vst.msk [vmem:[#allocation6 + $0x23] sm:$0x1] %vm950, %v3582
    %3671 = vst.msk [vmem:[#allocation6 + $0x2b] sm:$0x1] %vm950, %v3596
    %3672 = vst.msk [vmem:[#allocation6 + $0x33] sm:$0x1] %vm950, %v3598
    %3673 = vst.msk [vmem:[#allocation6 + $0x3b] sm:$0x1] %vm950, %v3600
    %3674 = vst.msk [vmem:[#allocation6 + $0x43] sm:$0x1] %vm950, %v3624
    %3675 = vst.msk [vmem:[#allocation6 + $0x4b] sm:$0x1] %vm950, %v3638
    %3676 = vst.msk [vmem:[#allocation6 + $0x53] sm:$0x1] %vm950, %v3646
    %3677 = vst.msk [vmem:[#allocation6 + $0x5b] sm:$0x1] %vm950, %v3648
    %3678 = vst.msk [vmem:[#allocation6 + $0x63] sm:$0x1] %vm950, %v3631
    %3679 = vst.msk [vmem:[#allocation6 + $0x6b] sm:$0x1] %vm950, %v3645
    %3680 = vst.msk [vmem:[#allocation6 + $0x73] sm:$0x1] %vm950, %v3647
    %3681 = vst.msk [vmem:[#allocation6 + $0x7b] sm:$0x1] %vm950, %v3649
    %v3682 = vld [vmem:[%s0 + $0x4] sm:$0x1]
    %v3683 = vld [vmem:[%s0 + $0xc] sm:$0x1]
    %v3684 = vld [vmem:[%s0 + $0x14] sm:$0x1]
    %v3685 = vld [vmem:[%s0 + $0x1c] sm:$0x1]
    %v3686 = vld [vmem:[%s0 + $0x24] sm:$0x1]
    %v3687 = vld [vmem:[%s0 + $0x2c] sm:$0x1]
    %v3688 = vld [vmem:[%s0 + $0x34] sm:$0x1]
    %v3689 = vld [vmem:[%s0 + $0x3c] sm:$0x1]
    %v3690 = vld [vmem:[%s0 + $0x44] sm:$0x1]
    %v3691 = vld [vmem:[%s0 + $0x4c] sm:$0x1]
    %v3692 = vld [vmem:[%s0 + $0x54] sm:$0x1]
    %v3693 = vld [vmem:[%s0 + $0x5c] sm:$0x1]
    %v3694 = vld [vmem:[%s0 + $0x64] sm:$0x1]
    %v3695 = vld [vmem:[%s0 + $0x6c] sm:$0x1]
    %v3696 = vld [vmem:[%s0 + $0x74] sm:$0x1]
    %v3697 = vld [vmem:[%s0 + $0x7c] sm:$0x1]
    %v3698 = vpack.c.bf16 %v3682, %v3682
    %v3699 = vpack.c.bf16 %v3683, %v3683
    %v3700 = vpack.c.bf16 %v3684, %v3684
    %v3701 = vpack.c.bf16 %v3685, %v3685
    %v3702 = vpack.c.bf16 %v3686, %v3686
    %v3703 = vpack.c.bf16 %v3687, %v3687
    %v3704 = vpack.c.bf16 %v3688, %v3688
    %v3705 = vpack.c.bf16 %v3689, %v3689
    %v3706 = vpack.c.bf16 %v3690, %v3690
    %v3707 = vpack.c.bf16 %v3691, %v3691
    %v3708 = vpack.c.bf16 %v3692, %v3692
    %v3709 = vpack.c.bf16 %v3693, %v3693
    %v3710 = vpack.c.bf16 %v3694, %v3694
    %v3711 = vpack.c.bf16 %v3695, %v3695
    %v3712 = vpack.c.bf16 %v3696, %v3696
    %v3713 = vpack.c.bf16 %v3697, %v3697
    %v3730 = vunpack.c.l.b16 %v3698
    %v3731 = vunpack.c.l.b16 %v3699
    %v3732 = vunpack.c.l.b16 %v3700
    %v3733 = vunpack.c.l.b16 %v3701
    %v3734 = vunpack.c.l.b16 %v3702
    %v3735 = vunpack.c.l.b16 %v3703
    %v3736 = vunpack.c.l.b16 %v3704
    %v3737 = vunpack.c.l.b16 %v3705
    %v3738 = vunpack.c.l.b16 %v3706
    %v3739 = vunpack.c.l.b16 %v3707
    %v3740 = vunpack.c.l.b16 %v3708
    %v3741 = vunpack.c.l.b16 %v3709
    %v3742 = vunpack.c.l.b16 %v3710
    %v3743 = vunpack.c.l.b16 %v3711
    %v3744 = vunpack.c.l.b16 %v3712
    %v3745 = vunpack.c.l.b16 %v3713
    %v3746 = vrot.slane %v3731, 7
    %v3747 = vsel %vm110, %v3746, %v3730
    %v3748 = vrot.slane %v3732, 6
    %v3749 = vsel %vm113, %v3748, %v3747
    %v3750 = vrot.slane %v3733, 5
    %v3751 = vsel %vm116, %v3750, %v3749
    %v3752 = vrot.slane %v3734, 4
    %v3753 = vsel %vm119, %v3752, %v3751
    %v3754 = vrot.slane %v3735, 3
    %v3755 = vsel %vm122, %v3754, %v3753
    %v3756 = vrot.slane %v3736, 2
    %v3757 = vsel %vm125, %v3756, %v3755
    %v3758 = vrot.slane %v3737, 1
    %v3759 = vsel %vm128, %v3758, %v3757
    %v3760 = vrot.slane %v3739, 7
    %v3761 = vsel %vm110, %v3760, %v3738
    %v3762 = vrot.slane %v3740, 6
    %v3763 = vsel %vm113, %v3762, %v3761
    %v3764 = vrot.slane %v3741, 5
    %v3765 = vsel %vm116, %v3764, %v3763
    %v3766 = vrot.slane %v3742, 4
    %v3767 = vsel %vm119, %v3766, %v3765
    %v3768 = vrot.slane %v3743, 3
    %v3769 = vsel %vm122, %v3768, %v3767
    %v3770 = vrot.slane %v3744, 2
    %v3771 = vsel %vm125, %v3770, %v3769
    %v3772 = vrot.slane %v3745, 1
    %v3773 = vsel %vm128, %v3772, %v3771
    %v3774 = vpack.c.b16 %v3759, %v3759
    %v3775 = vpack.c.b16 %v3773, %v3773
    %3778 = vst.msk [vmem:[#allocation2] sm:$0xf0] %vm39, %v3774
    %3779 = vst.msk [vmem:[#allocation2 + $0x8] sm:$0xf] %vm37, %v3775
    %v3780 = vld [vmem:[#allocation2] sm:$0xf8]
    %v3781 = vld [vmem:[#allocation2 + $0x8] sm:$0x7]
    %v3784 = vrot.slane %v3780, 3
    %v3785 = vrot.slane %v3781, 3
    %v3786 = vsel %vm154, %v3784, %v3785
    %3788 = vst.msk [vmem:[#allocation5] sm:$0xff] %vm159, %v3786
    %v3789 = vld [vmem:[#allocation2] sm:$0xf8]
    %v3790 = vld [vmem:[#allocation2 + $0x8] sm:$0xf]
    %v3792 = vshrl.u32 %v3789, 16
    %v3794 = vrot.slane %v3792, 3
    %v3795 = vshll.u32 %v3789, 16
    %v3797 = vrot.slane %v3795, 4
    %v3798 = vor.u32 %v3794, %v3797
    %v3800 = vshrl.u32 %v3790, 16
    %v3802 = vrot.slane %v3800, 3
    %v3803 = vshll.u32 %v3790, 16
    %v3805 = vrot.slane %v3803, 4
    %v3806 = vor.u32 %v3802, %v3805
    %v3807 = vsel %vm163, %v3798, %v3806
    %3808 = vrot.lane.b32.xlu0 %v3807, 32
    %v3809 = vpop.permute.xlu0 %3808
    %3811 = vst.msk [vmem:[#allocation5] sm:$0xff] %vm184, %v3809
    %v3812 = vld [vmem:[#allocation2] sm:$0xf0]
    %v3813 = vld [vmem:[#allocation2 + $0x8] sm:$0xf]
    %v3816 = vrot.slane %v3812, 4
    %v3817 = vrot.slane %v3813, 4
    %v3818 = vsel %vm190, %v3816, %v3817
    %3819 = vrot.lane.b32.xlu0 %v3818, 64
    %v3820 = vpop.permute.xlu0 %3819
    %3822 = vst.msk [vmem:[#allocation5] sm:$0xff] %vm197, %v3820
    %v3823 = vld [vmem:[#allocation2] sm:$0xf0]
    %v3824 = vld [vmem:[#allocation2 + $0x8] sm:$0x1f]
    %v3826 = vshrl.u32 %v3823, 16
    %v3828 = vrot.slane %v3826, 4
    %v3829 = vshll.u32 %v3823, 16
    %v3831 = vrot.slane %v3829, 5
    %v3832 = vor.u32 %v3828, %v3831
    %v3834 = vshrl.u32 %v3824, 16
    %v3836 = vrot.slane %v3834, 4
    %v3837 = vshll.u32 %v3824, 16
    %v3839 = vrot.slane %v3837, 5
    %v3840 = vor.u32 %v3836, %v3839
    %v3841 = vsel %vm201, %v3832, %v3840
    %3842 = vrot.lane.b32.xlu0 %v3841, 96
    %v3843 = vpop.permute.xlu0 %3842
    %3845 = vst.msk [vmem:[#allocation5] sm:$0xff] %vm222, %v3843
    %v3846 = vld [vmem:[#allocation2] sm:$0xe0]
    %v3847 = vld [vmem:[#allocation2 + $0x8] sm:$0x1f]
    %v3850 = vrot.slane %v3846, 5
    %v3851 = vrot.slane %v3847, 5
    %v3852 = vsel %vm228, %v3850, %v3851
    %3854 = vst.msk [vmem:[#allocation5 + $0x8] sm:$0xff] %vm159, %v3852
    %v3855 = vld [vmem:[#allocation5] sm:$0xff]
    %v3856 = vld [vmem:[#allocation5 + $0x8] sm:$0xff]
    %v3857 = vld [vmem:[%s1] sm:$0xf]
    %v3858 = vld [vmem:[%s1 + $0x4] sm:$0xf]
    %v3859 = vld [vmem:[%s1 + $0x8] sm:$0xf]
    %v3860 = vld [vmem:[%s1 + $0xc] sm:$0xf]
    %v3861 = vld [vmem:[%s1 + $0x10] sm:$0xf]
    %v3862 = vld [vmem:[%s1 + $0x14] sm:$0xf]
    %v3863 = vld [vmem:[%s1 + $0x18] sm:$0xf]
    %v3864 = vld [vmem:[%s1 + $0x1c] sm:$0xf]
    %v3865 = vld [vmem:[%s1 + $0x20] sm:$0xf]
    %v3866 = vld [vmem:[%s1 + $0x24] sm:$0xf]
    %v3867 = vld [vmem:[%s1 + $0x28] sm:$0xf]
    %v3868 = vld [vmem:[%s1 + $0x2c] sm:$0xf]
    %v3869 = vld [vmem:[%s1 + $0x30] sm:$0xf]
    %v3870 = vld [vmem:[%s1 + $0x34] sm:$0xf]
    %v3871 = vld [vmem:[%s1 + $0x38] sm:$0xf]
    %v3872 = vld [vmem:[%s1 + $0x3c] sm:$0xf]
    %v3873 = vld [vmem:[%s1 + $0x40] sm:$0xf]
    %v3874 = vld [vmem:[%s1 + $0x44] sm:$0xf]
    %v3875 = vld [vmem:[%s1 + $0x48] sm:$0xf]
    %v3876 = vld [vmem:[%s1 + $0x4c] sm:$0xf]
    %v3897 = vunpack.c.l.b16 %v3857
    %v3898 = vunpack.c.l.b16 %v3858
    %v3899 = vunpack.c.l.b16 %v3859
    %v3900 = vunpack.c.l.b16 %v3860
    %v3901 = vunpack.c.l.b16 %v3861
    %v3902 = vunpack.c.l.b16 %v3862
    %v3903 = vunpack.c.l.b16 %v3863
    %v3904 = vunpack.c.l.b16 %v3864
    %v3905 = vunpack.c.l.b16 %v3865
    %v3906 = vunpack.c.l.b16 %v3866
    %v3907 = vunpack.c.l.b16 %v3867
    %v3908 = vunpack.c.l.b16 %v3868
    %v3909 = vunpack.c.l.b16 %v3869
    %v3910 = vunpack.c.l.b16 %v3870
    %v3911 = vunpack.c.l.b16 %v3871
    %v3912 = vunpack.c.l.b16 %v3872
    %v3913 = vunpack.c.l.b16 %v3873
    %v3914 = vunpack.c.l.b16 %v3874
    %v3915 = vunpack.c.l.b16 %v3875
    %v3916 = vunpack.c.l.b16 %v3876
    %v3917 = vpack.c.b16 %v3898, %v3897
    %v3918 = vpack.c.b16 %v3900, %v3899
    %v3919 = vpack.c.b16 %v3902, %v3901
    %v3920 = vpack.c.b16 %v3904, %v3903
    %v3921 = vpack.c.b16 %v3906, %v3905
    %v3922 = vpack.c.b16 %v3908, %v3907
    %v3923 = vpack.c.b16 %v3910, %v3909
    %v3924 = vpack.c.b16 %v3912, %v3911
    %v3925 = vpack.c.b16 %v3914, %v3913
    %v3926 = vpack.c.b16 %v3916, %v3915
    %v3938 = vsel %vm159, %v3856, 0
    %3940 = vmatprep.subr.bf16.mxu0 0
    %3941 = vmatpush1.bf16.msra.mxu0 %v3917
    %3942 = vmatprep.subr.bf16.mxu0 0
    %3943 = vmatpush1.bf16.msra.mxu0 %v3918
    %3944 = vmatprep.subr.bf16.mxu0 0
    %3945 = vmatpush1.bf16.msra.mxu0 %v3919
    %3946 = vmatprep.subr.bf16.mxu0 0
    %3947 = vmatpush1.bf16.msra.mxu0 %v3920
    %3948 = vmatprep.subr.bf16.mxu0 0
    %3949 = vmatpush1.bf16.msra.mxu0 %v3921
    %3950 = vmatprep.subr.bf16.mxu0 0
    %3951 = vmatpush1.bf16.msra.mxu0 %v3922
    %3952 = vmatprep.subr.bf16.mxu0 0
    %3953 = vmatpush1.bf16.msra.mxu0 %v3923
    %3954 = vmatprep.subr.bf16.mxu0 0
    %3955 = vmatpush1.bf16.msra.mxu0 %v3924
    %3956 = vmatprep.subr.bf16.mxu0 0
    %3957 = vmatpush1.bf16.msra.mxu0 %v3925
    %3958 = vmatprep.subr.bf16.mxu0 0
    %3959 = vmatpush1.bf16.msra.mxu0 %v3926
    %3960 = vmatprep.subr.bf16.mxu0 0
    %3961 = vmatpush1.bf16.msra.mxu0 0
    %3962 = vmatprep.subr.bf16.mxu0 0
    %3963 = vmatpush1.bf16.msra.mxu0 0
    %3964 = vmatprep.subr.bf16.mxu0 0
    %3965 = vmatpush1.bf16.msra.mxu0 0
    %3966 = vmatprep.subr.bf16.mxu0 0
    %3967 = vmatpush1.bf16.msra.mxu0 0
    %3968 = vmatprep.subr.bf16.mxu0 0
    %3969 = vmatpush1.bf16.msra.mxu0 0
    %3970 = vmatprep.subr.bf16.mxu0 0
    %3971 = vmatpush1.bf16.msra.mxu0 0
    %3972 = vmatprep.mubr.bf16.mxu0 %v3938
    %3973 = vmatmul.mubr.bf16.gmra.mrb[0].mxu0 %v3855
    %v3974 = vpop.f32.mrb[0].mxu0
    %v3975 = vadd.f32 0.0, %v3974
    %v3976 = vpop.f32.mrb[0].mxu0
    %v3977 = vpop.f32.mrb[0].mxu0
    %v3978 = vadd.f32 0.0, %v3977
    %v3979 = vpop.f32.mrb[0].mxu0
    %3980 = vdwg.mxu0
    %v3981 = vld [vmem:[%s2] sm:$0x1]
    %v3983 = vlaneseq
    %v3984 = vshrl.u32 %v3983, 7
    %v3985 = vsub.s32 0, %v3984
    %v3986 = vrot.slane %v3981, %v3985
    %v3988 = vmul.f32 %v3975, %v3986
    %v3989 = vmul.f32 %v3978, %v3986
    %v3990 = vld [vmem:[%s3] sm:$0x1]
    %v3992 = vlaneseq
    %v3993 = vshrl.u32 %v3992, 7
    %v3994 = vsub.s32 0, %v3993
    %v3995 = vrot.slane %v3990, %v3994
    %v3997 = vadd.f32 %v3988, %v3995
    %v3998 = vadd.f32 %v3989, %v3995
    %v3999 = vmax.f32 %v3997, 0.0
    %v4000 = vmax.f32 %v3998, 0.0
    %v4001 = vpack.c.bf16 %v4000, %v3999
    %v4003 = vrot.slane %v4001, 4
    %4005 = vst.msk [vmem:[#allocation3] sm:$0xf0] %vm39, %v4003
    %4006 = vst.msk [vmem:[#allocation3 + $0x8] sm:$0xf] %vm37, %v4003
    %v4007 = vld [vmem:[#allocation3] sm:$0xf8]
    %v4008 = vld [vmem:[#allocation3 + $0x8] sm:$0x7]
    %v4011 = vrot.slane %v4007, 3
    %v4012 = vrot.slane %v4008, 3
    %v4013 = vsel %vm154, %v4011, %v4012
    %4015 = vst.msk [vmem:[#allocation5] sm:$0xff] %vm159, %v4013
    %v4016 = vld [vmem:[#allocation3] sm:$0xf8]
    %v4017 = vld [vmem:[#allocation3 + $0x8] sm:$0xf]
    %v4019 = vshrl.u32 %v4016, 16
    %v4021 = vrot.slane %v4019, 3
    %v4022 = vshll.u32 %v4016, 16
    %v4024 = vrot.slane %v4022, 4
    %v4025 = vor.u32 %v4021, %v4024
    %v4027 = vshrl.u32 %v4017, 16
    %v4029 = vrot.slane %v4027, 3
    %v4030 = vshll.u32 %v4017, 16
    %v4032 = vrot.slane %v4030, 4
    %v4033 = vor.u32 %v4029, %v4032
    %v4034 = vsel %vm163, %v4025, %v4033
    %4035 = vrot.lane.b32.xlu0 %v4034, 32
    %v4036 = vpop.permute.xlu0 %4035
    %4038 = vst.msk [vmem:[#allocation5] sm:$0xff] %vm184, %v4036
    %v4039 = vld [vmem:[#allocation3] sm:$0xf0]
    %v4040 = vld [vmem:[#allocation3 + $0x8] sm:$0xf]
    %v4043 = vrot.slane %v4039, 4
    %v4044 = vrot.slane %v4040, 4
    %v4045 = vsel %vm190, %v4043, %v4044
    %4046 = vrot.lane.b32.xlu0 %v4045, 64
    %v4047 = vpop.permute.xlu0 %4046
    %4049 = vst.msk [vmem:[#allocation5] sm:$0xff] %vm197, %v4047
    %v4050 = vld [vmem:[#allocation3] sm:$0xf0]
    %v4051 = vld [vmem:[#allocation3 + $0x8] sm:$0x1f]
    %v4053 = vshrl.u32 %v4050, 16
    %v4055 = vrot.slane %v4053, 4
    %v4056 = vshll.u32 %v4050, 16
    %v4058 = vrot.slane %v4056, 5
    %v4059 = vor.u32 %v4055, %v4058
    %v4061 = vshrl.u32 %v4051, 16
    %v4063 = vrot.slane %v4061, 4
    %v4064 = vshll.u32 %v4051, 16
    %v4066 = vrot.slane %v4064, 5
    %v4067 = vor.u32 %v4063, %v4066
    %v4068 = vsel %vm201, %v4059, %v4067
    %4069 = vrot.lane.b32.xlu0 %v4068, 96
    %v4070 = vpop.permute.xlu0 %4069
    %4072 = vst.msk [vmem:[#allocation5] sm:$0xff] %vm222, %v4070
    %v4073 = vld [vmem:[#allocation3] sm:$0xe0]
    %v4074 = vld [vmem:[#allocation3 + $0x8] sm:$0x1f]
    %v4077 = vrot.slane %v4073, 5
    %v4078 = vrot.slane %v4074, 5
    %v4079 = vsel %vm228, %v4077, %v4078
    %4081 = vst.msk [vmem:[#allocation5 + $0x8] sm:$0xff] %vm159, %v4079
    %v4082 = vld [vmem:[#allocation5] sm:$0xff]
    %v4083 = vld [vmem:[#allocation5 + $0x8] sm:$0xff]
    %v4084 = vld [vmem:[%s4] sm:$0xf]
    %v4085 = vld [vmem:[%s4 + $0x4] sm:$0xf]
    %v4086 = vld [vmem:[%s4 + $0x8] sm:$0xf]
    %v4087 = vld [vmem:[%s4 + $0xc] sm:$0xf]
    %v4088 = vld [vmem:[%s4 + $0x10] sm:$0xf]
    %v4089 = vld [vmem:[%s4 + $0x14] sm:$0xf]
    %v4090 = vld [vmem:[%s4 + $0x18] sm:$0xf]
    %v4091 = vld [vmem:[%s4 + $0x1c] sm:$0xf]
    %v4092 = vld [vmem:[%s4 + $0x20] sm:$0xf]
    %v4093 = vld [vmem:[%s4 + $0x24] sm:$0xf]
    %v4094 = vld [vmem:[%s4 + $0x28] sm:$0xf]
    %v4095 = vld [vmem:[%s4 + $0x2c] sm:$0xf]
    %v4096 = vld [vmem:[%s4 + $0x30] sm:$0xf]
    %v4097 = vld [vmem:[%s4 + $0x34] sm:$0xf]
    %v4098 = vld [vmem:[%s4 + $0x38] sm:$0xf]
    %v4099 = vld [vmem:[%s4 + $0x3c] sm:$0xf]
    %v4100 = vld [vmem:[%s4 + $0x40] sm:$0xf]
    %v4101 = vld [vmem:[%s4 + $0x44] sm:$0xf]
    %v4102 = vld [vmem:[%s4 + $0x48] sm:$0xf]
    %v4103 = vld [vmem:[%s4 + $0x4c] sm:$0xf]
    %v4124 = vunpack.c.l.b16 %v4084
    %v4125 = vunpack.c.l.b16 %v4085
    %v4126 = vunpack.c.l.b16 %v4086
    %v4127 = vunpack.c.l.b16 %v4087
    %v4128 = vunpack.c.l.b16 %v4088
    %v4129 = vunpack.c.l.b16 %v4089
    %v4130 = vunpack.c.l.b16 %v4090
    %v4131 = vunpack.c.l.b16 %v4091
    %v4132 = vunpack.c.l.b16 %v4092
    %v4133 = vunpack.c.l.b16 %v4093
    %v4134 = vunpack.c.l.b16 %v4094
    %v4135 = vunpack.c.l.b16 %v4095
    %v4136 = vunpack.c.l.b16 %v4096
    %v4137 = vunpack.c.l.b16 %v4097
    %v4138 = vunpack.c.l.b16 %v4098
    %v4139 = vunpack.c.l.b16 %v4099
    %v4140 = vunpack.c.l.b16 %v4100
    %v4141 = vunpack.c.l.b16 %v4101
    %v4142 = vunpack.c.l.b16 %v4102
    %v4143 = vunpack.c.l.b16 %v4103
    %v4144 = vpack.c.b16 %v4125, %v4124
    %v4145 = vpack.c.b16 %v4127, %v4126
    %v4146 = vpack.c.b16 %v4129, %v4128
    %v4147 = vpack.c.b16 %v4131, %v4130
    %v4148 = vpack.c.b16 %v4133, %v4132
    %v4149 = vpack.c.b16 %v4135, %v4134
    %v4150 = vpack.c.b16 %v4137, %v4136
    %v4151 = vpack.c.b16 %v4139, %v4138
    %v4152 = vpack.c.b16 %v4141, %v4140
    %v4153 = vpack.c.b16 %v4143, %v4142
    %v4165 = vsel %vm159, %v4083, 0
    %4167 = vmatprep.subr.bf16.mxu0 0
    %4168 = vmatpush1.bf16.msra.mxu0 %v4144
    %4169 = vmatprep.subr.bf16.mxu0 0
    %4170 = vmatpush1.bf16.msra.mxu0 %v4145
    %4171 = vmatprep.subr.bf16.mxu0 0
    %4172 = vmatpush1.bf16.msra.mxu0 %v4146
    %4173 = vmatprep.subr.bf16.mxu0 0
    %4174 = vmatpush1.bf16.msra.mxu0 %v4147
    %4175 = vmatprep.subr.bf16.mxu0 0
    %4176 = vmatpush1.bf16.msra.mxu0 %v4148
    %4177 = vmatprep.subr.bf16.mxu0 0
    %4178 = vmatpush1.bf16.msra.mxu0 %v4149
    %4179 = vmatprep.subr.bf16.mxu0 0
    %4180 = vmatpush1.bf16.msra.mxu0 %v4150
    %4181 = vmatprep.subr.bf16.mxu0 0
    %4182 = vmatpush1.bf16.msra.mxu0 %v4151
    %4183 = vmatprep.subr.bf16.mxu0 0
    %4184 = vmatpush1.bf16.msra.mxu0 %v4152
    %4185 = vmatprep.subr.bf16.mxu0 0
    %4186 = vmatpush1.bf16.msra.mxu0 %v4153
    %4187 = vmatprep.subr.bf16.mxu0 0
    %4188 = vmatpush1.bf16.msra.mxu0 0
    %4189 = vmatprep.subr.bf16.mxu0 0
    %4190 = vmatpush1.bf16.msra.mxu0 0
    %4191 = vmatprep.subr.bf16.mxu0 0
    %4192 = vmatpush1.bf16.msra.mxu0 0
    %4193 = vmatprep.subr.bf16.mxu0 0
    %4194 = vmatpush1.bf16.msra.mxu0 0
    %4195 = vmatprep.subr.bf16.mxu0 0
    %4196 = vmatpush1.bf16.msra.mxu0 0
    %4197 = vmatprep.subr.bf16.mxu0 0
    %4198 = vmatpush1.bf16.msra.mxu0 0
    %4199 = vmatprep.mubr.bf16.mxu0 %v4165
    %4200 = vmatmul.mubr.bf16.gmra.mrb[0].mxu0 %v4082
    %v4201 = vpop.f32.mrb[0].mxu0
    %v4202 = vadd.f32 0.0, %v4201
    %v4203 = vpop.f32.mrb[0].mxu0
    %v4204 = vpop.f32.mrb[0].mxu0
    %v4205 = vadd.f32 0.0, %v4204
    %v4206 = vpop.f32.mrb[0].mxu0
    %4207 = vdwg.mxu0
    %v4208 = vld [vmem:[%s5] sm:$0x1]
    %v4210 = vlaneseq
    %v4211 = vshrl.u32 %v4210, 7
    %v4212 = vsub.s32 0, %v4211
    %v4213 = vrot.slane %v4208, %v4212
    %v4215 = vmul.f32 %v4202, %v4213
    %v4216 = vmul.f32 %v4205, %v4213
    %v4217 = vld [vmem:[%s6] sm:$0x1]
    %v4219 = vlaneseq
    %v4220 = vshrl.u32 %v4219, 7
    %v4221 = vsub.s32 0, %v4220
    %v4222 = vrot.slane %v4217, %v4221
    %v4224 = vadd.f32 %v4215, %v4222
    %v4225 = vadd.f32 %v4216, %v4222
    %v4226 = vmax.f32 %v4224, 0.0
    %v4227 = vmax.f32 %v4225, 0.0
    %v4228 = vpack.c.bf16 %v4227, %v4226
    %v4230 = vrot.slane %v4228, 4
    %4232 = vst.msk [vmem:[#allocation4] sm:$0xf0] %vm39, %v4230
    %4233 = vst.msk [vmem:[#allocation4 + $0x8] sm:$0xf] %vm37, %v4230
    %v4234 = vld [vmem:[#allocation4] sm:$0xf8]
    %v4235 = vld [vmem:[#allocation4 + $0x8] sm:$0x7]
    %v4238 = vrot.slane %v4234, 3
    %v4239 = vrot.slane %v4235, 3
    %v4240 = vsel %vm154, %v4238, %v4239
    %4242 = vst.msk [vmem:[#allocation5] sm:$0xff] %vm159, %v4240
    %v4243 = vld [vmem:[#allocation4] sm:$0xf8]
    %v4244 = vld [vmem:[#allocation4 + $0x8] sm:$0xf]
    %v4246 = vshrl.u32 %v4243, 16
    %v4248 = vrot.slane %v4246, 3
    %v4249 = vshll.u32 %v4243, 16
    %v4251 = vrot.slane %v4249, 4
    %v4252 = vor.u32 %v4248, %v4251
    %v4254 = vshrl.u32 %v4244, 16
    %v4256 = vrot.slane %v4254, 3
    %v4257 = vshll.u32 %v4244, 16
    %v4259 = vrot.slane %v4257, 4
    %v4260 = vor.u32 %v4256, %v4259
    %v4261 = vsel %vm163, %v4252, %v4260
    %4262 = vrot.lane.b32.xlu0 %v4261, 32
    %v4263 = vpop.permute.xlu0 %4262
    %4265 = vst.msk [vmem:[#allocation5] sm:$0xff] %vm184, %v4263
    %v4266 = vld [vmem:[#allocation4] sm:$0xf0]
    %v4267 = vld [vmem:[#allocation4 + $0x8] sm:$0xf]
    %v4270 = vrot.slane %v4266, 4
    %v4271 = vrot.slane %v4267, 4
    %v4272 = vsel %vm190, %v4270, %v4271
    %4273 = vrot.lane.b32.xlu0 %v4272, 64
    %v4274 = vpop.permute.xlu0 %4273
    %4276 = vst.msk [vmem:[#allocation5] sm:$0xff] %vm197, %v4274
    %v4277 = vld [vmem:[#allocation4] sm:$0xf0]
    %v4278 = vld [vmem:[#allocation4 + $0x8] sm:$0x1f]
    %v4280 = vshrl.u32 %v4277, 16
    %v4282 = vrot.slane %v4280, 4
    %v4283 = vshll.u32 %v4277, 16
    %v4285 = vrot.slane %v4283, 5
    %v4286 = vor.u32 %v4282, %v4285
    %v4288 = vshrl.u32 %v4278, 16
    %v4290 = vrot.slane %v4288, 4
    %v4291 = vshll.u32 %v4278, 16
    %v4293 = vrot.slane %v4291, 5
    %v4294 = vor.u32 %v4290, %v4293
    %v4295 = vsel %vm201, %v4286, %v4294
    %4296 = vrot.lane.b32.xlu0 %v4295, 96
    %v4297 = vpop.permute.xlu0 %4296
    %4299 = vst.msk [vmem:[#allocation5] sm:$0xff] %vm222, %v4297
    %v4300 = vld [vmem:[#allocation4] sm:$0xe0]
    %v4301 = vld [vmem:[#allocation4 + $0x8] sm:$0x1f]
    %v4304 = vrot.slane %v4300, 5
    %v4305 = vrot.slane %v4301, 5
    %v4306 = vsel %vm228, %v4304, %v4305
    %4308 = vst.msk [vmem:[#allocation5 + $0x8] sm:$0xff] %vm159, %v4306
    %v4309 = vld [vmem:[#allocation5] sm:$0xff]
    %v4310 = vld [vmem:[#allocation5 + $0x8] sm:$0xff]
    %v4311 = vld [vmem:[%s7] sm:$0xf]
    %v4312 = vld [vmem:[%s7 + $0x4] sm:$0xf]
    %v4313 = vld [vmem:[%s7 + $0x8] sm:$0xf]
    %v4314 = vld [vmem:[%s7 + $0xc] sm:$0xf]
    %v4315 = vld [vmem:[%s7 + $0x10] sm:$0xf]
    %v4316 = vld [vmem:[%s7 + $0x14] sm:$0xf]
    %v4317 = vld [vmem:[%s7 + $0x18] sm:$0xf]
    %v4318 = vld [vmem:[%s7 + $0x1c] sm:$0xf]
    %v4319 = vld [vmem:[%s7 + $0x20] sm:$0xf]
    %v4320 = vld [vmem:[%s7 + $0x24] sm:$0xf]
    %v4321 = vld [vmem:[%s7 + $0x28] sm:$0xf]
    %v4322 = vld [vmem:[%s7 + $0x2c] sm:$0xf]
    %v4323 = vld [vmem:[%s7 + $0x30] sm:$0xf]
    %v4324 = vld [vmem:[%s7 + $0x34] sm:$0xf]
    %v4325 = vld [vmem:[%s7 + $0x38] sm:$0xf]
    %v4326 = vld [vmem:[%s7 + $0x3c] sm:$0xf]
    %v4327 = vld [vmem:[%s7 + $0x40] sm:$0xf]
    %v4328 = vld [vmem:[%s7 + $0x44] sm:$0xf]
    %v4329 = vld [vmem:[%s7 + $0x48] sm:$0xf]
    %v4330 = vld [vmem:[%s7 + $0x4c] sm:$0xf]
    %v4351 = vunpack.c.l.b16 %v4311
    %v4352 = vunpack.c.l.b16 %v4312
    %v4353 = vunpack.c.l.b16 %v4313
    %v4354 = vunpack.c.l.b16 %v4314
    %v4355 = vunpack.c.l.b16 %v4315
    %v4356 = vunpack.c.l.b16 %v4316
    %v4357 = vunpack.c.l.b16 %v4317
    %v4358 = vunpack.c.l.b16 %v4318
    %v4359 = vunpack.c.l.b16 %v4319
    %v4360 = vunpack.c.l.b16 %v4320
    %v4361 = vunpack.c.l.b16 %v4321
    %v4362 = vunpack.c.l.b16 %v4322
    %v4363 = vunpack.c.l.b16 %v4323
    %v4364 = vunpack.c.l.b16 %v4324
    %v4365 = vunpack.c.l.b16 %v4325
    %v4366 = vunpack.c.l.b16 %v4326
    %v4367 = vunpack.c.l.b16 %v4327
    %v4368 = vunpack.c.l.b16 %v4328
    %v4369 = vunpack.c.l.b16 %v4329
    %v4370 = vunpack.c.l.b16 %v4330
    %v4371 = vpack.c.b16 %v4352, %v4351
    %v4372 = vpack.c.b16 %v4354, %v4353
    %v4373 = vpack.c.b16 %v4356, %v4355
    %v4374 = vpack.c.b16 %v4358, %v4357
    %v4375 = vpack.c.b16 %v4360, %v4359
    %v4376 = vpack.c.b16 %v4362, %v4361
    %v4377 = vpack.c.b16 %v4364, %v4363
    %v4378 = vpack.c.b16 %v4366, %v4365
    %v4379 = vpack.c.b16 %v4368, %v4367
    %v4380 = vpack.c.b16 %v4370, %v4369
    %v4392 = vsel %vm159, %v4310, 0
    %4394 = vmatprep.subr.bf16.mxu0 0
    %4395 = vmatpush1.bf16.msra.mxu0 %v4371
    %4396 = vmatprep.subr.bf16.mxu0 0
    %4397 = vmatpush1.bf16.msra.mxu0 %v4372
    %4398 = vmatprep.subr.bf16.mxu0 0
    %4399 = vmatpush1.bf16.msra.mxu0 %v4373
    %4400 = vmatprep.subr.bf16.mxu0 0
    %4401 = vmatpush1.bf16.msra.mxu0 %v4374
    %4402 = vmatprep.subr.bf16.mxu0 0
    %4403 = vmatpush1.bf16.msra.mxu0 %v4375
    %4404 = vmatprep.subr.bf16.mxu0 0
    %4405 = vmatpush1.bf16.msra.mxu0 %v4376
    %4406 = vmatprep.subr.bf16.mxu0 0
    %4407 = vmatpush1.bf16.msra.mxu0 %v4377
    %4408 = vmatprep.subr.bf16.mxu0 0
    %4409 = vmatpush1.bf16.msra.mxu0 %v4378
    %4410 = vmatprep.subr.bf16.mxu0 0
    %4411 = vmatpush1.bf16.msra.mxu0 %v4379
    %4412 = vmatprep.subr.bf16.mxu0 0
    %4413 = vmatpush1.bf16.msra.mxu0 %v4380
    %4414 = vmatprep.subr.bf16.mxu0 0
    %4415 = vmatpush1.bf16.msra.mxu0 0
    %4416 = vmatprep.subr.bf16.mxu0 0
    %4417 = vmatpush1.bf16.msra.mxu0 0
    %4418 = vmatprep.subr.bf16.mxu0 0
    %4419 = vmatpush1.bf16.msra.mxu0 0
    %4420 = vmatprep.subr.bf16.mxu0 0
    %4421 = vmatpush1.bf16.msra.mxu0 0
    %4422 = vmatprep.subr.bf16.mxu0 0
    %4423 = vmatpush1.bf16.msra.mxu0 0
    %4424 = vmatprep.subr.bf16.mxu0 0
    %4425 = vmatpush1.bf16.msra.mxu0 0
    %4426 = vmatprep.mubr.bf16.mxu0 %v4392
    %4427 = vmatmul.mubr.bf16.gmra.mrb[0].mxu0 %v4309
    %v4428 = vpop.f32.mrb[0].mxu0
    %v4429 = vadd.f32 0.0, %v4428
    %v4430 = vpop.f32.mrb[0].mxu0
    %v4431 = vpop.f32.mrb[0].mxu0
    %v4432 = vadd.f32 0.0, %v4431
    %v4433 = vpop.f32.mrb[0].mxu0
    %4434 = vdwg.mxu0
    %v4435 = vld [vmem:[%s8] sm:$0x1]
    %v4437 = vlaneseq
    %v4438 = vshrl.u32 %v4437, 7
    %v4439 = vsub.s32 0, %v4438
    %v4440 = vrot.slane %v4435, %v4439
    %v4442 = vmul.f32 %v4429, %v4440
    %v4443 = vmul.f32 %v4432, %v4440
    %v4444 = vld [vmem:[%s9] sm:$0x1]
    %v4446 = vlaneseq
    %v4447 = vshrl.u32 %v4446, 7
    %v4448 = vsub.s32 0, %v4447
    %v4449 = vrot.slane %v4444, %v4448
    %v4451 = vadd.f32 %v4442, %v4449
    %v4452 = vadd.f32 %v4443, %v4449
    %v4453 = vmax.f32 %v4451, 0.0
    %v4454 = vmax.f32 %v4452, 0.0
    %v4457 = vcombine.high %v4453, %v4453
    %v4459 = vunpack.c.l.s4 1966171168
    %v4460 = vunpack.c.0.s8 %v4459
    %v4461 = vlaneseq
    %v4462 = vshrl.u32 %v4461, 7
    %v4463 = vsub.s32 %v4460, %v4462
    %v4464 = vrot.slane %v4453, %v4463
    %v4466 = vunpack.c.l.s4 1966171168
    %v4467 = vunpack.c.0.s8 %v4466
    %v4468 = vlaneseq
    %v4469 = vshrl.u32 %v4468, 7
    %v4470 = vsub.s32 %v4467, %v4469
    %v4471 = vrot.slane %v4457, %v4470
    %v4472 = vcombine.high %v4464, %v4464
    %v4473 = vcombine.high %v4471, %v4471
    %v4475 = vunpack.c.l.s4 1966171168
    %v4476 = vunpack.c.0.s8 %v4475
    %v4477 = vlaneseq
    %v4478 = vshrl.u32 %v4477, 7
    %v4479 = vsub.s32 %v4476, %v4478
    %v4480 = vrot.slane %v4464, %v4479
    %v4482 = vunpack.c.l.s4 1966171168
    %v4483 = vunpack.c.0.s8 %v4482
    %v4484 = vlaneseq
    %v4485 = vshrl.u32 %v4484, 7
    %v4486 = vsub.s32 %v4483, %v4485
    %v4487 = vrot.slane %v4471, %v4486
    %v4489 = vunpack.c.l.s4 1966171168
    %v4490 = vunpack.c.0.s8 %v4489
    %v4491 = vlaneseq
    %v4492 = vshrl.u32 %v4491, 7
    %v4493 = vsub.s32 %v4490, %v4492
    %v4494 = vrot.slane %v4472, %v4493
    %v4496 = vunpack.c.l.s4 1966171168
    %v4497 = vunpack.c.0.s8 %v4496
    %v4498 = vlaneseq
    %v4499 = vshrl.u32 %v4498, 7
    %v4500 = vsub.s32 %v4497, %v4499
    %v4501 = vrot.slane %v4473, %v4500
    %v4502 = vcombine.high %v4480, %v4480
    %v4503 = vcombine.high %v4487, %v4487
    %v4504 = vcombine.high %v4494, %v4494
    %v4505 = vcombine.high %v4501, %v4501
    %v4506 = vcombine.high %v4454, %v4454
    %v4508 = vunpack.c.l.s4 1966171168
    %v4509 = vunpack.c.0.s8 %v4508
    %v4510 = vlaneseq
    %v4511 = vshrl.u32 %v4510, 7
    %v4512 = vsub.s32 %v4509, %v4511
    %v4513 = vrot.slane %v4454, %v4512
    %v4515 = vunpack.c.l.s4 1966171168
    %v4516 = vunpack.c.0.s8 %v4515
    %v4517 = vlaneseq
    %v4518 = vshrl.u32 %v4517, 7
    %v4519 = vsub.s32 %v4516, %v4518
    %v4520 = vrot.slane %v4506, %v4519
    %v4521 = vcombine.high %v4513, %v4513
    %v4522 = vcombine.high %v4520, %v4520
    %v4524 = vunpack.c.l.s4 1966171168
    %v4525 = vunpack.c.0.s8 %v4524
    %v4526 = vlaneseq
    %v4527 = vshrl.u32 %v4526, 7
    %v4528 = vsub.s32 %v4525, %v4527
    %v4529 = vrot.slane %v4513, %v4528
    %v4531 = vunpack.c.l.s4 1966171168
    %v4532 = vunpack.c.0.s8 %v4531
    %v4533 = vlaneseq
    %v4534 = vshrl.u32 %v4533, 7
    %v4535 = vsub.s32 %v4532, %v4534
    %v4536 = vrot.slane %v4520, %v4535
    %v4538 = vunpack.c.l.s4 1966171168
    %v4539 = vunpack.c.0.s8 %v4538
    %v4540 = vlaneseq
    %v4541 = vshrl.u32 %v4540, 7
    %v4542 = vsub.s32 %v4539, %v4541
    %v4543 = vrot.slane %v4521, %v4542
    %v4545 = vunpack.c.l.s4 1966171168
    %v4546 = vunpack.c.0.s8 %v4545
    %v4547 = vlaneseq
    %v4548 = vshrl.u32 %v4547, 7
    %v4549 = vsub.s32 %v4546, %v4548
    %v4550 = vrot.slane %v4522, %v4549
    %v4551 = vcombine.high %v4529, %v4529
    %v4552 = vcombine.high %v4536, %v4536
    %v4553 = vcombine.high %v4543, %v4543
    %v4554 = vcombine.high %v4550, %v4550
    %4571 = vst.msk [vmem:[#allocation6 + $0x4] sm:$0x1] %vm950, %v4480
    %4572 = vst.msk [vmem:[#allocation6 + $0xc] sm:$0x1] %vm950, %v4494
    %4573 = vst.msk [vmem:[#allocation6 + $0x14] sm:$0x1] %vm950, %v4502
    %4574 = vst.msk [vmem:[#allocation6 + $0x1c] sm:$0x1] %vm950, %v4504
    %4575 = vst.msk [vmem:[#allocation6 + $0x24] sm:$0x1] %vm950, %v4487
    %4576 = vst.msk [vmem:[#allocation6 + $0x2c] sm:$0x1] %vm950, %v4501
    %4577 = vst.msk [vmem:[#allocation6 + $0x34] sm:$0x1] %vm950, %v4503
    %4578 = vst.msk [vmem:[#allocation6 + $0x3c] sm:$0x1] %vm950, %v4505
    %4579 = vst.msk [vmem:[#allocation6 + $0x44] sm:$0x1] %vm950, %v4529
    %4580 = vst.msk [vmem:[#allocation6 + $0x4c] sm:$0x1] %vm950, %v4543
    %4581 = vst.msk [vmem:[#allocation6 + $0x54] sm:$0x1] %vm950, %v4551
    %4582 = vst.msk [vmem:[#allocation6 + $0x5c] sm:$0x1] %vm950, %v4553
    %4583 = vst.msk [vmem:[#allocation6 + $0x64] sm:$0x1] %vm950, %v4536
    %4584 = vst.msk [vmem:[#allocation6 + $0x6c] sm:$0x1] %vm950, %v4550
    %4585 = vst.msk [vmem:[#allocation6 + $0x74] sm:$0x1] %vm950, %v4552
    %4586 = vst.msk [vmem:[#allocation6 + $0x7c] sm:$0x1] %vm950, %v4554
    %v4587 = vld [vmem:[%s0 + $0x5] sm:$0x1]
    %v4588 = vld [vmem:[%s0 + $0xd] sm:$0x1]
    %v4589 = vld [vmem:[%s0 + $0x15] sm:$0x1]
    %v4590 = vld [vmem:[%s0 + $0x1d] sm:$0x1]
    %v4591 = vld [vmem:[%s0 + $0x25] sm:$0x1]
    %v4592 = vld [vmem:[%s0 + $0x2d] sm:$0x1]
    %v4593 = vld [vmem:[%s0 + $0x35] sm:$0x1]
    %v4594 = vld [vmem:[%s0 + $0x3d] sm:$0x1]
    %v4595 = vld [vmem:[%s0 + $0x45] sm:$0x1]
    %v4596 = vld [vmem:[%s0 + $0x4d] sm:$0x1]
    %v4597 = vld [vmem:[%s0 + $0x55] sm:$0x1]
    %v4598 = vld [vmem:[%s0 + $0x5d] sm:$0x1]
    %v4599 = vld [vmem:[%s0 + $0x65] sm:$0x1]
    %v4600 = vld [vmem:[%s0 + $0x6d] sm:$0x1]
    %v4601 = vld [vmem:[%s0 + $0x75] sm:$0x1]
    %v4602 = vld [vmem:[%s0 + $0x7d] sm:$0x1]
    %v4603 = vpack.c.bf16 %v4587, %v4587
    %v4604 = vpack.c.bf16 %v4588, %v4588
    %v4605 = vpack.c.bf16 %v4589, %v4589
    %v4606 = vpack.c.bf16 %v4590, %v4590
    %v4607 = vpack.c.bf16 %v4591, %v4591
    %v4608 = vpack.c.bf16 %v4592, %v4592
    %v4609 = vpack.c.bf16 %v4593, %v4593
    %v4610 = vpack.c.bf16 %v4594, %v4594
    %v4611 = vpack.c.bf16 %v4595, %v4595
    %v4612 = vpack.c.bf16 %v4596, %v4596
    %v4613 = vpack.c.bf16 %v4597, %v4597
    %v4614 = vpack.c.bf16 %v4598, %v4598
    %v4615 = vpack.c.bf16 %v4599, %v4599
    %v4616 = vpack.c.bf16 %v4600, %v4600
    %v4617 = vpack.c.bf16 %v4601, %v4601
    %v4618 = vpack.c.bf16 %v4602, %v4602
    %v4635 = vunpack.c.l.b16 %v4603
    %v4636 = vunpack.c.l.b16 %v4604
    %v4637 = vunpack.c.l.b16 %v4605
    %v4638 = vunpack.c.l.b16 %v4606
    %v4639 = vunpack.c.l.b16 %v4607
    %v4640 = vunpack.c.l.b16 %v4608
    %v4641 = vunpack.c.l.b16 %v4609
    %v4642 = vunpack.c.l.b16 %v4610
    %v4643 = vunpack.c.l.b16 %v4611
    %v4644 = vunpack.c.l.b16 %v4612
    %v4645 = vunpack.c.l.b16 %v4613
    %v4646 = vunpack.c.l.b16 %v4614
    %v4647 = vunpack.c.l.b16 %v4615
    %v4648 = vunpack.c.l.b16 %v4616
    %v4649 = vunpack.c.l.b16 %v4617
    %v4650 = vunpack.c.l.b16 %v4618
    %v4651 = vrot.slane %v4636, 7
    %v4652 = vsel %vm110, %v4651, %v4635
    %v4653 = vrot.slane %v4637, 6
    %v4654 = vsel %vm113, %v4653, %v4652
    %v4655 = vrot.slane %v4638, 5
    %v4656 = vsel %vm116, %v4655, %v4654
    %v4657 = vrot.slane %v4639, 4
    %v4658 = vsel %vm119, %v4657, %v4656
    %v4659 = vrot.slane %v4640, 3
    %v4660 = vsel %vm122, %v4659, %v4658
    %v4661 = vrot.slane %v4641, 2
    %v4662 = vsel %vm125, %v4661, %v4660
    %v4663 = vrot.slane %v4642, 1
    %v4664 = vsel %vm128, %v4663, %v4662
    %v4665 = vrot.slane %v4644, 7
    %v4666 = vsel %vm110, %v4665, %v4643
    %v4667 = vrot.slane %v4645, 6
    %v4668 = vsel %vm113, %v4667, %v4666
    %v4669 = vrot.slane %v4646, 5
    %v4670 = vsel %vm116, %v4669, %v4668
    %v4671 = vrot.slane %v4647, 4
    %v4672 = vsel %vm119, %v4671, %v4670
    %v4673 = vrot.slane %v4648, 3
    %v4674 = vsel %vm122, %v4673, %v4672
    %v4675 = vrot.slane %v4649, 2
    %v4676 = vsel %vm125, %v4675, %v4674
    %v4677 = vrot.slane %v4650, 1
    %v4678 = vsel %vm128, %v4677, %v4676
    %v4679 = vpack.c.b16 %v4664, %v4664
    %v4680 = vpack.c.b16 %v4678, %v4678
    %4683 = vst.msk [vmem:[#allocation2] sm:$0xf0] %vm39, %v4679
    %4684 = vst.msk [vmem:[#allocation2 + $0x8] sm:$0xf] %vm37, %v4680
    %v4685 = vld [vmem:[#allocation2] sm:$0xf8]
    %v4686 = vld [vmem:[#allocation2 + $0x8] sm:$0x7]
    %v4689 = vrot.slane %v4685, 3
    %v4690 = vrot.slane %v4686, 3
    %v4691 = vsel %vm154, %v4689, %v4690
    %4693 = vst.msk [vmem:[#allocation5] sm:$0xff] %vm159, %v4691
    %v4694 = vld [vmem:[#allocation2] sm:$0xf8]
    %v4695 = vld [vmem:[#allocation2 + $0x8] sm:$0xf]
    %v4697 = vshrl.u32 %v4694, 16
    %v4699 = vrot.slane %v4697, 3
    %v4700 = vshll.u32 %v4694, 16
    %v4702 = vrot.slane %v4700, 4
    %v4703 = vor.u32 %v4699, %v4702
    %v4705 = vshrl.u32 %v4695, 16
    %v4707 = vrot.slane %v4705, 3
    %v4708 = vshll.u32 %v4695, 16
    %v4710 = vrot.slane %v4708, 4
    %v4711 = vor.u32 %v4707, %v4710
    %v4712 = vsel %vm163, %v4703, %v4711
    %4713 = vrot.lane.b32.xlu0 %v4712, 32
    %v4714 = vpop.permute.xlu0 %4713
    %4716 = vst.msk [vmem:[#allocation5] sm:$0xff] %vm184, %v4714
    %v4717 = vld [vmem:[#allocation2] sm:$0xf0]
    %v4718 = vld [vmem:[#allocation2 + $0x8] sm:$0xf]
    %v4721 = vrot.slane %v4717, 4
    %v4722 = vrot.slane %v4718, 4
    %v4723 = vsel %vm190, %v4721, %v4722
    %4724 = vrot.lane.b32.xlu0 %v4723, 64
    %v4725 = vpop.permute.xlu0 %4724
    %4727 = vst.msk [vmem:[#allocation5] sm:$0xff] %vm197, %v4725
    %v4728 = vld [vmem:[#allocation2] sm:$0xf0]
    %v4729 = vld [vmem:[#allocation2 + $0x8] sm:$0x1f]
    %v4731 = vshrl.u32 %v4728, 16
    %v4733 = vrot.slane %v4731, 4
    %v4734 = vshll.u32 %v4728, 16
    %v4736 = vrot.slane %v4734, 5
    %v4737 = vor.u32 %v4733, %v4736
    %v4739 = vshrl.u32 %v4729, 16
    %v4741 = vrot.slane %v4739, 4
    %v4742 = vshll.u32 %v4729, 16
    %v4744 = vrot.slane %v4742, 5
    %v4745 = vor.u32 %v4741, %v4744
    %v4746 = vsel %vm201, %v4737, %v4745
    %4747 = vrot.lane.b32.xlu0 %v4746, 96
    %v4748 = vpop.permute.xlu0 %4747
    %4750 = vst.msk [vmem:[#allocation5] sm:$0xff] %vm222, %v4748
    %v4751 = vld [vmem:[#allocation2] sm:$0xe0]
    %v4752 = vld [vmem:[#allocation2 + $0x8] sm:$0x1f]
    %v4755 = vrot.slane %v4751, 5
    %v4756 = vrot.slane %v4752, 5
    %v4757 = vsel %vm228, %v4755, %v4756
    %4759 = vst.msk [vmem:[#allocation5 + $0x8] sm:$0xff] %vm159, %v4757
    %v4760 = vld [vmem:[#allocation5] sm:$0xff]
    %v4761 = vld [vmem:[#allocation5 + $0x8] sm:$0xff]
    %v4762 = vld [vmem:[%s1] sm:$0xf]
    %v4763 = vld [vmem:[%s1 + $0x4] sm:$0xf]
    %v4764 = vld [vmem:[%s1 + $0x8] sm:$0xf]
    %v4765 = vld [vmem:[%s1 + $0xc] sm:$0xf]
    %v4766 = vld [vmem:[%s1 + $0x10] sm:$0xf]
    %v4767 = vld [vmem:[%s1 + $0x14] sm:$0xf]
    %v4768 = vld [vmem:[%s1 + $0x18] sm:$0xf]
    %v4769 = vld [vmem:[%s1 + $0x1c] sm:$0xf]
    %v4770 = vld [vmem:[%s1 + $0x20] sm:$0xf]
    %v4771 = vld [vmem:[%s1 + $0x24] sm:$0xf]
    %v4772 = vld [vmem:[%s1 + $0x28] sm:$0xf]
    %v4773 = vld [vmem:[%s1 + $0x2c] sm:$0xf]
    %v4774 = vld [vmem:[%s1 + $0x30] sm:$0xf]
    %v4775 = vld [vmem:[%s1 + $0x34] sm:$0xf]
    %v4776 = vld [vmem:[%s1 + $0x38] sm:$0xf]
    %v4777 = vld [vmem:[%s1 + $0x3c] sm:$0xf]
    %v4778 = vld [vmem:[%s1 + $0x40] sm:$0xf]
    %v4779 = vld [vmem:[%s1 + $0x44] sm:$0xf]
    %v4780 = vld [vmem:[%s1 + $0x48] sm:$0xf]
    %v4781 = vld [vmem:[%s1 + $0x4c] sm:$0xf]
    %v4802 = vunpack.c.l.b16 %v4762
    %v4803 = vunpack.c.l.b16 %v4763
    %v4804 = vunpack.c.l.b16 %v4764
    %v4805 = vunpack.c.l.b16 %v4765
    %v4806 = vunpack.c.l.b16 %v4766
    %v4807 = vunpack.c.l.b16 %v4767
    %v4808 = vunpack.c.l.b16 %v4768
    %v4809 = vunpack.c.l.b16 %v4769
    %v4810 = vunpack.c.l.b16 %v4770
    %v4811 = vunpack.c.l.b16 %v4771
    %v4812 = vunpack.c.l.b16 %v4772
    %v4813 = vunpack.c.l.b16 %v4773
    %v4814 = vunpack.c.l.b16 %v4774
    %v4815 = vunpack.c.l.b16 %v4775
    %v4816 = vunpack.c.l.b16 %v4776
    %v4817 = vunpack.c.l.b16 %v4777
    %v4818 = vunpack.c.l.b16 %v4778
    %v4819 = vunpack.c.l.b16 %v4779
    %v4820 = vunpack.c.l.b16 %v4780
    %v4821 = vunpack.c.l.b16 %v4781
    %v4822 = vpack.c.b16 %v4803, %v4802
    %v4823 = vpack.c.b16 %v4805, %v4804
    %v4824 = vpack.c.b16 %v4807, %v4806
    %v4825 = vpack.c.b16 %v4809, %v4808
    %v4826 = vpack.c.b16 %v4811, %v4810
    %v4827 = vpack.c.b16 %v4813, %v4812
    %v4828 = vpack.c.b16 %v4815, %v4814
    %v4829 = vpack.c.b16 %v4817, %v4816
    %v4830 = vpack.c.b16 %v4819, %v4818
    %v4831 = vpack.c.b16 %v4821, %v4820
    %v4843 = vsel %vm159, %v4761, 0
    %4845 = vmatprep.subr.bf16.mxu0 0
    %4846 = vmatpush1.bf16.msra.mxu0 %v4822
    %4847 = vmatprep.subr.bf16.mxu0 0
    %4848 = vmatpush1.bf16.msra.mxu0 %v4823
    %4849 = vmatprep.subr.bf16.mxu0 0
    %4850 = vmatpush1.bf16.msra.mxu0 %v4824
    %4851 = vmatprep.subr.bf16.mxu0 0
    %4852 = vmatpush1.bf16.msra.mxu0 %v4825
    %4853 = vmatprep.subr.bf16.mxu0 0
    %4854 = vmatpush1.bf16.msra.mxu0 %v4826
    %4855 = vmatprep.subr.bf16.mxu0 0
    %4856 = vmatpush1.bf16.msra.mxu0 %v4827
    %4857 = vmatprep.subr.bf16.mxu0 0
    %4858 = vmatpush1.bf16.msra.mxu0 %v4828
    %4859 = vmatprep.subr.bf16.mxu0 0
    %4860 = vmatpush1.bf16.msra.mxu0 %v4829
    %4861 = vmatprep.subr.bf16.mxu0 0
    %4862 = vmatpush1.bf16.msra.mxu0 %v4830
    %4863 = vmatprep.subr.bf16.mxu0 0
    %4864 = vmatpush1.bf16.msra.mxu0 %v4831
    %4865 = vmatprep.subr.bf16.mxu0 0
    %4866 = vmatpush1.bf16.msra.mxu0 0
    %4867 = vmatprep.subr.bf16.mxu0 0
    %4868 = vmatpush1.bf16.msra.mxu0 0
    %4869 = vmatprep.subr.bf16.mxu0 0
    %4870 = vmatpush1.bf16.msra.mxu0 0
    %4871 = vmatprep.subr.bf16.mxu0 0
    %4872 = vmatpush1.bf16.msra.mxu0 0
    %4873 = vmatprep.subr.bf16.mxu0 0
    %4874 = vmatpush1.bf16.msra.mxu0 0
    %4875 = vmatprep.subr.bf16.mxu0 0
    %4876 = vmatpush1.bf16.msra.mxu0 0
    %4877 = vmatprep.mubr.bf16.mxu0 %v4843
    %4878 = vmatmul.mubr.bf16.gmra.mrb[0].mxu0 %v4760
    %v4879 = vpop.f32.mrb[0].mxu0
    %v4880 = vadd.f32 0.0, %v4879
    %v4881 = vpop.f32.mrb[0].mxu0
    %v4882 = vpop.f32.mrb[0].mxu0
    %v4883 = vadd.f32 0.0, %v4882
    %v4884 = vpop.f32.mrb[0].mxu0
    %4885 = vdwg.mxu0
    %v4886 = vld [vmem:[%s2] sm:$0x1]
    %v4888 = vlaneseq
    %v4889 = vshrl.u32 %v4888, 7
    %v4890 = vsub.s32 0, %v4889
    %v4891 = vrot.slane %v4886, %v4890
    %v4893 = vmul.f32 %v4880, %v4891
    %v4894 = vmul.f32 %v4883, %v4891
    %v4895 = vld [vmem:[%s3] sm:$0x1]
    %v4897 = vlaneseq
    %v4898 = vshrl.u32 %v4897, 7
    %v4899 = vsub.s32 0, %v4898
    %v4900 = vrot.slane %v4895, %v4899
    %v4902 = vadd.f32 %v4893, %v4900
    %v4903 = vadd.f32 %v4894, %v4900
    %v4904 = vmax.f32 %v4902, 0.0
    %v4905 = vmax.f32 %v4903, 0.0
    %v4906 = vpack.c.bf16 %v4905, %v4904
    %v4908 = vrot.slane %v4906, 4
    %4910 = vst.msk [vmem:[#allocation3] sm:$0xf0] %vm39, %v4908
    %4911 = vst.msk [vmem:[#allocation3 + $0x8] sm:$0xf] %vm37, %v4908
    %v4912 = vld [vmem:[#allocation3] sm:$0xf8]
    %v4913 = vld [vmem:[#allocation3 + $0x8] sm:$0x7]
    %v4916 = vrot.slane %v4912, 3
    %v4917 = vrot.slane %v4913, 3
    %v4918 = vsel %vm154, %v4916, %v4917
    %4920 = vst.msk [vmem:[#allocation5] sm:$0xff] %vm159, %v4918
    %v4921 = vld [vmem:[#allocation3] sm:$0xf8]
    %v4922 = vld [vmem:[#allocation3 + $0x8] sm:$0xf]
    %v4924 = vshrl.u32 %v4921, 16
    %v4926 = vrot.slane %v4924, 3
    %v4927 = vshll.u32 %v4921, 16
    %v4929 = vrot.slane %v4927, 4
    %v4930 = vor.u32 %v4926, %v4929
    %v4932 = vshrl.u32 %v4922, 16
    %v4934 = vrot.slane %v4932, 3
    %v4935 = vshll.u32 %v4922, 16
    %v4937 = vrot.slane %v4935, 4
    %v4938 = vor.u32 %v4934, %v4937
    %v4939 = vsel %vm163, %v4930, %v4938
    %4940 = vrot.lane.b32.xlu0 %v4939, 32
    %v4941 = vpop.permute.xlu0 %4940
    %4943 = vst.msk [vmem:[#allocation5] sm:$0xff] %vm184, %v4941
    %v4944 = vld [vmem:[#allocation3] sm:$0xf0]
    %v4945 = vld [vmem:[#allocation3 + $0x8] sm:$0xf]
    %v4948 = vrot.slane %v4944, 4
    %v4949 = vrot.slane %v4945, 4
    %v4950 = vsel %vm190, %v4948, %v4949
    %4951 = vrot.lane.b32.xlu0 %v4950, 64
    %v4952 = vpop.permute.xlu0 %4951
    %4954 = vst.msk [vmem:[#allocation5] sm:$0xff] %vm197, %v4952
    %v4955 = vld [vmem:[#allocation3] sm:$0xf0]
    %v4956 = vld [vmem:[#allocation3 + $0x8] sm:$0x1f]
    %v4958 = vshrl.u32 %v4955, 16
    %v4960 = vrot.slane %v4958, 4
    %v4961 = vshll.u32 %v4955, 16
    %v4963 = vrot.slane %v4961, 5
    %v4964 = vor.u32 %v4960, %v4963
    %v4966 = vshrl.u32 %v4956, 16
    %v4968 = vrot.slane %v4966, 4
    %v4969 = vshll.u32 %v4956, 16
    %v4971 = vrot.slane %v4969, 5
    %v4972 = vor.u32 %v4968, %v4971
    %v4973 = vsel %vm201, %v4964, %v4972
    %4974 = vrot.lane.b32.xlu0 %v4973, 96
    %v4975 = vpop.permute.xlu0 %4974
    %4977 = vst.msk [vmem:[#allocation5] sm:$0xff] %vm222, %v4975
    %v4978 = vld [vmem:[#allocation3] sm:$0xe0]
    %v4979 = vld [vmem:[#allocation3 + $0x8] sm:$0x1f]
    %v4982 = vrot.slane %v4978, 5
    %v4983 = vrot.slane %v4979, 5
    %v4984 = vsel %vm228, %v4982, %v4983
    %4986 = vst.msk [vmem:[#allocation5 + $0x8] sm:$0xff] %vm159, %v4984
    %v4987 = vld [vmem:[#allocation5] sm:$0xff]
    %v4988 = vld [vmem:[#allocation5 + $0x8] sm:$0xff]
    %v4989 = vld [vmem:[%s4] sm:$0xf]
    %v4990 = vld [vmem:[%s4 + $0x4] sm:$0xf]
    %v4991 = vld [vmem:[%s4 + $0x8] sm:$0xf]
    %v4992 = vld [vmem:[%s4 + $0xc] sm:$0xf]
    %v4993 = vld [vmem:[%s4 + $0x10] sm:$0xf]
    %v4994 = vld [vmem:[%s4 + $0x14] sm:$0xf]
    %v4995 = vld [vmem:[%s4 + $0x18] sm:$0xf]
    %v4996 = vld [vmem:[%s4 + $0x1c] sm:$0xf]
    %v4997 = vld [vmem:[%s4 + $0x20] sm:$0xf]
    %v4998 = vld [vmem:[%s4 + $0x24] sm:$0xf]
    %v4999 = vld [vmem:[%s4 + $0x28] sm:$0xf]
    %v5000 = vld [vmem:[%s4 + $0x2c] sm:$0xf]
    %v5001 = vld [vmem:[%s4 + $0x30] sm:$0xf]
    %v5002 = vld [vmem:[%s4 + $0x34] sm:$0xf]
    %v5003 = vld [vmem:[%s4 + $0x38] sm:$0xf]
    %v5004 = vld [vmem:[%s4 + $0x3c] sm:$0xf]
    %v5005 = vld [vmem:[%s4 + $0x40] sm:$0xf]
    %v5006 = vld [vmem:[%s4 + $0x44] sm:$0xf]
    %v5007 = vld [vmem:[%s4 + $0x48] sm:$0xf]
    %v5008 = vld [vmem:[%s4 + $0x4c] sm:$0xf]
    %v5029 = vunpack.c.l.b16 %v4989
    %v5030 = vunpack.c.l.b16 %v4990
    %v5031 = vunpack.c.l.b16 %v4991
    %v5032 = vunpack.c.l.b16 %v4992
    %v5033 = vunpack.c.l.b16 %v4993
    %v5034 = vunpack.c.l.b16 %v4994
    %v5035 = vunpack.c.l.b16 %v4995
    %v5036 = vunpack.c.l.b16 %v4996
    %v5037 = vunpack.c.l.b16 %v4997
    %v5038 = vunpack.c.l.b16 %v4998
    %v5039 = vunpack.c.l.b16 %v4999
    %v5040 = vunpack.c.l.b16 %v5000
    %v5041 = vunpack.c.l.b16 %v5001
    %v5042 = vunpack.c.l.b16 %v5002
    %v5043 = vunpack.c.l.b16 %v5003
    %v5044 = vunpack.c.l.b16 %v5004
    %v5045 = vunpack.c.l.b16 %v5005
    %v5046 = vunpack.c.l.b16 %v5006
    %v5047 = vunpack.c.l.b16 %v5007
    %v5048 = vunpack.c.l.b16 %v5008
    %v5049 = vpack.c.b16 %v5030, %v5029
    %v5050 = vpack.c.b16 %v5032, %v5031
    %v5051 = vpack.c.b16 %v5034, %v5033
    %v5052 = vpack.c.b16 %v5036, %v5035
    %v5053 = vpack.c.b16 %v5038, %v5037
    %v5054 = vpack.c.b16 %v5040, %v5039
    %v5055 = vpack.c.b16 %v5042, %v5041
    %v5056 = vpack.c.b16 %v5044, %v5043
    %v5057 = vpack.c.b16 %v5046, %v5045
    %v5058 = vpack.c.b16 %v5048, %v5047
    %v5070 = vsel %vm159, %v4988, 0
    %5072 = vmatprep.subr.bf16.mxu0 0
    %5073 = vmatpush1.bf16.msra.mxu0 %v5049
    %5074 = vmatprep.subr.bf16.mxu0 0
    %5075 = vmatpush1.bf16.msra.mxu0 %v5050
    %5076 = vmatprep.subr.bf16.mxu0 0
    %5077 = vmatpush1.bf16.msra.mxu0 %v5051
    %5078 = vmatprep.subr.bf16.mxu0 0
    %5079 = vmatpush1.bf16.msra.mxu0 %v5052
    %5080 = vmatprep.subr.bf16.mxu0 0
    %5081 = vmatpush1.bf16.msra.mxu0 %v5053
    %5082 = vmatprep.subr.bf16.mxu0 0
    %5083 = vmatpush1.bf16.msra.mxu0 %v5054
    %5084 = vmatprep.subr.bf16.mxu0 0
    %5085 = vmatpush1.bf16.msra.mxu0 %v5055
    %5086 = vmatprep.subr.bf16.mxu0 0
    %5087 = vmatpush1.bf16.msra.mxu0 %v5056
    %5088 = vmatprep.subr.bf16.mxu0 0
    %5089 = vmatpush1.bf16.msra.mxu0 %v5057
    %5090 = vmatprep.subr.bf16.mxu0 0
    %5091 = vmatpush1.bf16.msra.mxu0 %v5058
    %5092 = vmatprep.subr.bf16.mxu0 0
    %5093 = vmatpush1.bf16.msra.mxu0 0
    %5094 = vmatprep.subr.bf16.mxu0 0
    %5095 = vmatpush1.bf16.msra.mxu0 0
    %5096 = vmatprep.subr.bf16.mxu0 0
    %5097 = vmatpush1.bf16.msra.mxu0 0
    %5098 = vmatprep.subr.bf16.mxu0 0
    %5099 = vmatpush1.bf16.msra.mxu0 0
    %5100 = vmatprep.subr.bf16.mxu0 0
    %5101 = vmatpush1.bf16.msra.mxu0 0
    %5102 = vmatprep.subr.bf16.mxu0 0
    %5103 = vmatpush1.bf16.msra.mxu0 0
    %5104 = vmatprep.mubr.bf16.mxu0 %v5070
    %5105 = vmatmul.mubr.bf16.gmra.mrb[0].mxu0 %v4987
    %v5106 = vpop.f32.mrb[0].mxu0
    %v5107 = vadd.f32 0.0, %v5106
    %v5108 = vpop.f32.mrb[0].mxu0
    %v5109 = vpop.f32.mrb[0].mxu0
    %v5110 = vadd.f32 0.0, %v5109
    %v5111 = vpop.f32.mrb[0].mxu0
    %5112 = vdwg.mxu0
    %v5113 = vld [vmem:[%s5] sm:$0x1]
    %v5115 = vlaneseq
    %v5116 = vshrl.u32 %v5115, 7
    %v5117 = vsub.s32 0, %v5116
    %v5118 = vrot.slane %v5113, %v5117
    %v5120 = vmul.f32 %v5107, %v5118
    %v5121 = vmul.f32 %v5110, %v5118
    %v5122 = vld [vmem:[%s6] sm:$0x1]
    %v5124 = vlaneseq
    %v5125 = vshrl.u32 %v5124, 7
    %v5126 = vsub.s32 0, %v5125
    %v5127 = vrot.slane %v5122, %v5126
    %v5129 = vadd.f32 %v5120, %v5127
    %v5130 = vadd.f32 %v5121, %v5127
    %v5131 = vmax.f32 %v5129, 0.0
    %v5132 = vmax.f32 %v5130, 0.0
    %v5133 = vpack.c.bf16 %v5132, %v5131
    %v5135 = vrot.slane %v5133, 4
    %5137 = vst.msk [vmem:[#allocation4] sm:$0xf0] %vm39, %v5135
    %5138 = vst.msk [vmem:[#allocation4 + $0x8] sm:$0xf] %vm37, %v5135
    %v5139 = vld [vmem:[#allocation4] sm:$0xf8]
    %v5140 = vld [vmem:[#allocation4 + $0x8] sm:$0x7]
    %v5143 = vrot.slane %v5139, 3
    %v5144 = vrot.slane %v5140, 3
    %v5145 = vsel %vm154, %v5143, %v5144
    %5147 = vst.msk [vmem:[#allocation5] sm:$0xff] %vm159, %v5145
    %v5148 = vld [vmem:[#allocation4] sm:$0xf8]
    %v5149 = vld [vmem:[#allocation4 + $0x8] sm:$0xf]
    %v5151 = vshrl.u32 %v5148, 16
    %v5153 = vrot.slane %v5151, 3
    %v5154 = vshll.u32 %v5148, 16
    %v5156 = vrot.slane %v5154, 4
    %v5157 = vor.u32 %v5153, %v5156
    %v5159 = vshrl.u32 %v5149, 16
    %v5161 = vrot.slane %v5159, 3
    %v5162 = vshll.u32 %v5149, 16
    %v5164 = vrot.slane %v5162, 4
    %v5165 = vor.u32 %v5161, %v5164
    %v5166 = vsel %vm163, %v5157, %v5165
    %5167 = vrot.lane.b32.xlu0 %v5166, 32
    %v5168 = vpop.permute.xlu0 %5167
    %5170 = vst.msk [vmem:[#allocation5] sm:$0xff] %vm184, %v5168
    %v5171 = vld [vmem:[#allocation4] sm:$0xf0]
    %v5172 = vld [vmem:[#allocation4 + $0x8] sm:$0xf]
    %v5175 = vrot.slane %v5171, 4
    %v5176 = vrot.slane %v5172, 4
    %v5177 = vsel %vm190, %v5175, %v5176
    %5178 = vrot.lane.b32.xlu0 %v5177, 64
    %v5179 = vpop.permute.xlu0 %5178
    %5181 = vst.msk [vmem:[#allocation5] sm:$0xff] %vm197, %v5179
    %v5182 = vld [vmem:[#allocation4] sm:$0xf0]
    %v5183 = vld [vmem:[#allocation4 + $0x8] sm:$0x1f]
    %v5185 = vshrl.u32 %v5182, 16
    %v5187 = vrot.slane %v5185, 4
    %v5188 = vshll.u32 %v5182, 16
    %v5190 = vrot.slane %v5188, 5
    %v5191 = vor.u32 %v5187, %v5190
    %v5193 = vshrl.u32 %v5183, 16
    %v5195 = vrot.slane %v5193, 4
    %v5196 = vshll.u32 %v5183, 16
    %v5198 = vrot.slane %v5196, 5
    %v5199 = vor.u32 %v5195, %v5198
    %v5200 = vsel %vm201, %v5191, %v5199
    %5201 = vrot.lane.b32.xlu0 %v5200, 96
    %v5202 = vpop.permute.xlu0 %5201
    %5204 = vst.msk [vmem:[#allocation5] sm:$0xff] %vm222, %v5202
    %v5205 = vld [vmem:[#allocation4] sm:$0xe0]
    %v5206 = vld [vmem:[#allocation4 + $0x8] sm:$0x1f]
    %v5209 = vrot.slane %v5205, 5
    %v5210 = vrot.slane %v5206, 5
    %v5211 = vsel %vm228, %v5209, %v5210
    %5213 = vst.msk [vmem:[#allocation5 + $0x8] sm:$0xff] %vm159, %v5211
    %v5214 = vld [vmem:[#allocation5] sm:$0xff]
    %v5215 = vld [vmem:[#allocation5 + $0x8] sm:$0xff]
    %v5216 = vld [vmem:[%s7] sm:$0xf]
    %v5217 = vld [vmem:[%s7 + $0x4] sm:$0xf]
    %v5218 = vld [vmem:[%s7 + $0x8] sm:$0xf]
    %v5219 = vld [vmem:[%s7 + $0xc] sm:$0xf]
    %v5220 = vld [vmem:[%s7 + $0x10] sm:$0xf]
    %v5221 = vld [vmem:[%s7 + $0x14] sm:$0xf]
    %v5222 = vld [vmem:[%s7 + $0x18] sm:$0xf]
    %v5223 = vld [vmem:[%s7 + $0x1c] sm:$0xf]
    %v5224 = vld [vmem:[%s7 + $0x20] sm:$0xf]
    %v5225 = vld [vmem:[%s7 + $0x24] sm:$0xf]
    %v5226 = vld [vmem:[%s7 + $0x28] sm:$0xf]
    %v5227 = vld [vmem:[%s7 + $0x2c] sm:$0xf]
    %v5228 = vld [vmem:[%s7 + $0x30] sm:$0xf]
    %v5229 = vld [vmem:[%s7 + $0x34] sm:$0xf]
    %v5230 = vld [vmem:[%s7 + $0x38] sm:$0xf]
    %v5231 = vld [vmem:[%s7 + $0x3c] sm:$0xf]
    %v5232 = vld [vmem:[%s7 + $0x40] sm:$0xf]
    %v5233 = vld [vmem:[%s7 + $0x44] sm:$0xf]
    %v5234 = vld [vmem:[%s7 + $0x48] sm:$0xf]
    %v5235 = vld [vmem:[%s7 + $0x4c] sm:$0xf]
    %v5256 = vunpack.c.l.b16 %v5216
    %v5257 = vunpack.c.l.b16 %v5217
    %v5258 = vunpack.c.l.b16 %v5218
    %v5259 = vunpack.c.l.b16 %v5219
    %v5260 = vunpack.c.l.b16 %v5220
    %v5261 = vunpack.c.l.b16 %v5221
    %v5262 = vunpack.c.l.b16 %v5222
    %v5263 = vunpack.c.l.b16 %v5223
    %v5264 = vunpack.c.l.b16 %v5224
    %v5265 = vunpack.c.l.b16 %v5225
    %v5266 = vunpack.c.l.b16 %v5226
    %v5267 = vunpack.c.l.b16 %v5227
    %v5268 = vunpack.c.l.b16 %v5228
    %v5269 = vunpack.c.l.b16 %v5229
    %v5270 = vunpack.c.l.b16 %v5230
    %v5271 = vunpack.c.l.b16 %v5231
    %v5272 = vunpack.c.l.b16 %v5232
    %v5273 = vunpack.c.l.b16 %v5233
    %v5274 = vunpack.c.l.b16 %v5234
    %v5275 = vunpack.c.l.b16 %v5235
    %v5276 = vpack.c.b16 %v5257, %v5256
    %v5277 = vpack.c.b16 %v5259, %v5258
    %v5278 = vpack.c.b16 %v5261, %v5260
    %v5279 = vpack.c.b16 %v5263, %v5262
    %v5280 = vpack.c.b16 %v5265, %v5264
    %v5281 = vpack.c.b16 %v5267, %v5266
    %v5282 = vpack.c.b16 %v5269, %v5268
    %v5283 = vpack.c.b16 %v5271, %v5270
    %v5284 = vpack.c.b16 %v5273, %v5272
    %v5285 = vpack.c.b16 %v5275, %v5274
    %v5297 = vsel %vm159, %v5215, 0
    %5299 = vmatprep.subr.bf16.mxu0 0
    %5300 = vmatpush1.bf16.msra.mxu0 %v5276
    %5301 = vmatprep.subr.bf16.mxu0 0
    %5302 = vmatpush1.bf16.msra.mxu0 %v5277
    %5303 = vmatprep.subr.bf16.mxu0 0
    %5304 = vmatpush1.bf16.msra.mxu0 %v5278
    %5305 = vmatprep.subr.bf16.mxu0 0
    %5306 = vmatpush1.bf16.msra.mxu0 %v5279
    %5307 = vmatprep.subr.bf16.mxu0 0
    %5308 = vmatpush1.bf16.msra.mxu0 %v5280
    %5309 = vmatprep.subr.bf16.mxu0 0
    %5310 = vmatpush1.bf16.msra.mxu0 %v5281
    %5311 = vmatprep.subr.bf16.mxu0 0
    %5312 = vmatpush1.bf16.msra.mxu0 %v5282
    %5313 = vmatprep.subr.bf16.mxu0 0
    %5314 = vmatpush1.bf16.msra.mxu0 %v5283
    %5315 = vmatprep.subr.bf16.mxu0 0
    %5316 = vmatpush1.bf16.msra.mxu0 %v5284
    %5317 = vmatprep.subr.bf16.mxu0 0
    %5318 = vmatpush1.bf16.msra.mxu0 %v5285
    %5319 = vmatprep.subr.bf16.mxu0 0
    %5320 = vmatpush1.bf16.msra.mxu0 0
    %5321 = vmatprep.subr.bf16.mxu0 0
    %5322 = vmatpush1.bf16.msra.mxu0 0
    %5323 = vmatprep.subr.bf16.mxu0 0
    %5324 = vmatpush1.bf16.msra.mxu0 0
    %5325 = vmatprep.subr.bf16.mxu0 0
    %5326 = vmatpush1.bf16.msra.mxu0 0
    %5327 = vmatprep.subr.bf16.mxu0 0
    %5328 = vmatpush1.bf16.msra.mxu0 0
    %5329 = vmatprep.subr.bf16.mxu0 0
    %5330 = vmatpush1.bf16.msra.mxu0 0
    %5331 = vmatprep.mubr.bf16.mxu0 %v5297
    %5332 = vmatmul.mubr.bf16.gmra.mrb[0].mxu0 %v5214
    %v5333 = vpop.f32.mrb[0].mxu0
    %v5334 = vadd.f32 0.0, %v5333
    %v5335 = vpop.f32.mrb[0].mxu0
    %v5336 = vpop.f32.mrb[0].mxu0
    %v5337 = vadd.f32 0.0, %v5336
    %v5338 = vpop.f32.mrb[0].mxu0
    %5339 = vdwg.mxu0
    %v5340 = vld [vmem:[%s8] sm:$0x1]
    %v5342 = vlaneseq
    %v5343 = vshrl.u32 %v5342, 7
    %v5344 = vsub.s32 0, %v5343
    %v5345 = vrot.slane %v5340, %v5344
    %v5347 = vmul.f32 %v5334, %v5345
    %v5348 = vmul.f32 %v5337, %v5345
    %v5349 = vld [vmem:[%s9] sm:$0x1]
    %v5351 = vlaneseq
    %v5352 = vshrl.u32 %v5351, 7
    %v5353 = vsub.s32 0, %v5352
    %v5354 = vrot.slane %v5349, %v5353
    %v5356 = vadd.f32 %v5347, %v5354
    %v5357 = vadd.f32 %v5348, %v5354
    %v5358 = vmax.f32 %v5356, 0.0
    %v5359 = vmax.f32 %v5357, 0.0
    %v5362 = vcombine.high %v5358, %v5358
    %v5364 = vunpack.c.l.s4 1966171168
    %v5365 = vunpack.c.0.s8 %v5364
    %v5366 = vlaneseq
    %v5367 = vshrl.u32 %v5366, 7
    %v5368 = vsub.s32 %v5365, %v5367
    %v5369 = vrot.slane %v5358, %v5368
    %v5371 = vunpack.c.l.s4 1966171168
    %v5372 = vunpack.c.0.s8 %v5371
    %v5373 = vlaneseq
    %v5374 = vshrl.u32 %v5373, 7
    %v5375 = vsub.s32 %v5372, %v5374
    %v5376 = vrot.slane %v5362, %v5375
    %v5377 = vcombine.high %v5369, %v5369
    %v5378 = vcombine.high %v5376, %v5376
    %v5380 = vunpack.c.l.s4 1966171168
    %v5381 = vunpack.c.0.s8 %v5380
    %v5382 = vlaneseq
    %v5383 = vshrl.u32 %v5382, 7
    %v5384 = vsub.s32 %v5381, %v5383
    %v5385 = vrot.slane %v5369, %v5384
    %v5387 = vunpack.c.l.s4 1966171168
    %v5388 = vunpack.c.0.s8 %v5387
    %v5389 = vlaneseq
    %v5390 = vshrl.u32 %v5389, 7
    %v5391 = vsub.s32 %v5388, %v5390
    %v5392 = vrot.slane %v5376, %v5391
    %v5394 = vunpack.c.l.s4 1966171168
    %v5395 = vunpack.c.0.s8 %v5394
    %v5396 = vlaneseq
    %v5397 = vshrl.u32 %v5396, 7
    %v5398 = vsub.s32 %v5395, %v5397
    %v5399 = vrot.slane %v5377, %v5398
    %v5401 = vunpack.c.l.s4 1966171168
    %v5402 = vunpack.c.0.s8 %v5401
    %v5403 = vlaneseq
    %v5404 = vshrl.u32 %v5403, 7
    %v5405 = vsub.s32 %v5402, %v5404
    %v5406 = vrot.slane %v5378, %v5405
    %v5407 = vcombine.high %v5385, %v5385
    %v5408 = vcombine.high %v5392, %v5392
    %v5409 = vcombine.high %v5399, %v5399
    %v5410 = vcombine.high %v5406, %v5406
    %v5411 = vcombine.high %v5359, %v5359
    %v5413 = vunpack.c.l.s4 1966171168
    %v5414 = vunpack.c.0.s8 %v5413
    %v5415 = vlaneseq
    %v5416 = vshrl.u32 %v5415, 7
    %v5417 = vsub.s32 %v5414, %v5416
    %v5418 = vrot.slane %v5359, %v5417
    %v5420 = vunpack.c.l.s4 1966171168
    %v5421 = vunpack.c.0.s8 %v5420
    %v5422 = vlaneseq
    %v5423 = vshrl.u32 %v5422, 7
    %v5424 = vsub.s32 %v5421, %v5423
    %v5425 = vrot.slane %v5411, %v5424
    %v5426 = vcombine.high %v5418, %v5418
    %v5427 = vcombine.high %v5425, %v5425
    %v5429 = vunpack.c.l.s4 1966171168
    %v5430 = vunpack.c.0.s8 %v5429
    %v5431 = vlaneseq
    %v5432 = vshrl.u32 %v5431, 7
    %v5433 = vsub.s32 %v5430, %v5432
    %v5434 = vrot.slane %v5418, %v5433
    %v5436 = vunpack.c.l.s4 1966171168
    %v5437 = vunpack.c.0.s8 %v5436
    %v5438 = vlaneseq
    %v5439 = vshrl.u32 %v5438, 7
    %v5440 = vsub.s32 %v5437, %v5439
    %v5441 = vrot.slane %v5425, %v5440
    %v5443 = vunpack.c.l.s4 1966171168
    %v5444 = vunpack.c.0.s8 %v5443
    %v5445 = vlaneseq
    %v5446 = vshrl.u32 %v5445, 7
    %v5447 = vsub.s32 %v5444, %v5446
    %v5448 = vrot.slane %v5426, %v5447
    %v5450 = vunpack.c.l.s4 1966171168
    %v5451 = vunpack.c.0.s8 %v5450
    %v5452 = vlaneseq
    %v5453 = vshrl.u32 %v5452, 7
    %v5454 = vsub.s32 %v5451, %v5453
    %v5455 = vrot.slane %v5427, %v5454
    %v5456 = vcombine.high %v5434, %v5434
    %v5457 = vcombine.high %v5441, %v5441
    %v5458 = vcombine.high %v5448, %v5448
    %v5459 = vcombine.high %v5455, %v5455
    %5476 = vst.msk [vmem:[#allocation6 + $0x5] sm:$0x1] %vm950, %v5385
    %5477 = vst.msk [vmem:[#allocation6 + $0xd] sm:$0x1] %vm950, %v5399
    %5478 = vst.msk [vmem:[#allocation6 + $0x15] sm:$0x1] %vm950, %v5407
    %5479 = vst.msk [vmem:[#allocation6 + $0x1d] sm:$0x1] %vm950, %v5409
    %5480 = vst.msk [vmem:[#allocation6 + $0x25] sm:$0x1] %vm950, %v5392
    %5481 = vst.msk [vmem:[#allocation6 + $0x2d] sm:$0x1] %vm950, %v5406
    %5482 = vst.msk [vmem:[#allocation6 + $0x35] sm:$0x1] %vm950, %v5408
    %5483 = vst.msk [vmem:[#allocation6 + $0x3d] sm:$0x1] %vm950, %v5410
    %5484 = vst.msk [vmem:[#allocation6 + $0x45] sm:$0x1] %vm950, %v5434
    %5485 = vst.msk [vmem:[#allocation6 + $0x4d] sm:$0x1] %vm950, %v5448
    %5486 = vst.msk [vmem:[#allocation6 + $0x55] sm:$0x1] %vm950, %v5456
    %5487 = vst.msk [vmem:[#allocation6 + $0x5d] sm:$0x1] %vm950, %v5458
    %5488 = vst.msk [vmem:[#allocation6 + $0x65] sm:$0x1] %vm950, %v5441
    %5489 = vst.msk [vmem:[#allocation6 + $0x6d] sm:$0x1] %vm950, %v5455
    %5490 = vst.msk [vmem:[#allocation6 + $0x75] sm:$0x1] %vm950, %v5457
    %5491 = vst.msk [vmem:[#allocation6 + $0x7d] sm:$0x1] %vm950, %v5459
    %v5492 = vld [vmem:[%s0 + $0x6] sm:$0x1]
    %v5493 = vld [vmem:[%s0 + $0xe] sm:$0x1]
    %v5494 = vld [vmem:[%s0 + $0x16] sm:$0x1]
    %v5495 = vld [vmem:[%s0 + $0x1e] sm:$0x1]
    %v5496 = vld [vmem:[%s0 + $0x26] sm:$0x1]
    %v5497 = vld [vmem:[%s0 + $0x2e] sm:$0x1]
    %v5498 = vld [vmem:[%s0 + $0x36] sm:$0x1]
    %v5499 = vld [vmem:[%s0 + $0x3e] sm:$0x1]
    %v5500 = vld [vmem:[%s0 + $0x46] sm:$0x1]
    %v5501 = vld [vmem:[%s0 + $0x4e] sm:$0x1]
    %v5502 = vld [vmem:[%s0 + $0x56] sm:$0x1]
    %v5503 = vld [vmem:[%s0 + $0x5e] sm:$0x1]
    %v5504 = vld [vmem:[%s0 + $0x66] sm:$0x1]
    %v5505 = vld [vmem:[%s0 + $0x6e] sm:$0x1]
    %v5506 = vld [vmem:[%s0 + $0x76] sm:$0x1]
    %v5507 = vld [vmem:[%s0 + $0x7e] sm:$0x1]
    %v5508 = vpack.c.bf16 %v5492, %v5492
    %v5509 = vpack.c.bf16 %v5493, %v5493
    %v5510 = vpack.c.bf16 %v5494, %v5494
    %v5511 = vpack.c.bf16 %v5495, %v5495
    %v5512 = vpack.c.bf16 %v5496, %v5496
    %v5513 = vpack.c.bf16 %v5497, %v5497
    %v5514 = vpack.c.bf16 %v5498, %v5498
    %v5515 = vpack.c.bf16 %v5499, %v5499
    %v5516 = vpack.c.bf16 %v5500, %v5500
    %v5517 = vpack.c.bf16 %v5501, %v5501
    %v5518 = vpack.c.bf16 %v5502, %v5502
    %v5519 = vpack.c.bf16 %v5503, %v5503
    %v5520 = vpack.c.bf16 %v5504, %v5504
    %v5521 = vpack.c.bf16 %v5505, %v5505
    %v5522 = vpack.c.bf16 %v5506, %v5506
    %v5523 = vpack.c.bf16 %v5507, %v5507
    %v5540 = vunpack.c.l.b16 %v5508
    %v5541 = vunpack.c.l.b16 %v5509
    %v5542 = vunpack.c.l.b16 %v5510
    %v5543 = vunpack.c.l.b16 %v5511
    %v5544 = vunpack.c.l.b16 %v5512
    %v5545 = vunpack.c.l.b16 %v5513
    %v5546 = vunpack.c.l.b16 %v5514
    %v5547 = vunpack.c.l.b16 %v5515
    %v5548 = vunpack.c.l.b16 %v5516
    %v5549 = vunpack.c.l.b16 %v5517
    %v5550 = vunpack.c.l.b16 %v5518
    %v5551 = vunpack.c.l.b16 %v5519
    %v5552 = vunpack.c.l.b16 %v5520
    %v5553 = vunpack.c.l.b16 %v5521
    %v5554 = vunpack.c.l.b16 %v5522
    %v5555 = vunpack.c.l.b16 %v5523
    %v5556 = vrot.slane %v5541, 7
    %v5557 = vsel %vm110, %v5556, %v5540
    %v5558 = vrot.slane %v5542, 6
    %v5559 = vsel %vm113, %v5558, %v5557
    %v5560 = vrot.slane %v5543, 5
    %v5561 = vsel %vm116, %v5560, %v5559
    %v5562 = vrot.slane %v5544, 4
    %v5563 = vsel %vm119, %v5562, %v5561
    %v5564 = vrot.slane %v5545, 3
    %v5565 = vsel %vm122, %v5564, %v5563
    %v5566 = vrot.slane %v5546, 2
    %v5567 = vsel %vm125, %v5566, %v5565
    %v5568 = vrot.slane %v5547, 1
    %v5569 = vsel %vm128, %v5568, %v5567
    %v5570 = vrot.slane %v5549, 7
    %v5571 = vsel %vm110, %v5570, %v5548
    %v5572 = vrot.slane %v5550, 6
    %v5573 = vsel %vm113, %v5572, %v5571
    %v5574 = vrot.slane %v5551, 5
    %v5575 = vsel %vm116, %v5574, %v5573
    %v5576 = vrot.slane %v5552, 4
    %v5577 = vsel %vm119, %v5576, %v5575
    %v5578 = vrot.slane %v5553, 3
    %v5579 = vsel %vm122, %v5578, %v5577
    %v5580 = vrot.slane %v5554, 2
    %v5581 = vsel %vm125, %v5580, %v5579
    %v5582 = vrot.slane %v5555, 1
    %v5583 = vsel %vm128, %v5582, %v5581
    %v5584 = vpack.c.b16 %v5569, %v5569
    %v5585 = vpack.c.b16 %v5583, %v5583
    %5588 = vst.msk [vmem:[#allocation2] sm:$0xf0] %vm39, %v5584
    %5589 = vst.msk [vmem:[#allocation2 + $0x8] sm:$0xf] %vm37, %v5585
    %v5590 = vld [vmem:[#allocation2] sm:$0xf8]
    %v5591 = vld [vmem:[#allocation2 + $0x8] sm:$0x7]
    %v5594 = vrot.slane %v5590, 3
    %v5595 = vrot.slane %v5591, 3
    %v5596 = vsel %vm154, %v5594, %v5595
    %5598 = vst.msk [vmem:[#allocation5] sm:$0xff] %vm159, %v5596
    %v5599 = vld [vmem:[#allocation2] sm:$0xf8]
    %v5600 = vld [vmem:[#allocation2 + $0x8] sm:$0xf]
    %v5602 = vshrl.u32 %v5599, 16
    %v5604 = vrot.slane %v5602, 3
    %v5605 = vshll.u32 %v5599, 16
    %v5607 = vrot.slane %v5605, 4
    %v5608 = vor.u32 %v5604, %v5607
    %v5610 = vshrl.u32 %v5600, 16
    %v5612 = vrot.slane %v5610, 3
    %v5613 = vshll.u32 %v5600, 16
    %v5615 = vrot.slane %v5613, 4
    %v5616 = vor.u32 %v5612, %v5615
    %v5617 = vsel %vm163, %v5608, %v5616
    %5618 = vrot.lane.b32.xlu0 %v5617, 32
    %v5619 = vpop.permute.xlu0 %5618
    %5621 = vst.msk [vmem:[#allocation5] sm:$0xff] %vm184, %v5619
    %v5622 = vld [vmem:[#allocation2] sm:$0xf0]
    %v5623 = vld [vmem:[#allocation2 + $0x8] sm:$0xf]
    %v5626 = vrot.slane %v5622, 4
    %v5627 = vrot.slane %v5623, 4
    %v5628 = vsel %vm190, %v5626, %v5627
    %5629 = vrot.lane.b32.xlu0 %v5628, 64
    %v5630 = vpop.permute.xlu0 %5629
    %5632 = vst.msk [vmem:[#allocation5] sm:$0xff] %vm197, %v5630
    %v5633 = vld [vmem:[#allocation2] sm:$0xf0]
    %v5634 = vld [vmem:[#allocation2 + $0x8] sm:$0x1f]
    %v5636 = vshrl.u32 %v5633, 16
    %v5638 = vrot.slane %v5636, 4
    %v5639 = vshll.u32 %v5633, 16
    %v5641 = vrot.slane %v5639, 5
    %v5642 = vor.u32 %v5638, %v5641
    %v5644 = vshrl.u32 %v5634, 16
    %v5646 = vrot.slane %v5644, 4
    %v5647 = vshll.u32 %v5634, 16
    %v5649 = vrot.slane %v5647, 5
    %v5650 = vor.u32 %v5646, %v5649
    %v5651 = vsel %vm201, %v5642, %v5650
    %5652 = vrot.lane.b32.xlu0 %v5651, 96
    %v5653 = vpop.permute.xlu0 %5652
    %5655 = vst.msk [vmem:[#allocation5] sm:$0xff] %vm222, %v5653
    %v5656 = vld [vmem:[#allocation2] sm:$0xe0]
    %v5657 = vld [vmem:[#allocation2 + $0x8] sm:$0x1f]
    %v5660 = vrot.slane %v5656, 5
    %v5661 = vrot.slane %v5657, 5
    %v5662 = vsel %vm228, %v5660, %v5661
    %5664 = vst.msk [vmem:[#allocation5 + $0x8] sm:$0xff] %vm159, %v5662
    %v5665 = vld [vmem:[#allocation5] sm:$0xff]
    %v5666 = vld [vmem:[#allocation5 + $0x8] sm:$0xff]
    %v5667 = vld [vmem:[%s1] sm:$0xf]
    %v5668 = vld [vmem:[%s1 + $0x4] sm:$0xf]
    %v5669 = vld [vmem:[%s1 + $0x8] sm:$0xf]
    %v5670 = vld [vmem:[%s1 + $0xc] sm:$0xf]
    %v5671 = vld [vmem:[%s1 + $0x10] sm:$0xf]
    %v5672 = vld [vmem:[%s1 + $0x14] sm:$0xf]
    %v5673 = vld [vmem:[%s1 + $0x18] sm:$0xf]
    %v5674 = vld [vmem:[%s1 + $0x1c] sm:$0xf]
    %v5675 = vld [vmem:[%s1 + $0x20] sm:$0xf]
    %v5676 = vld [vmem:[%s1 + $0x24] sm:$0xf]
    %v5677 = vld [vmem:[%s1 + $0x28] sm:$0xf]
    %v5678 = vld [vmem:[%s1 + $0x2c] sm:$0xf]
    %v5679 = vld [vmem:[%s1 + $0x30] sm:$0xf]
    %v5680 = vld [vmem:[%s1 + $0x34] sm:$0xf]
    %v5681 = vld [vmem:[%s1 + $0x38] sm:$0xf]
    %v5682 = vld [vmem:[%s1 + $0x3c] sm:$0xf]
    %v5683 = vld [vmem:[%s1 + $0x40] sm:$0xf]
    %v5684 = vld [vmem:[%s1 + $0x44] sm:$0xf]
    %v5685 = vld [vmem:[%s1 + $0x48] sm:$0xf]
    %v5686 = vld [vmem:[%s1 + $0x4c] sm:$0xf]
    %v5707 = vunpack.c.l.b16 %v5667
    %v5708 = vunpack.c.l.b16 %v5668
    %v5709 = vunpack.c.l.b16 %v5669
    %v5710 = vunpack.c.l.b16 %v5670
    %v5711 = vunpack.c.l.b16 %v5671
    %v5712 = vunpack.c.l.b16 %v5672
    %v5713 = vunpack.c.l.b16 %v5673
    %v5714 = vunpack.c.l.b16 %v5674
    %v5715 = vunpack.c.l.b16 %v5675
    %v5716 = vunpack.c.l.b16 %v5676
    %v5717 = vunpack.c.l.b16 %v5677
    %v5718 = vunpack.c.l.b16 %v5678
    %v5719 = vunpack.c.l.b16 %v5679
    %v5720 = vunpack.c.l.b16 %v5680
    %v5721 = vunpack.c.l.b16 %v5681
    %v5722 = vunpack.c.l.b16 %v5682
    %v5723 = vunpack.c.l.b16 %v5683
    %v5724 = vunpack.c.l.b16 %v5684
    %v5725 = vunpack.c.l.b16 %v5685
    %v5726 = vunpack.c.l.b16 %v5686
    %v5727 = vpack.c.b16 %v5708, %v5707
    %v5728 = vpack.c.b16 %v5710, %v5709
    %v5729 = vpack.c.b16 %v5712, %v5711
    %v5730 = vpack.c.b16 %v5714, %v5713
    %v5731 = vpack.c.b16 %v5716, %v5715
    %v5732 = vpack.c.b16 %v5718, %v5717
    %v5733 = vpack.c.b16 %v5720, %v5719
    %v5734 = vpack.c.b16 %v5722, %v5721
    %v5735 = vpack.c.b16 %v5724, %v5723
    %v5736 = vpack.c.b16 %v5726, %v5725
    %v5748 = vsel %vm159, %v5666, 0
    %5750 = vmatprep.subr.bf16.mxu0 0
    %5751 = vmatpush1.bf16.msra.mxu0 %v5727
    %5752 = vmatprep.subr.bf16.mxu0 0
    %5753 = vmatpush1.bf16.msra.mxu0 %v5728
    %5754 = vmatprep.subr.bf16.mxu0 0
    %5755 = vmatpush1.bf16.msra.mxu0 %v5729
    %5756 = vmatprep.subr.bf16.mxu0 0
    %5757 = vmatpush1.bf16.msra.mxu0 %v5730
    %5758 = vmatprep.subr.bf16.mxu0 0
    %5759 = vmatpush1.bf16.msra.mxu0 %v5731
    %5760 = vmatprep.subr.bf16.mxu0 0
    %5761 = vmatpush1.bf16.msra.mxu0 %v5732
    %5762 = vmatprep.subr.bf16.mxu0 0
    %5763 = vmatpush1.bf16.msra.mxu0 %v5733
    %5764 = vmatprep.subr.bf16.mxu0 0
    %5765 = vmatpush1.bf16.msra.mxu0 %v5734
    %5766 = vmatprep.subr.bf16.mxu0 0
    %5767 = vmatpush1.bf16.msra.mxu0 %v5735
    %5768 = vmatprep.subr.bf16.mxu0 0
    %5769 = vmatpush1.bf16.msra.mxu0 %v5736
    %5770 = vmatprep.subr.bf16.mxu0 0
    %5771 = vmatpush1.bf16.msra.mxu0 0
    %5772 = vmatprep.subr.bf16.mxu0 0
    %5773 = vmatpush1.bf16.msra.mxu0 0
    %5774 = vmatprep.subr.bf16.mxu0 0
    %5775 = vmatpush1.bf16.msra.mxu0 0
    %5776 = vmatprep.subr.bf16.mxu0 0
    %5777 = vmatpush1.bf16.msra.mxu0 0
    %5778 = vmatprep.subr.bf16.mxu0 0
    %5779 = vmatpush1.bf16.msra.mxu0 0
    %5780 = vmatprep.subr.bf16.mxu0 0
    %5781 = vmatpush1.bf16.msra.mxu0 0
    %5782 = vmatprep.mubr.bf16.mxu0 %v5748
    %5783 = vmatmul.mubr.bf16.gmra.mrb[0].mxu0 %v5665
    %v5784 = vpop.f32.mrb[0].mxu0
    %v5785 = vadd.f32 0.0, %v5784
    %v5786 = vpop.f32.mrb[0].mxu0
    %v5787 = vpop.f32.mrb[0].mxu0
    %v5788 = vadd.f32 0.0, %v5787
    %v5789 = vpop.f32.mrb[0].mxu0
    %5790 = vdwg.mxu0
    %v5791 = vld [vmem:[%s2] sm:$0x1]
    %v5793 = vlaneseq
    %v5794 = vshrl.u32 %v5793, 7
    %v5795 = vsub.s32 0, %v5794
    %v5796 = vrot.slane %v5791, %v5795
    %v5798 = vmul.f32 %v5785, %v5796
    %v5799 = vmul.f32 %v5788, %v5796
    %v5800 = vld [vmem:[%s3] sm:$0x1]
    %v5802 = vlaneseq
    %v5803 = vshrl.u32 %v5802, 7
    %v5804 = vsub.s32 0, %v5803
    %v5805 = vrot.slane %v5800, %v5804
    %v5807 = vadd.f32 %v5798, %v5805
    %v5808 = vadd.f32 %v5799, %v5805
    %v5809 = vmax.f32 %v5807, 0.0
    %v5810 = vmax.f32 %v5808, 0.0
    %v5811 = vpack.c.bf16 %v5810, %v5809
    %v5813 = vrot.slane %v5811, 4
    %5815 = vst.msk [vmem:[#allocation3] sm:$0xf0] %vm39, %v5813
    %5816 = vst.msk [vmem:[#allocation3 + $0x8] sm:$0xf] %vm37, %v5813
    %v5817 = vld [vmem:[#allocation3] sm:$0xf8]
    %v5818 = vld [vmem:[#allocation3 + $0x8] sm:$0x7]
    %v5821 = vrot.slane %v5817, 3
    %v5822 = vrot.slane %v5818, 3
    %v5823 = vsel %vm154, %v5821, %v5822
    %5825 = vst.msk [vmem:[#allocation5] sm:$0xff] %vm159, %v5823
    %v5826 = vld [vmem:[#allocation3] sm:$0xf8]
    %v5827 = vld [vmem:[#allocation3 + $0x8] sm:$0xf]
    %v5829 = vshrl.u32 %v5826, 16
    %v5831 = vrot.slane %v5829, 3
    %v5832 = vshll.u32 %v5826, 16
    %v5834 = vrot.slane %v5832, 4
    %v5835 = vor.u32 %v5831, %v5834
    %v5837 = vshrl.u32 %v5827, 16
    %v5839 = vrot.slane %v5837, 3
    %v5840 = vshll.u32 %v5827, 16
    %v5842 = vrot.slane %v5840, 4
    %v5843 = vor.u32 %v5839, %v5842
    %v5844 = vsel %vm163, %v5835, %v5843
    %5845 = vrot.lane.b32.xlu0 %v5844, 32
    %v5846 = vpop.permute.xlu0 %5845
    %5848 = vst.msk [vmem:[#allocation5] sm:$0xff] %vm184, %v5846
    %v5849 = vld [vmem:[#allocation3] sm:$0xf0]
    %v5850 = vld [vmem:[#allocation3 + $0x8] sm:$0xf]
    %v5853 = vrot.slane %v5849, 4
    %v5854 = vrot.slane %v5850, 4
    %v5855 = vsel %vm190, %v5853, %v5854
    %5856 = vrot.lane.b32.xlu0 %v5855, 64
    %v5857 = vpop.permute.xlu0 %5856
    %5859 = vst.msk [vmem:[#allocation5] sm:$0xff] %vm197, %v5857
    %v5860 = vld [vmem:[#allocation3] sm:$0xf0]
    %v5861 = vld [vmem:[#allocation3 + $0x8] sm:$0x1f]
    %v5863 = vshrl.u32 %v5860, 16
    %v5865 = vrot.slane %v5863, 4
    %v5866 = vshll.u32 %v5860, 16
    %v5868 = vrot.slane %v5866, 5
    %v5869 = vor.u32 %v5865, %v5868
    %v5871 = vshrl.u32 %v5861, 16
    %v5873 = vrot.slane %v5871, 4
    %v5874 = vshll.u32 %v5861, 16
    %v5876 = vrot.slane %v5874, 5
    %v5877 = vor.u32 %v5873, %v5876
    %v5878 = vsel %vm201, %v5869, %v5877
    %5879 = vrot.lane.b32.xlu0 %v5878, 96
    %v5880 = vpop.permute.xlu0 %5879
    %5882 = vst.msk [vmem:[#allocation5] sm:$0xff] %vm222, %v5880
    %v5883 = vld [vmem:[#allocation3] sm:$0xe0]
    %v5884 = vld [vmem:[#allocation3 + $0x8] sm:$0x1f]
    %v5887 = vrot.slane %v5883, 5
    %v5888 = vrot.slane %v5884, 5
    %v5889 = vsel %vm228, %v5887, %v5888
    %5891 = vst.msk [vmem:[#allocation5 + $0x8] sm:$0xff] %vm159, %v5889
    %v5892 = vld [vmem:[#allocation5] sm:$0xff]
    %v5893 = vld [vmem:[#allocation5 + $0x8] sm:$0xff]
    %v5894 = vld [vmem:[%s4] sm:$0xf]
    %v5895 = vld [vmem:[%s4 + $0x4] sm:$0xf]
    %v5896 = vld [vmem:[%s4 + $0x8] sm:$0xf]
    %v5897 = vld [vmem:[%s4 + $0xc] sm:$0xf]
    %v5898 = vld [vmem:[%s4 + $0x10] sm:$0xf]
    %v5899 = vld [vmem:[%s4 + $0x14] sm:$0xf]
    %v5900 = vld [vmem:[%s4 + $0x18] sm:$0xf]
    %v5901 = vld [vmem:[%s4 + $0x1c] sm:$0xf]
    %v5902 = vld [vmem:[%s4 + $0x20] sm:$0xf]
    %v5903 = vld [vmem:[%s4 + $0x24] sm:$0xf]
    %v5904 = vld [vmem:[%s4 + $0x28] sm:$0xf]
    %v5905 = vld [vmem:[%s4 + $0x2c] sm:$0xf]
    %v5906 = vld [vmem:[%s4 + $0x30] sm:$0xf]
    %v5907 = vld [vmem:[%s4 + $0x34] sm:$0xf]
    %v5908 = vld [vmem:[%s4 + $0x38] sm:$0xf]
    %v5909 = vld [vmem:[%s4 + $0x3c] sm:$0xf]
    %v5910 = vld [vmem:[%s4 + $0x40] sm:$0xf]
    %v5911 = vld [vmem:[%s4 + $0x44] sm:$0xf]
    %v5912 = vld [vmem:[%s4 + $0x48] sm:$0xf]
    %v5913 = vld [vmem:[%s4 + $0x4c] sm:$0xf]
    %v5934 = vunpack.c.l.b16 %v5894
    %v5935 = vunpack.c.l.b16 %v5895
    %v5936 = vunpack.c.l.b16 %v5896
    %v5937 = vunpack.c.l.b16 %v5897
    %v5938 = vunpack.c.l.b16 %v5898
    %v5939 = vunpack.c.l.b16 %v5899
    %v5940 = vunpack.c.l.b16 %v5900
    %v5941 = vunpack.c.l.b16 %v5901
    %v5942 = vunpack.c.l.b16 %v5902
    %v5943 = vunpack.c.l.b16 %v5903
    %v5944 = vunpack.c.l.b16 %v5904
    %v5945 = vunpack.c.l.b16 %v5905
    %v5946 = vunpack.c.l.b16 %v5906
    %v5947 = vunpack.c.l.b16 %v5907
    %v5948 = vunpack.c.l.b16 %v5908
    %v5949 = vunpack.c.l.b16 %v5909
    %v5950 = vunpack.c.l.b16 %v5910
    %v5951 = vunpack.c.l.b16 %v5911
    %v5952 = vunpack.c.l.b16 %v5912
    %v5953 = vunpack.c.l.b16 %v5913
    %v5954 = vpack.c.b16 %v5935, %v5934
    %v5955 = vpack.c.b16 %v5937, %v5936
    %v5956 = vpack.c.b16 %v5939, %v5938
    %v5957 = vpack.c.b16 %v5941, %v5940
    %v5958 = vpack.c.b16 %v5943, %v5942
    %v5959 = vpack.c.b16 %v5945, %v5944
    %v5960 = vpack.c.b16 %v5947, %v5946
    %v5961 = vpack.c.b16 %v5949, %v5948
    %v5962 = vpack.c.b16 %v5951, %v5950
    %v5963 = vpack.c.b16 %v5953, %v5952
    %v5975 = vsel %vm159, %v5893, 0
    %5977 = vmatprep.subr.bf16.mxu0 0
    %5978 = vmatpush1.bf16.msra.mxu0 %v5954
    %5979 = vmatprep.subr.bf16.mxu0 0
    %5980 = vmatpush1.bf16.msra.mxu0 %v5955
    %5981 = vmatprep.subr.bf16.mxu0 0
    %5982 = vmatpush1.bf16.msra.mxu0 %v5956
    %5983 = vmatprep.subr.bf16.mxu0 0
    %5984 = vmatpush1.bf16.msra.mxu0 %v5957
    %5985 = vmatprep.subr.bf16.mxu0 0
    %5986 = vmatpush1.bf16.msra.mxu0 %v5958
    %5987 = vmatprep.subr.bf16.mxu0 0
    %5988 = vmatpush1.bf16.msra.mxu0 %v5959
    %5989 = vmatprep.subr.bf16.mxu0 0
    %5990 = vmatpush1.bf16.msra.mxu0 %v5960
    %5991 = vmatprep.subr.bf16.mxu0 0
    %5992 = vmatpush1.bf16.msra.mxu0 %v5961
    %5993 = vmatprep.subr.bf16.mxu0 0
    %5994 = vmatpush1.bf16.msra.mxu0 %v5962
    %5995 = vmatprep.subr.bf16.mxu0 0
    %5996 = vmatpush1.bf16.msra.mxu0 %v5963
    %5997 = vmatprep.subr.bf16.mxu0 0
    %5998 = vmatpush1.bf16.msra.mxu0 0
    %5999 = vmatprep.subr.bf16.mxu0 0
    %6000 = vmatpush1.bf16.msra.mxu0 0
    %6001 = vmatprep.subr.bf16.mxu0 0
    %6002 = vmatpush1.bf16.msra.mxu0 0
    %6003 = vmatprep.subr.bf16.mxu0 0
    %6004 = vmatpush1.bf16.msra.mxu0 0
    %6005 = vmatprep.subr.bf16.mxu0 0
    %6006 = vmatpush1.bf16.msra.mxu0 0
    %6007 = vmatprep.subr.bf16.mxu0 0
    %6008 = vmatpush1.bf16.msra.mxu0 0
    %6009 = vmatprep.mubr.bf16.mxu0 %v5975
    %6010 = vmatmul.mubr.bf16.gmra.mrb[0].mxu0 %v5892
    %v6011 = vpop.f32.mrb[0].mxu0
    %v6012 = vadd.f32 0.0, %v6011
    %v6013 = vpop.f32.mrb[0].mxu0
    %v6014 = vpop.f32.mrb[0].mxu0
    %v6015 = vadd.f32 0.0, %v6014
    %v6016 = vpop.f32.mrb[0].mxu0
    %6017 = vdwg.mxu0
    %v6018 = vld [vmem:[%s5] sm:$0x1]
    %v6020 = vlaneseq
    %v6021 = vshrl.u32 %v6020, 7
    %v6022 = vsub.s32 0, %v6021
    %v6023 = vrot.slane %v6018, %v6022
    %v6025 = vmul.f32 %v6012, %v6023
    %v6026 = vmul.f32 %v6015, %v6023
    %v6027 = vld [vmem:[%s6] sm:$0x1]
    %v6029 = vlaneseq
    %v6030 = vshrl.u32 %v6029, 7
    %v6031 = vsub.s32 0, %v6030
    %v6032 = vrot.slane %v6027, %v6031
    %v6034 = vadd.f32 %v6025, %v6032
    %v6035 = vadd.f32 %v6026, %v6032
    %v6036 = vmax.f32 %v6034, 0.0
    %v6037 = vmax.f32 %v6035, 0.0
    %v6038 = vpack.c.bf16 %v6037, %v6036
    %v6040 = vrot.slane %v6038, 4
    %6042 = vst.msk [vmem:[#allocation4] sm:$0xf0] %vm39, %v6040
    %6043 = vst.msk [vmem:[#allocation4 + $0x8] sm:$0xf] %vm37, %v6040
    %v6044 = vld [vmem:[#allocation4] sm:$0xf8]
    %v6045 = vld [vmem:[#allocation4 + $0x8] sm:$0x7]
    %v6048 = vrot.slane %v6044, 3
    %v6049 = vrot.slane %v6045, 3
    %v6050 = vsel %vm154, %v6048, %v6049
    %6052 = vst.msk [vmem:[#allocation5] sm:$0xff] %vm159, %v6050
    %v6053 = vld [vmem:[#allocation4] sm:$0xf8]
    %v6054 = vld [vmem:[#allocation4 + $0x8] sm:$0xf]
    %v6056 = vshrl.u32 %v6053, 16
    %v6058 = vrot.slane %v6056, 3
    %v6059 = vshll.u32 %v6053, 16
    %v6061 = vrot.slane %v6059, 4
    %v6062 = vor.u32 %v6058, %v6061
    %v6064 = vshrl.u32 %v6054, 16
    %v6066 = vrot.slane %v6064, 3
    %v6067 = vshll.u32 %v6054, 16
    %v6069 = vrot.slane %v6067, 4
    %v6070 = vor.u32 %v6066, %v6069
    %v6071 = vsel %vm163, %v6062, %v6070
    %6072 = vrot.lane.b32.xlu0 %v6071, 32
    %v6073 = vpop.permute.xlu0 %6072
    %6075 = vst.msk [vmem:[#allocation5] sm:$0xff] %vm184, %v6073
    %v6076 = vld [vmem:[#allocation4] sm:$0xf0]
    %v6077 = vld [vmem:[#allocation4 + $0x8] sm:$0xf]
    %v6080 = vrot.slane %v6076, 4
    %v6081 = vrot.slane %v6077, 4
    %v6082 = vsel %vm190, %v6080, %v6081
    %6083 = vrot.lane.b32.xlu0 %v6082, 64
    %v6084 = vpop.permute.xlu0 %6083
    %6086 = vst.msk [vmem:[#allocation5] sm:$0xff] %vm197, %v6084
    %v6087 = vld [vmem:[#allocation4] sm:$0xf0]
    %v6088 = vld [vmem:[#allocation4 + $0x8] sm:$0x1f]
    %v6090 = vshrl.u32 %v6087, 16
    %v6092 = vrot.slane %v6090, 4
    %v6093 = vshll.u32 %v6087, 16
    %v6095 = vrot.slane %v6093, 5
    %v6096 = vor.u32 %v6092, %v6095
    %v6098 = vshrl.u32 %v6088, 16
    %v6100 = vrot.slane %v6098, 4
    %v6101 = vshll.u32 %v6088, 16
    %v6103 = vrot.slane %v6101, 5
    %v6104 = vor.u32 %v6100, %v6103
    %v6105 = vsel %vm201, %v6096, %v6104
    %6106 = vrot.lane.b32.xlu0 %v6105, 96
    %v6107 = vpop.permute.xlu0 %6106
    %6109 = vst.msk [vmem:[#allocation5] sm:$0xff] %vm222, %v6107
    %v6110 = vld [vmem:[#allocation4] sm:$0xe0]
    %v6111 = vld [vmem:[#allocation4 + $0x8] sm:$0x1f]
    %v6114 = vrot.slane %v6110, 5
    %v6115 = vrot.slane %v6111, 5
    %v6116 = vsel %vm228, %v6114, %v6115
    %6118 = vst.msk [vmem:[#allocation5 + $0x8] sm:$0xff] %vm159, %v6116
    %v6119 = vld [vmem:[#allocation5] sm:$0xff]
    %v6120 = vld [vmem:[#allocation5 + $0x8] sm:$0xff]
    %v6121 = vld [vmem:[%s7] sm:$0xf]
    %v6122 = vld [vmem:[%s7 + $0x4] sm:$0xf]
    %v6123 = vld [vmem:[%s7 + $0x8] sm:$0xf]
    %v6124 = vld [vmem:[%s7 + $0xc] sm:$0xf]
    %v6125 = vld [vmem:[%s7 + $0x10] sm:$0xf]
    %v6126 = vld [vmem:[%s7 + $0x14] sm:$0xf]
    %v6127 = vld [vmem:[%s7 + $0x18] sm:$0xf]
    %v6128 = vld [vmem:[%s7 + $0x1c] sm:$0xf]
    %v6129 = vld [vmem:[%s7 + $0x20] sm:$0xf]
    %v6130 = vld [vmem:[%s7 + $0x24] sm:$0xf]
    %v6131 = vld [vmem:[%s7 + $0x28] sm:$0xf]
    %v6132 = vld [vmem:[%s7 + $0x2c] sm:$0xf]
    %v6133 = vld [vmem:[%s7 + $0x30] sm:$0xf]
    %v6134 = vld [vmem:[%s7 + $0x34] sm:$0xf]
    %v6135 = vld [vmem:[%s7 + $0x38] sm:$0xf]
    %v6136 = vld [vmem:[%s7 + $0x3c] sm:$0xf]
    %v6137 = vld [vmem:[%s7 + $0x40] sm:$0xf]
    %v6138 = vld [vmem:[%s7 + $0x44] sm:$0xf]
    %v6139 = vld [vmem:[%s7 + $0x48] sm:$0xf]
    %v6140 = vld [vmem:[%s7 + $0x4c] sm:$0xf]
    %v6161 = vunpack.c.l.b16 %v6121
    %v6162 = vunpack.c.l.b16 %v6122
    %v6163 = vunpack.c.l.b16 %v6123
    %v6164 = vunpack.c.l.b16 %v6124
    %v6165 = vunpack.c.l.b16 %v6125
    %v6166 = vunpack.c.l.b16 %v6126
    %v6167 = vunpack.c.l.b16 %v6127
    %v6168 = vunpack.c.l.b16 %v6128
    %v6169 = vunpack.c.l.b16 %v6129
    %v6170 = vunpack.c.l.b16 %v6130
    %v6171 = vunpack.c.l.b16 %v6131
    %v6172 = vunpack.c.l.b16 %v6132
    %v6173 = vunpack.c.l.b16 %v6133
    %v6174 = vunpack.c.l.b16 %v6134
    %v6175 = vunpack.c.l.b16 %v6135
    %v6176 = vunpack.c.l.b16 %v6136
    %v6177 = vunpack.c.l.b16 %v6137
    %v6178 = vunpack.c.l.b16 %v6138
    %v6179 = vunpack.c.l.b16 %v6139
    %v6180 = vunpack.c.l.b16 %v6140
    %v6181 = vpack.c.b16 %v6162, %v6161
    %v6182 = vpack.c.b16 %v6164, %v6163
    %v6183 = vpack.c.b16 %v6166, %v6165
    %v6184 = vpack.c.b16 %v6168, %v6167
    %v6185 = vpack.c.b16 %v6170, %v6169
    %v6186 = vpack.c.b16 %v6172, %v6171
    %v6187 = vpack.c.b16 %v6174, %v6173
    %v6188 = vpack.c.b16 %v6176, %v6175
    %v6189 = vpack.c.b16 %v6178, %v6177
    %v6190 = vpack.c.b16 %v6180, %v6179
    %v6202 = vsel %vm159, %v6120, 0
    %6204 = vmatprep.subr.bf16.mxu0 0
    %6205 = vmatpush1.bf16.msra.mxu0 %v6181
    %6206 = vmatprep.subr.bf16.mxu0 0
    %6207 = vmatpush1.bf16.msra.mxu0 %v6182
    %6208 = vmatprep.subr.bf16.mxu0 0
    %6209 = vmatpush1.bf16.msra.mxu0 %v6183
    %6210 = vmatprep.subr.bf16.mxu0 0
    %6211 = vmatpush1.bf16.msra.mxu0 %v6184
    %6212 = vmatprep.subr.bf16.mxu0 0
    %6213 = vmatpush1.bf16.msra.mxu0 %v6185
    %6214 = vmatprep.subr.bf16.mxu0 0
    %6215 = vmatpush1.bf16.msra.mxu0 %v6186
    %6216 = vmatprep.subr.bf16.mxu0 0
    %6217 = vmatpush1.bf16.msra.mxu0 %v6187
    %6218 = vmatprep.subr.bf16.mxu0 0
    %6219 = vmatpush1.bf16.msra.mxu0 %v6188
    %6220 = vmatprep.subr.bf16.mxu0 0
    %6221 = vmatpush1.bf16.msra.mxu0 %v6189
    %6222 = vmatprep.subr.bf16.mxu0 0
    %6223 = vmatpush1.bf16.msra.mxu0 %v6190
    %6224 = vmatprep.subr.bf16.mxu0 0
    %6225 = vmatpush1.bf16.msra.mxu0 0
    %6226 = vmatprep.subr.bf16.mxu0 0
    %6227 = vmatpush1.bf16.msra.mxu0 0
    %6228 = vmatprep.subr.bf16.mxu0 0
    %6229 = vmatpush1.bf16.msra.mxu0 0
    %6230 = vmatprep.subr.bf16.mxu0 0
    %6231 = vmatpush1.bf16.msra.mxu0 0
    %6232 = vmatprep.subr.bf16.mxu0 0
    %6233 = vmatpush1.bf16.msra.mxu0 0
    %6234 = vmatprep.subr.bf16.mxu0 0
    %6235 = vmatpush1.bf16.msra.mxu0 0
    %6236 = vmatprep.mubr.bf16.mxu0 %v6202
    %6237 = vmatmul.mubr.bf16.gmra.mrb[0].mxu0 %v6119
    %v6238 = vpop.f32.mrb[0].mxu0
    %v6239 = vadd.f32 0.0, %v6238
    %v6240 = vpop.f32.mrb[0].mxu0
    %v6241 = vpop.f32.mrb[0].mxu0
    %v6242 = vadd.f32 0.0, %v6241
    %v6243 = vpop.f32.mrb[0].mxu0
    %6244 = vdwg.mxu0
    %v6245 = vld [vmem:[%s8] sm:$0x1]
    %v6247 = vlaneseq
    %v6248 = vshrl.u32 %v6247, 7
    %v6249 = vsub.s32 0, %v6248
    %v6250 = vrot.slane %v6245, %v6249
    %v6252 = vmul.f32 %v6239, %v6250
    %v6253 = vmul.f32 %v6242, %v6250
    %v6254 = vld [vmem:[%s9] sm:$0x1]
    %v6256 = vlaneseq
    %v6257 = vshrl.u32 %v6256, 7
    %v6258 = vsub.s32 0, %v6257
    %v6259 = vrot.slane %v6254, %v6258
    %v6261 = vadd.f32 %v6252, %v6259
    %v6262 = vadd.f32 %v6253, %v6259
    %v6263 = vmax.f32 %v6261, 0.0
    %v6264 = vmax.f32 %v6262, 0.0
    %v6267 = vcombine.high %v6263, %v6263
    %v6269 = vunpack.c.l.s4 1966171168
    %v6270 = vunpack.c.0.s8 %v6269
    %v6271 = vlaneseq
    %v6272 = vshrl.u32 %v6271, 7
    %v6273 = vsub.s32 %v6270, %v6272
    %v6274 = vrot.slane %v6263, %v6273
    %v6276 = vunpack.c.l.s4 1966171168
    %v6277 = vunpack.c.0.s8 %v6276
    %v6278 = vlaneseq
    %v6279 = vshrl.u32 %v6278, 7
    %v6280 = vsub.s32 %v6277, %v6279
    %v6281 = vrot.slane %v6267, %v6280
    %v6282 = vcombine.high %v6274, %v6274
    %v6283 = vcombine.high %v6281, %v6281
    %v6285 = vunpack.c.l.s4 1966171168
    %v6286 = vunpack.c.0.s8 %v6285
    %v6287 = vlaneseq
    %v6288 = vshrl.u32 %v6287, 7
    %v6289 = vsub.s32 %v6286, %v6288
    %v6290 = vrot.slane %v6274, %v6289
    %v6292 = vunpack.c.l.s4 1966171168
    %v6293 = vunpack.c.0.s8 %v6292
    %v6294 = vlaneseq
    %v6295 = vshrl.u32 %v6294, 7
    %v6296 = vsub.s32 %v6293, %v6295
    %v6297 = vrot.slane %v6281, %v6296
    %v6299 = vunpack.c.l.s4 1966171168
    %v6300 = vunpack.c.0.s8 %v6299
    %v6301 = vlaneseq
    %v6302 = vshrl.u32 %v6301, 7
    %v6303 = vsub.s32 %v6300, %v6302
    %v6304 = vrot.slane %v6282, %v6303
    %v6306 = vunpack.c.l.s4 1966171168
    %v6307 = vunpack.c.0.s8 %v6306
    %v6308 = vlaneseq
    %v6309 = vshrl.u32 %v6308, 7
    %v6310 = vsub.s32 %v6307, %v6309
    %v6311 = vrot.slane %v6283, %v6310
    %v6312 = vcombine.high %v6290, %v6290
    %v6313 = vcombine.high %v6297, %v6297
    %v6314 = vcombine.high %v6304, %v6304
    %v6315 = vcombine.high %v6311, %v6311
    %v6316 = vcombine.high %v6264, %v6264
    %v6318 = vunpack.c.l.s4 1966171168
    %v6319 = vunpack.c.0.s8 %v6318
    %v6320 = vlaneseq
    %v6321 = vshrl.u32 %v6320, 7
    %v6322 = vsub.s32 %v6319, %v6321
    %v6323 = vrot.slane %v6264, %v6322
    %v6325 = vunpack.c.l.s4 1966171168
    %v6326 = vunpack.c.0.s8 %v6325
    %v6327 = vlaneseq
    %v6328 = vshrl.u32 %v6327, 7
    %v6329 = vsub.s32 %v6326, %v6328
    %v6330 = vrot.slane %v6316, %v6329
    %v6331 = vcombine.high %v6323, %v6323
    %v6332 = vcombine.high %v6330, %v6330
    %v6334 = vunpack.c.l.s4 1966171168
    %v6335 = vunpack.c.0.s8 %v6334
    %v6336 = vlaneseq
    %v6337 = vshrl.u32 %v6336, 7
    %v6338 = vsub.s32 %v6335, %v6337
    %v6339 = vrot.slane %v6323, %v6338
    %v6341 = vunpack.c.l.s4 1966171168
    %v6342 = vunpack.c.0.s8 %v6341
    %v6343 = vlaneseq
    %v6344 = vshrl.u32 %v6343, 7
    %v6345 = vsub.s32 %v6342, %v6344
    %v6346 = vrot.slane %v6330, %v6345
    %v6348 = vunpack.c.l.s4 1966171168
    %v6349 = vunpack.c.0.s8 %v6348
    %v6350 = vlaneseq
    %v6351 = vshrl.u32 %v6350, 7
    %v6352 = vsub.s32 %v6349, %v6351
    %v6353 = vrot.slane %v6331, %v6352
    %v6355 = vunpack.c.l.s4 1966171168
    %v6356 = vunpack.c.0.s8 %v6355
    %v6357 = vlaneseq
    %v6358 = vshrl.u32 %v6357, 7
    %v6359 = vsub.s32 %v6356, %v6358
    %v6360 = vrot.slane %v6332, %v6359
    %v6361 = vcombine.high %v6339, %v6339
    %v6362 = vcombine.high %v6346, %v6346
    %v6363 = vcombine.high %v6353, %v6353
    %v6364 = vcombine.high %v6360, %v6360
    %6381 = vst.msk [vmem:[#allocation6 + $0x6] sm:$0x1] %vm950, %v6290
    %6382 = vst.msk [vmem:[#allocation6 + $0xe] sm:$0x1] %vm950, %v6304
    %6383 = vst.msk [vmem:[#allocation6 + $0x16] sm:$0x1] %vm950, %v6312
    %6384 = vst.msk [vmem:[#allocation6 + $0x1e] sm:$0x1] %vm950, %v6314
    %6385 = vst.msk [vmem:[#allocation6 + $0x26] sm:$0x1] %vm950, %v6297
    %6386 = vst.msk [vmem:[#allocation6 + $0x2e] sm:$0x1] %vm950, %v6311
    %6387 = vst.msk [vmem:[#allocation6 + $0x36] sm:$0x1] %vm950, %v6313
    %6388 = vst.msk [vmem:[#allocation6 + $0x3e] sm:$0x1] %vm950, %v6315
    %6389 = vst.msk [vmem:[#allocation6 + $0x46] sm:$0x1] %vm950, %v6339
    %6390 = vst.msk [vmem:[#allocation6 + $0x4e] sm:$0x1] %vm950, %v6353
    %6391 = vst.msk [vmem:[#allocation6 + $0x56] sm:$0x1] %vm950, %v6361
    %6392 = vst.msk [vmem:[#allocation6 + $0x5e] sm:$0x1] %vm950, %v6363
    %6393 = vst.msk [vmem:[#allocation6 + $0x66] sm:$0x1] %vm950, %v6346
    %6394 = vst.msk [vmem:[#allocation6 + $0x6e] sm:$0x1] %vm950, %v6360
    %6395 = vst.msk [vmem:[#allocation6 + $0x76] sm:$0x1] %vm950, %v6362
    %6396 = vst.msk [vmem:[#allocation6 + $0x7e] sm:$0x1] %vm950, %v6364
    %v6397 = vld [vmem:[%s0 + $0x7] sm:$0x1]
    %v6398 = vld [vmem:[%s0 + $0xf] sm:$0x1]
    %v6399 = vld [vmem:[%s0 + $0x17] sm:$0x1]
    %v6400 = vld [vmem:[%s0 + $0x1f] sm:$0x1]
    %v6401 = vld [vmem:[%s0 + $0x27] sm:$0x1]
    %v6402 = vld [vmem:[%s0 + $0x2f] sm:$0x1]
    %v6403 = vld [vmem:[%s0 + $0x37] sm:$0x1]
    %v6404 = vld [vmem:[%s0 + $0x3f] sm:$0x1]
    %v6405 = vld [vmem:[%s0 + $0x47] sm:$0x1]
    %v6406 = vld [vmem:[%s0 + $0x4f] sm:$0x1]
    %v6407 = vld [vmem:[%s0 + $0x57] sm:$0x1]
    %v6408 = vld [vmem:[%s0 + $0x5f] sm:$0x1]
    %v6409 = vld [vmem:[%s0 + $0x67] sm:$0x1]
    %v6410 = vld [vmem:[%s0 + $0x6f] sm:$0x1]
    %v6411 = vld [vmem:[%s0 + $0x77] sm:$0x1]
    %v6412 = vld [vmem:[%s0 + $0x7f] sm:$0x1]
    %v6413 = vpack.c.bf16 %v6397, %v6397
    %v6414 = vpack.c.bf16 %v6398, %v6398
    %v6415 = vpack.c.bf16 %v6399, %v6399
    %v6416 = vpack.c.bf16 %v6400, %v6400
    %v6417 = vpack.c.bf16 %v6401, %v6401
    %v6418 = vpack.c.bf16 %v6402, %v6402
    %v6419 = vpack.c.bf16 %v6403, %v6403
    %v6420 = vpack.c.bf16 %v6404, %v6404
    %v6421 = vpack.c.bf16 %v6405, %v6405
    %v6422 = vpack.c.bf16 %v6406, %v6406
    %v6423 = vpack.c.bf16 %v6407, %v6407
    %v6424 = vpack.c.bf16 %v6408, %v6408
    %v6425 = vpack.c.bf16 %v6409, %v6409
    %v6426 = vpack.c.bf16 %v6410, %v6410
    %v6427 = vpack.c.bf16 %v6411, %v6411
    %v6428 = vpack.c.bf16 %v6412, %v6412
    %v6445 = vunpack.c.l.b16 %v6413
    %v6446 = vunpack.c.l.b16 %v6414
    %v6447 = vunpack.c.l.b16 %v6415
    %v6448 = vunpack.c.l.b16 %v6416
    %v6449 = vunpack.c.l.b16 %v6417
    %v6450 = vunpack.c.l.b16 %v6418
    %v6451 = vunpack.c.l.b16 %v6419
    %v6452 = vunpack.c.l.b16 %v6420
    %v6453 = vunpack.c.l.b16 %v6421
    %v6454 = vunpack.c.l.b16 %v6422
    %v6455 = vunpack.c.l.b16 %v6423
    %v6456 = vunpack.c.l.b16 %v6424
    %v6457 = vunpack.c.l.b16 %v6425
    %v6458 = vunpack.c.l.b16 %v6426
    %v6459 = vunpack.c.l.b16 %v6427
    %v6460 = vunpack.c.l.b16 %v6428
    %v6461 = vrot.slane %v6446, 7
    %v6462 = vsel %vm110, %v6461, %v6445
    %v6463 = vrot.slane %v6447, 6
    %v6464 = vsel %vm113, %v6463, %v6462
    %v6465 = vrot.slane %v6448, 5
    %v6466 = vsel %vm116, %v6465, %v6464
    %v6467 = vrot.slane %v6449, 4
    %v6468 = vsel %vm119, %v6467, %v6466
    %v6469 = vrot.slane %v6450, 3
    %v6470 = vsel %vm122, %v6469, %v6468
    %v6471 = vrot.slane %v6451, 2
    %v6472 = vsel %vm125, %v6471, %v6470
    %v6473 = vrot.slane %v6452, 1
    %v6474 = vsel %vm128, %v6473, %v6472
    %v6475 = vrot.slane %v6454, 7
    %v6476 = vsel %vm110, %v6475, %v6453
    %v6477 = vrot.slane %v6455, 6
    %v6478 = vsel %vm113, %v6477, %v6476
    %v6479 = vrot.slane %v6456, 5
    %v6480 = vsel %vm116, %v6479, %v6478
    %v6481 = vrot.slane %v6457, 4
    %v6482 = vsel %vm119, %v6481, %v6480
    %v6483 = vrot.slane %v6458, 3
    %v6484 = vsel %vm122, %v6483, %v6482
    %v6485 = vrot.slane %v6459, 2
    %v6486 = vsel %vm125, %v6485, %v6484
    %v6487 = vrot.slane %v6460, 1
    %v6488 = vsel %vm128, %v6487, %v6486
    %v6489 = vpack.c.b16 %v6474, %v6474
    %v6490 = vpack.c.b16 %v6488, %v6488
    %6493 = vst.msk [vmem:[#allocation2] sm:$0xf0] %vm39, %v6489
    %6494 = vst.msk [vmem:[#allocation2 + $0x8] sm:$0xf] %vm37, %v6490
    %v6495 = vld [vmem:[#allocation2] sm:$0xf8]
    %v6496 = vld [vmem:[#allocation2 + $0x8] sm:$0x7]
    %v6499 = vrot.slane %v6495, 3
    %v6500 = vrot.slane %v6496, 3
    %v6501 = vsel %vm154, %v6499, %v6500
    %6503 = vst.msk [vmem:[#allocation5] sm:$0xff] %vm159, %v6501
    %v6504 = vld [vmem:[#allocation2] sm:$0xf8]
    %v6505 = vld [vmem:[#allocation2 + $0x8] sm:$0xf]
    %v6507 = vshrl.u32 %v6504, 16
    %v6509 = vrot.slane %v6507, 3
    %v6510 = vshll.u32 %v6504, 16
    %v6512 = vrot.slane %v6510, 4
    %v6513 = vor.u32 %v6509, %v6512
    %v6515 = vshrl.u32 %v6505, 16
    %v6517 = vrot.slane %v6515, 3
    %v6518 = vshll.u32 %v6505, 16
    %v6520 = vrot.slane %v6518, 4
    %v6521 = vor.u32 %v6517, %v6520
    %v6522 = vsel %vm163, %v6513, %v6521
    %6523 = vrot.lane.b32.xlu0 %v6522, 32
    %v6524 = vpop.permute.xlu0 %6523
    %6526 = vst.msk [vmem:[#allocation5] sm:$0xff] %vm184, %v6524
    %v6527 = vld [vmem:[#allocation2] sm:$0xf0]
    %v6528 = vld [vmem:[#allocation2 + $0x8] sm:$0xf]
    %v6531 = vrot.slane %v6527, 4
    %v6532 = vrot.slane %v6528, 4
    %v6533 = vsel %vm190, %v6531, %v6532
    %6534 = vrot.lane.b32.xlu0 %v6533, 64
    %v6535 = vpop.permute.xlu0 %6534
    %6537 = vst.msk [vmem:[#allocation5] sm:$0xff] %vm197, %v6535
    %v6538 = vld [vmem:[#allocation2] sm:$0xf0]
    %v6539 = vld [vmem:[#allocation2 + $0x8] sm:$0x1f]
    %v6541 = vshrl.u32 %v6538, 16
    %v6543 = vrot.slane %v6541, 4
    %v6544 = vshll.u32 %v6538, 16
    %v6546 = vrot.slane %v6544, 5
    %v6547 = vor.u32 %v6543, %v6546
    %v6549 = vshrl.u32 %v6539, 16
    %v6551 = vrot.slane %v6549, 4
    %v6552 = vshll.u32 %v6539, 16
    %v6554 = vrot.slane %v6552, 5
    %v6555 = vor.u32 %v6551, %v6554
    %v6556 = vsel %vm201, %v6547, %v6555
    %6557 = vrot.lane.b32.xlu0 %v6556, 96
    %v6558 = vpop.permute.xlu0 %6557
    %6560 = vst.msk [vmem:[#allocation5] sm:$0xff] %vm222, %v6558
    %v6561 = vld [vmem:[#allocation2] sm:$0xe0]
    %v6562 = vld [vmem:[#allocation2 + $0x8] sm:$0x1f]
    %v6565 = vrot.slane %v6561, 5
    %v6566 = vrot.slane %v6562, 5
    %v6567 = vsel %vm228, %v6565, %v6566
    %6569 = vst.msk [vmem:[#allocation5 + $0x8] sm:$0xff] %vm159, %v6567
    %v6570 = vld [vmem:[#allocation5] sm:$0xff]
    %v6571 = vld [vmem:[#allocation5 + $0x8] sm:$0xff]
    %v6572 = vld [vmem:[%s1] sm:$0xf]
    %v6573 = vld [vmem:[%s1 + $0x4] sm:$0xf]
    %v6574 = vld [vmem:[%s1 + $0x8] sm:$0xf]
    %v6575 = vld [vmem:[%s1 + $0xc] sm:$0xf]
    %v6576 = vld [vmem:[%s1 + $0x10] sm:$0xf]
    %v6577 = vld [vmem:[%s1 + $0x14] sm:$0xf]
    %v6578 = vld [vmem:[%s1 + $0x18] sm:$0xf]
    %v6579 = vld [vmem:[%s1 + $0x1c] sm:$0xf]
    %v6580 = vld [vmem:[%s1 + $0x20] sm:$0xf]
    %v6581 = vld [vmem:[%s1 + $0x24] sm:$0xf]
    %v6582 = vld [vmem:[%s1 + $0x28] sm:$0xf]
    %v6583 = vld [vmem:[%s1 + $0x2c] sm:$0xf]
    %v6584 = vld [vmem:[%s1 + $0x30] sm:$0xf]
    %v6585 = vld [vmem:[%s1 + $0x34] sm:$0xf]
    %v6586 = vld [vmem:[%s1 + $0x38] sm:$0xf]
    %v6587 = vld [vmem:[%s1 + $0x3c] sm:$0xf]
    %v6588 = vld [vmem:[%s1 + $0x40] sm:$0xf]
    %v6589 = vld [vmem:[%s1 + $0x44] sm:$0xf]
    %v6590 = vld [vmem:[%s1 + $0x48] sm:$0xf]
    %v6591 = vld [vmem:[%s1 + $0x4c] sm:$0xf]
    %v6612 = vunpack.c.l.b16 %v6572
    %v6613 = vunpack.c.l.b16 %v6573
    %v6614 = vunpack.c.l.b16 %v6574
    %v6615 = vunpack.c.l.b16 %v6575
    %v6616 = vunpack.c.l.b16 %v6576
    %v6617 = vunpack.c.l.b16 %v6577
    %v6618 = vunpack.c.l.b16 %v6578
    %v6619 = vunpack.c.l.b16 %v6579
    %v6620 = vunpack.c.l.b16 %v6580
    %v6621 = vunpack.c.l.b16 %v6581
    %v6622 = vunpack.c.l.b16 %v6582
    %v6623 = vunpack.c.l.b16 %v6583
    %v6624 = vunpack.c.l.b16 %v6584
    %v6625 = vunpack.c.l.b16 %v6585
    %v6626 = vunpack.c.l.b16 %v6586
    %v6627 = vunpack.c.l.b16 %v6587
    %v6628 = vunpack.c.l.b16 %v6588
    %v6629 = vunpack.c.l.b16 %v6589
    %v6630 = vunpack.c.l.b16 %v6590
    %v6631 = vunpack.c.l.b16 %v6591
    %v6632 = vpack.c.b16 %v6613, %v6612
    %v6633 = vpack.c.b16 %v6615, %v6614
    %v6634 = vpack.c.b16 %v6617, %v6616
    %v6635 = vpack.c.b16 %v6619, %v6618
    %v6636 = vpack.c.b16 %v6621, %v6620
    %v6637 = vpack.c.b16 %v6623, %v6622
    %v6638 = vpack.c.b16 %v6625, %v6624
    %v6639 = vpack.c.b16 %v6627, %v6626
    %v6640 = vpack.c.b16 %v6629, %v6628
    %v6641 = vpack.c.b16 %v6631, %v6630
    %v6653 = vsel %vm159, %v6571, 0
    %6655 = vmatprep.subr.bf16.mxu0 0
    %6656 = vmatpush1.bf16.msra.mxu0 %v6632
    %6657 = vmatprep.subr.bf16.mxu0 0
    %6658 = vmatpush1.bf16.msra.mxu0 %v6633
    %6659 = vmatprep.subr.bf16.mxu0 0
    %6660 = vmatpush1.bf16.msra.mxu0 %v6634
    %6661 = vmatprep.subr.bf16.mxu0 0
    %6662 = vmatpush1.bf16.msra.mxu0 %v6635
    %6663 = vmatprep.subr.bf16.mxu0 0
    %6664 = vmatpush1.bf16.msra.mxu0 %v6636
    %6665 = vmatprep.subr.bf16.mxu0 0
    %6666 = vmatpush1.bf16.msra.mxu0 %v6637
    %6667 = vmatprep.subr.bf16.mxu0 0
    %6668 = vmatpush1.bf16.msra.mxu0 %v6638
    %6669 = vmatprep.subr.bf16.mxu0 0
    %6670 = vmatpush1.bf16.msra.mxu0 %v6639
    %6671 = vmatprep.subr.bf16.mxu0 0
    %6672 = vmatpush1.bf16.msra.mxu0 %v6640
    %6673 = vmatprep.subr.bf16.mxu0 0
    %6674 = vmatpush1.bf16.msra.mxu0 %v6641
    %6675 = vmatprep.subr.bf16.mxu0 0
    %6676 = vmatpush1.bf16.msra.mxu0 0
    %6677 = vmatprep.subr.bf16.mxu0 0
    %6678 = vmatpush1.bf16.msra.mxu0 0
    %6679 = vmatprep.subr.bf16.mxu0 0
    %6680 = vmatpush1.bf16.msra.mxu0 0
    %6681 = vmatprep.subr.bf16.mxu0 0
    %6682 = vmatpush1.bf16.msra.mxu0 0
    %6683 = vmatprep.subr.bf16.mxu0 0
    %6684 = vmatpush1.bf16.msra.mxu0 0
    %6685 = vmatprep.subr.bf16.mxu0 0
    %6686 = vmatpush1.bf16.msra.mxu0 0
    %6687 = vmatprep.mubr.bf16.mxu0 %v6653
    %6688 = vmatmul.mubr.bf16.gmra.mrb[0].mxu0 %v6570
    %v6689 = vpop.f32.mrb[0].mxu0
    %v6690 = vadd.f32 0.0, %v6689
    %v6691 = vpop.f32.mrb[0].mxu0
    %v6692 = vpop.f32.mrb[0].mxu0
    %v6693 = vadd.f32 0.0, %v6692
    %v6694 = vpop.f32.mrb[0].mxu0
    %6695 = vdwg.mxu0
    %v6696 = vld [vmem:[%s2] sm:$0x1]
    %v6698 = vlaneseq
    %v6699 = vshrl.u32 %v6698, 7
    %v6700 = vsub.s32 0, %v6699
    %v6701 = vrot.slane %v6696, %v6700
    %v6703 = vmul.f32 %v6690, %v6701
    %v6704 = vmul.f32 %v6693, %v6701
    %v6705 = vld [vmem:[%s3] sm:$0x1]
    %v6707 = vlaneseq
    %v6708 = vshrl.u32 %v6707, 7
    %v6709 = vsub.s32 0, %v6708
    %v6710 = vrot.slane %v6705, %v6709
    %v6712 = vadd.f32 %v6703, %v6710
    %v6713 = vadd.f32 %v6704, %v6710
    %v6714 = vmax.f32 %v6712, 0.0
    %v6715 = vmax.f32 %v6713, 0.0
    %v6716 = vpack.c.bf16 %v6715, %v6714
    %v6718 = vrot.slane %v6716, 4
    %6720 = vst.msk [vmem:[#allocation3] sm:$0xf0] %vm39, %v6718
    %6721 = vst.msk [vmem:[#allocation3 + $0x8] sm:$0xf] %vm37, %v6718
    %v6722 = vld [vmem:[#allocation3] sm:$0xf8]
    %v6723 = vld [vmem:[#allocation3 + $0x8] sm:$0x7]
    %v6726 = vrot.slane %v6722, 3
    %v6727 = vrot.slane %v6723, 3
    %v6728 = vsel %vm154, %v6726, %v6727
    %6730 = vst.msk [vmem:[#allocation5] sm:$0xff] %vm159, %v6728
    %v6731 = vld [vmem:[#allocation3] sm:$0xf8]
    %v6732 = vld [vmem:[#allocation3 + $0x8] sm:$0xf]
    %v6734 = vshrl.u32 %v6731, 16
    %v6736 = vrot.slane %v6734, 3
    %v6737 = vshll.u32 %v6731, 16
    %v6739 = vrot.slane %v6737, 4
    %v6740 = vor.u32 %v6736, %v6739
    %v6742 = vshrl.u32 %v6732, 16
    %v6744 = vrot.slane %v6742, 3
    %v6745 = vshll.u32 %v6732, 16
    %v6747 = vrot.slane %v6745, 4
    %v6748 = vor.u32 %v6744, %v6747
    %v6749 = vsel %vm163, %v6740, %v6748
    %6750 = vrot.lane.b32.xlu0 %v6749, 32
    %v6751 = vpop.permute.xlu0 %6750
    %6753 = vst.msk [vmem:[#allocation5] sm:$0xff] %vm184, %v6751
    %v6754 = vld [vmem:[#allocation3] sm:$0xf0]
    %v6755 = vld [vmem:[#allocation3 + $0x8] sm:$0xf]
    %v6758 = vrot.slane %v6754, 4
    %v6759 = vrot.slane %v6755, 4
    %v6760 = vsel %vm190, %v6758, %v6759
    %6761 = vrot.lane.b32.xlu0 %v6760, 64
    %v6762 = vpop.permute.xlu0 %6761
    %6764 = vst.msk [vmem:[#allocation5] sm:$0xff] %vm197, %v6762
    %v6765 = vld [vmem:[#allocation3] sm:$0xf0]
    %v6766 = vld [vmem:[#allocation3 + $0x8] sm:$0x1f]
    %v6768 = vshrl.u32 %v6765, 16
    %v6770 = vrot.slane %v6768, 4
    %v6771 = vshll.u32 %v6765, 16
    %v6773 = vrot.slane %v6771, 5
    %v6774 = vor.u32 %v6770, %v6773
    %v6776 = vshrl.u32 %v6766, 16
    %v6778 = vrot.slane %v6776, 4
    %v6779 = vshll.u32 %v6766, 16
    %v6781 = vrot.slane %v6779, 5
    %v6782 = vor.u32 %v6778, %v6781
    %v6783 = vsel %vm201, %v6774, %v6782
    %6784 = vrot.lane.b32.xlu0 %v6783, 96
    %v6785 = vpop.permute.xlu0 %6784
    %6787 = vst.msk [vmem:[#allocation5] sm:$0xff] %vm222, %v6785
    %v6788 = vld [vmem:[#allocation3] sm:$0xe0]
    %v6789 = vld [vmem:[#allocation3 + $0x8] sm:$0x1f]
    %v6792 = vrot.slane %v6788, 5
    %v6793 = vrot.slane %v6789, 5
    %v6794 = vsel %vm228, %v6792, %v6793
    %6796 = vst.msk [vmem:[#allocation5 + $0x8] sm:$0xff] %vm159, %v6794
    %v6797 = vld [vmem:[#allocation5] sm:$0xff]
    %v6798 = vld [vmem:[#allocation5 + $0x8] sm:$0xff]
    %v6799 = vld [vmem:[%s4] sm:$0xf]
    %v6800 = vld [vmem:[%s4 + $0x4] sm:$0xf]
    %v6801 = vld [vmem:[%s4 + $0x8] sm:$0xf]
    %v6802 = vld [vmem:[%s4 + $0xc] sm:$0xf]
    %v6803 = vld [vmem:[%s4 + $0x10] sm:$0xf]
    %v6804 = vld [vmem:[%s4 + $0x14] sm:$0xf]
    %v6805 = vld [vmem:[%s4 + $0x18] sm:$0xf]
    %v6806 = vld [vmem:[%s4 + $0x1c] sm:$0xf]
    %v6807 = vld [vmem:[%s4 + $0x20] sm:$0xf]
    %v6808 = vld [vmem:[%s4 + $0x24] sm:$0xf]
    %v6809 = vld [vmem:[%s4 + $0x28] sm:$0xf]
    %v6810 = vld [vmem:[%s4 + $0x2c] sm:$0xf]
    %v6811 = vld [vmem:[%s4 + $0x30] sm:$0xf]
    %v6812 = vld [vmem:[%s4 + $0x34] sm:$0xf]
    %v6813 = vld [vmem:[%s4 + $0x38] sm:$0xf]
    %v6814 = vld [vmem:[%s4 + $0x3c] sm:$0xf]
    %v6815 = vld [vmem:[%s4 + $0x40] sm:$0xf]
    %v6816 = vld [vmem:[%s4 + $0x44] sm:$0xf]
    %v6817 = vld [vmem:[%s4 + $0x48] sm:$0xf]
    %v6818 = vld [vmem:[%s4 + $0x4c] sm:$0xf]
    %v6839 = vunpack.c.l.b16 %v6799
    %v6840 = vunpack.c.l.b16 %v6800
    %v6841 = vunpack.c.l.b16 %v6801
    %v6842 = vunpack.c.l.b16 %v6802
    %v6843 = vunpack.c.l.b16 %v6803
    %v6844 = vunpack.c.l.b16 %v6804
    %v6845 = vunpack.c.l.b16 %v6805
    %v6846 = vunpack.c.l.b16 %v6806
    %v6847 = vunpack.c.l.b16 %v6807
    %v6848 = vunpack.c.l.b16 %v6808
    %v6849 = vunpack.c.l.b16 %v6809
    %v6850 = vunpack.c.l.b16 %v6810
    %v6851 = vunpack.c.l.b16 %v6811
    %v6852 = vunpack.c.l.b16 %v6812
    %v6853 = vunpack.c.l.b16 %v6813
    %v6854 = vunpack.c.l.b16 %v6814
    %v6855 = vunpack.c.l.b16 %v6815
    %v6856 = vunpack.c.l.b16 %v6816
    %v6857 = vunpack.c.l.b16 %v6817
    %v6858 = vunpack.c.l.b16 %v6818
    %v6859 = vpack.c.b16 %v6840, %v6839
    %v6860 = vpack.c.b16 %v6842, %v6841
    %v6861 = vpack.c.b16 %v6844, %v6843
    %v6862 = vpack.c.b16 %v6846, %v6845
    %v6863 = vpack.c.b16 %v6848, %v6847
    %v6864 = vpack.c.b16 %v6850, %v6849
    %v6865 = vpack.c.b16 %v6852, %v6851
    %v6866 = vpack.c.b16 %v6854, %v6853
    %v6867 = vpack.c.b16 %v6856, %v6855
    %v6868 = vpack.c.b16 %v6858, %v6857
    %v6880 = vsel %vm159, %v6798, 0
    %6882 = vmatprep.subr.bf16.mxu0 0
    %6883 = vmatpush1.bf16.msra.mxu0 %v6859
    %6884 = vmatprep.subr.bf16.mxu0 0
    %6885 = vmatpush1.bf16.msra.mxu0 %v6860
    %6886 = vmatprep.subr.bf16.mxu0 0
    %6887 = vmatpush1.bf16.msra.mxu0 %v6861
    %6888 = vmatprep.subr.bf16.mxu0 0
    %6889 = vmatpush1.bf16.msra.mxu0 %v6862
    %6890 = vmatprep.subr.bf16.mxu0 0
    %6891 = vmatpush1.bf16.msra.mxu0 %v6863
    %6892 = vmatprep.subr.bf16.mxu0 0
    %6893 = vmatpush1.bf16.msra.mxu0 %v6864
    %6894 = vmatprep.subr.bf16.mxu0 0
    %6895 = vmatpush1.bf16.msra.mxu0 %v6865
    %6896 = vmatprep.subr.bf16.mxu0 0
    %6897 = vmatpush1.bf16.msra.mxu0 %v6866
    %6898 = vmatprep.subr.bf16.mxu0 0
    %6899 = vmatpush1.bf16.msra.mxu0 %v6867
    %6900 = vmatprep.subr.bf16.mxu0 0
    %6901 = vmatpush1.bf16.msra.mxu0 %v6868
    %6902 = vmatprep.subr.bf16.mxu0 0
    %6903 = vmatpush1.bf16.msra.mxu0 0
    %6904 = vmatprep.subr.bf16.mxu0 0
    %6905 = vmatpush1.bf16.msra.mxu0 0
    %6906 = vmatprep.subr.bf16.mxu0 0
    %6907 = vmatpush1.bf16.msra.mxu0 0
    %6908 = vmatprep.subr.bf16.mxu0 0
    %6909 = vmatpush1.bf16.msra.mxu0 0
    %6910 = vmatprep.subr.bf16.mxu0 0
    %6911 = vmatpush1.bf16.msra.mxu0 0
    %6912 = vmatprep.subr.bf16.mxu0 0
    %6913 = vmatpush1.bf16.msra.mxu0 0
    %6914 = vmatprep.mubr.bf16.mxu0 %v6880
    %6915 = vmatmul.mubr.bf16.gmra.mrb[0].mxu0 %v6797
    %v6916 = vpop.f32.mrb[0].mxu0
    %v6917 = vadd.f32 0.0, %v6916
    %v6918 = vpop.f32.mrb[0].mxu0
    %v6919 = vpop.f32.mrb[0].mxu0
    %v6920 = vadd.f32 0.0, %v6919
    %v6921 = vpop.f32.mrb[0].mxu0
    %6922 = vdwg.mxu0
    %v6923 = vld [vmem:[%s5] sm:$0x1]
    %v6925 = vlaneseq
    %v6926 = vshrl.u32 %v6925, 7
    %v6927 = vsub.s32 0, %v6926
    %v6928 = vrot.slane %v6923, %v6927
    %v6930 = vmul.f32 %v6917, %v6928
    %v6931 = vmul.f32 %v6920, %v6928
    %v6932 = vld [vmem:[%s6] sm:$0x1]
    %v6934 = vlaneseq
    %v6935 = vshrl.u32 %v6934, 7
    %v6936 = vsub.s32 0, %v6935
    %v6937 = vrot.slane %v6932, %v6936
    %v6939 = vadd.f32 %v6930, %v6937
    %v6940 = vadd.f32 %v6931, %v6937
    %v6941 = vmax.f32 %v6939, 0.0
    %v6942 = vmax.f32 %v6940, 0.0
    %v6943 = vpack.c.bf16 %v6942, %v6941
    %v6945 = vrot.slane %v6943, 4
    %6947 = vst.msk [vmem:[#allocation4] sm:$0xf0] %vm39, %v6945
    %6948 = vst.msk [vmem:[#allocation4 + $0x8] sm:$0xf] %vm37, %v6945
    %v6949 = vld [vmem:[#allocation4] sm:$0xf8]
    %v6950 = vld [vmem:[#allocation4 + $0x8] sm:$0x7]
    %v6953 = vrot.slane %v6949, 3
    %v6954 = vrot.slane %v6950, 3
    %v6955 = vsel %vm154, %v6953, %v6954
    %6957 = vst.msk [vmem:[#allocation5] sm:$0xff] %vm159, %v6955
    %v6958 = vld [vmem:[#allocation4] sm:$0xf8]
    %v6959 = vld [vmem:[#allocation4 + $0x8] sm:$0xf]
    %v6961 = vshrl.u32 %v6958, 16
    %v6963 = vrot.slane %v6961, 3
    %v6964 = vshll.u32 %v6958, 16
    %v6966 = vrot.slane %v6964, 4
    %v6967 = vor.u32 %v6963, %v6966
    %v6969 = vshrl.u32 %v6959, 16
    %v6971 = vrot.slane %v6969, 3
    %v6972 = vshll.u32 %v6959, 16
    %v6974 = vrot.slane %v6972, 4
    %v6975 = vor.u32 %v6971, %v6974
    %v6976 = vsel %vm163, %v6967, %v6975
    %6977 = vrot.lane.b32.xlu0 %v6976, 32
    %v6978 = vpop.permute.xlu0 %6977
    %6980 = vst.msk [vmem:[#allocation5] sm:$0xff] %vm184, %v6978
    %v6981 = vld [vmem:[#allocation4] sm:$0xf0]
    %v6982 = vld [vmem:[#allocation4 + $0x8] sm:$0xf]
    %v6985 = vrot.slane %v6981, 4
    %v6986 = vrot.slane %v6982, 4
    %v6987 = vsel %vm190, %v6985, %v6986
    %6988 = vrot.lane.b32.xlu0 %v6987, 64
    %v6989 = vpop.permute.xlu0 %6988
    %6991 = vst.msk [vmem:[#allocation5] sm:$0xff] %vm197, %v6989
    %v6992 = vld [vmem:[#allocation4] sm:$0xf0]
    %v6993 = vld [vmem:[#allocation4 + $0x8] sm:$0x1f]
    %v6995 = vshrl.u32 %v6992, 16
    %v6997 = vrot.slane %v6995, 4
    %v6998 = vshll.u32 %v6992, 16
    %v7000 = vrot.slane %v6998, 5
    %v7001 = vor.u32 %v6997, %v7000
    %v7003 = vshrl.u32 %v6993, 16
    %v7005 = vrot.slane %v7003, 4
    %v7006 = vshll.u32 %v6993, 16
    %v7008 = vrot.slane %v7006, 5
    %v7009 = vor.u32 %v7005, %v7008
    %v7010 = vsel %vm201, %v7001, %v7009
    %7011 = vrot.lane.b32.xlu0 %v7010, 96
    %v7012 = vpop.permute.xlu0 %7011
    %7014 = vst.msk [vmem:[#allocation5] sm:$0xff] %vm222, %v7012
    %v7015 = vld [vmem:[#allocation4] sm:$0xe0]
    %v7016 = vld [vmem:[#allocation4 + $0x8] sm:$0x1f]
    %v7019 = vrot.slane %v7015, 5
    %v7020 = vrot.slane %v7016, 5
    %v7021 = vsel %vm228, %v7019, %v7020
    %7023 = vst.msk [vmem:[#allocation5 + $0x8] sm:$0xff] %vm159, %v7021
    %v7024 = vld [vmem:[#allocation5] sm:$0xff]
    %v7025 = vld [vmem:[#allocation5 + $0x8] sm:$0xff]
    %v7026 = vld [vmem:[%s7] sm:$0xf]
    %v7027 = vld [vmem:[%s7 + $0x4] sm:$0xf]
    %v7028 = vld [vmem:[%s7 + $0x8] sm:$0xf]
    %v7029 = vld [vmem:[%s7 + $0xc] sm:$0xf]
    %v7030 = vld [vmem:[%s7 + $0x10] sm:$0xf]
    %v7031 = vld [vmem:[%s7 + $0x14] sm:$0xf]
    %v7032 = vld [vmem:[%s7 + $0x18] sm:$0xf]
    %v7033 = vld [vmem:[%s7 + $0x1c] sm:$0xf]
    %v7034 = vld [vmem:[%s7 + $0x20] sm:$0xf]
    %v7035 = vld [vmem:[%s7 + $0x24] sm:$0xf]
    %v7036 = vld [vmem:[%s7 + $0x28] sm:$0xf]
    %v7037 = vld [vmem:[%s7 + $0x2c] sm:$0xf]
    %v7038 = vld [vmem:[%s7 + $0x30] sm:$0xf]
    %v7039 = vld [vmem:[%s7 + $0x34] sm:$0xf]
    %v7040 = vld [vmem:[%s7 + $0x38] sm:$0xf]
    %v7041 = vld [vmem:[%s7 + $0x3c] sm:$0xf]
    %v7042 = vld [vmem:[%s7 + $0x40] sm:$0xf]
    %v7043 = vld [vmem:[%s7 + $0x44] sm:$0xf]
    %v7044 = vld [vmem:[%s7 + $0x48] sm:$0xf]
    %v7045 = vld [vmem:[%s7 + $0x4c] sm:$0xf]
    %v7066 = vunpack.c.l.b16 %v7026
    %v7067 = vunpack.c.l.b16 %v7027
    %v7068 = vunpack.c.l.b16 %v7028
    %v7069 = vunpack.c.l.b16 %v7029
    %v7070 = vunpack.c.l.b16 %v7030
    %v7071 = vunpack.c.l.b16 %v7031
    %v7072 = vunpack.c.l.b16 %v7032
    %v7073 = vunpack.c.l.b16 %v7033
    %v7074 = vunpack.c.l.b16 %v7034
    %v7075 = vunpack.c.l.b16 %v7035
    %v7076 = vunpack.c.l.b16 %v7036
    %v7077 = vunpack.c.l.b16 %v7037
    %v7078 = vunpack.c.l.b16 %v7038
    %v7079 = vunpack.c.l.b16 %v7039
    %v7080 = vunpack.c.l.b16 %v7040
    %v7081 = vunpack.c.l.b16 %v7041
    %v7082 = vunpack.c.l.b16 %v7042
    %v7083 = vunpack.c.l.b16 %v7043
    %v7084 = vunpack.c.l.b16 %v7044
    %v7085 = vunpack.c.l.b16 %v7045
    %v7086 = vpack.c.b16 %v7067, %v7066
    %v7087 = vpack.c.b16 %v7069, %v7068
    %v7088 = vpack.c.b16 %v7071, %v7070
    %v7089 = vpack.c.b16 %v7073, %v7072
    %v7090 = vpack.c.b16 %v7075, %v7074
    %v7091 = vpack.c.b16 %v7077, %v7076
    %v7092 = vpack.c.b16 %v7079, %v7078
    %v7093 = vpack.c.b16 %v7081, %v7080
    %v7094 = vpack.c.b16 %v7083, %v7082
    %v7095 = vpack.c.b16 %v7085, %v7084
    %v7107 = vsel %vm159, %v7025, 0
    %7109 = vmatprep.subr.bf16.mxu0 0
    %7110 = vmatpush1.bf16.msra.mxu0 %v7086
    %7111 = vmatprep.subr.bf16.mxu0 0
    %7112 = vmatpush1.bf16.msra.mxu0 %v7087
    %7113 = vmatprep.subr.bf16.mxu0 0
    %7114 = vmatpush1.bf16.msra.mxu0 %v7088
    %7115 = vmatprep.subr.bf16.mxu0 0
    %7116 = vmatpush1.bf16.msra.mxu0 %v7089
    %7117 = vmatprep.subr.bf16.mxu0 0
    %7118 = vmatpush1.bf16.msra.mxu0 %v7090
    %7119 = vmatprep.subr.bf16.mxu0 0
    %7120 = vmatpush1.bf16.msra.mxu0 %v7091
    %7121 = vmatprep.subr.bf16.mxu0 0
    %7122 = vmatpush1.bf16.msra.mxu0 %v7092
    %7123 = vmatprep.subr.bf16.mxu0 0
    %7124 = vmatpush1.bf16.msra.mxu0 %v7093
    %7125 = vmatprep.subr.bf16.mxu0 0
    %7126 = vmatpush1.bf16.msra.mxu0 %v7094
    %7127 = vmatprep.subr.bf16.mxu0 0
    %7128 = vmatpush1.bf16.msra.mxu0 %v7095
    %7129 = vmatprep.subr.bf16.mxu0 0
    %7130 = vmatpush1.bf16.msra.mxu0 0
    %7131 = vmatprep.subr.bf16.mxu0 0
    %7132 = vmatpush1.bf16.msra.mxu0 0
    %7133 = vmatprep.subr.bf16.mxu0 0
    %7134 = vmatpush1.bf16.msra.mxu0 0
    %7135 = vmatprep.subr.bf16.mxu0 0
    %7136 = vmatpush1.bf16.msra.mxu0 0
    %7137 = vmatprep.subr.bf16.mxu0 0
    %7138 = vmatpush1.bf16.msra.mxu0 0
    %7139 = vmatprep.subr.bf16.mxu0 0
    %7140 = vmatpush1.bf16.msra.mxu0 0
    %7141 = vmatprep.mubr.bf16.mxu0 %v7107
    %7142 = vmatmul.mubr.bf16.gmra.mrb[0].mxu0 %v7024
    %v7143 = vpop.f32.mrb[0].mxu0
    %v7144 = vadd.f32 0.0, %v7143
    %v7145 = vpop.f32.mrb[0].mxu0
    %v7146 = vpop.f32.mrb[0].mxu0
    %v7147 = vadd.f32 0.0, %v7146
    %v7148 = vpop.f32.mrb[0].mxu0
    %7149 = vdwg.mxu0
    %v7150 = vld [vmem:[%s8] sm:$0x1]
    %v7152 = vlaneseq
    %v7153 = vshrl.u32 %v7152, 7
    %v7154 = vsub.s32 0, %v7153
    %v7155 = vrot.slane %v7150, %v7154
    %v7157 = vmul.f32 %v7144, %v7155
    %v7158 = vmul.f32 %v7147, %v7155
    %v7159 = vld [vmem:[%s9] sm:$0x1]
    %v7161 = vlaneseq
    %v7162 = vshrl.u32 %v7161, 7
    %v7163 = vsub.s32 0, %v7162
    %v7164 = vrot.slane %v7159, %v7163
    %v7166 = vadd.f32 %v7157, %v7164
    %v7167 = vadd.f32 %v7158, %v7164
    %v7168 = vmax.f32 %v7166, 0.0
    %v7169 = vmax.f32 %v7167, 0.0
    %v7172 = vcombine.high %v7168, %v7168
    %v7174 = vunpack.c.l.s4 1966171168
    %v7175 = vunpack.c.0.s8 %v7174
    %v7176 = vlaneseq
    %v7177 = vshrl.u32 %v7176, 7
    %v7178 = vsub.s32 %v7175, %v7177
    %v7179 = vrot.slane %v7168, %v7178
    %v7181 = vunpack.c.l.s4 1966171168
    %v7182 = vunpack.c.0.s8 %v7181
    %v7183 = vlaneseq
    %v7184 = vshrl.u32 %v7183, 7
    %v7185 = vsub.s32 %v7182, %v7184
    %v7186 = vrot.slane %v7172, %v7185
    %v7187 = vcombine.high %v7179, %v7179
    %v7188 = vcombine.high %v7186, %v7186
    %v7190 = vunpack.c.l.s4 1966171168
    %v7191 = vunpack.c.0.s8 %v7190
    %v7192 = vlaneseq
    %v7193 = vshrl.u32 %v7192, 7
    %v7194 = vsub.s32 %v7191, %v7193
    %v7195 = vrot.slane %v7179, %v7194
    %v7197 = vunpack.c.l.s4 1966171168
    %v7198 = vunpack.c.0.s8 %v7197
    %v7199 = vlaneseq
    %v7200 = vshrl.u32 %v7199, 7
    %v7201 = vsub.s32 %v7198, %v7200
    %v7202 = vrot.slane %v7186, %v7201
    %v7204 = vunpack.c.l.s4 1966171168
    %v7205 = vunpack.c.0.s8 %v7204
    %v7206 = vlaneseq
    %v7207 = vshrl.u32 %v7206, 7
    %v7208 = vsub.s32 %v7205, %v7207
    %v7209 = vrot.slane %v7187, %v7208
    %v7211 = vunpack.c.l.s4 1966171168
    %v7212 = vunpack.c.0.s8 %v7211
    %v7213 = vlaneseq
    %v7214 = vshrl.u32 %v7213, 7
    %v7215 = vsub.s32 %v7212, %v7214
    %v7216 = vrot.slane %v7188, %v7215
    %v7217 = vcombine.high %v7195, %v7195
    %v7218 = vcombine.high %v7202, %v7202
    %v7219 = vcombine.high %v7209, %v7209
    %v7220 = vcombine.high %v7216, %v7216
    %v7221 = vcombine.high %v7169, %v7169
    %v7223 = vunpack.c.l.s4 1966171168
    %v7224 = vunpack.c.0.s8 %v7223
    %v7225 = vlaneseq
    %v7226 = vshrl.u32 %v7225, 7
    %v7227 = vsub.s32 %v7224, %v7226
    %v7228 = vrot.slane %v7169, %v7227
    %v7230 = vunpack.c.l.s4 1966171168
    %v7231 = vunpack.c.0.s8 %v7230
    %v7232 = vlaneseq
    %v7233 = vshrl.u32 %v7232, 7
    %v7234 = vsub.s32 %v7231, %v7233
    %v7235 = vrot.slane %v7221, %v7234
    %v7236 = vcombine.high %v7228, %v7228
    %v7237 = vcombine.high %v7235, %v7235
    %v7239 = vunpack.c.l.s4 1966171168
    %v7240 = vunpack.c.0.s8 %v7239
    %v7241 = vlaneseq
    %v7242 = vshrl.u32 %v7241, 7
    %v7243 = vsub.s32 %v7240, %v7242
    %v7244 = vrot.slane %v7228, %v7243
    %v7246 = vunpack.c.l.s4 1966171168
    %v7247 = vunpack.c.0.s8 %v7246
    %v7248 = vlaneseq
    %v7249 = vshrl.u32 %v7248, 7
    %v7250 = vsub.s32 %v7247, %v7249
    %v7251 = vrot.slane %v7235, %v7250
    %v7253 = vunpack.c.l.s4 1966171168
    %v7254 = vunpack.c.0.s8 %v7253
    %v7255 = vlaneseq
    %v7256 = vshrl.u32 %v7255, 7
    %v7257 = vsub.s32 %v7254, %v7256
    %v7258 = vrot.slane %v7236, %v7257
    %v7260 = vunpack.c.l.s4 1966171168
    %v7261 = vunpack.c.0.s8 %v7260
    %v7262 = vlaneseq
    %v7263 = vshrl.u32 %v7262, 7
    %v7264 = vsub.s32 %v7261, %v7263
    %v7265 = vrot.slane %v7237, %v7264
    %v7266 = vcombine.high %v7244, %v7244
    %v7267 = vcombine.high %v7251, %v7251
    %v7268 = vcombine.high %v7258, %v7258
    %v7269 = vcombine.high %v7265, %v7265
    %7286 = vst.msk [vmem:[#allocation6 + $0x7] sm:$0x1] %vm950, %v7195
    %7287 = vst.msk [vmem:[#allocation6 + $0xf] sm:$0x1] %vm950, %v7209
    %7288 = vst.msk [vmem:[#allocation6 + $0x17] sm:$0x1] %vm950, %v7217
    %7289 = vst.msk [vmem:[#allocation6 + $0x1f] sm:$0x1] %vm950, %v7219
    %7290 = vst.msk [vmem:[#allocation6 + $0x27] sm:$0x1] %vm950, %v7202
    %7291 = vst.msk [vmem:[#allocation6 + $0x2f] sm:$0x1] %vm950, %v7216
    %7292 = vst.msk [vmem:[#allocation6 + $0x37] sm:$0x1] %vm950, %v7218
    %7293 = vst.msk [vmem:[#allocation6 + $0x3f] sm:$0x1] %vm950, %v7220
    %7294 = vst.msk [vmem:[#allocation6 + $0x47] sm:$0x1] %vm950, %v7244
    %7295 = vst.msk [vmem:[#allocation6 + $0x4f] sm:$0x1] %vm950, %v7258
    %7296 = vst.msk [vmem:[#allocation6 + $0x57] sm:$0x1] %vm950, %v7266
    %7297 = vst.msk [vmem:[#allocation6 + $0x5f] sm:$0x1] %vm950, %v7268
    %7298 = vst.msk [vmem:[#allocation6 + $0x67] sm:$0x1] %vm950, %v7251
    %7299 = vst.msk [vmem:[#allocation6 + $0x6f] sm:$0x1] %vm950, %v7265
    %7300 = vst.msk [vmem:[#allocation6 + $0x77] sm:$0x1] %vm950, %v7267
    %7301 = vst.msk [vmem:[#allocation6 + $0x7f] sm:$0x1] %vm950, %v7269
    // Predicated region
    $region42: #{tpu_custom_call.1} parent=1 // pred_check
      _
    $region43: #{tpu_custom_call.1} parent=1 // pred_check_branch
      %7303 = sbr.rel (0) target = $region45
    $region44: #{tpu_custom_call.1} parent=1 // pred_region
      %s7305 = ssub.s32 2048, 2048
      %7306 = vsyncadd [#allocation7], %s7305
      %s7307 = sshll.u32 [#allocation6], 4
      %s7308 = int_to_ptr.vmem [resolvable:$true] %s7307
      %7313 = dma.vmem_to_hbm [thread:$0]  %s7308, 2048, %s10, [#allocation7], 128, 128, 8
    $region45: #{tpu_custom_call.1} parent=1 // pred_fallthru
      _
    // Predicated region
    $region46: #{tpu_custom_call.1} parent=1 // pred_check
      _
    $region47: #{tpu_custom_call.1} parent=1 // pred_check_branch
      %7315 = sbr.rel (0) target = $region49
    $region48: #{tpu_custom_call.1} parent=1 // pred_region
      %7316 = dma.done [#allocation7], 2048
    $region49: #{tpu_custom_call.1} parent=1 // pred_fallthru
      _
    %7317 = vsyncpa [#allocation7], 1

</llo_original>
